<compile_context>
chip_gen: v7x
topology: tpu7x:2x2x1
jax: 0.10.0
libtpu: 0.0.40
codegen_flags: <defaults>
</compile_context>

<pallas_src>
import functools

import jax
import jax.numpy as jnp
from jax import lax
from jax.experimental import pallas as pl
from jax.experimental.pallas import tpu as pltpu


def _pick_tile(dim, target, align):
    """Largest tile <= target that divides `dim` and is a multiple of `align`.
    The full dim (always a legal block size) is the fallback."""
    if dim <= target:
        return dim
    t = (target // align) * align
    while t >= align:
        if dim % t == 0:
            return t
        t -= align
    return dim


# ----------------------------------------------------------------------------
# Kernel 1: tiled dense linear layer (used for c_attn and c_proj)
# ----------------------------------------------------------------------------
def _linear_kernel(x_ref, w_ref, b_ref, o_ref, acc_ref):
    k = pl.program_id(2)

    @pl.when(k == 0)
    def _init():
        acc_ref[...] = jnp.zeros(acc_ref.shape, acc_ref.dtype)

    acc_ref[...] += jnp.dot(x_ref[...], w_ref[...],
                            preferred_element_type=jnp.float32)

    @pl.when(k == pl.num_programs(2) - 1)
    def _finalize():
        o_ref[...] = (acc_ref[...] + b_ref[...].astype(jnp.float32)).astype(o_ref.dtype)


def linear(x, w, b, *, tm=256, tn=256, tk=512):
    M, K = x.shape
    N = w.shape[1]
    tm = _pick_tile(M, tm, 8)
    tn = _pick_tile(N, tn, 128)
    tk = _pick_tile(K, tk, 128)
    grid = (M // tm, N // tn, K // tk)
    itemsize = jnp.dtype(x.dtype).itemsize
    cost = pl.CostEstimate(
        flops=2 * M * N * K,
        transcendentals=0,
        bytes_accessed=int(itemsize * (M * K * (N // tn) + K * N * (M // tm) + 2 * M * N)),
    )
    return pl.pallas_call(
        _linear_kernel,
        out_shape=jax.ShapeDtypeStruct((M, N), x.dtype),
        grid_spec=pltpu.PrefetchScalarGridSpec(
            num_scalar_prefetch=0,
            grid=grid,
            in_specs=[
                pl.BlockSpec((tm, tk), lambda i, j, k: (i, k)),
                pl.BlockSpec((tk, tn), lambda i, j, k: (k, j)),
                pl.BlockSpec((1, tn), lambda i, j, k: (0, j)),
            ],
            out_specs=pl.BlockSpec((tm, tn), lambda i, j, k: (i, j)),
            scratch_shapes=[pltpu.VMEM((tm, tn), jnp.float32)],
        ),
        compiler_params=pltpu.CompilerParams(
            dimension_semantics=("parallel", "parallel", "arbitrary")),
        cost_estimate=cost,
    )(x, w, b.reshape(1, N))


# ----------------------------------------------------------------------------
# Kernel 2: flash-attention core (online softmax, fp32 accumulators)
#   grid = (batch, head, q_tile, kv_tile); kv_tile is the reduction axis.
# ----------------------------------------------------------------------------
def _flash_attn_kernel(q_ref, k_ref, v_ref, o_ref, m_ref, l_ref, acc_ref,
                       *, scale, kv_axis):
    ki = pl.program_id(kv_axis)

    @pl.when(ki == 0)
    def _init():
        m_ref[...] = jnp.full(m_ref.shape, -jnp.inf, m_ref.dtype)
        l_ref[...] = jnp.zeros(l_ref.shape, l_ref.dtype)
        acc_ref[...] = jnp.zeros(acc_ref.shape, acc_ref.dtype)

    tq, hd = q_ref.shape[-2], q_ref.shape[-1]
    tkv = k_ref.shape[-2]

    # Fold softmax scale into q (S*D multiplies instead of S*S).
    q = q_ref[...].reshape(tq, hd) * scale
    k = k_ref[...].reshape(tkv, hd)
    v = v_ref[...].reshape(tkv, hd)

    # scores = q @ k^T, contracting last dims (no explicit transpose of k),
    # accumulated in fp32 (attention_softmax_in_fp32=True).
    s = lax.dot_general(q, k, (((1,), (1,)), ((), ())),
                        preferred_element_type=jnp.float32)  # (tq, tkv)

    m_prev = m_ref[...]
    m_new = jnp.maximum(m_prev, jnp.max(s, axis=-1, keepdims=True))
    alpha = jnp.exp(m_prev - m_new)
    p = jnp.exp(s - m_new)

    l_ref[...] = alpha * l_ref[...] + jnp.sum(p, axis=-1, keepdims=True)
    acc_ref[...] = alpha * acc_ref[...] + lax.dot_general(
        p.astype(v.dtype), v, (((1,), (0,)), ((), ())),
        preferred_element_type=jnp.float32)
    m_ref[...] = m_new

    @pl.when(ki == pl.num_programs(kv_axis) - 1)
    def _finalize():
        out = acc_ref[...] * pl.reciprocal(l_ref[...], approx=True)
        o_ref[...] = out.astype(o_ref.dtype).reshape(o_ref.shape)


def mha_flash_attention(qkv, *, batch, seq, num_heads, head_dim, scale,
                        out_dtype, tq=256, tkv=512):
    """qkv: (batch*seq, 3*hidden) fused c_attn output, MHA layout
    [q_h0|k_h0|v_h0|q_h1|...] along the last dim. Returns (batch, seq, hidden)."""
    B, S, nh, hd = batch, seq, num_heads, head_dim
    H = nh * hd
    tq = _pick_tile(S, tq, 8)
    tkv = _pick_tile(S, tkv, 8)
    nq, nk = S // tq, S // tkv
    grid = (B, nh, nq, nk)
    kernel = functools.partial(_flash_attn_kernel, scale=scale, kv_axis=3)
    scratch = [pltpu.VMEM((tq, 1), jnp.float32),
               pltpu.VMEM((tq, 1), jnp.float32),
               pltpu.VMEM((tq, hd), jnp.float32)]
    itemsize = jnp.dtype(qkv.dtype).itemsize
    cost = pl.CostEstimate(
        flops=4 * B * nh * S * S * hd,
        transcendentals=B * nh * S * S,
        bytes_accessed=int(itemsize * (2 * B * S * H + 2 * B * S * H * nq)),
    )
    cparams = pltpu.CompilerParams(
        dimension_semantics=("parallel", "parallel", "parallel", "arbitrary"))

    if hd % 128 == 0:
        # Fast path: DMA q/k/v blocks straight out of the fused qkv tensor and
        # write the output head-packed (lane-dense) into (B, S, H).
        qkv3 = qkv.reshape(B, S, 3 * H)
        out = pl.pallas_call(
            kernel,
            out_shape=jax.ShapeDtypeStruct((B, S, H), out_dtype),
            grid_spec=pltpu.PrefetchScalarGridSpec(
                num_scalar_prefetch=0,
                grid=grid,
                in_specs=[
                    pl.BlockSpec((1, tq, hd), lambda b, h, qi, ki: (b, qi, 3 * h)),
                    pl.BlockSpec((1, tkv, hd), lambda b, h, qi, ki: (b, ki, 3 * h + 1)),
                    pl.BlockSpec((1, tkv, hd), lambda b, h, qi, ki: (b, ki, 3 * h + 2)),
                ],
                out_specs=pl.BlockSpec((1, tq, hd), lambda b, h, qi, ki: (b, qi, h)),
                scratch_shapes=scratch,
            ),
            compiler_params=cparams,
            cost_estimate=cost,
        )(qkv3, qkv3, qkv3)
        return out  # already (B, S, H); no merge-heads transpose needed

    # Fallback for head_dim not a multiple of 128: explicit split/transpose
    # (extra HBM passes, but always legal w.r.t. the (8,128) block rule).
    qkv4 = jnp.transpose(qkv.reshape(B, S, nh, 3 * hd), (0, 2, 1, 3))  # (B, nh, S, 3hd)
    q, k, v = jnp.split(qkv4, 3, axis=-1)                              # (B, nh, S, hd)
    out = pl.pallas_call(
        kernel,
        out_shape=jax.ShapeDtypeStruct((B, nh, S, hd), out_dtype),
        grid_spec=pltpu.PrefetchScalarGridSpec(
            num_scalar_prefetch=0,
            grid=grid,
            in_specs=[
                pl.BlockSpec((1, 1, tq, hd), lambda b, h, qi, ki: (b, h, qi, 0)),
                pl.BlockSpec((1, 1, tkv, hd), lambda b, h, qi, ki: (b, h, ki, 0)),
                pl.BlockSpec((1, 1, tkv, hd), lambda b, h, qi, ki: (b, h, ki, 0)),
            ],
            out_specs=pl.BlockSpec((1, 1, tq, hd), lambda b, h, qi, ki: (b, h, qi, 0)),
            scratch_shapes=scratch,
        ),
        compiler_params=cparams,
        cost_estimate=cost,
    )(q, k, v)
    return jnp.transpose(out, (0, 2, 1, 3)).reshape(B, S, H)


# ----------------------------------------------------------------------------
# Full Attention.forward (MHA path, attention_mask=None)
# ----------------------------------------------------------------------------
# TODO(synk): GQA / MQA head types, RoPE, KV-cache update, attention_mask and
#             dropout (attn_pdrop/resid_pdrop > 0) are not implemented here.
@functools.partial(jax.jit, static_argnames=("num_heads",))
def attention_forward(hidden_states, params, *, num_heads):
    B, S, H = hidden_states.shape
    head_dim = H // num_heads
    softmax_scale = 1.0 / (head_dim ** 0.5)  # scale_attn_weights=True, multiplier=None

    # c_attn: (B*S, H) -> (B*S, 3H)
    x2d = hidden_states.reshape(B * S, H)
    qkv = linear(x2d, params["c_attn_w"], params["c_attn_b"])

    # attention core (flash): reads q/k/v directly from the fused qkv tensor
    attn_out = mha_flash_attention(
        qkv, batch=B, seq=S, num_heads=num_heads, head_dim=head_dim,
        scale=softmax_scale, out_dtype=hidden_states.dtype)  # (B, S, H)

    # c_proj
    out = linear(attn_out.reshape(B * S, H), params["c_proj_w"], params["c_proj_b"])
    return out.reshape(B, S, H)


# ----------------------------------------------------------------------------
# Pure JAX reference for correctness check
# ----------------------------------------------------------------------------
def attention_reference(hidden_states, params, *, num_heads):
    B, S, H = hidden_states.shape
    head_dim = H // num_heads
    scale = 1.0 / (head_dim ** 0.5)

    qkv = hidden_states @ params["c_attn_w"] + params["c_attn_b"]
    qkv = qkv.reshape(B, S, num_heads, 3 * head_dim).transpose(0, 2, 1, 3)
    q, k, v = jnp.split(qkv, 3, axis=-1)

    scores = jnp.einsum("bhqd,bhkd->bhqk", q, k).astype(jnp.float32) * scale
    p = jax.nn.softmax(scores, axis=-1).astype(hidden_states.dtype)
    o = jnp.einsum("bhqk,bhkd->bhqd", p, v)
    o = o.transpose(0, 2, 1, 3).reshape(B, S, H)
    return o @ params["c_proj_w"] + params["c_proj_b"]


def _make_case(key, B, S, H):
    k_x, k_w1, k_b1, k_w2, k_b2 = jax.random.split(key, 5)
    hidden_states = jax.random.normal(k_x, (B, S, H), dtype=jnp.float32)
    params = {
        # stored as (in, out) == PyTorch weight.T
        "c_attn_w": jax.random.normal(k_w1, (H, 3 * H), dtype=jnp.float32) * 0.05,
        "c_attn_b": jax.random.normal(k_b1, (3 * H,), dtype=jnp.float32) * 0.05,
        "c_proj_w": jax.random.normal(k_w2, (H, H), dtype=jnp.float32) * 0.05,
        "c_proj_b": jax.random.normal(k_b2, (H,), dtype=jnp.float32) * 0.05,
    }
    return hidden_states, params


if __name__ == "__main__":
    key = jax.random.PRNGKey(0)
    key1, key2 = jax.random.split(key)

    # Case 1: n_embd=256, n_head=2 -> head_dim=128 (lane-dense fused-qkv path)
    B, S, H, NH = 2, 256, 256, 2
    x, params = _make_case(key1, B, S, H)
    out = jax.block_until_ready(attention_forward(x, params, num_heads=NH))
    ref = jax.block_until_ready(attention_reference(x, params, num_heads=NH))
    assert out.shape == (B, S, H), out.shape
    assert jnp.allclose(out, ref, atol=5e-3, rtol=5e-3), "mismatch vs reference (case 1)"

    # Case 2: n_embd=128, n_head=2 -> head_dim=64 (fallback split path)
    B2, S2, H2, NH2 = 2, 64, 128, 2
    x2, params2 = _make_case(key2, B2, S2, H2)
    out2 = jax.block_until_ready(attention_forward(x2, params2, num_heads=NH2))
    ref2 = jax.block_until_ready(attention_reference(x2, params2, num_heads=NH2))
    assert out2.shape == (B2, S2, H2), out2.shape
    assert jnp.allclose(out2, ref2, atol=5e-3, rtol=5e-3), "mismatch vs reference (case 2)"

    print("KERNEL_OK")
</pallas_src>

<mosaic_0001>
module attributes {stable_mosaic.version = 11 : i64} {
  func.func @_flash_attn_kernel(%arg0: i32, %arg1: i32, %arg2: i32, %arg3: i32, %arg4: memref<1x256x128xf32, #tpu.memory_space<vmem>>, %arg5: memref<1x256x128xf32, #tpu.memory_space<vmem>>, %arg6: memref<1x256x128xf32, #tpu.memory_space<vmem>>, %arg7: memref<1x256x128xf32, #tpu.memory_space<vmem>>, %arg8: memref<256x1xf32, #tpu.memory_space<vmem>>, %arg9: memref<256x1xf32, #tpu.memory_space<vmem>>, %arg10: memref<256x128xf32, #tpu.memory_space<vmem>>) attributes {dimension_semantics = [#tpu.dimension_semantics<parallel>, #tpu.dimension_semantics<parallel>, #tpu.dimension_semantics<parallel>, #tpu.dimension_semantics<arbitrary>], iteration_bounds = array<i64: 2, 2, 1, 1>, scalar_prefetch = 0 : i64, scratch_operands = 3 : i64, tpu.core_type = #tpu.core_type<tc>, window_params = [{transform_indices = @transform_0, window_bounds = array<i64: 1, 256, 128>}, {transform_indices = @transform_1, window_bounds = array<i64: 1, 256, 128>}, {transform_indices = @transform_2, window_bounds = array<i64: 1, 256, 128>}, {transform_indices = @transform_3, window_bounds = array<i64: 1, 256, 128>}]} {
    %c0_i32 = arith.constant 0 : i32
    %0 = arith.cmpi eq, %arg3, %c0_i32 : i32
    %1 = arith.extui %0 : i1 to i32
    %c0_i32_0 = arith.constant 0 : i32
    %2 = arith.cmpi ne, %1, %c0_i32_0 : i32
    scf.if %2 {
      %cst_27 = arith.constant 0xFF800000 : f32
      %37 = vector.broadcast %cst_27 : f32 to vector<256x1xf32>
      %c0_28 = arith.constant 0 : index
      %c0_29 = arith.constant 0 : index
      %38 = vector.load %arg8[%c0_28, %c0_29] : memref<256x1xf32, #tpu.memory_space<vmem>>, vector<256x1xf32>
      tpu.vector_store %arg8[%c0_28, %c0_29], %37 {strides = array<i32>} : memref<256x1xf32, #tpu.memory_space<vmem>>, vector<256x1xf32>,
      %cst_30 = arith.constant 0.000000e+00 : f32
      %39 = vector.broadcast %cst_30 : f32 to vector<256x1xf32>
      %c0_31 = arith.constant 0 : index
      %c0_32 = arith.constant 0 : index
      %40 = vector.load %arg9[%c0_31, %c0_32] : memref<256x1xf32, #tpu.memory_space<vmem>>, vector<256x1xf32>
      tpu.vector_store %arg9[%c0_31, %c0_32], %39 {strides = array<i32>} : memref<256x1xf32, #tpu.memory_space<vmem>>, vector<256x1xf32>,
      %cst_33 = arith.constant 0.000000e+00 : f32
      %41 = vector.broadcast %cst_33 : f32 to vector<256x128xf32>
      %c0_34 = arith.constant 0 : index
      %c0_35 = arith.constant 0 : index
      %42 = vector.load %arg10[%c0_34, %c0_35] : memref<256x128xf32, #tpu.memory_space<vmem>>, vector<256x128xf32>
      tpu.vector_store %arg10[%c0_34, %c0_35], %41 {strides = array<i32>} : memref<256x128xf32, #tpu.memory_space<vmem>>, vector<256x128xf32>,
    } else {
    }
    %c0 = arith.constant 0 : index
    %c0_1 = arith.constant 0 : index
    %c0_2 = arith.constant 0 : index
    %3 = vector.load %arg4[%c0, %c0_1, %c0_2] : memref<1x256x128xf32, #tpu.memory_space<vmem>>, vector<1x256x128xf32>
    %4 = vector.shape_cast %3 : vector<1x256x128xf32> to vector<256x128xf32>
    %cst = arith.constant 0.0883883461 : f32
    %5 = vector.broadcast %cst : f32 to vector<256x128xf32>
    %6 = arith.mulf %4, %5 : vector<256x128xf32>
    %c0_3 = arith.constant 0 : index
    %c0_4 = arith.constant 0 : index
    %c0_5 = arith.constant 0 : index
    %7 = vector.load %arg5[%c0_3, %c0_4, %c0_5] : memref<1x256x128xf32, #tpu.memory_space<vmem>>, vector<1x256x128xf32>
    %8 = vector.shape_cast %7 : vector<1x256x128xf32> to vector<256x128xf32>
    %c0_6 = arith.constant 0 : index
    %c0_7 = arith.constant 0 : index
    %c0_8 = arith.constant 0 : index
    %9 = vector.load %arg6[%c0_6, %c0_7, %c0_8] : memref<1x256x128xf32, #tpu.memory_space<vmem>>, vector<1x256x128xf32>
    %10 = vector.shape_cast %9 : vector<1x256x128xf32> to vector<256x128xf32>
    %cst_9 = arith.constant dense<0.000000e+00> : vector<256x256xf32>
    %11 = tpu.matmul %6, %8, %cst_9 {dimension_numbers = #tpu.dot_dimension_numbers<[1], [1], [0], [0], [0, 0, 1, 0], [], []>} : vector<256x128xf32>, vector<256x128xf32>, vector<256x256xf32> -> vector<256x256xf32>
    %c0_10 = arith.constant 0 : index
    %c0_11 = arith.constant 0 : index
    %12 = vector.load %arg8[%c0_10, %c0_11] : memref<256x1xf32, #tpu.memory_space<vmem>>, vector<256x1xf32>
    %cst_12 = arith.constant dense<0xFF800000> : vector<256xf32>
    %13 = vector.multi_reduction <maximumf>, %11, %cst_12 [1] : vector<256x256xf32> to vector<256xf32>
    %14 = vector.shape_cast %13 : vector<256xf32> to vector<256x1xf32>
    %15 = arith.maximumf %12, %14 : vector<256x1xf32>
    %16 = arith.subf %12, %15 : vector<256x1xf32>
    %17 = math.exp %16 : vector<256x1xf32>
    %18 = vector.broadcast %15 : vector<256x1xf32> to vector<256x256xf32>
    %19 = arith.subf %11, %18 : vector<256x256xf32>
    %20 = math.exp %19 : vector<256x256xf32>
    %c0_13 = arith.constant 0 : index
    %c0_14 = arith.constant 0 : index
    %21 = vector.load %arg9[%c0_13, %c0_14] : memref<256x1xf32, #tpu.memory_space<vmem>>, vector<256x1xf32>
    %22 = arith.mulf %17, %21 : vector<256x1xf32>
    %cst_15 = arith.constant dense<0.000000e+00> : vector<256xf32>
    %23 = vector.multi_reduction <add>, %20, %cst_15 [1] : vector<256x256xf32> to vector<256xf32>
    %24 = vector.shape_cast %23 : vector<256xf32> to vector<256x1xf32>
    %25 = arith.addf %22, %24 : vector<256x1xf32>
    %c0_16 = arith.constant 0 : index
    %c0_17 = arith.constant 0 : index
    %26 = vector.load %arg9[%c0_16, %c0_17] : memref<256x1xf32, #tpu.memory_space<vmem>>, vector<256x1xf32>
    tpu.vector_store %arg9[%c0_16, %c0_17], %25 {strides = array<i32>} : memref<256x1xf32, #tpu.memory_space<vmem>>, vector<256x1xf32>,
    %c0_18 = arith.constant 0 : index
    %c0_19 = arith.constant 0 : index
    %27 = vector.load %arg10[%c0_18, %c0_19] : memref<256x128xf32, #tpu.memory_space<vmem>>, vector<256x128xf32>
    %28 = vector.broadcast %17 : vector<256x1xf32> to vector<256x128xf32>
    %29 = arith.mulf %28, %27 : vector<256x128xf32>
    %cst_20 = arith.constant dense<0.000000e+00> : vector<256x128xf32>
    %30 = tpu.matmul %20, %10, %cst_20 {dimension_numbers = #tpu.dot_dimension_numbers<[1], [0], [0], [1], [0, 0, 1, 1], [], []>} : vector<256x256xf32>, vector<256x128xf32>, vector<256x128xf32> -> vector<256x128xf32>
    %31 = arith.addf %29, %30 : vector<256x128xf32>
    %c0_21 = arith.constant 0 : index
    %c0_22 = arith.constant 0 : index
    %32 = vector.load %arg10[%c0_21, %c0_22] : memref<256x128xf32, #tpu.memory_space<vmem>>, vector<256x128xf32>
    tpu.vector_store %arg10[%c0_21, %c0_22], %31 {strides = array<i32>} : memref<256x128xf32, #tpu.memory_space<vmem>>, vector<256x128xf32>,
    %c0_23 = arith.constant 0 : index
    %c0_24 = arith.constant 0 : index
    %33 = vector.load %arg8[%c0_23, %c0_24] : memref<256x1xf32, #tpu.memory_space<vmem>>, vector<256x1xf32>
    tpu.vector_store %arg8[%c0_23, %c0_24], %15 {strides = array<i32>} : memref<256x1xf32, #tpu.memory_space<vmem>>, vector<256x1xf32>,
    %c0_i32_25 = arith.constant 0 : i32
    %34 = arith.cmpi eq, %arg3, %c0_i32_25 : i32
    %35 = arith.extui %34 : i1 to i32
    %c0_i32_26 = arith.constant 0 : i32
    %36 = arith.cmpi ne, %35, %c0_i32_26 : i32
    scf.if %36 {
      %c0_27 = arith.constant 0 : index
      %c0_28 = arith.constant 0 : index
      %37 = vector.load %arg10[%c0_27, %c0_28] : memref<256x128xf32, #tpu.memory_space<vmem>>, vector<256x128xf32>
      %c0_29 = arith.constant 0 : index
      %c0_30 = arith.constant 0 : index
      %38 = vector.load %arg9[%c0_29, %c0_30] : memref<256x1xf32, #tpu.memory_space<vmem>>, vector<256x1xf32>
      %39 = tpu.reciprocal %38 {approx = true} : vector<256x1xf32> -> vector<256x1xf32>
      %40 = vector.broadcast %39 : vector<256x1xf32> to vector<256x128xf32>
      %41 = arith.mulf %37, %40 : vector<256x128xf32>
      %42 = vector.shape_cast %41 : vector<256x128xf32> to vector<1x256x128xf32>
      %c0_31 = arith.constant 0 : index
      %c0_32 = arith.constant 0 : index
      %c0_33 = arith.constant 0 : index
      %43 = vector.load %arg7[%c0_31, %c0_32, %c0_33] : memref<1x256x128xf32, #tpu.memory_space<vmem>>, vector<1x256x128xf32>
      tpu.vector_store %arg7[%c0_31, %c0_32, %c0_33], %42 {strides = array<i32>} : memref<1x256x128xf32, #tpu.memory_space<vmem>>, vector<1x256x128xf32>,
    } else {
    }
    return
  }
  func.func @transform_0(%arg0: i32, %arg1: i32, %arg2: i32, %arg3: i32) -> (i32, i32, i32) {
    %c3_i32 = arith.constant 3 : i32
    %0 = arith.muli %c3_i32, %arg1 : i32
    %c0_i32 = arith.constant 0 : i32
    return %arg0, %arg2, %0 : i32, i32, i32
  }
  func.func @transform_1(%arg0: i32, %arg1: i32, %arg2: i32, %arg3: i32) -> (i32, i32, i32) {
    %c3_i32 = arith.constant 3 : i32
    %0 = arith.muli %c3_i32, %arg1 : i32
    %c1_i32 = arith.constant 1 : i32
    %1 = arith.addi %0, %c1_i32 : i32
    %c0_i32 = arith.constant 0 : i32
    return %arg0, %arg3, %1 : i32, i32, i32
  }
  func.func @transform_2(%arg0: i32, %arg1: i32, %arg2: i32, %arg3: i32) -> (i32, i32, i32) {
    %c3_i32 = arith.constant 3 : i32
    %0 = arith.muli %c3_i32, %arg1 : i32
    %c2_i32 = arith.constant 2 : i32
    %1 = arith.addi %0, %c2_i32 : i32
    %c0_i32 = arith.constant 0 : i32
    return %arg0, %arg3, %1 : i32, i32, i32
  }
  func.func @transform_3(%arg0: i32, %arg1: i32, %arg2: i32, %arg3: i32) -> (i32, i32, i32) {
    %c0_i32 = arith.constant 0 : i32
    return %arg0, %arg2, %arg1 : i32, i32, i32
  }
}

module attributes {stable_mosaic.version = 11 : i64} {
  func.func @_linear_kernel(%arg0: i32, %arg1: i32, %arg2: i32, %arg3: memref<256x256xf32, #tpu.memory_space<vmem>>, %arg4: memref<256x256xf32, #tpu.memory_space<vmem>>, %arg5: memref<1x256xf32, #tpu.memory_space<vmem>>, %arg6: memref<256x256xf32, #tpu.memory_space<vmem>>, %arg7: memref<256x256xf32, #tpu.memory_space<vmem>>) attributes {dimension_semantics = [#tpu.dimension_semantics<parallel>, #tpu.dimension_semantics<parallel>, #tpu.dimension_semantics<arbitrary>], iteration_bounds = array<i64: 2, 3, 1>, scalar_prefetch = 0 : i64, scratch_operands = 1 : i64, tpu.core_type = #tpu.core_type<tc>, window_params = [{transform_indices = @transform_0, window_bounds = array<i64: 256, 256>}, {transform_indices = @transform_1, window_bounds = array<i64: 256, 256>}, {transform_indices = @transform_2, window_bounds = array<i64: 1, 256>}, {transform_indices = @transform_3, window_bounds = array<i64: 256, 256>}]} {
    %c0_i32 = arith.constant 0 : i32
    %0 = arith.cmpi eq, %arg2, %c0_i32 : i32
    %1 = arith.extui %0 : i1 to i32
    %c0_i32_0 = arith.constant 0 : i32
    %2 = arith.cmpi ne, %1, %c0_i32_0 : i32
    scf.if %2 {
      %cst_10 = arith.constant 0.000000e+00 : f32
      %12 = vector.broadcast %cst_10 : f32 to vector<256x256xf32>
      %c0_11 = arith.constant 0 : index
      %c0_12 = arith.constant 0 : index
      %13 = vector.load %arg7[%c0_11, %c0_12] : memref<256x256xf32, #tpu.memory_space<vmem>>, vector<256x256xf32>
      tpu.vector_store %arg7[%c0_11, %c0_12], %12 {strides = array<i32>} : memref<256x256xf32, #tpu.memory_space<vmem>>, vector<256x256xf32>,
    } else {
    }
    %c0 = arith.constant 0 : index
    %c0_1 = arith.constant 0 : index
    %3 = vector.load %arg7[%c0, %c0_1] : memref<256x256xf32, #tpu.memory_space<vmem>>, vector<256x256xf32>
    %c0_2 = arith.constant 0 : index
    %c0_3 = arith.constant 0 : index
    %4 = vector.load %arg3[%c0_2, %c0_3] : memref<256x256xf32, #tpu.memory_space<vmem>>, vector<256x256xf32>
    %c0_4 = arith.constant 0 : index
    %c0_5 = arith.constant 0 : index
    %5 = vector.load %arg4[%c0_4, %c0_5] : memref<256x256xf32, #tpu.memory_space<vmem>>, vector<256x256xf32>
    %cst = arith.constant dense<0.000000e+00> : vector<256x256xf32>
    %6 = tpu.matmul %4, %5, %cst {dimension_numbers = #tpu.dot_dimension_numbers<[1], [0], [0], [1], [0, 0, 1, 1], [], []>} : vector<256x256xf32>, vector<256x256xf32>, vector<256x256xf32> -> vector<256x256xf32>
    %7 = arith.addf %3, %6 : vector<256x256xf32>
    %c0_6 = arith.constant 0 : index
    %c0_7 = arith.constant 0 : index
    %8 = vector.load %arg7[%c0_6, %c0_7] : memref<256x256xf32, #tpu.memory_space<vmem>>, vector<256x256xf32>
    tpu.vector_store %arg7[%c0_6, %c0_7], %7 {strides = array<i32>} : memref<256x256xf32, #tpu.memory_space<vmem>>, vector<256x256xf32>,
    %c0_i32_8 = arith.constant 0 : i32
    %9 = arith.cmpi eq, %arg2, %c0_i32_8 : i32
    %10 = arith.extui %9 : i1 to i32
    %c0_i32_9 = arith.constant 0 : i32
    %11 = arith.cmpi ne, %10, %c0_i32_9 : i32
    scf.if %11 {
      %c0_10 = arith.constant 0 : index
      %c0_11 = arith.constant 0 : index
      %12 = vector.load %arg7[%c0_10, %c0_11] : memref<256x256xf32, #tpu.memory_space<vmem>>, vector<256x256xf32>
      %c0_12 = arith.constant 0 : index
      %c0_13 = arith.constant 0 : index
      %13 = vector.load %arg5[%c0_12, %c0_13] : memref<1x256xf32, #tpu.memory_space<vmem>>, vector<1x256xf32>
      %14 = vector.broadcast %13 : vector<1x256xf32> to vector<256x256xf32>
      %15 = arith.addf %12, %14 : vector<256x256xf32>
      %c0_14 = arith.constant 0 : index
      %c0_15 = arith.constant 0 : index
      %16 = vector.load %arg6[%c0_14, %c0_15] : memref<256x256xf32, #tpu.memory_space<vmem>>, vector<256x256xf32>
      tpu.vector_store %arg6[%c0_14, %c0_15], %15 {strides = array<i32>} : memref<256x256xf32, #tpu.memory_space<vmem>>, vector<256x256xf32>,
    } else {
    }
    return
  }
  func.func @transform_0(%arg0: i32, %arg1: i32, %arg2: i32) -> (i32, i32) {
    %c0_i32 = arith.constant 0 : i32
    return %arg0, %arg2 : i32, i32
  }
  func.func @transform_1(%arg0: i32, %arg1: i32, %arg2: i32) -> (i32, i32) {
    %c0_i32 = arith.constant 0 : i32
    return %arg2, %arg1 : i32, i32
  }
  func.func @transform_2(%arg0: i32, %arg1: i32, %arg2: i32) -> (i32, i32) {
    %c0_i32 = arith.constant 0 : i32
    %c0_i32_0 = arith.constant 0 : i32
    return %c0_i32, %arg1 : i32, i32
  }
  func.func @transform_3(%arg0: i32, %arg1: i32, %arg2: i32) -> (i32, i32) {
    %c0_i32 = arith.constant 0 : i32
    return %arg0, %arg1 : i32, i32
  }
}

module attributes {stable_mosaic.version = 11 : i64} {
  func.func @_linear_kernel(%arg0: i32, %arg1: i32, %arg2: i32, %arg3: memref<256x256xf32, #tpu.memory_space<vmem>>, %arg4: memref<256x256xf32, #tpu.memory_space<vmem>>, %arg5: memref<1x256xf32, #tpu.memory_space<vmem>>, %arg6: memref<256x256xf32, #tpu.memory_space<vmem>>, %arg7: memref<256x256xf32, #tpu.memory_space<vmem>>) attributes {dimension_semantics = [#tpu.dimension_semantics<parallel>, #tpu.dimension_semantics<parallel>, #tpu.dimension_semantics<arbitrary>], iteration_bounds = array<i64: 2, 1, 1>, scalar_prefetch = 0 : i64, scratch_operands = 1 : i64, tpu.core_type = #tpu.core_type<tc>, window_params = [{transform_indices = @transform_0, window_bounds = array<i64: 256, 256>}, {transform_indices = @transform_1, window_bounds = array<i64: 256, 256>}, {transform_indices = @transform_2, window_bounds = array<i64: 1, 256>}, {transform_indices = @transform_3, window_bounds = array<i64: 256, 256>}]} {
    %c0_i32 = arith.constant 0 : i32
    %0 = arith.cmpi eq, %arg2, %c0_i32 : i32
    %1 = arith.extui %0 : i1 to i32
    %c0_i32_0 = arith.constant 0 : i32
    %2 = arith.cmpi ne, %1, %c0_i32_0 : i32
    scf.if %2 {
      %cst_10 = arith.constant 0.000000e+00 : f32
      %12 = vector.broadcast %cst_10 : f32 to vector<256x256xf32>
      %c0_11 = arith.constant 0 : index
      %c0_12 = arith.constant 0 : index
      %13 = vector.load %arg7[%c0_11, %c0_12] : memref<256x256xf32, #tpu.memory_space<vmem>>, vector<256x256xf32>
      tpu.vector_store %arg7[%c0_11, %c0_12], %12 {strides = array<i32>} : memref<256x256xf32, #tpu.memory_space<vmem>>, vector<256x256xf32>,
    } else {
    }
    %c0 = arith.constant 0 : index
    %c0_1 = arith.constant 0 : index
    %3 = vector.load %arg7[%c0, %c0_1] : memref<256x256xf32, #tpu.memory_space<vmem>>, vector<256x256xf32>
    %c0_2 = arith.constant 0 : index
    %c0_3 = arith.constant 0 : index
    %4 = vector.load %arg3[%c0_2, %c0_3] : memref<256x256xf32, #tpu.memory_space<vmem>>, vector<256x256xf32>
    %c0_4 = arith.constant 0 : index
    %c0_5 = arith.constant 0 : index
    %5 = vector.load %arg4[%c0_4, %c0_5] : memref<256x256xf32, #tpu.memory_space<vmem>>, vector<256x256xf32>
    %cst = arith.constant dense<0.000000e+00> : vector<256x256xf32>
    %6 = tpu.matmul %4, %5, %cst {dimension_numbers = #tpu.dot_dimension_numbers<[1], [0], [0], [1], [0, 0, 1, 1], [], []>} : vector<256x256xf32>, vector<256x256xf32>, vector<256x256xf32> -> vector<256x256xf32>
    %7 = arith.addf %3, %6 : vector<256x256xf32>
    %c0_6 = arith.constant 0 : index
    %c0_7 = arith.constant 0 : index
    %8 = vector.load %arg7[%c0_6, %c0_7] : memref<256x256xf32, #tpu.memory_space<vmem>>, vector<256x256xf32>
    tpu.vector_store %arg7[%c0_6, %c0_7], %7 {strides = array<i32>} : memref<256x256xf32, #tpu.memory_space<vmem>>, vector<256x256xf32>,
    %c0_i32_8 = arith.constant 0 : i32
    %9 = arith.cmpi eq, %arg2, %c0_i32_8 : i32
    %10 = arith.extui %9 : i1 to i32
    %c0_i32_9 = arith.constant 0 : i32
    %11 = arith.cmpi ne, %10, %c0_i32_9 : i32
    scf.if %11 {
      %c0_10 = arith.constant 0 : index
      %c0_11 = arith.constant 0 : index
      %12 = vector.load %arg7[%c0_10, %c0_11] : memref<256x256xf32, #tpu.memory_space<vmem>>, vector<256x256xf32>
      %c0_12 = arith.constant 0 : index
      %c0_13 = arith.constant 0 : index
      %13 = vector.load %arg5[%c0_12, %c0_13] : memref<1x256xf32, #tpu.memory_space<vmem>>, vector<1x256xf32>
      %14 = vector.broadcast %13 : vector<1x256xf32> to vector<256x256xf32>
      %15 = arith.addf %12, %14 : vector<256x256xf32>
      %c0_14 = arith.constant 0 : index
      %c0_15 = arith.constant 0 : index
      %16 = vector.load %arg6[%c0_14, %c0_15] : memref<256x256xf32, #tpu.memory_space<vmem>>, vector<256x256xf32>
      tpu.vector_store %arg6[%c0_14, %c0_15], %15 {strides = array<i32>} : memref<256x256xf32, #tpu.memory_space<vmem>>, vector<256x256xf32>,
    } else {
    }
    return
  }
  func.func @transform_0(%arg0: i32, %arg1: i32, %arg2: i32) -> (i32, i32) {
    %c0_i32 = arith.constant 0 : i32
    return %arg0, %arg2 : i32, i32
  }
  func.func @transform_1(%arg0: i32, %arg1: i32, %arg2: i32) -> (i32, i32) {
    %c0_i32 = arith.constant 0 : i32
    return %arg2, %arg1 : i32, i32
  }
  func.func @transform_2(%arg0: i32, %arg1: i32, %arg2: i32) -> (i32, i32) {
    %c0_i32 = arith.constant 0 : i32
    %c0_i32_0 = arith.constant 0 : i32
    return %c0_i32, %arg1 : i32, i32
  }
  func.func @transform_3(%arg0: i32, %arg1: i32, %arg2: i32) -> (i32, i32) {
    %c0_i32 = arith.constant 0 : i32
    return %arg0, %arg1 : i32, i32
  }
}

</mosaic_0001>

<llo_original>
// kernel: attention_forward.5
$region0: #{attention_forward.5}
  #allocation0 [shape = 'u32[]', space=smem, size = 0x4, offset = 0x4, fixed_abs, tag = 'smem constant byte address 0x4 - core index']
  #allocation1 [shape = 'u32[144,128]{1,0:T(1,128)}', space=vmem, size = 0x12000, scoped, tag = 'internal scratch']
  #allocation2 [shape = 'f32[256,256]{1,0:T(8,128)}', space=vmem, size = 0x40000, scoped, tag = 'scratch operand']
  %s0 = inlined_call_operand.vmem [shape: f32[512,256], index: 0, kind: input, shape index: {}]
  %s1 = inlined_call_operand.vmem [shape: f32[256,256], index: 1, kind: input, shape index: {}]
  %s2 = inlined_call_operand.vmem [shape: f32[1,256], index: 2, kind: input, shape index: {}]
  %s3 = inlined_call_operand.hbm [shape: f32[512,256], index: 3, kind: output, shape index: {}]
  %s4 = sld [smem:[#allocation0]]
  $region53: #{attention_forward.5} parent=0
    _
  %s6 = ssub.s32 1, %s4
  %s7 = scalar_select 0, %s6, %s4
  $region1: #{attention_forward.5} parent=0
    #allocation3 [shape = 'u8[524288]{0}', space=vmem, size = 0x80000, scoped, tag = 'output window, operand 0']
    #allocation4 [shape = 's32[2]{0}', space=sflag, size = 0x8, scoped, tag = 'scoped memory for attention_forward.5']
    %8 = vsyncpa [#allocation4], 0
    %s9 = scalar_lea.sflag [#allocation4], 1
    %10 = vsyncpa %s9, 0
    loop: start=0, step=1, limit=4
    $region2: #{attention_forward.5} parent=1 // loop_pre_header
      _
    $region3: #{attention_forward.5} parent=1 // loop_header
      %s12 = sphi 0, %s16
      %p13 = scmp.ge.s32.totalorder %s12, 4
      %s19 = sphi 0, %s38
      %s20 = sphi 0, %s34
      %s21 = sphi 0, %s30
      %s22 = sphi 0, %s19
      %s23 = sphi 0, %s20
      %s24 = sphi 0, %s21
      %s25 = sphi 0, %s22
      %s26 = sphi 0, %s23
      %s27 = sphi 0, %s24
      %s43 = sphi 0, %s45
      %s46 = sphi 0, %s43
      %s47 = sphi 0, %s46
      %s63 = sphi 0, %s47
      %s71 = sphi 0, %s73
      %s74 = sphi 0, %s71
      %s75 = sphi 0, %s74
      %s91 = sphi 0, %s75
      %s97 = sphi 0, %s99
      %s100 = sphi 0, %s97
      %s101 = sphi 0, %s100
      %s117 = sphi 0, %s101
      %s125 = sphi 0, %s127
      %s128 = sphi 0, %s125
      %s129 = sphi 0, %s128
      %s145 = sphi 0, %s129
    $region4: #{attention_forward.5} parent=1 // loop_header_branch
      %15 = sbr.rel (%p13) target = $region8
    $region5: #{attention_forward.5} parent=1 // loop_body
      %s17 = ssub.s32 %s12, 1
      %s18 = ssub.s32 %s12, 2
      %s28 = sadd.s32 1, %s21
      %p29 = scmp.ge.s32.totalorder %s28, 1
      %s30 = scalar_select %p29, 0, %s28
      %s31 = sadd.s32 1, %s20
      %s32 = scalar_select %p29, %s31, %s20
      %p33 = scmp.ge.s32.totalorder %s32, 1
      %s34 = scalar_select %p33, 0, %s32
      %s35 = sadd.s32 1, %s19
      %s36 = scalar_select %p33, %s35, %s19
      %p37 = scmp.ge.s32.totalorder %s36, 2
      %s38 = scalar_select %p37, 0, %s36
      %s39 = ssub.s32 %s19, %s38
      %s40 = ssub.s32 %s21, %s30
      %s41 = sor.u32 %s39, %s40
      %p42 = scmp.eq.s32.totalorder %s41, 0
      %s44 = sadd.s32 %s43, 1
      %s45 = scalar_select %p42, %s43, %s44
      %p48 = pneg %p42
      %p49 = scmp.eq.s32.totalorder %s12, 1
      %p50 = por %p48, %p49
      %p51 = scmp.ne.s32.totalorder %s43, %s46
      %p52 = scmp.eq.s32.totalorder %s12, 0
      %p53 = por %p51, %p52
      %p54 = scmp.ne.s32.totalorder %s43, %s46
      %p55 = scmp.eq.s32.totalorder %s17, 1
      %p56 = por %p54, %p55
      %p57 = scmp.ne.s32.totalorder %s46, %s47
      %p58 = scmp.eq.s32.totalorder %s17, 0
      %p59 = por %p57, %p58
      %p60 = scmp.ne.s32.totalorder %s46, %s47
      %p61 = scmp.eq.s32.totalorder %s18, 1
      %p62 = por %p60, %p61
      %p64 = scmp.ne.s32.totalorder %s47, %s63
      %p65 = scmp.eq.s32.totalorder %s18, 0
      %p66 = por %p64, %p65
      %s67 = ssub.s32 %s21, %s30
      %s68 = ssub.s32 %s20, %s34
      %s69 = sor.u32 %s67, %s68
      %p70 = scmp.eq.s32.totalorder %s69, 0
      %s72 = sadd.s32 %s71, 1
      %s73 = scalar_select %p70, %s71, %s72
      %p76 = pneg %p70
      %p77 = scmp.eq.s32.totalorder %s12, 1
      %p78 = por %p76, %p77
      %p79 = scmp.ne.s32.totalorder %s71, %s74
      %p80 = scmp.eq.s32.totalorder %s12, 0
      %p81 = por %p79, %p80
      %p82 = scmp.ne.s32.totalorder %s71, %s74
      %p83 = scmp.eq.s32.totalorder %s17, 1
      %p84 = por %p82, %p83
      %p85 = scmp.ne.s32.totalorder %s74, %s75
      %p86 = scmp.eq.s32.totalorder %s17, 0
      %p87 = por %p85, %p86
      %p88 = scmp.ne.s32.totalorder %s74, %s75
      %p89 = scmp.eq.s32.totalorder %s18, 1
      %p90 = por %p88, %p89
      %p92 = scmp.ne.s32.totalorder %s75, %s91
      %p93 = scmp.eq.s32.totalorder %s18, 0
      %p94 = por %p92, %p93
      %s95 = ssub.s32 %s20, %s34
      %p96 = scmp.eq.s32.totalorder %s95, 0
      %s98 = sadd.s32 %s97, 1
      %s99 = scalar_select %p96, %s97, %s98
      %p102 = pneg %p96
      %p103 = scmp.eq.s32.totalorder %s12, 1
      %p104 = por %p102, %p103
      %p105 = scmp.ne.s32.totalorder %s97, %s100
      %p106 = scmp.eq.s32.totalorder %s12, 0
      %p107 = por %p105, %p106
      %p108 = scmp.ne.s32.totalorder %s97, %s100
      %p109 = scmp.eq.s32.totalorder %s17, 1
      %p110 = por %p108, %p109
      %p111 = scmp.ne.s32.totalorder %s100, %s101
      %p112 = scmp.eq.s32.totalorder %s17, 0
      %p113 = por %p111, %p112
      %p114 = scmp.ne.s32.totalorder %s100, %s101
      %p115 = scmp.eq.s32.totalorder %s18, 1
      %p116 = por %p114, %p115
      %p118 = scmp.ne.s32.totalorder %s101, %s117
      %p119 = scmp.eq.s32.totalorder %s18, 0
      %p120 = por %p118, %p119
      %s121 = ssub.s32 %s19, %s38
      %s122 = ssub.s32 %s20, %s34
      %s123 = sor.u32 %s121, %s122
      %p124 = scmp.eq.s32.totalorder %s123, 0
      %s126 = sadd.s32 %s125, 1
      %s127 = scalar_select %p124, %s125, %s126
      %p130 = pneg %p124
      %p131 = scmp.eq.s32.totalorder %s12, 1
      %p132 = por %p130, %p131
      %p133 = scmp.ne.s32.totalorder %s125, %s128
      %p134 = scmp.eq.s32.totalorder %s12, 0
      %p135 = por %p133, %p134
      %p136 = scmp.ne.s32.totalorder %s125, %s128
      %p137 = scmp.eq.s32.totalorder %s17, 1
      %p138 = por %p136, %p137
      %p139 = scmp.ne.s32.totalorder %s128, %s129
      %p140 = scmp.eq.s32.totalorder %s17, 0
      %p141 = por %p139, %p140
      %p142 = scmp.ne.s32.totalorder %s128, %s129
      %p143 = scmp.eq.s32.totalorder %s18, 1
      %p144 = por %p142, %p143
      %p146 = scmp.ne.s32.totalorder %s129, %s145
      %p147 = scmp.eq.s32.totalorder %s18, 0
      %p148 = por %p146, %p147
      %p149 = scmp.le.s32.totalorder 1, %s12
      %p150 = scmp.lt.s32.totalorder %s12, 3
      %p151 = pnand %p149, %p150
      %p152 = pneg %p151
      // Predicated region
      $region9: #{attention_forward.5} parent=5 // pred_check
        _
      $region10: #{attention_forward.5} parent=5 // pred_check_branch
        %154 = sbr.rel (%p151) target = $region12
      $region11: #{attention_forward.5} parent=5 // pred_region
        %s155 = ssub.s32 %s12, 1
        // Predicated region
        $region13: #{attention_forward.5} parent=11 // pred_check
          %p156 = pneg %p87
        $region14: #{attention_forward.5} parent=11 // pred_check_branch
          %158 = sbr.rel (%p156) target = $region16
        $region15: #{attention_forward.5} parent=11 // pred_region
          %s159 = smul.u32 32, %s24
          %s160 = smul.u32 2, %s23
          %p161 = scmp.lt.s32.totalorder %s159, 31
          %s162 = scalar_select %p161, %s159, 31
          %p163 = scmp.lt.s32.totalorder %s160, 1
          %s164 = scalar_select %p163, %s160, 1
          %s165 = smul.addr %s162, 2
          %s166 = sadd.s32 %s164, %s165
          %s167 = smul.addr %s166, 8
          %s168 = scalar_lea.vmem %s1, %s167
          %s169 = smul.u32 32, %s24
          %s170 = smul.u32 2, %s23
        $region16: #{attention_forward.5} parent=11 // pred_fallthru
          _
        // Predicated region
        $region17: #{attention_forward.5} parent=11 // pred_check
          %p171 = pneg %p113
        $region18: #{attention_forward.5} parent=11 // pred_check_branch
          %173 = sbr.rel (%p171) target = $region20
        $region19: #{attention_forward.5} parent=11 // pred_region
          %s174 = smul.u32 2, %s23
          %p175 = scmp.lt.s32.totalorder %s174, 1
          %s176 = scalar_select %p175, %s174, 1
          %s177 = scalar_lea.vmem %s2, %s176
          %s178 = smul.u32 2, %s23
        $region20: #{attention_forward.5} parent=11 // pred_fallthru
          _
      $region12: #{attention_forward.5} parent=5 // pred_fallthru
        _
      %p179 = scmp.lt.s32.totalorder %s12, 2
      // Predicated region
      $region21: #{attention_forward.5} parent=5 // pred_check
        %p180 = pneg %p179
      $region22: #{attention_forward.5} parent=5 // pred_check_branch
        %182 = sbr.rel (%p180) target = $region24
      $region23: #{attention_forward.5} parent=5 // pred_region
        // Predicated region
        $region25: #{attention_forward.5} parent=23 // pred_check
          %p183 = pneg %p53
        $region26: #{attention_forward.5} parent=23 // pred_check_branch
          %185 = sbr.rel (%p183) target = $region28
        $region27: #{attention_forward.5} parent=23 // pred_region
          %s186 = smul.u32 32, %s19
          %s187 = smul.u32 2, %s21
          %p188 = scmp.lt.s32.totalorder %s186, 63
          %s189 = scalar_select %p188, %s186, 63
          %p190 = scmp.lt.s32.totalorder %s187, 1
          %s191 = scalar_select %p190, %s187, 1
          %s192 = smul.addr %s189, 2
          %s193 = sadd.s32 %s191, %s192
          %s194 = smul.addr %s193, 8
          %s195 = scalar_lea.vmem %s0, %s194
          %s196 = smul.u32 32, %s19
          %s197 = smul.u32 2, %s21
        $region28: #{attention_forward.5} parent=23 // pred_fallthru
          _
      $region24: #{attention_forward.5} parent=5 // pred_fallthru
        _
      %p198 = scmp.le.s32.totalorder 1, %s12
      %p199 = scmp.lt.s32.totalorder %s12, 3
      %p200 = pnand %p198, %p199
      %p201 = pneg %p200
      // Predicated region
      $region29: #{attention_forward.5} parent=5 // pred_check
        _
      $region30: #{attention_forward.5} parent=5 // pred_check_branch
        %203 = sbr.rel (%p200) target = $region32
      $region31: #{attention_forward.5} parent=5 // pred_region
        %s204 = ssub.s32 %s12, 1
        %s205 = smul.u32 32, %s22
        %s206 = smul.u32 2, %s24
        %p207 = scmp.lt.s32.totalorder %s205, 63
        %s208 = scalar_select %p207, %s205, 63
        %p209 = scmp.lt.s32.totalorder %s206, 1
        %s210 = scalar_select %p209, %s206, 1
        %s211 = smul.addr %s208, 2
        %s212 = sadd.s32 %s210, %s211
        %s213 = smul.addr %s212, 8
        %s214 = scalar_lea.vmem %s0, %s213
        %p215 = pneg %p59
        %p216 = pneg %p56
        %s217 = smul.u32 32, %s24
        %s218 = smul.u32 2, %s23
        %p219 = scmp.lt.s32.totalorder %s217, 31
        %s220 = scalar_select %p219, %s217, 31
        %p221 = scmp.lt.s32.totalorder %s218, 1
        %s222 = scalar_select %p221, %s218, 1
        %s223 = smul.addr %s220, 2
        %s224 = sadd.s32 %s222, %s223
        %s225 = smul.addr %s224, 8
        %s226 = scalar_lea.vmem %s1, %s225
        %p227 = pneg %p87
        %p228 = pneg %p84
        %s229 = smul.u32 2, %s23
        %p230 = scmp.lt.s32.totalorder %s229, 1
        %s231 = scalar_select %p230, %s229, 1
        %s232 = scalar_lea.vmem %s2, %s231
        %p233 = pneg %p113
        %p234 = pneg %p110
        %p235 = pneg %p141
        %p236 = pneg %p138
        %s237 = sand.u32 %s128, 1
        %s238 = scalar_lea.sflag [#allocation4], %s237
        %s239 = sand.u32 %s128, 1
        %s240 = smul.addr %s239, 512
        %s241 = scalar_lea.vmem [#allocation3], %s240
        %s242 = smul.u32 32, %s22
        %s243 = smul.u32 2, %s24
        %p244 = scmp.lt.s32.totalorder %s242, 63
        %s245 = scalar_select %p244, %s242, 63
        %p246 = scmp.lt.s32.totalorder %s243, 1
        %s247 = scalar_select %p246, %s243, 1
        %s248 = smul.addr %s245, 2
        %s249 = sadd.s32 %s247, %s248
        %s250 = smul.addr %s249, 8
        %s251 = scalar_lea.vmem %s0, %s250
        %s252 = smul.u32 32, %s22
        %s253 = smul.u32 2, %s24
        %s254 = smul.u32 32, %s24
        %s255 = smul.u32 2, %s23
        %p256 = scmp.lt.s32.totalorder %s254, 31
        %s257 = scalar_select %p256, %s254, 31
        %p258 = scmp.lt.s32.totalorder %s255, 1
        %s259 = scalar_select %p258, %s255, 1
        %s260 = smul.addr %s257, 2
        %s261 = sadd.s32 %s259, %s260
        %s262 = smul.addr %s261, 8
        %s263 = scalar_lea.vmem %s1, %s262
        %s264 = smul.u32 32, %s24
        %s265 = smul.u32 2, %s23
        %s266 = smul.u32 2, %s23
        %p267 = scmp.lt.s32.totalorder %s266, 1
        %s268 = scalar_select %p267, %s266, 1
        %s269 = scalar_lea.vmem %s2, %s268
        %s270 = smul.u32 2, %s23
        %s271 = smul.u32 32, %s22
        %s272 = smul.u32 2, %s23
        %p273 = scmp.eq.s32.totalorder %s24, 0
        // Predicated region
        $region33: #{attention_forward.5} parent=31 // pred_check
          %p274 = pneg %p273
        $region34: #{attention_forward.5} parent=31 // pred_check_branch
          %276 = sbr.rel (%p274) target = $region36
        $region35: #{attention_forward.5} parent=31 // pred_region
          %277 = vst [vmem:[#allocation2] sm:$0xff] 0.0
          %278 = vst [vmem:[#allocation2 + $0x8] sm:$0xff] 0.0
          %279 = vst [vmem:[#allocation2 + $0x10] sm:$0xff] 0.0
          %280 = vst [vmem:[#allocation2 + $0x18] sm:$0xff] 0.0
          %281 = vst [vmem:[#allocation2 + $0x20] sm:$0xff] 0.0
          %282 = vst [vmem:[#allocation2 + $0x28] sm:$0xff] 0.0
          %283 = vst [vmem:[#allocation2 + $0x30] sm:$0xff] 0.0
          %284 = vst [vmem:[#allocation2 + $0x38] sm:$0xff] 0.0
          %285 = vst [vmem:[#allocation2 + $0x40] sm:$0xff] 0.0
          %286 = vst [vmem:[#allocation2 + $0x48] sm:$0xff] 0.0
          %287 = vst [vmem:[#allocation2 + $0x50] sm:$0xff] 0.0
          %288 = vst [vmem:[#allocation2 + $0x58] sm:$0xff] 0.0
          %289 = vst [vmem:[#allocation2 + $0x60] sm:$0xff] 0.0
          %290 = vst [vmem:[#allocation2 + $0x68] sm:$0xff] 0.0
          %291 = vst [vmem:[#allocation2 + $0x70] sm:$0xff] 0.0
          %292 = vst [vmem:[#allocation2 + $0x78] sm:$0xff] 0.0
          %293 = vst [vmem:[#allocation2 + $0x80] sm:$0xff] 0.0
          %294 = vst [vmem:[#allocation2 + $0x88] sm:$0xff] 0.0
          %295 = vst [vmem:[#allocation2 + $0x90] sm:$0xff] 0.0
          %296 = vst [vmem:[#allocation2 + $0x98] sm:$0xff] 0.0
          %297 = vst [vmem:[#allocation2 + $0xa0] sm:$0xff] 0.0
          %298 = vst [vmem:[#allocation2 + $0xa8] sm:$0xff] 0.0
          %299 = vst [vmem:[#allocation2 + $0xb0] sm:$0xff] 0.0
          %300 = vst [vmem:[#allocation2 + $0xb8] sm:$0xff] 0.0
          %301 = vst [vmem:[#allocation2 + $0xc0] sm:$0xff] 0.0
          %302 = vst [vmem:[#allocation2 + $0xc8] sm:$0xff] 0.0
          %303 = vst [vmem:[#allocation2 + $0xd0] sm:$0xff] 0.0
          %304 = vst [vmem:[#allocation2 + $0xd8] sm:$0xff] 0.0
          %305 = vst [vmem:[#allocation2 + $0xe0] sm:$0xff] 0.0
          %306 = vst [vmem:[#allocation2 + $0xe8] sm:$0xff] 0.0
          %307 = vst [vmem:[#allocation2 + $0xf0] sm:$0xff] 0.0
          %308 = vst [vmem:[#allocation2 + $0xf8] sm:$0xff] 0.0
          %309 = vst [vmem:[#allocation2 + $0x100] sm:$0xff] 0.0
          %310 = vst [vmem:[#allocation2 + $0x108] sm:$0xff] 0.0
          %311 = vst [vmem:[#allocation2 + $0x110] sm:$0xff] 0.0
          %312 = vst [vmem:[#allocation2 + $0x118] sm:$0xff] 0.0
          %313 = vst [vmem:[#allocation2 + $0x120] sm:$0xff] 0.0
          %314 = vst [vmem:[#allocation2 + $0x128] sm:$0xff] 0.0
          %315 = vst [vmem:[#allocation2 + $0x130] sm:$0xff] 0.0
          %316 = vst [vmem:[#allocation2 + $0x138] sm:$0xff] 0.0
          %317 = vst [vmem:[#allocation2 + $0x140] sm:$0xff] 0.0
          %318 = vst [vmem:[#allocation2 + $0x148] sm:$0xff] 0.0
          %319 = vst [vmem:[#allocation2 + $0x150] sm:$0xff] 0.0
          %320 = vst [vmem:[#allocation2 + $0x158] sm:$0xff] 0.0
          %321 = vst [vmem:[#allocation2 + $0x160] sm:$0xff] 0.0
          %322 = vst [vmem:[#allocation2 + $0x168] sm:$0xff] 0.0
          %323 = vst [vmem:[#allocation2 + $0x170] sm:$0xff] 0.0
          %324 = vst [vmem:[#allocation2 + $0x178] sm:$0xff] 0.0
          %325 = vst [vmem:[#allocation2 + $0x180] sm:$0xff] 0.0
          %326 = vst [vmem:[#allocation2 + $0x188] sm:$0xff] 0.0
          %327 = vst [vmem:[#allocation2 + $0x190] sm:$0xff] 0.0
          %328 = vst [vmem:[#allocation2 + $0x198] sm:$0xff] 0.0
          %329 = vst [vmem:[#allocation2 + $0x1a0] sm:$0xff] 0.0
          %330 = vst [vmem:[#allocation2 + $0x1a8] sm:$0xff] 0.0
          %331 = vst [vmem:[#allocation2 + $0x1b0] sm:$0xff] 0.0
          %332 = vst [vmem:[#allocation2 + $0x1b8] sm:$0xff] 0.0
          %333 = vst [vmem:[#allocation2 + $0x1c0] sm:$0xff] 0.0
          %334 = vst [vmem:[#allocation2 + $0x1c8] sm:$0xff] 0.0
          %335 = vst [vmem:[#allocation2 + $0x1d0] sm:$0xff] 0.0
          %336 = vst [vmem:[#allocation2 + $0x1d8] sm:$0xff] 0.0
          %337 = vst [vmem:[#allocation2 + $0x1e0] sm:$0xff] 0.0
          %338 = vst [vmem:[#allocation2 + $0x1e8] sm:$0xff] 0.0
          %339 = vst [vmem:[#allocation2 + $0x1f0] sm:$0xff] 0.0
          %340 = vst [vmem:[#allocation2 + $0x1f8] sm:$0xff] 0.0
        $region36: #{attention_forward.5} parent=31 // pred_fallthru
          _
        %v341 = vld [vmem:[#allocation2] sm:$0xff]
        %v342 = vld [vmem:[#allocation2 + $0x8] sm:$0xff]
        %v343 = vld [vmem:[#allocation2 + $0x10] sm:$0xff]
        %v344 = vld [vmem:[#allocation2 + $0x18] sm:$0xff]
        %v345 = vld [vmem:[#allocation2 + $0x20] sm:$0xff]
        %v346 = vld [vmem:[#allocation2 + $0x28] sm:$0xff]
        %v347 = vld [vmem:[#allocation2 + $0x30] sm:$0xff]
        %v348 = vld [vmem:[#allocation2 + $0x38] sm:$0xff]
        %v349 = vld [vmem:[#allocation2 + $0x40] sm:$0xff]
        %v350 = vld [vmem:[#allocation2 + $0x48] sm:$0xff]
        %v351 = vld [vmem:[#allocation2 + $0x50] sm:$0xff]
        %v352 = vld [vmem:[#allocation2 + $0x58] sm:$0xff]
        %v353 = vld [vmem:[#allocation2 + $0x60] sm:$0xff]
        %v354 = vld [vmem:[#allocation2 + $0x68] sm:$0xff]
        %v355 = vld [vmem:[#allocation2 + $0x70] sm:$0xff]
        %v356 = vld [vmem:[#allocation2 + $0x78] sm:$0xff]
        %v357 = vld [vmem:[#allocation2 + $0x80] sm:$0xff]
        %v358 = vld [vmem:[#allocation2 + $0x88] sm:$0xff]
        %v359 = vld [vmem:[#allocation2 + $0x90] sm:$0xff]
        %v360 = vld [vmem:[#allocation2 + $0x98] sm:$0xff]
        %v361 = vld [vmem:[#allocation2 + $0xa0] sm:$0xff]
        %v362 = vld [vmem:[#allocation2 + $0xa8] sm:$0xff]
        %v363 = vld [vmem:[#allocation2 + $0xb0] sm:$0xff]
        %v364 = vld [vmem:[#allocation2 + $0xb8] sm:$0xff]
        %v365 = vld [vmem:[#allocation2 + $0xc0] sm:$0xff]
        %v366 = vld [vmem:[#allocation2 + $0xc8] sm:$0xff]
        %v367 = vld [vmem:[#allocation2 + $0xd0] sm:$0xff]
        %v368 = vld [vmem:[#allocation2 + $0xd8] sm:$0xff]
        %v369 = vld [vmem:[#allocation2 + $0xe0] sm:$0xff]
        %v370 = vld [vmem:[#allocation2 + $0xe8] sm:$0xff]
        %v371 = vld [vmem:[#allocation2 + $0xf0] sm:$0xff]
        %v372 = vld [vmem:[#allocation2 + $0xf8] sm:$0xff]
        %v373 = vld [vmem:[#allocation2 + $0x100] sm:$0xff]
        %v374 = vld [vmem:[#allocation2 + $0x108] sm:$0xff]
        %v375 = vld [vmem:[#allocation2 + $0x110] sm:$0xff]
        %v376 = vld [vmem:[#allocation2 + $0x118] sm:$0xff]
        %v377 = vld [vmem:[#allocation2 + $0x120] sm:$0xff]
        %v378 = vld [vmem:[#allocation2 + $0x128] sm:$0xff]
        %v379 = vld [vmem:[#allocation2 + $0x130] sm:$0xff]
        %v380 = vld [vmem:[#allocation2 + $0x138] sm:$0xff]
        %v381 = vld [vmem:[#allocation2 + $0x140] sm:$0xff]
        %v382 = vld [vmem:[#allocation2 + $0x148] sm:$0xff]
        %v383 = vld [vmem:[#allocation2 + $0x150] sm:$0xff]
        %v384 = vld [vmem:[#allocation2 + $0x158] sm:$0xff]
        %v385 = vld [vmem:[#allocation2 + $0x160] sm:$0xff]
        %v386 = vld [vmem:[#allocation2 + $0x168] sm:$0xff]
        %v387 = vld [vmem:[#allocation2 + $0x170] sm:$0xff]
        %v388 = vld [vmem:[#allocation2 + $0x178] sm:$0xff]
        %v389 = vld [vmem:[#allocation2 + $0x180] sm:$0xff]
        %v390 = vld [vmem:[#allocation2 + $0x188] sm:$0xff]
        %v391 = vld [vmem:[#allocation2 + $0x190] sm:$0xff]
        %v392 = vld [vmem:[#allocation2 + $0x198] sm:$0xff]
        %v393 = vld [vmem:[#allocation2 + $0x1a0] sm:$0xff]
        %v394 = vld [vmem:[#allocation2 + $0x1a8] sm:$0xff]
        %v395 = vld [vmem:[#allocation2 + $0x1b0] sm:$0xff]
        %v396 = vld [vmem:[#allocation2 + $0x1b8] sm:$0xff]
        %v397 = vld [vmem:[#allocation2 + $0x1c0] sm:$0xff]
        %v398 = vld [vmem:[#allocation2 + $0x1c8] sm:$0xff]
        %v399 = vld [vmem:[#allocation2 + $0x1d0] sm:$0xff]
        %v400 = vld [vmem:[#allocation2 + $0x1d8] sm:$0xff]
        %v401 = vld [vmem:[#allocation2 + $0x1e0] sm:$0xff]
        %v402 = vld [vmem:[#allocation2 + $0x1e8] sm:$0xff]
        %v403 = vld [vmem:[#allocation2 + $0x1f0] sm:$0xff]
        %v404 = vld [vmem:[#allocation2 + $0x1f8] sm:$0xff]
        %v405 = vld [vmem:[%s251] sm:$0xff]
        %v406 = vld [vmem:[%s251 + $0x8] sm:$0xff]
        %v407 = vld [vmem:[%s251 + $0x10] sm:$0xff]
        %v408 = vld [vmem:[%s251 + $0x18] sm:$0xff]
        %v409 = vld [vmem:[%s251 + $0x20] sm:$0xff]
        %v410 = vld [vmem:[%s251 + $0x28] sm:$0xff]
        %v411 = vld [vmem:[%s251 + $0x30] sm:$0xff]
        %v412 = vld [vmem:[%s251 + $0x38] sm:$0xff]
        %v413 = vld [vmem:[%s251 + $0x40] sm:$0xff]
        %v414 = vld [vmem:[%s251 + $0x48] sm:$0xff]
        %v415 = vld [vmem:[%s251 + $0x50] sm:$0xff]
        %v416 = vld [vmem:[%s251 + $0x58] sm:$0xff]
        %v417 = vld [vmem:[%s251 + $0x60] sm:$0xff]
        %v418 = vld [vmem:[%s251 + $0x68] sm:$0xff]
        %v419 = vld [vmem:[%s251 + $0x70] sm:$0xff]
        %v420 = vld [vmem:[%s251 + $0x78] sm:$0xff]
        %v421 = vld [vmem:[%s251 + $0x80] sm:$0xff]
        %v422 = vld [vmem:[%s251 + $0x88] sm:$0xff]
        %v423 = vld [vmem:[%s251 + $0x90] sm:$0xff]
        %v424 = vld [vmem:[%s251 + $0x98] sm:$0xff]
        %v425 = vld [vmem:[%s251 + $0xa0] sm:$0xff]
        %v426 = vld [vmem:[%s251 + $0xa8] sm:$0xff]
        %v427 = vld [vmem:[%s251 + $0xb0] sm:$0xff]
        %v428 = vld [vmem:[%s251 + $0xb8] sm:$0xff]
        %v429 = vld [vmem:[%s251 + $0xc0] sm:$0xff]
        %v430 = vld [vmem:[%s251 + $0xc8] sm:$0xff]
        %v431 = vld [vmem:[%s251 + $0xd0] sm:$0xff]
        %v432 = vld [vmem:[%s251 + $0xd8] sm:$0xff]
        %v433 = vld [vmem:[%s251 + $0xe0] sm:$0xff]
        %v434 = vld [vmem:[%s251 + $0xe8] sm:$0xff]
        %v435 = vld [vmem:[%s251 + $0xf0] sm:$0xff]
        %v436 = vld [vmem:[%s251 + $0xf8] sm:$0xff]
        %v437 = vld [vmem:[%s251 + $0x100] sm:$0xff]
        %v438 = vld [vmem:[%s251 + $0x108] sm:$0xff]
        %v439 = vld [vmem:[%s251 + $0x110] sm:$0xff]
        %v440 = vld [vmem:[%s251 + $0x118] sm:$0xff]
        %v441 = vld [vmem:[%s251 + $0x120] sm:$0xff]
        %v442 = vld [vmem:[%s251 + $0x128] sm:$0xff]
        %v443 = vld [vmem:[%s251 + $0x130] sm:$0xff]
        %v444 = vld [vmem:[%s251 + $0x138] sm:$0xff]
        %v445 = vld [vmem:[%s251 + $0x140] sm:$0xff]
        %v446 = vld [vmem:[%s251 + $0x148] sm:$0xff]
        %v447 = vld [vmem:[%s251 + $0x150] sm:$0xff]
        %v448 = vld [vmem:[%s251 + $0x158] sm:$0xff]
        %v449 = vld [vmem:[%s251 + $0x160] sm:$0xff]
        %v450 = vld [vmem:[%s251 + $0x168] sm:$0xff]
        %v451 = vld [vmem:[%s251 + $0x170] sm:$0xff]
        %v452 = vld [vmem:[%s251 + $0x178] sm:$0xff]
        %v453 = vld [vmem:[%s251 + $0x180] sm:$0xff]
        %v454 = vld [vmem:[%s251 + $0x188] sm:$0xff]
        %v455 = vld [vmem:[%s251 + $0x190] sm:$0xff]
        %v456 = vld [vmem:[%s251 + $0x198] sm:$0xff]
        %v457 = vld [vmem:[%s251 + $0x1a0] sm:$0xff]
        %v458 = vld [vmem:[%s251 + $0x1a8] sm:$0xff]
        %v459 = vld [vmem:[%s251 + $0x1b0] sm:$0xff]
        %v460 = vld [vmem:[%s251 + $0x1b8] sm:$0xff]
        %v461 = vld [vmem:[%s251 + $0x1c0] sm:$0xff]
        %v462 = vld [vmem:[%s251 + $0x1c8] sm:$0xff]
        %v463 = vld [vmem:[%s251 + $0x1d0] sm:$0xff]
        %v464 = vld [vmem:[%s251 + $0x1d8] sm:$0xff]
        %v465 = vld [vmem:[%s251 + $0x1e0] sm:$0xff]
        %v466 = vld [vmem:[%s251 + $0x1e8] sm:$0xff]
        %v467 = vld [vmem:[%s251 + $0x1f0] sm:$0xff]
        %v468 = vld [vmem:[%s251 + $0x1f8] sm:$0xff]
        %v469 = vld [vmem:[%s263] sm:$0xff]
        %v470 = vld [vmem:[%s263 + $0x8] sm:$0xff]
        %v471 = vld [vmem:[%s263 + $0x10] sm:$0xff]
        %v472 = vld [vmem:[%s263 + $0x18] sm:$0xff]
        %v473 = vld [vmem:[%s263 + $0x20] sm:$0xff]
        %v474 = vld [vmem:[%s263 + $0x28] sm:$0xff]
        %v475 = vld [vmem:[%s263 + $0x30] sm:$0xff]
        %v476 = vld [vmem:[%s263 + $0x38] sm:$0xff]
        %v477 = vld [vmem:[%s263 + $0x40] sm:$0xff]
        %v478 = vld [vmem:[%s263 + $0x48] sm:$0xff]
        %v479 = vld [vmem:[%s263 + $0x50] sm:$0xff]
        %v480 = vld [vmem:[%s263 + $0x58] sm:$0xff]
        %v481 = vld [vmem:[%s263 + $0x60] sm:$0xff]
        %v482 = vld [vmem:[%s263 + $0x68] sm:$0xff]
        %v483 = vld [vmem:[%s263 + $0x70] sm:$0xff]
        %v484 = vld [vmem:[%s263 + $0x78] sm:$0xff]
        %v485 = vld [vmem:[%s263 + $0x80] sm:$0xff]
        %v486 = vld [vmem:[%s263 + $0x88] sm:$0xff]
        %v487 = vld [vmem:[%s263 + $0x90] sm:$0xff]
        %v488 = vld [vmem:[%s263 + $0x98] sm:$0xff]
        %v489 = vld [vmem:[%s263 + $0xa0] sm:$0xff]
        %v490 = vld [vmem:[%s263 + $0xa8] sm:$0xff]
        %v491 = vld [vmem:[%s263 + $0xb0] sm:$0xff]
        %v492 = vld [vmem:[%s263 + $0xb8] sm:$0xff]
        %v493 = vld [vmem:[%s263 + $0xc0] sm:$0xff]
        %v494 = vld [vmem:[%s263 + $0xc8] sm:$0xff]
        %v495 = vld [vmem:[%s263 + $0xd0] sm:$0xff]
        %v496 = vld [vmem:[%s263 + $0xd8] sm:$0xff]
        %v497 = vld [vmem:[%s263 + $0xe0] sm:$0xff]
        %v498 = vld [vmem:[%s263 + $0xe8] sm:$0xff]
        %v499 = vld [vmem:[%s263 + $0xf0] sm:$0xff]
        %v500 = vld [vmem:[%s263 + $0xf8] sm:$0xff]
        %v501 = vld [vmem:[%s263 + $0x100] sm:$0xff]
        %v502 = vld [vmem:[%s263 + $0x108] sm:$0xff]
        %v503 = vld [vmem:[%s263 + $0x110] sm:$0xff]
        %v504 = vld [vmem:[%s263 + $0x118] sm:$0xff]
        %v505 = vld [vmem:[%s263 + $0x120] sm:$0xff]
        %v506 = vld [vmem:[%s263 + $0x128] sm:$0xff]
        %v507 = vld [vmem:[%s263 + $0x130] sm:$0xff]
        %v508 = vld [vmem:[%s263 + $0x138] sm:$0xff]
        %v509 = vld [vmem:[%s263 + $0x140] sm:$0xff]
        %v510 = vld [vmem:[%s263 + $0x148] sm:$0xff]
        %v511 = vld [vmem:[%s263 + $0x150] sm:$0xff]
        %v512 = vld [vmem:[%s263 + $0x158] sm:$0xff]
        %v513 = vld [vmem:[%s263 + $0x160] sm:$0xff]
        %v514 = vld [vmem:[%s263 + $0x168] sm:$0xff]
        %v515 = vld [vmem:[%s263 + $0x170] sm:$0xff]
        %v516 = vld [vmem:[%s263 + $0x178] sm:$0xff]
        %v517 = vld [vmem:[%s263 + $0x180] sm:$0xff]
        %v518 = vld [vmem:[%s263 + $0x188] sm:$0xff]
        %v519 = vld [vmem:[%s263 + $0x190] sm:$0xff]
        %v520 = vld [vmem:[%s263 + $0x198] sm:$0xff]
        %v521 = vld [vmem:[%s263 + $0x1a0] sm:$0xff]
        %v522 = vld [vmem:[%s263 + $0x1a8] sm:$0xff]
        %v523 = vld [vmem:[%s263 + $0x1b0] sm:$0xff]
        %v524 = vld [vmem:[%s263 + $0x1b8] sm:$0xff]
        %v525 = vld [vmem:[%s263 + $0x1c0] sm:$0xff]
        %v526 = vld [vmem:[%s263 + $0x1c8] sm:$0xff]
        %v527 = vld [vmem:[%s263 + $0x1d0] sm:$0xff]
        %v528 = vld [vmem:[%s263 + $0x1d8] sm:$0xff]
        %v529 = vld [vmem:[%s263 + $0x1e0] sm:$0xff]
        %v530 = vld [vmem:[%s263 + $0x1e8] sm:$0xff]
        %v531 = vld [vmem:[%s263 + $0x1f0] sm:$0xff]
        %v532 = vld [vmem:[%s263 + $0x1f8] sm:$0xff]
        %533 = vmatprep.subr.mxu0 %v470
        %534 = vmatpush1.msra.mxu0 %v469
        %535 = vmatprep.subr.mxu0 %v472
        %536 = vmatpush1.msra.mxu0 %v471
        %537 = vmatprep.subr.mxu0 %v474
        %538 = vmatpush1.msra.mxu0 %v473
        %539 = vmatprep.subr.mxu0 %v476
        %540 = vmatpush1.msra.mxu0 %v475
        %541 = vmatprep.subr.mxu0 %v478
        %542 = vmatpush1.msra.mxu0 %v477
        %543 = vmatprep.subr.mxu0 %v480
        %544 = vmatpush1.msra.mxu0 %v479
        %545 = vmatprep.subr.mxu0 %v482
        %546 = vmatpush1.msra.mxu0 %v481
        %547 = vmatprep.subr.mxu0 %v484
        %548 = vmatpush1.msra.mxu0 %v483
        %549 = vmatprep.subr.mxu0 %v486
        %550 = vmatpush1.msra.mxu0 %v485
        %551 = vmatprep.subr.mxu0 %v488
        %552 = vmatpush1.msra.mxu0 %v487
        %553 = vmatprep.subr.mxu0 %v490
        %554 = vmatpush1.msra.mxu0 %v489
        %555 = vmatprep.subr.mxu0 %v492
        %556 = vmatpush1.msra.mxu0 %v491
        %557 = vmatprep.subr.mxu0 %v494
        %558 = vmatpush1.msra.mxu0 %v493
        %559 = vmatprep.subr.mxu0 %v496
        %560 = vmatpush1.msra.mxu0 %v495
        %561 = vmatprep.subr.mxu0 %v498
        %562 = vmatpush1.msra.mxu0 %v497
        %563 = vmatprep.subr.mxu0 %v500
        %564 = vmatpush1.msra.mxu0 %v499
        %565 = vmatprep.subr.mxu0 %v502
        %566 = vmatpush1.msra.mxu0 %v501
        %567 = vmatprep.subr.mxu0 %v504
        %568 = vmatpush1.msra.mxu0 %v503
        %569 = vmatprep.subr.mxu0 %v506
        %570 = vmatpush1.msra.mxu0 %v505
        %571 = vmatprep.subr.mxu0 %v508
        %572 = vmatpush1.msra.mxu0 %v507
        %573 = vmatprep.subr.mxu0 %v510
        %574 = vmatpush1.msra.mxu0 %v509
        %575 = vmatprep.subr.mxu0 %v512
        %576 = vmatpush1.msra.mxu0 %v511
        %577 = vmatprep.subr.mxu0 %v514
        %578 = vmatpush1.msra.mxu0 %v513
        %579 = vmatprep.subr.mxu0 %v516
        %580 = vmatpush1.msra.mxu0 %v515
        %581 = vmatprep.subr.mxu0 %v518
        %582 = vmatpush1.msra.mxu0 %v517
        %583 = vmatprep.subr.mxu0 %v520
        %584 = vmatpush1.msra.mxu0 %v519
        %585 = vmatprep.subr.mxu0 %v522
        %586 = vmatpush1.msra.mxu0 %v521
        %587 = vmatprep.subr.mxu0 %v524
        %588 = vmatpush1.msra.mxu0 %v523
        %589 = vmatprep.subr.mxu0 %v526
        %590 = vmatpush1.msra.mxu0 %v525
        %591 = vmatprep.subr.mxu0 %v528
        %592 = vmatpush1.msra.mxu0 %v527
        %593 = vmatprep.subr.mxu0 %v530
        %594 = vmatpush1.msra.mxu0 %v529
        %595 = vmatprep.subr.mxu0 %v532
        %596 = vmatpush1.msra.mxu0 %v531
        %597 = vmatprep.mubr.f32.mxu0 %v406
        %598 = vmatmul.mubr.f32.gmra.mrb[0].mxu0 %v405
        %v599 = vpop.f32.mrb[0].mxu0
        %v600 = vadd.f32 0.0, %v599
        %v601 = vpop.f32.mrb[0].mxu0
        %v602 = vadd.f32 0.0, %v601
        %603 = vmatprep.mubr.f32.mxu0 %v408
        %604 = vmatmul.mubr.f32.gmra.mrb[0].mxu0 %v407
        %v605 = vpop.f32.mrb[0].mxu0
        %v606 = vadd.f32 0.0, %v605
        %v607 = vpop.f32.mrb[0].mxu0
        %v608 = vadd.f32 0.0, %v607
        %609 = vmatprep.mubr.f32.mxu0 %v410
        %610 = vmatmul.mubr.f32.gmra.mrb[0].mxu0 %v409
        %v611 = vpop.f32.mrb[0].mxu0
        %v612 = vadd.f32 0.0, %v611
        %v613 = vpop.f32.mrb[0].mxu0
        %v614 = vadd.f32 0.0, %v613
        %615 = vmatprep.mubr.f32.mxu0 %v412
        %616 = vmatmul.mubr.f32.gmra.mrb[0].mxu0 %v411
        %v617 = vpop.f32.mrb[0].mxu0
        %v618 = vadd.f32 0.0, %v617
        %v619 = vpop.f32.mrb[0].mxu0
        %v620 = vadd.f32 0.0, %v619
        %621 = vmatprep.mubr.f32.mxu0 %v414
        %622 = vmatmul.mubr.f32.gmra.mrb[0].mxu0 %v413
        %v623 = vpop.f32.mrb[0].mxu0
        %v624 = vadd.f32 0.0, %v623
        %v625 = vpop.f32.mrb[0].mxu0
        %v626 = vadd.f32 0.0, %v625
        %627 = vmatprep.mubr.f32.mxu0 %v416
        %628 = vmatmul.mubr.f32.gmra.mrb[0].mxu0 %v415
        %v629 = vpop.f32.mrb[0].mxu0
        %v630 = vadd.f32 0.0, %v629
        %v631 = vpop.f32.mrb[0].mxu0
        %v632 = vadd.f32 0.0, %v631
        %633 = vmatprep.mubr.f32.mxu0 %v418
        %634 = vmatmul.mubr.f32.gmra.mrb[0].mxu0 %v417
        %v635 = vpop.f32.mrb[0].mxu0
        %v636 = vadd.f32 0.0, %v635
        %v637 = vpop.f32.mrb[0].mxu0
        %v638 = vadd.f32 0.0, %v637
        %639 = vmatprep.mubr.f32.mxu0 %v420
        %640 = vmatmul.mubr.f32.gmra.mrb[0].mxu0 %v419
        %v641 = vpop.f32.mrb[0].mxu0
        %v642 = vadd.f32 0.0, %v641
        %v643 = vpop.f32.mrb[0].mxu0
        %v644 = vadd.f32 0.0, %v643
        %645 = vmatprep.mubr.f32.mxu0 %v422
        %646 = vmatmul.mubr.f32.gmra.mrb[0].mxu0 %v421
        %v647 = vpop.f32.mrb[0].mxu0
        %v648 = vadd.f32 0.0, %v647
        %v649 = vpop.f32.mrb[0].mxu0
        %v650 = vadd.f32 0.0, %v649
        %651 = vmatprep.mubr.f32.mxu0 %v424
        %652 = vmatmul.mubr.f32.gmra.mrb[0].mxu0 %v423
        %v653 = vpop.f32.mrb[0].mxu0
        %v654 = vadd.f32 0.0, %v653
        %v655 = vpop.f32.mrb[0].mxu0
        %v656 = vadd.f32 0.0, %v655
        %657 = vmatprep.mubr.f32.mxu0 %v426
        %658 = vmatmul.mubr.f32.gmra.mrb[0].mxu0 %v425
        %v659 = vpop.f32.mrb[0].mxu0
        %v660 = vadd.f32 0.0, %v659
        %v661 = vpop.f32.mrb[0].mxu0
        %v662 = vadd.f32 0.0, %v661
        %663 = vmatprep.mubr.f32.mxu0 %v428
        %664 = vmatmul.mubr.f32.gmra.mrb[0].mxu0 %v427
        %v665 = vpop.f32.mrb[0].mxu0
        %v666 = vadd.f32 0.0, %v665
        %v667 = vpop.f32.mrb[0].mxu0
        %v668 = vadd.f32 0.0, %v667
        %669 = vmatprep.mubr.f32.mxu0 %v430
        %670 = vmatmul.mubr.f32.gmra.mrb[0].mxu0 %v429
        %v671 = vpop.f32.mrb[0].mxu0
        %v672 = vadd.f32 0.0, %v671
        %v673 = vpop.f32.mrb[0].mxu0
        %v674 = vadd.f32 0.0, %v673
        %675 = vmatprep.mubr.f32.mxu0 %v432
        %676 = vmatmul.mubr.f32.gmra.mrb[0].mxu0 %v431
        %v677 = vpop.f32.mrb[0].mxu0
        %v678 = vadd.f32 0.0, %v677
        %v679 = vpop.f32.mrb[0].mxu0
        %v680 = vadd.f32 0.0, %v679
        %681 = vmatprep.mubr.f32.mxu0 %v434
        %682 = vmatmul.mubr.f32.gmra.mrb[0].mxu0 %v433
        %v683 = vpop.f32.mrb[0].mxu0
        %v684 = vadd.f32 0.0, %v683
        %v685 = vpop.f32.mrb[0].mxu0
        %v686 = vadd.f32 0.0, %v685
        %687 = vmatprep.mubr.f32.mxu0 %v436
        %688 = vmatmul.mubr.f32.gmra.mrb[0].mxu0 %v435
        %v689 = vpop.f32.mrb[0].mxu0
        %v690 = vadd.f32 0.0, %v689
        %v691 = vpop.f32.mrb[0].mxu0
        %v692 = vadd.f32 0.0, %v691
        %693 = vmatprep.mubr.f32.mxu0 %v438
        %694 = vmatmul.mubr.f32.gmra.mrb[0].mxu0 %v437
        %v695 = vpop.f32.mrb[0].mxu0
        %v696 = vadd.f32 0.0, %v695
        %v697 = vpop.f32.mrb[0].mxu0
        %v698 = vadd.f32 0.0, %v697
        %699 = vmatprep.mubr.f32.mxu0 %v440
        %700 = vmatmul.mubr.f32.gmra.mrb[0].mxu0 %v439
        %v701 = vpop.f32.mrb[0].mxu0
        %v702 = vadd.f32 0.0, %v701
        %v703 = vpop.f32.mrb[0].mxu0
        %v704 = vadd.f32 0.0, %v703
        %705 = vmatprep.mubr.f32.mxu0 %v442
        %706 = vmatmul.mubr.f32.gmra.mrb[0].mxu0 %v441
        %v707 = vpop.f32.mrb[0].mxu0
        %v708 = vadd.f32 0.0, %v707
        %v709 = vpop.f32.mrb[0].mxu0
        %v710 = vadd.f32 0.0, %v709
        %711 = vmatprep.mubr.f32.mxu0 %v444
        %712 = vmatmul.mubr.f32.gmra.mrb[0].mxu0 %v443
        %v713 = vpop.f32.mrb[0].mxu0
        %v714 = vadd.f32 0.0, %v713
        %v715 = vpop.f32.mrb[0].mxu0
        %v716 = vadd.f32 0.0, %v715
        %717 = vmatprep.mubr.f32.mxu0 %v446
        %718 = vmatmul.mubr.f32.gmra.mrb[0].mxu0 %v445
        %v719 = vpop.f32.mrb[0].mxu0
        %v720 = vadd.f32 0.0, %v719
        %v721 = vpop.f32.mrb[0].mxu0
        %v722 = vadd.f32 0.0, %v721
        %723 = vmatprep.mubr.f32.mxu0 %v448
        %724 = vmatmul.mubr.f32.gmra.mrb[0].mxu0 %v447
        %v725 = vpop.f32.mrb[0].mxu0
        %v726 = vadd.f32 0.0, %v725
        %v727 = vpop.f32.mrb[0].mxu0
        %v728 = vadd.f32 0.0, %v727
        %729 = vmatprep.mubr.f32.mxu0 %v450
        %730 = vmatmul.mubr.f32.gmra.mrb[0].mxu0 %v449
        %v731 = vpop.f32.mrb[0].mxu0
        %v732 = vadd.f32 0.0, %v731
        %v733 = vpop.f32.mrb[0].mxu0
        %v734 = vadd.f32 0.0, %v733
        %735 = vmatprep.mubr.f32.mxu0 %v452
        %736 = vmatmul.mubr.f32.gmra.mrb[0].mxu0 %v451
        %v737 = vpop.f32.mrb[0].mxu0
        %v738 = vadd.f32 0.0, %v737
        %v739 = vpop.f32.mrb[0].mxu0
        %v740 = vadd.f32 0.0, %v739
        %741 = vmatprep.mubr.f32.mxu0 %v454
        %742 = vmatmul.mubr.f32.gmra.mrb[0].mxu0 %v453
        %v743 = vpop.f32.mrb[0].mxu0
        %v744 = vadd.f32 0.0, %v743
        %v745 = vpop.f32.mrb[0].mxu0
        %v746 = vadd.f32 0.0, %v745
        %747 = vmatprep.mubr.f32.mxu0 %v456
        %748 = vmatmul.mubr.f32.gmra.mrb[0].mxu0 %v455
        %v749 = vpop.f32.mrb[0].mxu0
        %v750 = vadd.f32 0.0, %v749
        %v751 = vpop.f32.mrb[0].mxu0
        %v752 = vadd.f32 0.0, %v751
        %753 = vmatprep.mubr.f32.mxu0 %v458
        %754 = vmatmul.mubr.f32.gmra.mrb[0].mxu0 %v457
        %v755 = vpop.f32.mrb[0].mxu0
        %v756 = vadd.f32 0.0, %v755
        %v757 = vpop.f32.mrb[0].mxu0
        %v758 = vadd.f32 0.0, %v757
        %759 = vmatprep.mubr.f32.mxu0 %v460
        %760 = vmatmul.mubr.f32.gmra.mrb[0].mxu0 %v459
        %v761 = vpop.f32.mrb[0].mxu0
        %v762 = vadd.f32 0.0, %v761
        %v763 = vpop.f32.mrb[0].mxu0
        %v764 = vadd.f32 0.0, %v763
        %765 = vmatprep.mubr.f32.mxu0 %v462
        %766 = vmatmul.mubr.f32.gmra.mrb[0].mxu0 %v461
        %v767 = vpop.f32.mrb[0].mxu0
        %v768 = vadd.f32 0.0, %v767
        %v769 = vpop.f32.mrb[0].mxu0
        %v770 = vadd.f32 0.0, %v769
        %771 = vmatprep.mubr.f32.mxu0 %v464
        %772 = vmatmul.mubr.f32.gmra.mrb[0].mxu0 %v463
        %v773 = vpop.f32.mrb[0].mxu0
        %v774 = vadd.f32 0.0, %v773
        %v775 = vpop.f32.mrb[0].mxu0
        %v776 = vadd.f32 0.0, %v775
        %777 = vmatprep.mubr.f32.mxu0 %v466
        %778 = vmatmul.mubr.f32.gmra.mrb[0].mxu0 %v465
        %v779 = vpop.f32.mrb[0].mxu0
        %v780 = vadd.f32 0.0, %v779
        %v781 = vpop.f32.mrb[0].mxu0
        %v782 = vadd.f32 0.0, %v781
        %783 = vmatprep.mubr.f32.mxu0 %v468
        %784 = vmatmul.mubr.f32.gmra.mrb[0].mxu0 %v467
        %v785 = vpop.f32.mrb[0].mxu0
        %v786 = vadd.f32 0.0, %v785
        %v787 = vpop.f32.mrb[0].mxu0
        %v788 = vadd.f32 0.0, %v787
        %789 = vdwg.mxu0
        %v790 = vadd.f32 %v341, %v600
        %v791 = vadd.f32 %v342, %v602
        %v792 = vadd.f32 %v343, %v606
        %v793 = vadd.f32 %v344, %v608
        %v794 = vadd.f32 %v345, %v612
        %v795 = vadd.f32 %v346, %v614
        %v796 = vadd.f32 %v347, %v618
        %v797 = vadd.f32 %v348, %v620
        %v798 = vadd.f32 %v349, %v624
        %v799 = vadd.f32 %v350, %v626
        %v800 = vadd.f32 %v351, %v630
        %v801 = vadd.f32 %v352, %v632
        %v802 = vadd.f32 %v353, %v636
        %v803 = vadd.f32 %v354, %v638
        %v804 = vadd.f32 %v355, %v642
        %v805 = vadd.f32 %v356, %v644
        %v806 = vadd.f32 %v357, %v648
        %v807 = vadd.f32 %v358, %v650
        %v808 = vadd.f32 %v359, %v654
        %v809 = vadd.f32 %v360, %v656
        %v810 = vadd.f32 %v361, %v660
        %v811 = vadd.f32 %v362, %v662
        %v812 = vadd.f32 %v363, %v666
        %v813 = vadd.f32 %v364, %v668
        %v814 = vadd.f32 %v365, %v672
        %v815 = vadd.f32 %v366, %v674
        %v816 = vadd.f32 %v367, %v678
        %v817 = vadd.f32 %v368, %v680
        %v818 = vadd.f32 %v369, %v684
        %v819 = vadd.f32 %v370, %v686
        %v820 = vadd.f32 %v371, %v690
        %v821 = vadd.f32 %v372, %v692
        %v822 = vadd.f32 %v373, %v696
        %v823 = vadd.f32 %v374, %v698
        %v824 = vadd.f32 %v375, %v702
        %v825 = vadd.f32 %v376, %v704
        %v826 = vadd.f32 %v377, %v708
        %v827 = vadd.f32 %v378, %v710
        %v828 = vadd.f32 %v379, %v714
        %v829 = vadd.f32 %v380, %v716
        %v830 = vadd.f32 %v381, %v720
        %v831 = vadd.f32 %v382, %v722
        %v832 = vadd.f32 %v383, %v726
        %v833 = vadd.f32 %v384, %v728
        %v834 = vadd.f32 %v385, %v732
        %v835 = vadd.f32 %v386, %v734
        %v836 = vadd.f32 %v387, %v738
        %v837 = vadd.f32 %v388, %v740
        %v838 = vadd.f32 %v389, %v744
        %v839 = vadd.f32 %v390, %v746
        %v840 = vadd.f32 %v391, %v750
        %v841 = vadd.f32 %v392, %v752
        %v842 = vadd.f32 %v393, %v756
        %v843 = vadd.f32 %v394, %v758
        %v844 = vadd.f32 %v395, %v762
        %v845 = vadd.f32 %v396, %v764
        %v846 = vadd.f32 %v397, %v768
        %v847 = vadd.f32 %v398, %v770
        %v848 = vadd.f32 %v399, %v774
        %v849 = vadd.f32 %v400, %v776
        %v850 = vadd.f32 %v401, %v780
        %v851 = vadd.f32 %v402, %v782
        %v852 = vadd.f32 %v403, %v786
        %v853 = vadd.f32 %v404, %v788
        %854 = vst [vmem:[#allocation2] sm:$0xff] %v790
        %855 = vst [vmem:[#allocation2 + $0x8] sm:$0xff] %v791
        %856 = vst [vmem:[#allocation2 + $0x10] sm:$0xff] %v792
        %857 = vst [vmem:[#allocation2 + $0x18] sm:$0xff] %v793
        %858 = vst [vmem:[#allocation2 + $0x20] sm:$0xff] %v794
        %859 = vst [vmem:[#allocation2 + $0x28] sm:$0xff] %v795
        %860 = vst [vmem:[#allocation2 + $0x30] sm:$0xff] %v796
        %861 = vst [vmem:[#allocation2 + $0x38] sm:$0xff] %v797
        %862 = vst [vmem:[#allocation2 + $0x40] sm:$0xff] %v798
        %863 = vst [vmem:[#allocation2 + $0x48] sm:$0xff] %v799
        %864 = vst [vmem:[#allocation2 + $0x50] sm:$0xff] %v800
        %865 = vst [vmem:[#allocation2 + $0x58] sm:$0xff] %v801
        %866 = vst [vmem:[#allocation2 + $0x60] sm:$0xff] %v802
        %867 = vst [vmem:[#allocation2 + $0x68] sm:$0xff] %v803
        %868 = vst [vmem:[#allocation2 + $0x70] sm:$0xff] %v804
        %869 = vst [vmem:[#allocation2 + $0x78] sm:$0xff] %v805
        %870 = vst [vmem:[#allocation2 + $0x80] sm:$0xff] %v806
        %871 = vst [vmem:[#allocation2 + $0x88] sm:$0xff] %v807
        %872 = vst [vmem:[#allocation2 + $0x90] sm:$0xff] %v808
        %873 = vst [vmem:[#allocation2 + $0x98] sm:$0xff] %v809
        %874 = vst [vmem:[#allocation2 + $0xa0] sm:$0xff] %v810
        %875 = vst [vmem:[#allocation2 + $0xa8] sm:$0xff] %v811
        %876 = vst [vmem:[#allocation2 + $0xb0] sm:$0xff] %v812
        %877 = vst [vmem:[#allocation2 + $0xb8] sm:$0xff] %v813
        %878 = vst [vmem:[#allocation2 + $0xc0] sm:$0xff] %v814
        %879 = vst [vmem:[#allocation2 + $0xc8] sm:$0xff] %v815
        %880 = vst [vmem:[#allocation2 + $0xd0] sm:$0xff] %v816
        %881 = vst [vmem:[#allocation2 + $0xd8] sm:$0xff] %v817
        %882 = vst [vmem:[#allocation2 + $0xe0] sm:$0xff] %v818
        %883 = vst [vmem:[#allocation2 + $0xe8] sm:$0xff] %v819
        %884 = vst [vmem:[#allocation2 + $0xf0] sm:$0xff] %v820
        %885 = vst [vmem:[#allocation2 + $0xf8] sm:$0xff] %v821
        %886 = vst [vmem:[#allocation2 + $0x100] sm:$0xff] %v822
        %887 = vst [vmem:[#allocation2 + $0x108] sm:$0xff] %v823
        %888 = vst [vmem:[#allocation2 + $0x110] sm:$0xff] %v824
        %889 = vst [vmem:[#allocation2 + $0x118] sm:$0xff] %v825
        %890 = vst [vmem:[#allocation2 + $0x120] sm:$0xff] %v826
        %891 = vst [vmem:[#allocation2 + $0x128] sm:$0xff] %v827
        %892 = vst [vmem:[#allocation2 + $0x130] sm:$0xff] %v828
        %893 = vst [vmem:[#allocation2 + $0x138] sm:$0xff] %v829
        %894 = vst [vmem:[#allocation2 + $0x140] sm:$0xff] %v830
        %895 = vst [vmem:[#allocation2 + $0x148] sm:$0xff] %v831
        %896 = vst [vmem:[#allocation2 + $0x150] sm:$0xff] %v832
        %897 = vst [vmem:[#allocation2 + $0x158] sm:$0xff] %v833
        %898 = vst [vmem:[#allocation2 + $0x160] sm:$0xff] %v834
        %899 = vst [vmem:[#allocation2 + $0x168] sm:$0xff] %v835
        %900 = vst [vmem:[#allocation2 + $0x170] sm:$0xff] %v836
        %901 = vst [vmem:[#allocation2 + $0x178] sm:$0xff] %v837
        %902 = vst [vmem:[#allocation2 + $0x180] sm:$0xff] %v838
        %903 = vst [vmem:[#allocation2 + $0x188] sm:$0xff] %v839
        %904 = vst [vmem:[#allocation2 + $0x190] sm:$0xff] %v840
        %905 = vst [vmem:[#allocation2 + $0x198] sm:$0xff] %v841
        %906 = vst [vmem:[#allocation2 + $0x1a0] sm:$0xff] %v842
        %907 = vst [vmem:[#allocation2 + $0x1a8] sm:$0xff] %v843
        %908 = vst [vmem:[#allocation2 + $0x1b0] sm:$0xff] %v844
        %909 = vst [vmem:[#allocation2 + $0x1b8] sm:$0xff] %v845
        %910 = vst [vmem:[#allocation2 + $0x1c0] sm:$0xff] %v846
        %911 = vst [vmem:[#allocation2 + $0x1c8] sm:$0xff] %v847
        %912 = vst [vmem:[#allocation2 + $0x1d0] sm:$0xff] %v848
        %913 = vst [vmem:[#allocation2 + $0x1d8] sm:$0xff] %v849
        %914 = vst [vmem:[#allocation2 + $0x1e0] sm:$0xff] %v850
        %915 = vst [vmem:[#allocation2 + $0x1e8] sm:$0xff] %v851
        %916 = vst [vmem:[#allocation2 + $0x1f0] sm:$0xff] %v852
        %917 = vst [vmem:[#allocation2 + $0x1f8] sm:$0xff] %v853
        // Predicated region
        $region37: #{attention_forward.5} parent=31 // pred_check
          %p918 = pneg %p273
        $region38: #{attention_forward.5} parent=31 // pred_check_branch
          %920 = sbr.rel (%p918) target = $region40
        $region39: #{attention_forward.5} parent=31 // pred_region
          %v921 = vld [vmem:[#allocation2] sm:$0xff]
          %v922 = vld [vmem:[#allocation2 + $0x8] sm:$0xff]
          %v923 = vld [vmem:[#allocation2 + $0x10] sm:$0xff]
          %v924 = vld [vmem:[#allocation2 + $0x18] sm:$0xff]
          %v925 = vld [vmem:[#allocation2 + $0x20] sm:$0xff]
          %v926 = vld [vmem:[#allocation2 + $0x28] sm:$0xff]
          %v927 = vld [vmem:[#allocation2 + $0x30] sm:$0xff]
          %v928 = vld [vmem:[#allocation2 + $0x38] sm:$0xff]
          %v929 = vld [vmem:[#allocation2 + $0x40] sm:$0xff]
          %v930 = vld [vmem:[#allocation2 + $0x48] sm:$0xff]
          %v931 = vld [vmem:[#allocation2 + $0x50] sm:$0xff]
          %v932 = vld [vmem:[#allocation2 + $0x58] sm:$0xff]
          %v933 = vld [vmem:[#allocation2 + $0x60] sm:$0xff]
          %v934 = vld [vmem:[#allocation2 + $0x68] sm:$0xff]
          %v935 = vld [vmem:[#allocation2 + $0x70] sm:$0xff]
          %v936 = vld [vmem:[#allocation2 + $0x78] sm:$0xff]
          %v937 = vld [vmem:[#allocation2 + $0x80] sm:$0xff]
          %v938 = vld [vmem:[#allocation2 + $0x88] sm:$0xff]
          %v939 = vld [vmem:[#allocation2 + $0x90] sm:$0xff]
          %v940 = vld [vmem:[#allocation2 + $0x98] sm:$0xff]
          %v941 = vld [vmem:[#allocation2 + $0xa0] sm:$0xff]
          %v942 = vld [vmem:[#allocation2 + $0xa8] sm:$0xff]
          %v943 = vld [vmem:[#allocation2 + $0xb0] sm:$0xff]
          %v944 = vld [vmem:[#allocation2 + $0xb8] sm:$0xff]
          %v945 = vld [vmem:[#allocation2 + $0xc0] sm:$0xff]
          %v946 = vld [vmem:[#allocation2 + $0xc8] sm:$0xff]
          %v947 = vld [vmem:[#allocation2 + $0xd0] sm:$0xff]
          %v948 = vld [vmem:[#allocation2 + $0xd8] sm:$0xff]
          %v949 = vld [vmem:[#allocation2 + $0xe0] sm:$0xff]
          %v950 = vld [vmem:[#allocation2 + $0xe8] sm:$0xff]
          %v951 = vld [vmem:[#allocation2 + $0xf0] sm:$0xff]
          %v952 = vld [vmem:[#allocation2 + $0xf8] sm:$0xff]
          %v953 = vld [vmem:[#allocation2 + $0x100] sm:$0xff]
          %v954 = vld [vmem:[#allocation2 + $0x108] sm:$0xff]
          %v955 = vld [vmem:[#allocation2 + $0x110] sm:$0xff]
          %v956 = vld [vmem:[#allocation2 + $0x118] sm:$0xff]
          %v957 = vld [vmem:[#allocation2 + $0x120] sm:$0xff]
          %v958 = vld [vmem:[#allocation2 + $0x128] sm:$0xff]
          %v959 = vld [vmem:[#allocation2 + $0x130] sm:$0xff]
          %v960 = vld [vmem:[#allocation2 + $0x138] sm:$0xff]
          %v961 = vld [vmem:[#allocation2 + $0x140] sm:$0xff]
          %v962 = vld [vmem:[#allocation2 + $0x148] sm:$0xff]
          %v963 = vld [vmem:[#allocation2 + $0x150] sm:$0xff]
          %v964 = vld [vmem:[#allocation2 + $0x158] sm:$0xff]
          %v965 = vld [vmem:[#allocation2 + $0x160] sm:$0xff]
          %v966 = vld [vmem:[#allocation2 + $0x168] sm:$0xff]
          %v967 = vld [vmem:[#allocation2 + $0x170] sm:$0xff]
          %v968 = vld [vmem:[#allocation2 + $0x178] sm:$0xff]
          %v969 = vld [vmem:[#allocation2 + $0x180] sm:$0xff]
          %v970 = vld [vmem:[#allocation2 + $0x188] sm:$0xff]
          %v971 = vld [vmem:[#allocation2 + $0x190] sm:$0xff]
          %v972 = vld [vmem:[#allocation2 + $0x198] sm:$0xff]
          %v973 = vld [vmem:[#allocation2 + $0x1a0] sm:$0xff]
          %v974 = vld [vmem:[#allocation2 + $0x1a8] sm:$0xff]
          %v975 = vld [vmem:[#allocation2 + $0x1b0] sm:$0xff]
          %v976 = vld [vmem:[#allocation2 + $0x1b8] sm:$0xff]
          %v977 = vld [vmem:[#allocation2 + $0x1c0] sm:$0xff]
          %v978 = vld [vmem:[#allocation2 + $0x1c8] sm:$0xff]
          %v979 = vld [vmem:[#allocation2 + $0x1d0] sm:$0xff]
          %v980 = vld [vmem:[#allocation2 + $0x1d8] sm:$0xff]
          %v981 = vld [vmem:[#allocation2 + $0x1e0] sm:$0xff]
          %v982 = vld [vmem:[#allocation2 + $0x1e8] sm:$0xff]
          %v983 = vld [vmem:[#allocation2 + $0x1f0] sm:$0xff]
          %v984 = vld [vmem:[#allocation2 + $0x1f8] sm:$0xff]
          %v985 = vld [vmem:[%s269] sm:$0x3]
          %v987 = vlaneseq
          %v988 = vshrl.u32 %v987, 7
          %v989 = vsub.s32 0, %v988
          %v990 = vrot.slane %v985, %v989
          %v991 = vlaneseq
          %v992 = vshrl.u32 %v991, 7
          %v993 = vsub.s32 1, %v992
          %v994 = vrot.slane %v985, %v993
          %v997 = vadd.f32 %v921, %v990
          %v998 = vadd.f32 %v922, %v994
          %v999 = vadd.f32 %v923, %v990
          %v1000 = vadd.f32 %v924, %v994
          %v1001 = vadd.f32 %v925, %v990
          %v1002 = vadd.f32 %v926, %v994
          %v1003 = vadd.f32 %v927, %v990
          %v1004 = vadd.f32 %v928, %v994
          %v1005 = vadd.f32 %v929, %v990
          %v1006 = vadd.f32 %v930, %v994
          %v1007 = vadd.f32 %v931, %v990
          %v1008 = vadd.f32 %v932, %v994
          %v1009 = vadd.f32 %v933, %v990
          %v1010 = vadd.f32 %v934, %v994
          %v1011 = vadd.f32 %v935, %v990
          %v1012 = vadd.f32 %v936, %v994
          %v1013 = vadd.f32 %v937, %v990
          %v1014 = vadd.f32 %v938, %v994
          %v1015 = vadd.f32 %v939, %v990
          %v1016 = vadd.f32 %v940, %v994
          %v1017 = vadd.f32 %v941, %v990
          %v1018 = vadd.f32 %v942, %v994
          %v1019 = vadd.f32 %v943, %v990
          %v1020 = vadd.f32 %v944, %v994
          %v1021 = vadd.f32 %v945, %v990
          %v1022 = vadd.f32 %v946, %v994
          %v1023 = vadd.f32 %v947, %v990
          %v1024 = vadd.f32 %v948, %v994
          %v1025 = vadd.f32 %v949, %v990
          %v1026 = vadd.f32 %v950, %v994
          %v1027 = vadd.f32 %v951, %v990
          %v1028 = vadd.f32 %v952, %v994
          %v1029 = vadd.f32 %v953, %v990
          %v1030 = vadd.f32 %v954, %v994
          %v1031 = vadd.f32 %v955, %v990
          %v1032 = vadd.f32 %v956, %v994
          %v1033 = vadd.f32 %v957, %v990
          %v1034 = vadd.f32 %v958, %v994
          %v1035 = vadd.f32 %v959, %v990
          %v1036 = vadd.f32 %v960, %v994
          %v1037 = vadd.f32 %v961, %v990
          %v1038 = vadd.f32 %v962, %v994
          %v1039 = vadd.f32 %v963, %v990
          %v1040 = vadd.f32 %v964, %v994
          %v1041 = vadd.f32 %v965, %v990
          %v1042 = vadd.f32 %v966, %v994
          %v1043 = vadd.f32 %v967, %v990
          %v1044 = vadd.f32 %v968, %v994
          %v1045 = vadd.f32 %v969, %v990
          %v1046 = vadd.f32 %v970, %v994
          %v1047 = vadd.f32 %v971, %v990
          %v1048 = vadd.f32 %v972, %v994
          %v1049 = vadd.f32 %v973, %v990
          %v1050 = vadd.f32 %v974, %v994
          %v1051 = vadd.f32 %v975, %v990
          %v1052 = vadd.f32 %v976, %v994
          %v1053 = vadd.f32 %v977, %v990
          %v1054 = vadd.f32 %v978, %v994
          %v1055 = vadd.f32 %v979, %v990
          %v1056 = vadd.f32 %v980, %v994
          %v1057 = vadd.f32 %v981, %v990
          %v1058 = vadd.f32 %v982, %v994
          %v1059 = vadd.f32 %v983, %v990
          %v1060 = vadd.f32 %v984, %v994
          %1061 = vst [vmem:[%s241] sm:$0xff] %v997
          %1062 = vst [vmem:[%s241 + $0x8] sm:$0xff] %v998
          %1063 = vst [vmem:[%s241 + $0x10] sm:$0xff] %v999
          %1064 = vst [vmem:[%s241 + $0x18] sm:$0xff] %v1000
          %1065 = vst [vmem:[%s241 + $0x20] sm:$0xff] %v1001
          %1066 = vst [vmem:[%s241 + $0x28] sm:$0xff] %v1002
          %1067 = vst [vmem:[%s241 + $0x30] sm:$0xff] %v1003
          %1068 = vst [vmem:[%s241 + $0x38] sm:$0xff] %v1004
          %1069 = vst [vmem:[%s241 + $0x40] sm:$0xff] %v1005
          %1070 = vst [vmem:[%s241 + $0x48] sm:$0xff] %v1006
          %1071 = vst [vmem:[%s241 + $0x50] sm:$0xff] %v1007
          %1072 = vst [vmem:[%s241 + $0x58] sm:$0xff] %v1008
          %1073 = vst [vmem:[%s241 + $0x60] sm:$0xff] %v1009
          %1074 = vst [vmem:[%s241 + $0x68] sm:$0xff] %v1010
          %1075 = vst [vmem:[%s241 + $0x70] sm:$0xff] %v1011
          %1076 = vst [vmem:[%s241 + $0x78] sm:$0xff] %v1012
          %1077 = vst [vmem:[%s241 + $0x80] sm:$0xff] %v1013
          %1078 = vst [vmem:[%s241 + $0x88] sm:$0xff] %v1014
          %1079 = vst [vmem:[%s241 + $0x90] sm:$0xff] %v1015
          %1080 = vst [vmem:[%s241 + $0x98] sm:$0xff] %v1016
          %1081 = vst [vmem:[%s241 + $0xa0] sm:$0xff] %v1017
          %1082 = vst [vmem:[%s241 + $0xa8] sm:$0xff] %v1018
          %1083 = vst [vmem:[%s241 + $0xb0] sm:$0xff] %v1019
          %1084 = vst [vmem:[%s241 + $0xb8] sm:$0xff] %v1020
          %1085 = vst [vmem:[%s241 + $0xc0] sm:$0xff] %v1021
          %1086 = vst [vmem:[%s241 + $0xc8] sm:$0xff] %v1022
          %1087 = vst [vmem:[%s241 + $0xd0] sm:$0xff] %v1023
          %1088 = vst [vmem:[%s241 + $0xd8] sm:$0xff] %v1024
          %1089 = vst [vmem:[%s241 + $0xe0] sm:$0xff] %v1025
          %1090 = vst [vmem:[%s241 + $0xe8] sm:$0xff] %v1026
          %1091 = vst [vmem:[%s241 + $0xf0] sm:$0xff] %v1027
          %1092 = vst [vmem:[%s241 + $0xf8] sm:$0xff] %v1028
          %1093 = vst [vmem:[%s241 + $0x100] sm:$0xff] %v1029
          %1094 = vst [vmem:[%s241 + $0x108] sm:$0xff] %v1030
          %1095 = vst [vmem:[%s241 + $0x110] sm:$0xff] %v1031
          %1096 = vst [vmem:[%s241 + $0x118] sm:$0xff] %v1032
          %1097 = vst [vmem:[%s241 + $0x120] sm:$0xff] %v1033
          %1098 = vst [vmem:[%s241 + $0x128] sm:$0xff] %v1034
          %1099 = vst [vmem:[%s241 + $0x130] sm:$0xff] %v1035
          %1100 = vst [vmem:[%s241 + $0x138] sm:$0xff] %v1036
          %1101 = vst [vmem:[%s241 + $0x140] sm:$0xff] %v1037
          %1102 = vst [vmem:[%s241 + $0x148] sm:$0xff] %v1038
          %1103 = vst [vmem:[%s241 + $0x150] sm:$0xff] %v1039
          %1104 = vst [vmem:[%s241 + $0x158] sm:$0xff] %v1040
          %1105 = vst [vmem:[%s241 + $0x160] sm:$0xff] %v1041
          %1106 = vst [vmem:[%s241 + $0x168] sm:$0xff] %v1042
          %1107 = vst [vmem:[%s241 + $0x170] sm:$0xff] %v1043
          %1108 = vst [vmem:[%s241 + $0x178] sm:$0xff] %v1044
          %1109 = vst [vmem:[%s241 + $0x180] sm:$0xff] %v1045
          %1110 = vst [vmem:[%s241 + $0x188] sm:$0xff] %v1046
          %1111 = vst [vmem:[%s241 + $0x190] sm:$0xff] %v1047
          %1112 = vst [vmem:[%s241 + $0x198] sm:$0xff] %v1048
          %1113 = vst [vmem:[%s241 + $0x1a0] sm:$0xff] %v1049
          %1114 = vst [vmem:[%s241 + $0x1a8] sm:$0xff] %v1050
          %1115 = vst [vmem:[%s241 + $0x1b0] sm:$0xff] %v1051
          %1116 = vst [vmem:[%s241 + $0x1b8] sm:$0xff] %v1052
          %1117 = vst [vmem:[%s241 + $0x1c0] sm:$0xff] %v1053
          %1118 = vst [vmem:[%s241 + $0x1c8] sm:$0xff] %v1054
          %1119 = vst [vmem:[%s241 + $0x1d0] sm:$0xff] %v1055
          %1120 = vst [vmem:[%s241 + $0x1d8] sm:$0xff] %v1056
          %1121 = vst [vmem:[%s241 + $0x1e0] sm:$0xff] %v1057
          %1122 = vst [vmem:[%s241 + $0x1e8] sm:$0xff] %v1058
          %1123 = vst [vmem:[%s241 + $0x1f0] sm:$0xff] %v1059
          %1124 = vst [vmem:[%s241 + $0x1f8] sm:$0xff] %v1060
        $region40: #{attention_forward.5} parent=31 // pred_fallthru
          _
        %s1125 = sand.u32 %s128, 1
        %s1126 = scalar_lea.sflag [#allocation4], %s1125
        %s1127 = sand.u32 %s128, 1
        %s1128 = smul.addr %s1127, 512
        %s1129 = scalar_lea.vmem [#allocation3], %s1128
        // Predicated region
        $region41: #{attention_forward.5} parent=31 // pred_check
          %p1130 = pneg %p138
        $region42: #{attention_forward.5} parent=31 // pred_check_branch
          %1132 = sbr.rel (%p1130) target = $region44
        $region43: #{attention_forward.5} parent=31 // pred_region
          %s1133 = smul.u32 32, %s22
          %s1134 = smul.u32 2, %s23
          %s1136 = ssub.s32 8192, 8192
          %1137 = vsyncadd %s1126, %s1136
          %s1138 = smul.addr %s1133, 2
          %s1139 = sadd.s32 %s1134, %s1138
          %s1140 = smul.addr %s1139, 128
          %s1141 = scalar_lea.hbm %s3, %s1140
          %s1142 = sshll.u32 %s1129, 4
          %s1143 = int_to_ptr.vmem [resolvable:$true] %s1142
          %1148 = dma.vmem_to_hbm [thread:$0]  %s1143, 8192, %s1141, %s1126, 256, 256, 16
        $region44: #{attention_forward.5} parent=31 // pred_fallthru
          _
      $region32: #{attention_forward.5} parent=5 // pred_fallthru
        _
      %p1149 = scmp.le.s32.totalorder 2, %s12
      // Predicated region
      $region45: #{attention_forward.5} parent=5 // pred_check
        %p1150 = pneg %p1149
      $region46: #{attention_forward.5} parent=5 // pred_check_branch
        %1152 = sbr.rel (%p1150) target = $region48
      $region47: #{attention_forward.5} parent=5 // pred_region
        %s1153 = ssub.s32 %s12, 2
        // Predicated region
        $region49: #{attention_forward.5} parent=47 // pred_check
          %p1154 = pneg %p144
        $region50: #{attention_forward.5} parent=47 // pred_check_branch
          %1156 = sbr.rel (%p1154) target = $region52
        $region51: #{attention_forward.5} parent=47 // pred_region
          %s1157 = sand.u32 %s129, 1
          %s1158 = scalar_lea.sflag [#allocation4], %s1157
          %s1159 = sand.u32 %s129, 1
          %s1160 = smul.addr %s1159, 512
          %s1161 = scalar_lea.vmem [#allocation3], %s1160
          %1162 = dma.done %s1158, 8192
        $region52: #{attention_forward.5} parent=47 // pred_fallthru
          _
      $region48: #{attention_forward.5} parent=5 // pred_fallthru
        _
    $region6: #{attention_forward.5} parent=1 // loop_footer
      %s16 = sadd.s32 1, %s12
    $region7: #{attention_forward.5} parent=1 // loop_footer_branch
      %11 = sbr.rel target = $region3
    $region8: #{attention_forward.5} parent=1 // loop_exit
      _
    %1163 = vsyncpa [#allocation4], 1
    %s1164 = scalar_lea.sflag [#allocation4], 1
    %1165 = vsyncpa %s1164, 1

// kernel: attention_forward.3
$region0: #{attention_forward.3}
  #allocation0 [shape = 'u32[]', space=smem, size = 0x4, offset = 0x4, fixed_abs, tag = 'smem constant byte address 0x4 - core index']
  #allocation1 [shape = 'u32[144,128]{1,0:T(1,128)}', space=vmem, size = 0x12000, scoped, tag = 'internal scratch']
  #allocation2 [shape = 'f32[256,256]{1,0:T(8,128)}', space=vmem, size = 0x40000, scoped, tag = 'scratch operand']
  %s0 = inlined_call_operand.hbm [shape: f32[512,256], index: 0, kind: input, shape index: {}]
  %s1 = inlined_call_operand.hbm [shape: f32[256,768], index: 1, kind: input, shape index: {}]
  %s2 = inlined_call_operand.vmem [shape: f32[1,768], index: 2, kind: input, shape index: {}]
  %s3 = inlined_call_operand.vmem [shape: f32[512,768], index: 3, kind: output, shape index: {}]
  %s4 = sld [smem:[#allocation0]]
  $region80: #{attention_forward.3} parent=0
    _
  %s6 = ssub.s32 1, %s4
  %s7 = scalar_select 0, %s6, %s4
  $region1: #{attention_forward.3} parent=0
    #allocation3 [shape = 'u8[524288]{0}', space=vmem, size = 0x80000, scoped, tag = 'input window, operand 0']
    #allocation4 [shape = 's32[2]{0}', space=sflag, size = 0x8, scoped, tag = 'scoped memory for attention_forward.3']
    #allocation5 [shape = 'u8[524288]{0}', space=vmem, size = 0x80000, scoped, tag = 'input window, operand 1']
    #allocation6 [shape = 's32[2]{0}', space=sflag, size = 0x8, scoped, tag = 'scoped memory for attention_forward.3']
    #allocation7 [shape = 'u8[524288]{0}', space=vmem, size = 0x80000, scoped, tag = 'output window, operand 0']
    %8 = vsyncpa [#allocation4], 0
    %s9 = scalar_lea.sflag [#allocation4], 1
    %10 = vsyncpa %s9, 0
    %11 = vsyncpa [#allocation6], 0
    %s12 = scalar_lea.sflag [#allocation6], 1
    %13 = vsyncpa %s12, 0
    loop: start=0, step=1, limit=8
    $region2: #{attention_forward.3} parent=1 // loop_pre_header
      _
    $region3: #{attention_forward.3} parent=1 // loop_header
      %s15 = sphi 0, %s19
      %p16 = scmp.ge.s32.totalorder %s15, 8
      %s22 = sphi 0, %s41
      %s23 = sphi 0, %s37
      %s24 = sphi 0, %s33
      %s25 = sphi 0, %s22
      %s26 = sphi 0, %s23
      %s27 = sphi 0, %s24
      %s28 = sphi 0, %s25
      %s29 = sphi 0, %s26
      %s30 = sphi 0, %s27
      %s46 = sphi 0, %s48
      %s49 = sphi 0, %s46
      %s50 = sphi 0, %s49
      %s66 = sphi 0, %s50
      %s74 = sphi 0, %s76
      %s77 = sphi 0, %s74
      %s78 = sphi 0, %s77
      %s94 = sphi 0, %s78
      %s100 = sphi 0, %s102
      %s103 = sphi 0, %s100
      %s104 = sphi 0, %s103
      %s120 = sphi 0, %s104
      %s128 = sphi 0, %s130
      %s131 = sphi 0, %s128
      %s132 = sphi 0, %s131
      %s148 = sphi 0, %s132
    $region4: #{attention_forward.3} parent=1 // loop_header_branch
      %18 = sbr.rel (%p16) target = $region8
    $region5: #{attention_forward.3} parent=1 // loop_body
      %s20 = ssub.s32 %s15, 1
      %s21 = ssub.s32 %s15, 2
      %s31 = sadd.s32 1, %s24
      %p32 = scmp.ge.s32.totalorder %s31, 1
      %s33 = scalar_select %p32, 0, %s31
      %s34 = sadd.s32 1, %s23
      %s35 = scalar_select %p32, %s34, %s23
      %p36 = scmp.ge.s32.totalorder %s35, 3
      %s37 = scalar_select %p36, 0, %s35
      %s38 = sadd.s32 1, %s22
      %s39 = scalar_select %p36, %s38, %s22
      %p40 = scmp.ge.s32.totalorder %s39, 2
      %s41 = scalar_select %p40, 0, %s39
      %s42 = ssub.s32 %s22, %s41
      %s43 = ssub.s32 %s24, %s33
      %s44 = sor.u32 %s42, %s43
      %p45 = scmp.eq.s32.totalorder %s44, 0
      %s47 = sadd.s32 %s46, 1
      %s48 = scalar_select %p45, %s46, %s47
      %p51 = pneg %p45
      %p52 = scmp.eq.s32.totalorder %s15, 5
      %p53 = por %p51, %p52
      %p54 = scmp.ne.s32.totalorder %s46, %s49
      %p55 = scmp.eq.s32.totalorder %s15, 0
      %p56 = por %p54, %p55
      %p57 = scmp.ne.s32.totalorder %s46, %s49
      %p58 = scmp.eq.s32.totalorder %s20, 5
      %p59 = por %p57, %p58
      %p60 = scmp.ne.s32.totalorder %s49, %s50
      %p61 = scmp.eq.s32.totalorder %s20, 0
      %p62 = por %p60, %p61
      %p63 = scmp.ne.s32.totalorder %s49, %s50
      %p64 = scmp.eq.s32.totalorder %s21, 5
      %p65 = por %p63, %p64
      %p67 = scmp.ne.s32.totalorder %s50, %s66
      %p68 = scmp.eq.s32.totalorder %s21, 0
      %p69 = por %p67, %p68
      %s70 = ssub.s32 %s24, %s33
      %s71 = ssub.s32 %s23, %s37
      %s72 = sor.u32 %s70, %s71
      %p73 = scmp.eq.s32.totalorder %s72, 0
      %s75 = sadd.s32 %s74, 1
      %s76 = scalar_select %p73, %s74, %s75
      %p79 = pneg %p73
      %p80 = scmp.eq.s32.totalorder %s15, 5
      %p81 = por %p79, %p80
      %p82 = scmp.ne.s32.totalorder %s74, %s77
      %p83 = scmp.eq.s32.totalorder %s15, 0
      %p84 = por %p82, %p83
      %p85 = scmp.ne.s32.totalorder %s74, %s77
      %p86 = scmp.eq.s32.totalorder %s20, 5
      %p87 = por %p85, %p86
      %p88 = scmp.ne.s32.totalorder %s77, %s78
      %p89 = scmp.eq.s32.totalorder %s20, 0
      %p90 = por %p88, %p89
      %p91 = scmp.ne.s32.totalorder %s77, %s78
      %p92 = scmp.eq.s32.totalorder %s21, 5
      %p93 = por %p91, %p92
      %p95 = scmp.ne.s32.totalorder %s78, %s94
      %p96 = scmp.eq.s32.totalorder %s21, 0
      %p97 = por %p95, %p96
      %s98 = ssub.s32 %s23, %s37
      %p99 = scmp.eq.s32.totalorder %s98, 0
      %s101 = sadd.s32 %s100, 1
      %s102 = scalar_select %p99, %s100, %s101
      %p105 = pneg %p99
      %p106 = scmp.eq.s32.totalorder %s15, 5
      %p107 = por %p105, %p106
      %p108 = scmp.ne.s32.totalorder %s100, %s103
      %p109 = scmp.eq.s32.totalorder %s15, 0
      %p110 = por %p108, %p109
      %p111 = scmp.ne.s32.totalorder %s100, %s103
      %p112 = scmp.eq.s32.totalorder %s20, 5
      %p113 = por %p111, %p112
      %p114 = scmp.ne.s32.totalorder %s103, %s104
      %p115 = scmp.eq.s32.totalorder %s20, 0
      %p116 = por %p114, %p115
      %p117 = scmp.ne.s32.totalorder %s103, %s104
      %p118 = scmp.eq.s32.totalorder %s21, 5
      %p119 = por %p117, %p118
      %p121 = scmp.ne.s32.totalorder %s104, %s120
      %p122 = scmp.eq.s32.totalorder %s21, 0
      %p123 = por %p121, %p122
      %s124 = ssub.s32 %s22, %s41
      %s125 = ssub.s32 %s23, %s37
      %s126 = sor.u32 %s124, %s125
      %p127 = scmp.eq.s32.totalorder %s126, 0
      %s129 = sadd.s32 %s128, 1
      %s130 = scalar_select %p127, %s128, %s129
      %p133 = pneg %p127
      %p134 = scmp.eq.s32.totalorder %s15, 5
      %p135 = por %p133, %p134
      %p136 = scmp.ne.s32.totalorder %s128, %s131
      %p137 = scmp.eq.s32.totalorder %s15, 0
      %p138 = por %p136, %p137
      %p139 = scmp.ne.s32.totalorder %s128, %s131
      %p140 = scmp.eq.s32.totalorder %s20, 5
      %p141 = por %p139, %p140
      %p142 = scmp.ne.s32.totalorder %s131, %s132
      %p143 = scmp.eq.s32.totalorder %s20, 0
      %p144 = por %p142, %p143
      %p145 = scmp.ne.s32.totalorder %s131, %s132
      %p146 = scmp.eq.s32.totalorder %s21, 5
      %p147 = por %p145, %p146
      %p149 = scmp.ne.s32.totalorder %s132, %s148
      %p150 = scmp.eq.s32.totalorder %s21, 0
      %p151 = por %p149, %p150
      %p152 = scmp.le.s32.totalorder 1, %s15
      %p153 = scmp.lt.s32.totalorder %s15, 7
      %p154 = pnand %p152, %p153
      %p155 = pneg %p154
      // Predicated region
      $region9: #{attention_forward.3} parent=5 // pred_check
        _
      $region10: #{attention_forward.3} parent=5 // pred_check_branch
        %157 = sbr.rel (%p154) target = $region12
      $region11: #{attention_forward.3} parent=5 // pred_region
        %s158 = ssub.s32 %s15, 1
      $region12: #{attention_forward.3} parent=5 // pred_fallthru
        _
      %p159 = scmp.lt.s32.totalorder %s15, 6
      // Predicated region
      $region13: #{attention_forward.3} parent=5 // pred_check
        %p160 = pneg %p159
      $region14: #{attention_forward.3} parent=5 // pred_check_branch
        %162 = sbr.rel (%p160) target = $region16
      $region15: #{attention_forward.3} parent=5 // pred_region
        // Predicated region
        $region17: #{attention_forward.3} parent=15 // pred_check
          %p163 = pneg %p56
        $region18: #{attention_forward.3} parent=15 // pred_check_branch
          %165 = sbr.rel (%p163) target = $region20
        $region19: #{attention_forward.3} parent=15 // pred_region
          %s166 = sand.u32 %s46, 1
          %s167 = scalar_lea.sflag [#allocation4], %s166
          %s168 = sand.u32 %s46, 1
          %s169 = smul.addr %s168, 512
          %s170 = scalar_lea.vmem [#allocation3], %s169
          %s171 = smul.u32 32, %s22
          %s172 = smul.u32 2, %s24
          %s174 = ssub.s32 8192, 8192
          %175 = vsyncadd %s167, %s174
          %s176 = smul.addr %s171, 2
          %s177 = sadd.s32 %s172, %s176
          %s178 = smul.addr %s177, 128
          %s179 = scalar_lea.hbm %s0, %s178
          %s180 = sshll.u32 %s170, 4
          %s181 = int_to_ptr.vmem [resolvable:$true] %s180
          %186 = dma.hbm_to_vmem [thread:$0]  %s179, 8192, %s181, %s167, 256, 256, 16
        $region20: #{attention_forward.3} parent=15 // pred_fallthru
          _
        // Predicated region
        $region21: #{attention_forward.3} parent=15 // pred_check
          %p187 = pneg %p84
        $region22: #{attention_forward.3} parent=15 // pred_check_branch
          %189 = sbr.rel (%p187) target = $region24
        $region23: #{attention_forward.3} parent=15 // pred_region
          %s190 = sand.u32 %s74, 1
          %s191 = scalar_lea.sflag [#allocation6], %s190
          %s192 = sand.u32 %s74, 1
          %s193 = smul.addr %s192, 512
          %s194 = scalar_lea.vmem [#allocation5], %s193
          %s195 = smul.u32 32, %s24
          %s196 = smul.u32 2, %s23
          %s198 = ssub.s32 8192, 8192
          %199 = vsyncadd %s191, %s198
          %s200 = smul.addr %s195, 6
          %s201 = sadd.s32 %s196, %s200
          %s202 = smul.addr %s201, 128
          %s203 = scalar_lea.hbm %s1, %s202
          %s204 = sshll.u32 %s194, 4
          %s205 = int_to_ptr.vmem [resolvable:$true] %s204
          %210 = dma.hbm_to_vmem [thread:$0]  %s203, 8192, %s205, %s191, 768, 256, 16
        $region24: #{attention_forward.3} parent=15 // pred_fallthru
          _
        // Predicated region
        $region25: #{attention_forward.3} parent=15 // pred_check
          %p211 = pneg %p110
        $region26: #{attention_forward.3} parent=15 // pred_check_branch
          %213 = sbr.rel (%p211) target = $region28
        $region27: #{attention_forward.3} parent=15 // pred_region
          %s214 = smul.u32 2, %s23
          %p215 = scmp.lt.s32.totalorder %s214, 5
          %s216 = scalar_select %p215, %s214, 5
          %s217 = scalar_lea.vmem %s2, %s216
          %s218 = smul.u32 2, %s23
        $region28: #{attention_forward.3} parent=15 // pred_fallthru
          _
      $region16: #{attention_forward.3} parent=5 // pred_fallthru
        _
      %p219 = scmp.le.s32.totalorder 1, %s15
      %p220 = scmp.lt.s32.totalorder %s15, 7
      %p221 = pnand %p219, %p220
      %p222 = pneg %p221
      // Predicated region
      $region29: #{attention_forward.3} parent=5 // pred_check
        _
      $region30: #{attention_forward.3} parent=5 // pred_check_branch
        %224 = sbr.rel (%p221) target = $region32
      $region31: #{attention_forward.3} parent=5 // pred_region
        %s225 = ssub.s32 %s15, 1
        %s226 = sand.u32 %s49, 1
        %s227 = scalar_lea.sflag [#allocation4], %s226
        %s228 = sand.u32 %s49, 1
        %s229 = smul.addr %s228, 512
        %s230 = scalar_lea.vmem [#allocation3], %s229
        // Predicated region
        $region33: #{attention_forward.3} parent=31 // pred_check
          %p231 = pneg %p62
        $region34: #{attention_forward.3} parent=31 // pred_check_branch
          %233 = sbr.rel (%p231) target = $region36
        $region35: #{attention_forward.3} parent=31 // pred_region
          %234 = dma.done %s227, 8192
        $region36: #{attention_forward.3} parent=31 // pred_fallthru
          _
        %s235 = sand.u32 %s77, 1
        %s236 = scalar_lea.sflag [#allocation6], %s235
        %s237 = sand.u32 %s77, 1
        %s238 = smul.addr %s237, 512
        %s239 = scalar_lea.vmem [#allocation5], %s238
        // Predicated region
        $region37: #{attention_forward.3} parent=31 // pred_check
          %p240 = pneg %p90
        $region38: #{attention_forward.3} parent=31 // pred_check_branch
          %242 = sbr.rel (%p240) target = $region40
        $region39: #{attention_forward.3} parent=31 // pred_region
          %243 = dma.done %s236, 8192
        $region40: #{attention_forward.3} parent=31 // pred_fallthru
          _
        %s244 = sand.u32 %s49, 1
        %s245 = scalar_lea.sflag [#allocation4], %s244
        %s246 = sand.u32 %s49, 1
        %s247 = smul.addr %s246, 512
        %s248 = scalar_lea.vmem [#allocation3], %s247
        %p249 = pneg %p62
        %p250 = pneg %p59
        %s251 = sand.u32 %s77, 1
        %s252 = scalar_lea.sflag [#allocation6], %s251
        %s253 = sand.u32 %s77, 1
        %s254 = smul.addr %s253, 512
        %s255 = scalar_lea.vmem [#allocation5], %s254
        %p256 = pneg %p90
        %p257 = pneg %p87
        %s258 = smul.u32 2, %s26
        %p259 = scmp.lt.s32.totalorder %s258, 5
        %s260 = scalar_select %p259, %s258, 5
        %s261 = scalar_lea.vmem %s2, %s260
        %p262 = pneg %p116
        %p263 = pneg %p113
        %p264 = pneg %p144
        %p265 = pneg %p141
        %s266 = sand.u32 %s131, 1
        %s267 = sand.u32 %s131, 1
        %s268 = smul.addr %s267, 512
        %s269 = scalar_lea.vmem [#allocation7], %s268
        %s270 = smul.u32 32, %s25
        %s271 = smul.u32 2, %s27
        %s272 = smul.u32 32, %s27
        %s273 = smul.u32 2, %s26
        %s274 = smul.u32 2, %s26
        %p275 = scmp.lt.s32.totalorder %s274, 5
        %s276 = scalar_select %p275, %s274, 5
        %s277 = scalar_lea.vmem %s2, %s276
        %s278 = smul.u32 2, %s26
        %s279 = smul.u32 32, %s25
        %s280 = smul.u32 2, %s26
        %p281 = scmp.eq.s32.totalorder %s27, 0
        // Predicated region
        $region41: #{attention_forward.3} parent=31 // pred_check
          %p282 = pneg %p281
        $region42: #{attention_forward.3} parent=31 // pred_check_branch
          %284 = sbr.rel (%p282) target = $region44
        $region43: #{attention_forward.3} parent=31 // pred_region
          %285 = vst [vmem:[#allocation2] sm:$0xff] 0.0
          %286 = vst [vmem:[#allocation2 + $0x8] sm:$0xff] 0.0
          %287 = vst [vmem:[#allocation2 + $0x10] sm:$0xff] 0.0
          %288 = vst [vmem:[#allocation2 + $0x18] sm:$0xff] 0.0
          %289 = vst [vmem:[#allocation2 + $0x20] sm:$0xff] 0.0
          %290 = vst [vmem:[#allocation2 + $0x28] sm:$0xff] 0.0
          %291 = vst [vmem:[#allocation2 + $0x30] sm:$0xff] 0.0
          %292 = vst [vmem:[#allocation2 + $0x38] sm:$0xff] 0.0
          %293 = vst [vmem:[#allocation2 + $0x40] sm:$0xff] 0.0
          %294 = vst [vmem:[#allocation2 + $0x48] sm:$0xff] 0.0
          %295 = vst [vmem:[#allocation2 + $0x50] sm:$0xff] 0.0
          %296 = vst [vmem:[#allocation2 + $0x58] sm:$0xff] 0.0
          %297 = vst [vmem:[#allocation2 + $0x60] sm:$0xff] 0.0
          %298 = vst [vmem:[#allocation2 + $0x68] sm:$0xff] 0.0
          %299 = vst [vmem:[#allocation2 + $0x70] sm:$0xff] 0.0
          %300 = vst [vmem:[#allocation2 + $0x78] sm:$0xff] 0.0
          %301 = vst [vmem:[#allocation2 + $0x80] sm:$0xff] 0.0
          %302 = vst [vmem:[#allocation2 + $0x88] sm:$0xff] 0.0
          %303 = vst [vmem:[#allocation2 + $0x90] sm:$0xff] 0.0
          %304 = vst [vmem:[#allocation2 + $0x98] sm:$0xff] 0.0
          %305 = vst [vmem:[#allocation2 + $0xa0] sm:$0xff] 0.0
          %306 = vst [vmem:[#allocation2 + $0xa8] sm:$0xff] 0.0
          %307 = vst [vmem:[#allocation2 + $0xb0] sm:$0xff] 0.0
          %308 = vst [vmem:[#allocation2 + $0xb8] sm:$0xff] 0.0
          %309 = vst [vmem:[#allocation2 + $0xc0] sm:$0xff] 0.0
          %310 = vst [vmem:[#allocation2 + $0xc8] sm:$0xff] 0.0
          %311 = vst [vmem:[#allocation2 + $0xd0] sm:$0xff] 0.0
          %312 = vst [vmem:[#allocation2 + $0xd8] sm:$0xff] 0.0
          %313 = vst [vmem:[#allocation2 + $0xe0] sm:$0xff] 0.0
          %314 = vst [vmem:[#allocation2 + $0xe8] sm:$0xff] 0.0
          %315 = vst [vmem:[#allocation2 + $0xf0] sm:$0xff] 0.0
          %316 = vst [vmem:[#allocation2 + $0xf8] sm:$0xff] 0.0
          %317 = vst [vmem:[#allocation2 + $0x100] sm:$0xff] 0.0
          %318 = vst [vmem:[#allocation2 + $0x108] sm:$0xff] 0.0
          %319 = vst [vmem:[#allocation2 + $0x110] sm:$0xff] 0.0
          %320 = vst [vmem:[#allocation2 + $0x118] sm:$0xff] 0.0
          %321 = vst [vmem:[#allocation2 + $0x120] sm:$0xff] 0.0
          %322 = vst [vmem:[#allocation2 + $0x128] sm:$0xff] 0.0
          %323 = vst [vmem:[#allocation2 + $0x130] sm:$0xff] 0.0
          %324 = vst [vmem:[#allocation2 + $0x138] sm:$0xff] 0.0
          %325 = vst [vmem:[#allocation2 + $0x140] sm:$0xff] 0.0
          %326 = vst [vmem:[#allocation2 + $0x148] sm:$0xff] 0.0
          %327 = vst [vmem:[#allocation2 + $0x150] sm:$0xff] 0.0
          %328 = vst [vmem:[#allocation2 + $0x158] sm:$0xff] 0.0
          %329 = vst [vmem:[#allocation2 + $0x160] sm:$0xff] 0.0
          %330 = vst [vmem:[#allocation2 + $0x168] sm:$0xff] 0.0
          %331 = vst [vmem:[#allocation2 + $0x170] sm:$0xff] 0.0
          %332 = vst [vmem:[#allocation2 + $0x178] sm:$0xff] 0.0
          %333 = vst [vmem:[#allocation2 + $0x180] sm:$0xff] 0.0
          %334 = vst [vmem:[#allocation2 + $0x188] sm:$0xff] 0.0
          %335 = vst [vmem:[#allocation2 + $0x190] sm:$0xff] 0.0
          %336 = vst [vmem:[#allocation2 + $0x198] sm:$0xff] 0.0
          %337 = vst [vmem:[#allocation2 + $0x1a0] sm:$0xff] 0.0
          %338 = vst [vmem:[#allocation2 + $0x1a8] sm:$0xff] 0.0
          %339 = vst [vmem:[#allocation2 + $0x1b0] sm:$0xff] 0.0
          %340 = vst [vmem:[#allocation2 + $0x1b8] sm:$0xff] 0.0
          %341 = vst [vmem:[#allocation2 + $0x1c0] sm:$0xff] 0.0
          %342 = vst [vmem:[#allocation2 + $0x1c8] sm:$0xff] 0.0
          %343 = vst [vmem:[#allocation2 + $0x1d0] sm:$0xff] 0.0
          %344 = vst [vmem:[#allocation2 + $0x1d8] sm:$0xff] 0.0
          %345 = vst [vmem:[#allocation2 + $0x1e0] sm:$0xff] 0.0
          %346 = vst [vmem:[#allocation2 + $0x1e8] sm:$0xff] 0.0
          %347 = vst [vmem:[#allocation2 + $0x1f0] sm:$0xff] 0.0
          %348 = vst [vmem:[#allocation2 + $0x1f8] sm:$0xff] 0.0
        $region44: #{attention_forward.3} parent=31 // pred_fallthru
          _
        %v349 = vld [vmem:[#allocation2] sm:$0xff]
        %v350 = vld [vmem:[#allocation2 + $0x8] sm:$0xff]
        %v351 = vld [vmem:[#allocation2 + $0x10] sm:$0xff]
        %v352 = vld [vmem:[#allocation2 + $0x18] sm:$0xff]
        %v353 = vld [vmem:[#allocation2 + $0x20] sm:$0xff]
        %v354 = vld [vmem:[#allocation2 + $0x28] sm:$0xff]
        %v355 = vld [vmem:[#allocation2 + $0x30] sm:$0xff]
        %v356 = vld [vmem:[#allocation2 + $0x38] sm:$0xff]
        %v357 = vld [vmem:[#allocation2 + $0x40] sm:$0xff]
        %v358 = vld [vmem:[#allocation2 + $0x48] sm:$0xff]
        %v359 = vld [vmem:[#allocation2 + $0x50] sm:$0xff]
        %v360 = vld [vmem:[#allocation2 + $0x58] sm:$0xff]
        %v361 = vld [vmem:[#allocation2 + $0x60] sm:$0xff]
        %v362 = vld [vmem:[#allocation2 + $0x68] sm:$0xff]
        %v363 = vld [vmem:[#allocation2 + $0x70] sm:$0xff]
        %v364 = vld [vmem:[#allocation2 + $0x78] sm:$0xff]
        %v365 = vld [vmem:[#allocation2 + $0x80] sm:$0xff]
        %v366 = vld [vmem:[#allocation2 + $0x88] sm:$0xff]
        %v367 = vld [vmem:[#allocation2 + $0x90] sm:$0xff]
        %v368 = vld [vmem:[#allocation2 + $0x98] sm:$0xff]
        %v369 = vld [vmem:[#allocation2 + $0xa0] sm:$0xff]
        %v370 = vld [vmem:[#allocation2 + $0xa8] sm:$0xff]
        %v371 = vld [vmem:[#allocation2 + $0xb0] sm:$0xff]
        %v372 = vld [vmem:[#allocation2 + $0xb8] sm:$0xff]
        %v373 = vld [vmem:[#allocation2 + $0xc0] sm:$0xff]
        %v374 = vld [vmem:[#allocation2 + $0xc8] sm:$0xff]
        %v375 = vld [vmem:[#allocation2 + $0xd0] sm:$0xff]
        %v376 = vld [vmem:[#allocation2 + $0xd8] sm:$0xff]
        %v377 = vld [vmem:[#allocation2 + $0xe0] sm:$0xff]
        %v378 = vld [vmem:[#allocation2 + $0xe8] sm:$0xff]
        %v379 = vld [vmem:[#allocation2 + $0xf0] sm:$0xff]
        %v380 = vld [vmem:[#allocation2 + $0xf8] sm:$0xff]
        %v381 = vld [vmem:[#allocation2 + $0x100] sm:$0xff]
        %v382 = vld [vmem:[#allocation2 + $0x108] sm:$0xff]
        %v383 = vld [vmem:[#allocation2 + $0x110] sm:$0xff]
        %v384 = vld [vmem:[#allocation2 + $0x118] sm:$0xff]
        %v385 = vld [vmem:[#allocation2 + $0x120] sm:$0xff]
        %v386 = vld [vmem:[#allocation2 + $0x128] sm:$0xff]
        %v387 = vld [vmem:[#allocation2 + $0x130] sm:$0xff]
        %v388 = vld [vmem:[#allocation2 + $0x138] sm:$0xff]
        %v389 = vld [vmem:[#allocation2 + $0x140] sm:$0xff]
        %v390 = vld [vmem:[#allocation2 + $0x148] sm:$0xff]
        %v391 = vld [vmem:[#allocation2 + $0x150] sm:$0xff]
        %v392 = vld [vmem:[#allocation2 + $0x158] sm:$0xff]
        %v393 = vld [vmem:[#allocation2 + $0x160] sm:$0xff]
        %v394 = vld [vmem:[#allocation2 + $0x168] sm:$0xff]
        %v395 = vld [vmem:[#allocation2 + $0x170] sm:$0xff]
        %v396 = vld [vmem:[#allocation2 + $0x178] sm:$0xff]
        %v397 = vld [vmem:[#allocation2 + $0x180] sm:$0xff]
        %v398 = vld [vmem:[#allocation2 + $0x188] sm:$0xff]
        %v399 = vld [vmem:[#allocation2 + $0x190] sm:$0xff]
        %v400 = vld [vmem:[#allocation2 + $0x198] sm:$0xff]
        %v401 = vld [vmem:[#allocation2 + $0x1a0] sm:$0xff]
        %v402 = vld [vmem:[#allocation2 + $0x1a8] sm:$0xff]
        %v403 = vld [vmem:[#allocation2 + $0x1b0] sm:$0xff]
        %v404 = vld [vmem:[#allocation2 + $0x1b8] sm:$0xff]
        %v405 = vld [vmem:[#allocation2 + $0x1c0] sm:$0xff]
        %v406 = vld [vmem:[#allocation2 + $0x1c8] sm:$0xff]
        %v407 = vld [vmem:[#allocation2 + $0x1d0] sm:$0xff]
        %v408 = vld [vmem:[#allocation2 + $0x1d8] sm:$0xff]
        %v409 = vld [vmem:[#allocation2 + $0x1e0] sm:$0xff]
        %v410 = vld [vmem:[#allocation2 + $0x1e8] sm:$0xff]
        %v411 = vld [vmem:[#allocation2 + $0x1f0] sm:$0xff]
        %v412 = vld [vmem:[#allocation2 + $0x1f8] sm:$0xff]
        %v413 = vld [vmem:[%s230] sm:$0xff]
        %v414 = vld [vmem:[%s230 + $0x8] sm:$0xff]
        %v415 = vld [vmem:[%s230 + $0x10] sm:$0xff]
        %v416 = vld [vmem:[%s230 + $0x18] sm:$0xff]
        %v417 = vld [vmem:[%s230 + $0x20] sm:$0xff]
        %v418 = vld [vmem:[%s230 + $0x28] sm:$0xff]
        %v419 = vld [vmem:[%s230 + $0x30] sm:$0xff]
        %v420 = vld [vmem:[%s230 + $0x38] sm:$0xff]
        %v421 = vld [vmem:[%s230 + $0x40] sm:$0xff]
        %v422 = vld [vmem:[%s230 + $0x48] sm:$0xff]
        %v423 = vld [vmem:[%s230 + $0x50] sm:$0xff]
        %v424 = vld [vmem:[%s230 + $0x58] sm:$0xff]
        %v425 = vld [vmem:[%s230 + $0x60] sm:$0xff]
        %v426 = vld [vmem:[%s230 + $0x68] sm:$0xff]
        %v427 = vld [vmem:[%s230 + $0x70] sm:$0xff]
        %v428 = vld [vmem:[%s230 + $0x78] sm:$0xff]
        %v429 = vld [vmem:[%s230 + $0x80] sm:$0xff]
        %v430 = vld [vmem:[%s230 + $0x88] sm:$0xff]
        %v431 = vld [vmem:[%s230 + $0x90] sm:$0xff]
        %v432 = vld [vmem:[%s230 + $0x98] sm:$0xff]
        %v433 = vld [vmem:[%s230 + $0xa0] sm:$0xff]
        %v434 = vld [vmem:[%s230 + $0xa8] sm:$0xff]
        %v435 = vld [vmem:[%s230 + $0xb0] sm:$0xff]
        %v436 = vld [vmem:[%s230 + $0xb8] sm:$0xff]
        %v437 = vld [vmem:[%s230 + $0xc0] sm:$0xff]
        %v438 = vld [vmem:[%s230 + $0xc8] sm:$0xff]
        %v439 = vld [vmem:[%s230 + $0xd0] sm:$0xff]
        %v440 = vld [vmem:[%s230 + $0xd8] sm:$0xff]
        %v441 = vld [vmem:[%s230 + $0xe0] sm:$0xff]
        %v442 = vld [vmem:[%s230 + $0xe8] sm:$0xff]
        %v443 = vld [vmem:[%s230 + $0xf0] sm:$0xff]
        %v444 = vld [vmem:[%s230 + $0xf8] sm:$0xff]
        %v445 = vld [vmem:[%s230 + $0x100] sm:$0xff]
        %v446 = vld [vmem:[%s230 + $0x108] sm:$0xff]
        %v447 = vld [vmem:[%s230 + $0x110] sm:$0xff]
        %v448 = vld [vmem:[%s230 + $0x118] sm:$0xff]
        %v449 = vld [vmem:[%s230 + $0x120] sm:$0xff]
        %v450 = vld [vmem:[%s230 + $0x128] sm:$0xff]
        %v451 = vld [vmem:[%s230 + $0x130] sm:$0xff]
        %v452 = vld [vmem:[%s230 + $0x138] sm:$0xff]
        %v453 = vld [vmem:[%s230 + $0x140] sm:$0xff]
        %v454 = vld [vmem:[%s230 + $0x148] sm:$0xff]
        %v455 = vld [vmem:[%s230 + $0x150] sm:$0xff]
        %v456 = vld [vmem:[%s230 + $0x158] sm:$0xff]
        %v457 = vld [vmem:[%s230 + $0x160] sm:$0xff]
        %v458 = vld [vmem:[%s230 + $0x168] sm:$0xff]
        %v459 = vld [vmem:[%s230 + $0x170] sm:$0xff]
        %v460 = vld [vmem:[%s230 + $0x178] sm:$0xff]
        %v461 = vld [vmem:[%s230 + $0x180] sm:$0xff]
        %v462 = vld [vmem:[%s230 + $0x188] sm:$0xff]
        %v463 = vld [vmem:[%s230 + $0x190] sm:$0xff]
        %v464 = vld [vmem:[%s230 + $0x198] sm:$0xff]
        %v465 = vld [vmem:[%s230 + $0x1a0] sm:$0xff]
        %v466 = vld [vmem:[%s230 + $0x1a8] sm:$0xff]
        %v467 = vld [vmem:[%s230 + $0x1b0] sm:$0xff]
        %v468 = vld [vmem:[%s230 + $0x1b8] sm:$0xff]
        %v469 = vld [vmem:[%s230 + $0x1c0] sm:$0xff]
        %v470 = vld [vmem:[%s230 + $0x1c8] sm:$0xff]
        %v471 = vld [vmem:[%s230 + $0x1d0] sm:$0xff]
        %v472 = vld [vmem:[%s230 + $0x1d8] sm:$0xff]
        %v473 = vld [vmem:[%s230 + $0x1e0] sm:$0xff]
        %v474 = vld [vmem:[%s230 + $0x1e8] sm:$0xff]
        %v475 = vld [vmem:[%s230 + $0x1f0] sm:$0xff]
        %v476 = vld [vmem:[%s230 + $0x1f8] sm:$0xff]
        %v477 = vld [vmem:[%s239] sm:$0xff]
        %v478 = vld [vmem:[%s239 + $0x8] sm:$0xff]
        %v479 = vld [vmem:[%s239 + $0x10] sm:$0xff]
        %v480 = vld [vmem:[%s239 + $0x18] sm:$0xff]
        %v481 = vld [vmem:[%s239 + $0x20] sm:$0xff]
        %v482 = vld [vmem:[%s239 + $0x28] sm:$0xff]
        %v483 = vld [vmem:[%s239 + $0x30] sm:$0xff]
        %v484 = vld [vmem:[%s239 + $0x38] sm:$0xff]
        %v485 = vld [vmem:[%s239 + $0x40] sm:$0xff]
        %v486 = vld [vmem:[%s239 + $0x48] sm:$0xff]
        %v487 = vld [vmem:[%s239 + $0x50] sm:$0xff]
        %v488 = vld [vmem:[%s239 + $0x58] sm:$0xff]
        %v489 = vld [vmem:[%s239 + $0x60] sm:$0xff]
        %v490 = vld [vmem:[%s239 + $0x68] sm:$0xff]
        %v491 = vld [vmem:[%s239 + $0x70] sm:$0xff]
        %v492 = vld [vmem:[%s239 + $0x78] sm:$0xff]
        %v493 = vld [vmem:[%s239 + $0x80] sm:$0xff]
        %v494 = vld [vmem:[%s239 + $0x88] sm:$0xff]
        %v495 = vld [vmem:[%s239 + $0x90] sm:$0xff]
        %v496 = vld [vmem:[%s239 + $0x98] sm:$0xff]
        %v497 = vld [vmem:[%s239 + $0xa0] sm:$0xff]
        %v498 = vld [vmem:[%s239 + $0xa8] sm:$0xff]
        %v499 = vld [vmem:[%s239 + $0xb0] sm:$0xff]
        %v500 = vld [vmem:[%s239 + $0xb8] sm:$0xff]
        %v501 = vld [vmem:[%s239 + $0xc0] sm:$0xff]
        %v502 = vld [vmem:[%s239 + $0xc8] sm:$0xff]
        %v503 = vld [vmem:[%s239 + $0xd0] sm:$0xff]
        %v504 = vld [vmem:[%s239 + $0xd8] sm:$0xff]
        %v505 = vld [vmem:[%s239 + $0xe0] sm:$0xff]
        %v506 = vld [vmem:[%s239 + $0xe8] sm:$0xff]
        %v507 = vld [vmem:[%s239 + $0xf0] sm:$0xff]
        %v508 = vld [vmem:[%s239 + $0xf8] sm:$0xff]
        %v509 = vld [vmem:[%s239 + $0x100] sm:$0xff]
        %v510 = vld [vmem:[%s239 + $0x108] sm:$0xff]
        %v511 = vld [vmem:[%s239 + $0x110] sm:$0xff]
        %v512 = vld [vmem:[%s239 + $0x118] sm:$0xff]
        %v513 = vld [vmem:[%s239 + $0x120] sm:$0xff]
        %v514 = vld [vmem:[%s239 + $0x128] sm:$0xff]
        %v515 = vld [vmem:[%s239 + $0x130] sm:$0xff]
        %v516 = vld [vmem:[%s239 + $0x138] sm:$0xff]
        %v517 = vld [vmem:[%s239 + $0x140] sm:$0xff]
        %v518 = vld [vmem:[%s239 + $0x148] sm:$0xff]
        %v519 = vld [vmem:[%s239 + $0x150] sm:$0xff]
        %v520 = vld [vmem:[%s239 + $0x158] sm:$0xff]
        %v521 = vld [vmem:[%s239 + $0x160] sm:$0xff]
        %v522 = vld [vmem:[%s239 + $0x168] sm:$0xff]
        %v523 = vld [vmem:[%s239 + $0x170] sm:$0xff]
        %v524 = vld [vmem:[%s239 + $0x178] sm:$0xff]
        %v525 = vld [vmem:[%s239 + $0x180] sm:$0xff]
        %v526 = vld [vmem:[%s239 + $0x188] sm:$0xff]
        %v527 = vld [vmem:[%s239 + $0x190] sm:$0xff]
        %v528 = vld [vmem:[%s239 + $0x198] sm:$0xff]
        %v529 = vld [vmem:[%s239 + $0x1a0] sm:$0xff]
        %v530 = vld [vmem:[%s239 + $0x1a8] sm:$0xff]
        %v531 = vld [vmem:[%s239 + $0x1b0] sm:$0xff]
        %v532 = vld [vmem:[%s239 + $0x1b8] sm:$0xff]
        %v533 = vld [vmem:[%s239 + $0x1c0] sm:$0xff]
        %v534 = vld [vmem:[%s239 + $0x1c8] sm:$0xff]
        %v535 = vld [vmem:[%s239 + $0x1d0] sm:$0xff]
        %v536 = vld [vmem:[%s239 + $0x1d8] sm:$0xff]
        %v537 = vld [vmem:[%s239 + $0x1e0] sm:$0xff]
        %v538 = vld [vmem:[%s239 + $0x1e8] sm:$0xff]
        %v539 = vld [vmem:[%s239 + $0x1f0] sm:$0xff]
        %v540 = vld [vmem:[%s239 + $0x1f8] sm:$0xff]
        %541 = vmatprep.subr.mxu0 %v478
        %542 = vmatpush1.msra.mxu0 %v477
        %543 = vmatprep.subr.mxu0 %v480
        %544 = vmatpush1.msra.mxu0 %v479
        %545 = vmatprep.subr.mxu0 %v482
        %546 = vmatpush1.msra.mxu0 %v481
        %547 = vmatprep.subr.mxu0 %v484
        %548 = vmatpush1.msra.mxu0 %v483
        %549 = vmatprep.subr.mxu0 %v486
        %550 = vmatpush1.msra.mxu0 %v485
        %551 = vmatprep.subr.mxu0 %v488
        %552 = vmatpush1.msra.mxu0 %v487
        %553 = vmatprep.subr.mxu0 %v490
        %554 = vmatpush1.msra.mxu0 %v489
        %555 = vmatprep.subr.mxu0 %v492
        %556 = vmatpush1.msra.mxu0 %v491
        %557 = vmatprep.subr.mxu0 %v494
        %558 = vmatpush1.msra.mxu0 %v493
        %559 = vmatprep.subr.mxu0 %v496
        %560 = vmatpush1.msra.mxu0 %v495
        %561 = vmatprep.subr.mxu0 %v498
        %562 = vmatpush1.msra.mxu0 %v497
        %563 = vmatprep.subr.mxu0 %v500
        %564 = vmatpush1.msra.mxu0 %v499
        %565 = vmatprep.subr.mxu0 %v502
        %566 = vmatpush1.msra.mxu0 %v501
        %567 = vmatprep.subr.mxu0 %v504
        %568 = vmatpush1.msra.mxu0 %v503
        %569 = vmatprep.subr.mxu0 %v506
        %570 = vmatpush1.msra.mxu0 %v505
        %571 = vmatprep.subr.mxu0 %v508
        %572 = vmatpush1.msra.mxu0 %v507
        %573 = vmatprep.subr.mxu0 %v510
        %574 = vmatpush1.msra.mxu0 %v509
        %575 = vmatprep.subr.mxu0 %v512
        %576 = vmatpush1.msra.mxu0 %v511
        %577 = vmatprep.subr.mxu0 %v514
        %578 = vmatpush1.msra.mxu0 %v513
        %579 = vmatprep.subr.mxu0 %v516
        %580 = vmatpush1.msra.mxu0 %v515
        %581 = vmatprep.subr.mxu0 %v518
        %582 = vmatpush1.msra.mxu0 %v517
        %583 = vmatprep.subr.mxu0 %v520
        %584 = vmatpush1.msra.mxu0 %v519
        %585 = vmatprep.subr.mxu0 %v522
        %586 = vmatpush1.msra.mxu0 %v521
        %587 = vmatprep.subr.mxu0 %v524
        %588 = vmatpush1.msra.mxu0 %v523
        %589 = vmatprep.subr.mxu0 %v526
        %590 = vmatpush1.msra.mxu0 %v525
        %591 = vmatprep.subr.mxu0 %v528
        %592 = vmatpush1.msra.mxu0 %v527
        %593 = vmatprep.subr.mxu0 %v530
        %594 = vmatpush1.msra.mxu0 %v529
        %595 = vmatprep.subr.mxu0 %v532
        %596 = vmatpush1.msra.mxu0 %v531
        %597 = vmatprep.subr.mxu0 %v534
        %598 = vmatpush1.msra.mxu0 %v533
        %599 = vmatprep.subr.mxu0 %v536
        %600 = vmatpush1.msra.mxu0 %v535
        %601 = vmatprep.subr.mxu0 %v538
        %602 = vmatpush1.msra.mxu0 %v537
        %603 = vmatprep.subr.mxu0 %v540
        %604 = vmatpush1.msra.mxu0 %v539
        %605 = vmatprep.mubr.f32.mxu0 %v414
        %606 = vmatmul.mubr.f32.gmra.mrb[0].mxu0 %v413
        %v607 = vpop.f32.mrb[0].mxu0
        %v608 = vadd.f32 0.0, %v607
        %v609 = vpop.f32.mrb[0].mxu0
        %v610 = vadd.f32 0.0, %v609
        %611 = vmatprep.mubr.f32.mxu0 %v416
        %612 = vmatmul.mubr.f32.gmra.mrb[0].mxu0 %v415
        %v613 = vpop.f32.mrb[0].mxu0
        %v614 = vadd.f32 0.0, %v613
        %v615 = vpop.f32.mrb[0].mxu0
        %v616 = vadd.f32 0.0, %v615
        %617 = vmatprep.mubr.f32.mxu0 %v418
        %618 = vmatmul.mubr.f32.gmra.mrb[0].mxu0 %v417
        %v619 = vpop.f32.mrb[0].mxu0
        %v620 = vadd.f32 0.0, %v619
        %v621 = vpop.f32.mrb[0].mxu0
        %v622 = vadd.f32 0.0, %v621
        %623 = vmatprep.mubr.f32.mxu0 %v420
        %624 = vmatmul.mubr.f32.gmra.mrb[0].mxu0 %v419
        %v625 = vpop.f32.mrb[0].mxu0
        %v626 = vadd.f32 0.0, %v625
        %v627 = vpop.f32.mrb[0].mxu0
        %v628 = vadd.f32 0.0, %v627
        %629 = vmatprep.mubr.f32.mxu0 %v422
        %630 = vmatmul.mubr.f32.gmra.mrb[0].mxu0 %v421
        %v631 = vpop.f32.mrb[0].mxu0
        %v632 = vadd.f32 0.0, %v631
        %v633 = vpop.f32.mrb[0].mxu0
        %v634 = vadd.f32 0.0, %v633
        %635 = vmatprep.mubr.f32.mxu0 %v424
        %636 = vmatmul.mubr.f32.gmra.mrb[0].mxu0 %v423
        %v637 = vpop.f32.mrb[0].mxu0
        %v638 = vadd.f32 0.0, %v637
        %v639 = vpop.f32.mrb[0].mxu0
        %v640 = vadd.f32 0.0, %v639
        %641 = vmatprep.mubr.f32.mxu0 %v426
        %642 = vmatmul.mubr.f32.gmra.mrb[0].mxu0 %v425
        %v643 = vpop.f32.mrb[0].mxu0
        %v644 = vadd.f32 0.0, %v643
        %v645 = vpop.f32.mrb[0].mxu0
        %v646 = vadd.f32 0.0, %v645
        %647 = vmatprep.mubr.f32.mxu0 %v428
        %648 = vmatmul.mubr.f32.gmra.mrb[0].mxu0 %v427
        %v649 = vpop.f32.mrb[0].mxu0
        %v650 = vadd.f32 0.0, %v649
        %v651 = vpop.f32.mrb[0].mxu0
        %v652 = vadd.f32 0.0, %v651
        %653 = vmatprep.mubr.f32.mxu0 %v430
        %654 = vmatmul.mubr.f32.gmra.mrb[0].mxu0 %v429
        %v655 = vpop.f32.mrb[0].mxu0
        %v656 = vadd.f32 0.0, %v655
        %v657 = vpop.f32.mrb[0].mxu0
        %v658 = vadd.f32 0.0, %v657
        %659 = vmatprep.mubr.f32.mxu0 %v432
        %660 = vmatmul.mubr.f32.gmra.mrb[0].mxu0 %v431
        %v661 = vpop.f32.mrb[0].mxu0
        %v662 = vadd.f32 0.0, %v661
        %v663 = vpop.f32.mrb[0].mxu0
        %v664 = vadd.f32 0.0, %v663
        %665 = vmatprep.mubr.f32.mxu0 %v434
        %666 = vmatmul.mubr.f32.gmra.mrb[0].mxu0 %v433
        %v667 = vpop.f32.mrb[0].mxu0
        %v668 = vadd.f32 0.0, %v667
        %v669 = vpop.f32.mrb[0].mxu0
        %v670 = vadd.f32 0.0, %v669
        %671 = vmatprep.mubr.f32.mxu0 %v436
        %672 = vmatmul.mubr.f32.gmra.mrb[0].mxu0 %v435
        %v673 = vpop.f32.mrb[0].mxu0
        %v674 = vadd.f32 0.0, %v673
        %v675 = vpop.f32.mrb[0].mxu0
        %v676 = vadd.f32 0.0, %v675
        %677 = vmatprep.mubr.f32.mxu0 %v438
        %678 = vmatmul.mubr.f32.gmra.mrb[0].mxu0 %v437
        %v679 = vpop.f32.mrb[0].mxu0
        %v680 = vadd.f32 0.0, %v679
        %v681 = vpop.f32.mrb[0].mxu0
        %v682 = vadd.f32 0.0, %v681
        %683 = vmatprep.mubr.f32.mxu0 %v440
        %684 = vmatmul.mubr.f32.gmra.mrb[0].mxu0 %v439
        %v685 = vpop.f32.mrb[0].mxu0
        %v686 = vadd.f32 0.0, %v685
        %v687 = vpop.f32.mrb[0].mxu0
        %v688 = vadd.f32 0.0, %v687
        %689 = vmatprep.mubr.f32.mxu0 %v442
        %690 = vmatmul.mubr.f32.gmra.mrb[0].mxu0 %v441
        %v691 = vpop.f32.mrb[0].mxu0
        %v692 = vadd.f32 0.0, %v691
        %v693 = vpop.f32.mrb[0].mxu0
        %v694 = vadd.f32 0.0, %v693
        %695 = vmatprep.mubr.f32.mxu0 %v444
        %696 = vmatmul.mubr.f32.gmra.mrb[0].mxu0 %v443
        %v697 = vpop.f32.mrb[0].mxu0
        %v698 = vadd.f32 0.0, %v697
        %v699 = vpop.f32.mrb[0].mxu0
        %v700 = vadd.f32 0.0, %v699
        %701 = vmatprep.mubr.f32.mxu0 %v446
        %702 = vmatmul.mubr.f32.gmra.mrb[0].mxu0 %v445
        %v703 = vpop.f32.mrb[0].mxu0
        %v704 = vadd.f32 0.0, %v703
        %v705 = vpop.f32.mrb[0].mxu0
        %v706 = vadd.f32 0.0, %v705
        %707 = vmatprep.mubr.f32.mxu0 %v448
        %708 = vmatmul.mubr.f32.gmra.mrb[0].mxu0 %v447
        %v709 = vpop.f32.mrb[0].mxu0
        %v710 = vadd.f32 0.0, %v709
        %v711 = vpop.f32.mrb[0].mxu0
        %v712 = vadd.f32 0.0, %v711
        %713 = vmatprep.mubr.f32.mxu0 %v450
        %714 = vmatmul.mubr.f32.gmra.mrb[0].mxu0 %v449
        %v715 = vpop.f32.mrb[0].mxu0
        %v716 = vadd.f32 0.0, %v715
        %v717 = vpop.f32.mrb[0].mxu0
        %v718 = vadd.f32 0.0, %v717
        %719 = vmatprep.mubr.f32.mxu0 %v452
        %720 = vmatmul.mubr.f32.gmra.mrb[0].mxu0 %v451
        %v721 = vpop.f32.mrb[0].mxu0
        %v722 = vadd.f32 0.0, %v721
        %v723 = vpop.f32.mrb[0].mxu0
        %v724 = vadd.f32 0.0, %v723
        %725 = vmatprep.mubr.f32.mxu0 %v454
        %726 = vmatmul.mubr.f32.gmra.mrb[0].mxu0 %v453
        %v727 = vpop.f32.mrb[0].mxu0
        %v728 = vadd.f32 0.0, %v727
        %v729 = vpop.f32.mrb[0].mxu0
        %v730 = vadd.f32 0.0, %v729
        %731 = vmatprep.mubr.f32.mxu0 %v456
        %732 = vmatmul.mubr.f32.gmra.mrb[0].mxu0 %v455
        %v733 = vpop.f32.mrb[0].mxu0
        %v734 = vadd.f32 0.0, %v733
        %v735 = vpop.f32.mrb[0].mxu0
        %v736 = vadd.f32 0.0, %v735
        %737 = vmatprep.mubr.f32.mxu0 %v458
        %738 = vmatmul.mubr.f32.gmra.mrb[0].mxu0 %v457
        %v739 = vpop.f32.mrb[0].mxu0
        %v740 = vadd.f32 0.0, %v739
        %v741 = vpop.f32.mrb[0].mxu0
        %v742 = vadd.f32 0.0, %v741
        %743 = vmatprep.mubr.f32.mxu0 %v460
        %744 = vmatmul.mubr.f32.gmra.mrb[0].mxu0 %v459
        %v745 = vpop.f32.mrb[0].mxu0
        %v746 = vadd.f32 0.0, %v745
        %v747 = vpop.f32.mrb[0].mxu0
        %v748 = vadd.f32 0.0, %v747
        %749 = vmatprep.mubr.f32.mxu0 %v462
        %750 = vmatmul.mubr.f32.gmra.mrb[0].mxu0 %v461
        %v751 = vpop.f32.mrb[0].mxu0
        %v752 = vadd.f32 0.0, %v751
        %v753 = vpop.f32.mrb[0].mxu0
        %v754 = vadd.f32 0.0, %v753
        %755 = vmatprep.mubr.f32.mxu0 %v464
        %756 = vmatmul.mubr.f32.gmra.mrb[0].mxu0 %v463
        %v757 = vpop.f32.mrb[0].mxu0
        %v758 = vadd.f32 0.0, %v757
        %v759 = vpop.f32.mrb[0].mxu0
        %v760 = vadd.f32 0.0, %v759
        %761 = vmatprep.mubr.f32.mxu0 %v466
        %762 = vmatmul.mubr.f32.gmra.mrb[0].mxu0 %v465
        %v763 = vpop.f32.mrb[0].mxu0
        %v764 = vadd.f32 0.0, %v763
        %v765 = vpop.f32.mrb[0].mxu0
        %v766 = vadd.f32 0.0, %v765
        %767 = vmatprep.mubr.f32.mxu0 %v468
        %768 = vmatmul.mubr.f32.gmra.mrb[0].mxu0 %v467
        %v769 = vpop.f32.mrb[0].mxu0
        %v770 = vadd.f32 0.0, %v769
        %v771 = vpop.f32.mrb[0].mxu0
        %v772 = vadd.f32 0.0, %v771
        %773 = vmatprep.mubr.f32.mxu0 %v470
        %774 = vmatmul.mubr.f32.gmra.mrb[0].mxu0 %v469
        %v775 = vpop.f32.mrb[0].mxu0
        %v776 = vadd.f32 0.0, %v775
        %v777 = vpop.f32.mrb[0].mxu0
        %v778 = vadd.f32 0.0, %v777
        %779 = vmatprep.mubr.f32.mxu0 %v472
        %780 = vmatmul.mubr.f32.gmra.mrb[0].mxu0 %v471
        %v781 = vpop.f32.mrb[0].mxu0
        %v782 = vadd.f32 0.0, %v781
        %v783 = vpop.f32.mrb[0].mxu0
        %v784 = vadd.f32 0.0, %v783
        %785 = vmatprep.mubr.f32.mxu0 %v474
        %786 = vmatmul.mubr.f32.gmra.mrb[0].mxu0 %v473
        %v787 = vpop.f32.mrb[0].mxu0
        %v788 = vadd.f32 0.0, %v787
        %v789 = vpop.f32.mrb[0].mxu0
        %v790 = vadd.f32 0.0, %v789
        %791 = vmatprep.mubr.f32.mxu0 %v476
        %792 = vmatmul.mubr.f32.gmra.mrb[0].mxu0 %v475
        %v793 = vpop.f32.mrb[0].mxu0
        %v794 = vadd.f32 0.0, %v793
        %v795 = vpop.f32.mrb[0].mxu0
        %v796 = vadd.f32 0.0, %v795
        %797 = vdwg.mxu0
        %v798 = vadd.f32 %v349, %v608
        %v799 = vadd.f32 %v350, %v610
        %v800 = vadd.f32 %v351, %v614
        %v801 = vadd.f32 %v352, %v616
        %v802 = vadd.f32 %v353, %v620
        %v803 = vadd.f32 %v354, %v622
        %v804 = vadd.f32 %v355, %v626
        %v805 = vadd.f32 %v356, %v628
        %v806 = vadd.f32 %v357, %v632
        %v807 = vadd.f32 %v358, %v634
        %v808 = vadd.f32 %v359, %v638
        %v809 = vadd.f32 %v360, %v640
        %v810 = vadd.f32 %v361, %v644
        %v811 = vadd.f32 %v362, %v646
        %v812 = vadd.f32 %v363, %v650
        %v813 = vadd.f32 %v364, %v652
        %v814 = vadd.f32 %v365, %v656
        %v815 = vadd.f32 %v366, %v658
        %v816 = vadd.f32 %v367, %v662
        %v817 = vadd.f32 %v368, %v664
        %v818 = vadd.f32 %v369, %v668
        %v819 = vadd.f32 %v370, %v670
        %v820 = vadd.f32 %v371, %v674
        %v821 = vadd.f32 %v372, %v676
        %v822 = vadd.f32 %v373, %v680
        %v823 = vadd.f32 %v374, %v682
        %v824 = vadd.f32 %v375, %v686
        %v825 = vadd.f32 %v376, %v688
        %v826 = vadd.f32 %v377, %v692
        %v827 = vadd.f32 %v378, %v694
        %v828 = vadd.f32 %v379, %v698
        %v829 = vadd.f32 %v380, %v700
        %v830 = vadd.f32 %v381, %v704
        %v831 = vadd.f32 %v382, %v706
        %v832 = vadd.f32 %v383, %v710
        %v833 = vadd.f32 %v384, %v712
        %v834 = vadd.f32 %v385, %v716
        %v835 = vadd.f32 %v386, %v718
        %v836 = vadd.f32 %v387, %v722
        %v837 = vadd.f32 %v388, %v724
        %v838 = vadd.f32 %v389, %v728
        %v839 = vadd.f32 %v390, %v730
        %v840 = vadd.f32 %v391, %v734
        %v841 = vadd.f32 %v392, %v736
        %v842 = vadd.f32 %v393, %v740
        %v843 = vadd.f32 %v394, %v742
        %v844 = vadd.f32 %v395, %v746
        %v845 = vadd.f32 %v396, %v748
        %v846 = vadd.f32 %v397, %v752
        %v847 = vadd.f32 %v398, %v754
        %v848 = vadd.f32 %v399, %v758
        %v849 = vadd.f32 %v400, %v760
        %v850 = vadd.f32 %v401, %v764
        %v851 = vadd.f32 %v402, %v766
        %v852 = vadd.f32 %v403, %v770
        %v853 = vadd.f32 %v404, %v772
        %v854 = vadd.f32 %v405, %v776
        %v855 = vadd.f32 %v406, %v778
        %v856 = vadd.f32 %v407, %v782
        %v857 = vadd.f32 %v408, %v784
        %v858 = vadd.f32 %v409, %v788
        %v859 = vadd.f32 %v410, %v790
        %v860 = vadd.f32 %v411, %v794
        %v861 = vadd.f32 %v412, %v796
        %862 = vst [vmem:[#allocation2] sm:$0xff] %v798
        %863 = vst [vmem:[#allocation2 + $0x8] sm:$0xff] %v799
        %864 = vst [vmem:[#allocation2 + $0x10] sm:$0xff] %v800
        %865 = vst [vmem:[#allocation2 + $0x18] sm:$0xff] %v801
        %866 = vst [vmem:[#allocation2 + $0x20] sm:$0xff] %v802
        %867 = vst [vmem:[#allocation2 + $0x28] sm:$0xff] %v803
        %868 = vst [vmem:[#allocation2 + $0x30] sm:$0xff] %v804
        %869 = vst [vmem:[#allocation2 + $0x38] sm:$0xff] %v805
        %870 = vst [vmem:[#allocation2 + $0x40] sm:$0xff] %v806
        %871 = vst [vmem:[#allocation2 + $0x48] sm:$0xff] %v807
        %872 = vst [vmem:[#allocation2 + $0x50] sm:$0xff] %v808
        %873 = vst [vmem:[#allocation2 + $0x58] sm:$0xff] %v809
        %874 = vst [vmem:[#allocation2 + $0x60] sm:$0xff] %v810
        %875 = vst [vmem:[#allocation2 + $0x68] sm:$0xff] %v811
        %876 = vst [vmem:[#allocation2 + $0x70] sm:$0xff] %v812
        %877 = vst [vmem:[#allocation2 + $0x78] sm:$0xff] %v813
        %878 = vst [vmem:[#allocation2 + $0x80] sm:$0xff] %v814
        %879 = vst [vmem:[#allocation2 + $0x88] sm:$0xff] %v815
        %880 = vst [vmem:[#allocation2 + $0x90] sm:$0xff] %v816
        %881 = vst [vmem:[#allocation2 + $0x98] sm:$0xff] %v817
        %882 = vst [vmem:[#allocation2 + $0xa0] sm:$0xff] %v818
        %883 = vst [vmem:[#allocation2 + $0xa8] sm:$0xff] %v819
        %884 = vst [vmem:[#allocation2 + $0xb0] sm:$0xff] %v820
        %885 = vst [vmem:[#allocation2 + $0xb8] sm:$0xff] %v821
        %886 = vst [vmem:[#allocation2 + $0xc0] sm:$0xff] %v822
        %887 = vst [vmem:[#allocation2 + $0xc8] sm:$0xff] %v823
        %888 = vst [vmem:[#allocation2 + $0xd0] sm:$0xff] %v824
        %889 = vst [vmem:[#allocation2 + $0xd8] sm:$0xff] %v825
        %890 = vst [vmem:[#allocation2 + $0xe0] sm:$0xff] %v826
        %891 = vst [vmem:[#allocation2 + $0xe8] sm:$0xff] %v827
        %892 = vst [vmem:[#allocation2 + $0xf0] sm:$0xff] %v828
        %893 = vst [vmem:[#allocation2 + $0xf8] sm:$0xff] %v829
        %894 = vst [vmem:[#allocation2 + $0x100] sm:$0xff] %v830
        %895 = vst [vmem:[#allocation2 + $0x108] sm:$0xff] %v831
        %896 = vst [vmem:[#allocation2 + $0x110] sm:$0xff] %v832
        %897 = vst [vmem:[#allocation2 + $0x118] sm:$0xff] %v833
        %898 = vst [vmem:[#allocation2 + $0x120] sm:$0xff] %v834
        %899 = vst [vmem:[#allocation2 + $0x128] sm:$0xff] %v835
        %900 = vst [vmem:[#allocation2 + $0x130] sm:$0xff] %v836
        %901 = vst [vmem:[#allocation2 + $0x138] sm:$0xff] %v837
        %902 = vst [vmem:[#allocation2 + $0x140] sm:$0xff] %v838
        %903 = vst [vmem:[#allocation2 + $0x148] sm:$0xff] %v839
        %904 = vst [vmem:[#allocation2 + $0x150] sm:$0xff] %v840
        %905 = vst [vmem:[#allocation2 + $0x158] sm:$0xff] %v841
        %906 = vst [vmem:[#allocation2 + $0x160] sm:$0xff] %v842
        %907 = vst [vmem:[#allocation2 + $0x168] sm:$0xff] %v843
        %908 = vst [vmem:[#allocation2 + $0x170] sm:$0xff] %v844
        %909 = vst [vmem:[#allocation2 + $0x178] sm:$0xff] %v845
        %910 = vst [vmem:[#allocation2 + $0x180] sm:$0xff] %v846
        %911 = vst [vmem:[#allocation2 + $0x188] sm:$0xff] %v847
        %912 = vst [vmem:[#allocation2 + $0x190] sm:$0xff] %v848
        %913 = vst [vmem:[#allocation2 + $0x198] sm:$0xff] %v849
        %914 = vst [vmem:[#allocation2 + $0x1a0] sm:$0xff] %v850
        %915 = vst [vmem:[#allocation2 + $0x1a8] sm:$0xff] %v851
        %916 = vst [vmem:[#allocation2 + $0x1b0] sm:$0xff] %v852
        %917 = vst [vmem:[#allocation2 + $0x1b8] sm:$0xff] %v853
        %918 = vst [vmem:[#allocation2 + $0x1c0] sm:$0xff] %v854
        %919 = vst [vmem:[#allocation2 + $0x1c8] sm:$0xff] %v855
        %920 = vst [vmem:[#allocation2 + $0x1d0] sm:$0xff] %v856
        %921 = vst [vmem:[#allocation2 + $0x1d8] sm:$0xff] %v857
        %922 = vst [vmem:[#allocation2 + $0x1e0] sm:$0xff] %v858
        %923 = vst [vmem:[#allocation2 + $0x1e8] sm:$0xff] %v859
        %924 = vst [vmem:[#allocation2 + $0x1f0] sm:$0xff] %v860
        %925 = vst [vmem:[#allocation2 + $0x1f8] sm:$0xff] %v861
        // Predicated region
        $region45: #{attention_forward.3} parent=31 // pred_check
          %p926 = pneg %p281
        $region46: #{attention_forward.3} parent=31 // pred_check_branch
          %928 = sbr.rel (%p926) target = $region48
        $region47: #{attention_forward.3} parent=31 // pred_region
          %v929 = vld [vmem:[#allocation2] sm:$0xff]
          %v930 = vld [vmem:[#allocation2 + $0x8] sm:$0xff]
          %v931 = vld [vmem:[#allocation2 + $0x10] sm:$0xff]
          %v932 = vld [vmem:[#allocation2 + $0x18] sm:$0xff]
          %v933 = vld [vmem:[#allocation2 + $0x20] sm:$0xff]
          %v934 = vld [vmem:[#allocation2 + $0x28] sm:$0xff]
          %v935 = vld [vmem:[#allocation2 + $0x30] sm:$0xff]
          %v936 = vld [vmem:[#allocation2 + $0x38] sm:$0xff]
          %v937 = vld [vmem:[#allocation2 + $0x40] sm:$0xff]
          %v938 = vld [vmem:[#allocation2 + $0x48] sm:$0xff]
          %v939 = vld [vmem:[#allocation2 + $0x50] sm:$0xff]
          %v940 = vld [vmem:[#allocation2 + $0x58] sm:$0xff]
          %v941 = vld [vmem:[#allocation2 + $0x60] sm:$0xff]
          %v942 = vld [vmem:[#allocation2 + $0x68] sm:$0xff]
          %v943 = vld [vmem:[#allocation2 + $0x70] sm:$0xff]
          %v944 = vld [vmem:[#allocation2 + $0x78] sm:$0xff]
          %v945 = vld [vmem:[#allocation2 + $0x80] sm:$0xff]
          %v946 = vld [vmem:[#allocation2 + $0x88] sm:$0xff]
          %v947 = vld [vmem:[#allocation2 + $0x90] sm:$0xff]
          %v948 = vld [vmem:[#allocation2 + $0x98] sm:$0xff]
          %v949 = vld [vmem:[#allocation2 + $0xa0] sm:$0xff]
          %v950 = vld [vmem:[#allocation2 + $0xa8] sm:$0xff]
          %v951 = vld [vmem:[#allocation2 + $0xb0] sm:$0xff]
          %v952 = vld [vmem:[#allocation2 + $0xb8] sm:$0xff]
          %v953 = vld [vmem:[#allocation2 + $0xc0] sm:$0xff]
          %v954 = vld [vmem:[#allocation2 + $0xc8] sm:$0xff]
          %v955 = vld [vmem:[#allocation2 + $0xd0] sm:$0xff]
          %v956 = vld [vmem:[#allocation2 + $0xd8] sm:$0xff]
          %v957 = vld [vmem:[#allocation2 + $0xe0] sm:$0xff]
          %v958 = vld [vmem:[#allocation2 + $0xe8] sm:$0xff]
          %v959 = vld [vmem:[#allocation2 + $0xf0] sm:$0xff]
          %v960 = vld [vmem:[#allocation2 + $0xf8] sm:$0xff]
          %v961 = vld [vmem:[#allocation2 + $0x100] sm:$0xff]
          %v962 = vld [vmem:[#allocation2 + $0x108] sm:$0xff]
          %v963 = vld [vmem:[#allocation2 + $0x110] sm:$0xff]
          %v964 = vld [vmem:[#allocation2 + $0x118] sm:$0xff]
          %v965 = vld [vmem:[#allocation2 + $0x120] sm:$0xff]
          %v966 = vld [vmem:[#allocation2 + $0x128] sm:$0xff]
          %v967 = vld [vmem:[#allocation2 + $0x130] sm:$0xff]
          %v968 = vld [vmem:[#allocation2 + $0x138] sm:$0xff]
          %v969 = vld [vmem:[#allocation2 + $0x140] sm:$0xff]
          %v970 = vld [vmem:[#allocation2 + $0x148] sm:$0xff]
          %v971 = vld [vmem:[#allocation2 + $0x150] sm:$0xff]
          %v972 = vld [vmem:[#allocation2 + $0x158] sm:$0xff]
          %v973 = vld [vmem:[#allocation2 + $0x160] sm:$0xff]
          %v974 = vld [vmem:[#allocation2 + $0x168] sm:$0xff]
          %v975 = vld [vmem:[#allocation2 + $0x170] sm:$0xff]
          %v976 = vld [vmem:[#allocation2 + $0x178] sm:$0xff]
          %v977 = vld [vmem:[#allocation2 + $0x180] sm:$0xff]
          %v978 = vld [vmem:[#allocation2 + $0x188] sm:$0xff]
          %v979 = vld [vmem:[#allocation2 + $0x190] sm:$0xff]
          %v980 = vld [vmem:[#allocation2 + $0x198] sm:$0xff]
          %v981 = vld [vmem:[#allocation2 + $0x1a0] sm:$0xff]
          %v982 = vld [vmem:[#allocation2 + $0x1a8] sm:$0xff]
          %v983 = vld [vmem:[#allocation2 + $0x1b0] sm:$0xff]
          %v984 = vld [vmem:[#allocation2 + $0x1b8] sm:$0xff]
          %v985 = vld [vmem:[#allocation2 + $0x1c0] sm:$0xff]
          %v986 = vld [vmem:[#allocation2 + $0x1c8] sm:$0xff]
          %v987 = vld [vmem:[#allocation2 + $0x1d0] sm:$0xff]
          %v988 = vld [vmem:[#allocation2 + $0x1d8] sm:$0xff]
          %v989 = vld [vmem:[#allocation2 + $0x1e0] sm:$0xff]
          %v990 = vld [vmem:[#allocation2 + $0x1e8] sm:$0xff]
          %v991 = vld [vmem:[#allocation2 + $0x1f0] sm:$0xff]
          %v992 = vld [vmem:[#allocation2 + $0x1f8] sm:$0xff]
          %v993 = vld [vmem:[%s277] sm:$0x3]
          %v995 = vlaneseq
          %v996 = vshrl.u32 %v995, 7
          %v997 = vsub.s32 0, %v996
          %v998 = vrot.slane %v993, %v997
          %v999 = vlaneseq
          %v1000 = vshrl.u32 %v999, 7
          %v1001 = vsub.s32 1, %v1000
          %v1002 = vrot.slane %v993, %v1001
          %v1005 = vadd.f32 %v929, %v998
          %v1006 = vadd.f32 %v930, %v1002
          %v1007 = vadd.f32 %v931, %v998
          %v1008 = vadd.f32 %v932, %v1002
          %v1009 = vadd.f32 %v933, %v998
          %v1010 = vadd.f32 %v934, %v1002
          %v1011 = vadd.f32 %v935, %v998
          %v1012 = vadd.f32 %v936, %v1002
          %v1013 = vadd.f32 %v937, %v998
          %v1014 = vadd.f32 %v938, %v1002
          %v1015 = vadd.f32 %v939, %v998
          %v1016 = vadd.f32 %v940, %v1002
          %v1017 = vadd.f32 %v941, %v998
          %v1018 = vadd.f32 %v942, %v1002
          %v1019 = vadd.f32 %v943, %v998
          %v1020 = vadd.f32 %v944, %v1002
          %v1021 = vadd.f32 %v945, %v998
          %v1022 = vadd.f32 %v946, %v1002
          %v1023 = vadd.f32 %v947, %v998
          %v1024 = vadd.f32 %v948, %v1002
          %v1025 = vadd.f32 %v949, %v998
          %v1026 = vadd.f32 %v950, %v1002
          %v1027 = vadd.f32 %v951, %v998
          %v1028 = vadd.f32 %v952, %v1002
          %v1029 = vadd.f32 %v953, %v998
          %v1030 = vadd.f32 %v954, %v1002
          %v1031 = vadd.f32 %v955, %v998
          %v1032 = vadd.f32 %v956, %v1002
          %v1033 = vadd.f32 %v957, %v998
          %v1034 = vadd.f32 %v958, %v1002
          %v1035 = vadd.f32 %v959, %v998
          %v1036 = vadd.f32 %v960, %v1002
          %v1037 = vadd.f32 %v961, %v998
          %v1038 = vadd.f32 %v962, %v1002
          %v1039 = vadd.f32 %v963, %v998
          %v1040 = vadd.f32 %v964, %v1002
          %v1041 = vadd.f32 %v965, %v998
          %v1042 = vadd.f32 %v966, %v1002
          %v1043 = vadd.f32 %v967, %v998
          %v1044 = vadd.f32 %v968, %v1002
          %v1045 = vadd.f32 %v969, %v998
          %v1046 = vadd.f32 %v970, %v1002
          %v1047 = vadd.f32 %v971, %v998
          %v1048 = vadd.f32 %v972, %v1002
          %v1049 = vadd.f32 %v973, %v998
          %v1050 = vadd.f32 %v974, %v1002
          %v1051 = vadd.f32 %v975, %v998
          %v1052 = vadd.f32 %v976, %v1002
          %v1053 = vadd.f32 %v977, %v998
          %v1054 = vadd.f32 %v978, %v1002
          %v1055 = vadd.f32 %v979, %v998
          %v1056 = vadd.f32 %v980, %v1002
          %v1057 = vadd.f32 %v981, %v998
          %v1058 = vadd.f32 %v982, %v1002
          %v1059 = vadd.f32 %v983, %v998
          %v1060 = vadd.f32 %v984, %v1002
          %v1061 = vadd.f32 %v985, %v998
          %v1062 = vadd.f32 %v986, %v1002
          %v1063 = vadd.f32 %v987, %v998
          %v1064 = vadd.f32 %v988, %v1002
          %v1065 = vadd.f32 %v989, %v998
          %v1066 = vadd.f32 %v990, %v1002
          %v1067 = vadd.f32 %v991, %v998
          %v1068 = vadd.f32 %v992, %v1002
          %1069 = vst [vmem:[%s269] sm:$0xff] %v1005
          %1070 = vst [vmem:[%s269 + $0x8] sm:$0xff] %v1006
          %1071 = vst [vmem:[%s269 + $0x10] sm:$0xff] %v1007
          %1072 = vst [vmem:[%s269 + $0x18] sm:$0xff] %v1008
          %1073 = vst [vmem:[%s269 + $0x20] sm:$0xff] %v1009
          %1074 = vst [vmem:[%s269 + $0x28] sm:$0xff] %v1010
          %1075 = vst [vmem:[%s269 + $0x30] sm:$0xff] %v1011
          %1076 = vst [vmem:[%s269 + $0x38] sm:$0xff] %v1012
          %1077 = vst [vmem:[%s269 + $0x40] sm:$0xff] %v1013
          %1078 = vst [vmem:[%s269 + $0x48] sm:$0xff] %v1014
          %1079 = vst [vmem:[%s269 + $0x50] sm:$0xff] %v1015
          %1080 = vst [vmem:[%s269 + $0x58] sm:$0xff] %v1016
          %1081 = vst [vmem:[%s269 + $0x60] sm:$0xff] %v1017
          %1082 = vst [vmem:[%s269 + $0x68] sm:$0xff] %v1018
          %1083 = vst [vmem:[%s269 + $0x70] sm:$0xff] %v1019
          %1084 = vst [vmem:[%s269 + $0x78] sm:$0xff] %v1020
          %1085 = vst [vmem:[%s269 + $0x80] sm:$0xff] %v1021
          %1086 = vst [vmem:[%s269 + $0x88] sm:$0xff] %v1022
          %1087 = vst [vmem:[%s269 + $0x90] sm:$0xff] %v1023
          %1088 = vst [vmem:[%s269 + $0x98] sm:$0xff] %v1024
          %1089 = vst [vmem:[%s269 + $0xa0] sm:$0xff] %v1025
          %1090 = vst [vmem:[%s269 + $0xa8] sm:$0xff] %v1026
          %1091 = vst [vmem:[%s269 + $0xb0] sm:$0xff] %v1027
          %1092 = vst [vmem:[%s269 + $0xb8] sm:$0xff] %v1028
          %1093 = vst [vmem:[%s269 + $0xc0] sm:$0xff] %v1029
          %1094 = vst [vmem:[%s269 + $0xc8] sm:$0xff] %v1030
          %1095 = vst [vmem:[%s269 + $0xd0] sm:$0xff] %v1031
          %1096 = vst [vmem:[%s269 + $0xd8] sm:$0xff] %v1032
          %1097 = vst [vmem:[%s269 + $0xe0] sm:$0xff] %v1033
          %1098 = vst [vmem:[%s269 + $0xe8] sm:$0xff] %v1034
          %1099 = vst [vmem:[%s269 + $0xf0] sm:$0xff] %v1035
          %1100 = vst [vmem:[%s269 + $0xf8] sm:$0xff] %v1036
          %1101 = vst [vmem:[%s269 + $0x100] sm:$0xff] %v1037
          %1102 = vst [vmem:[%s269 + $0x108] sm:$0xff] %v1038
          %1103 = vst [vmem:[%s269 + $0x110] sm:$0xff] %v1039
          %1104 = vst [vmem:[%s269 + $0x118] sm:$0xff] %v1040
          %1105 = vst [vmem:[%s269 + $0x120] sm:$0xff] %v1041
          %1106 = vst [vmem:[%s269 + $0x128] sm:$0xff] %v1042
          %1107 = vst [vmem:[%s269 + $0x130] sm:$0xff] %v1043
          %1108 = vst [vmem:[%s269 + $0x138] sm:$0xff] %v1044
          %1109 = vst [vmem:[%s269 + $0x140] sm:$0xff] %v1045
          %1110 = vst [vmem:[%s269 + $0x148] sm:$0xff] %v1046
          %1111 = vst [vmem:[%s269 + $0x150] sm:$0xff] %v1047
          %1112 = vst [vmem:[%s269 + $0x158] sm:$0xff] %v1048
          %1113 = vst [vmem:[%s269 + $0x160] sm:$0xff] %v1049
          %1114 = vst [vmem:[%s269 + $0x168] sm:$0xff] %v1050
          %1115 = vst [vmem:[%s269 + $0x170] sm:$0xff] %v1051
          %1116 = vst [vmem:[%s269 + $0x178] sm:$0xff] %v1052
          %1117 = vst [vmem:[%s269 + $0x180] sm:$0xff] %v1053
          %1118 = vst [vmem:[%s269 + $0x188] sm:$0xff] %v1054
          %1119 = vst [vmem:[%s269 + $0x190] sm:$0xff] %v1055
          %1120 = vst [vmem:[%s269 + $0x198] sm:$0xff] %v1056
          %1121 = vst [vmem:[%s269 + $0x1a0] sm:$0xff] %v1057
          %1122 = vst [vmem:[%s269 + $0x1a8] sm:$0xff] %v1058
          %1123 = vst [vmem:[%s269 + $0x1b0] sm:$0xff] %v1059
          %1124 = vst [vmem:[%s269 + $0x1b8] sm:$0xff] %v1060
          %1125 = vst [vmem:[%s269 + $0x1c0] sm:$0xff] %v1061
          %1126 = vst [vmem:[%s269 + $0x1c8] sm:$0xff] %v1062
          %1127 = vst [vmem:[%s269 + $0x1d0] sm:$0xff] %v1063
          %1128 = vst [vmem:[%s269 + $0x1d8] sm:$0xff] %v1064
          %1129 = vst [vmem:[%s269 + $0x1e0] sm:$0xff] %v1065
          %1130 = vst [vmem:[%s269 + $0x1e8] sm:$0xff] %v1066
          %1131 = vst [vmem:[%s269 + $0x1f0] sm:$0xff] %v1067
          %1132 = vst [vmem:[%s269 + $0x1f8] sm:$0xff] %v1068
        $region48: #{attention_forward.3} parent=31 // pred_fallthru
          _
        %s1133 = sand.u32 %s131, 1
        %s1134 = sand.u32 %s131, 1
        %s1135 = smul.addr %s1134, 512
        %s1136 = scalar_lea.vmem [#allocation7], %s1135
        // Predicated region
        $region49: #{attention_forward.3} parent=31 // pred_check
          %p1137 = pneg %p141
        $region50: #{attention_forward.3} parent=31 // pred_check_branch
          %1139 = sbr.rel (%p1137) target = $region52
        $region51: #{attention_forward.3} parent=31 // pred_region
          %s1140 = smul.u32 32, %s25
          %s1141 = smul.u32 2, %s26
          %s1142 = smul.addr %s1140, 6
          %s1143 = sadd.s32 %s1141, %s1142
          %s1144 = smul.addr %s1143, 8
          %s1145 = scalar_lea.vmem %s3, %s1144
          // Predicated region
          $region53: #{attention_forward.3} parent=51 // pred_check
            _
          $region54: #{attention_forward.3} parent=51 // pred_check_branch
            %1147 = sbr.rel (0) target = $region56
          $region55: #{attention_forward.3} parent=51 // pred_region
            // Predicated region
            $region57: #{attention_forward.3} parent=55 // pred_check
              _
            $region58: #{attention_forward.3} parent=55 // pred_check_branch
              %1149 = sbr.rel (0) target = $region60
            $region59: #{attention_forward.3} parent=55 // pred_region
              loop: start=0, step=1, limit=1
              $region61: #{attention_forward.3} parent=59 // loop_pre_header
                _
              $region62: #{attention_forward.3} parent=59 // loop_header
                %s1151 = sphi 0, %s1155
                %p1152 = scmp.ge.s32.totalorder %s1151, 1
                %s1156 = sphi %s1136, %s1136
                %s1157 = sphi %s1145, %s1145
              $region63: #{attention_forward.3} parent=59 // loop_header_branch
                %1154 = sbr.rel (%p1152) target = $region67
              $region64: #{attention_forward.3} parent=59 // loop_body
                %v1158 = vld [vmem:[%s1156] sm:$0xff]
                %1159 = vst [vmem:[%s1157] sm:$0xff] %v1158
                %v1160 = vld [vmem:[%s1156 + $0x8] sm:$0xff]
                %1161 = vst [vmem:[%s1157 + $0x8] sm:$0xff] %v1160
                %v1162 = vld [vmem:[%s1156 + $0x10] sm:$0xff]
                %1163 = vst [vmem:[%s1157 + $0x30] sm:$0xff] %v1162
                %v1164 = vld [vmem:[%s1156 + $0x18] sm:$0xff]
                %1165 = vst [vmem:[%s1157 + $0x38] sm:$0xff] %v1164
                %v1166 = vld [vmem:[%s1156 + $0x20] sm:$0xff]
                %1167 = vst [vmem:[%s1157 + $0x60] sm:$0xff] %v1166
                %v1168 = vld [vmem:[%s1156 + $0x28] sm:$0xff]
                %1169 = vst [vmem:[%s1157 + $0x68] sm:$0xff] %v1168
                %v1170 = vld [vmem:[%s1156 + $0x30] sm:$0xff]
                %1171 = vst [vmem:[%s1157 + $0x90] sm:$0xff] %v1170
                %v1172 = vld [vmem:[%s1156 + $0x38] sm:$0xff]
                %1173 = vst [vmem:[%s1157 + $0x98] sm:$0xff] %v1172
                %v1174 = vld [vmem:[%s1156 + $0x40] sm:$0xff]
                %1175 = vst [vmem:[%s1157 + $0xc0] sm:$0xff] %v1174
                %v1176 = vld [vmem:[%s1156 + $0x48] sm:$0xff]
                %1177 = vst [vmem:[%s1157 + $0xc8] sm:$0xff] %v1176
                %v1178 = vld [vmem:[%s1156 + $0x50] sm:$0xff]
                %1179 = vst [vmem:[%s1157 + $0xf0] sm:$0xff] %v1178
                %v1180 = vld [vmem:[%s1156 + $0x58] sm:$0xff]
                %1181 = vst [vmem:[%s1157 + $0xf8] sm:$0xff] %v1180
                %v1182 = vld [vmem:[%s1156 + $0x60] sm:$0xff]
                %1183 = vst [vmem:[%s1157 + $0x120] sm:$0xff] %v1182
                %v1184 = vld [vmem:[%s1156 + $0x68] sm:$0xff]
                %1185 = vst [vmem:[%s1157 + $0x128] sm:$0xff] %v1184
                %v1186 = vld [vmem:[%s1156 + $0x70] sm:$0xff]
                %1187 = vst [vmem:[%s1157 + $0x150] sm:$0xff] %v1186
                %v1188 = vld [vmem:[%s1156 + $0x78] sm:$0xff]
                %1189 = vst [vmem:[%s1157 + $0x158] sm:$0xff] %v1188
                %v1190 = vld [vmem:[%s1156 + $0x80] sm:$0xff]
                %1191 = vst [vmem:[%s1157 + $0x180] sm:$0xff] %v1190
                %v1192 = vld [vmem:[%s1156 + $0x88] sm:$0xff]
                %1193 = vst [vmem:[%s1157 + $0x188] sm:$0xff] %v1192
                %v1194 = vld [vmem:[%s1156 + $0x90] sm:$0xff]
                %1195 = vst [vmem:[%s1157 + $0x1b0] sm:$0xff] %v1194
                %v1196 = vld [vmem:[%s1156 + $0x98] sm:$0xff]
                %1197 = vst [vmem:[%s1157 + $0x1b8] sm:$0xff] %v1196
                %v1198 = vld [vmem:[%s1156 + $0xa0] sm:$0xff]
                %1199 = vst [vmem:[%s1157 + $0x1e0] sm:$0xff] %v1198
                %v1200 = vld [vmem:[%s1156 + $0xa8] sm:$0xff]
                %1201 = vst [vmem:[%s1157 + $0x1e8] sm:$0xff] %v1200
                %v1202 = vld [vmem:[%s1156 + $0xb0] sm:$0xff]
                %1203 = vst [vmem:[%s1157 + $0x210] sm:$0xff] %v1202
                %v1204 = vld [vmem:[%s1156 + $0xb8] sm:$0xff]
                %1205 = vst [vmem:[%s1157 + $0x218] sm:$0xff] %v1204
                %v1206 = vld [vmem:[%s1156 + $0xc0] sm:$0xff]
                %1207 = vst [vmem:[%s1157 + $0x240] sm:$0xff] %v1206
                %v1208 = vld [vmem:[%s1156 + $0xc8] sm:$0xff]
                %1209 = vst [vmem:[%s1157 + $0x248] sm:$0xff] %v1208
                %v1210 = vld [vmem:[%s1156 + $0xd0] sm:$0xff]
                %1211 = vst [vmem:[%s1157 + $0x270] sm:$0xff] %v1210
                %v1212 = vld [vmem:[%s1156 + $0xd8] sm:$0xff]
                %1213 = vst [vmem:[%s1157 + $0x278] sm:$0xff] %v1212
                %v1214 = vld [vmem:[%s1156 + $0xe0] sm:$0xff]
                %1215 = vst [vmem:[%s1157 + $0x2a0] sm:$0xff] %v1214
                %v1216 = vld [vmem:[%s1156 + $0xe8] sm:$0xff]
                %1217 = vst [vmem:[%s1157 + $0x2a8] sm:$0xff] %v1216
                %v1218 = vld [vmem:[%s1156 + $0xf0] sm:$0xff]
                %1219 = vst [vmem:[%s1157 + $0x2d0] sm:$0xff] %v1218
                %v1220 = vld [vmem:[%s1156 + $0xf8] sm:$0xff]
                %1221 = vst [vmem:[%s1157 + $0x2d8] sm:$0xff] %v1220
                %v1222 = vld [vmem:[%s1156 + $0x100] sm:$0xff]
                %1223 = vst [vmem:[%s1157 + $0x300] sm:$0xff] %v1222
                %v1224 = vld [vmem:[%s1156 + $0x108] sm:$0xff]
                %1225 = vst [vmem:[%s1157 + $0x308] sm:$0xff] %v1224
                %v1226 = vld [vmem:[%s1156 + $0x110] sm:$0xff]
                %1227 = vst [vmem:[%s1157 + $0x330] sm:$0xff] %v1226
                %v1228 = vld [vmem:[%s1156 + $0x118] sm:$0xff]
                %1229 = vst [vmem:[%s1157 + $0x338] sm:$0xff] %v1228
                %v1230 = vld [vmem:[%s1156 + $0x120] sm:$0xff]
                %1231 = vst [vmem:[%s1157 + $0x360] sm:$0xff] %v1230
                %v1232 = vld [vmem:[%s1156 + $0x128] sm:$0xff]
                %1233 = vst [vmem:[%s1157 + $0x368] sm:$0xff] %v1232
                %v1234 = vld [vmem:[%s1156 + $0x130] sm:$0xff]
                %1235 = vst [vmem:[%s1157 + $0x390] sm:$0xff] %v1234
                %v1236 = vld [vmem:[%s1156 + $0x138] sm:$0xff]
                %1237 = vst [vmem:[%s1157 + $0x398] sm:$0xff] %v1236
                %v1238 = vld [vmem:[%s1156 + $0x140] sm:$0xff]
                %1239 = vst [vmem:[%s1157 + $0x3c0] sm:$0xff] %v1238
                %v1240 = vld [vmem:[%s1156 + $0x148] sm:$0xff]
                %1241 = vst [vmem:[%s1157 + $0x3c8] sm:$0xff] %v1240
                %v1242 = vld [vmem:[%s1156 + $0x150] sm:$0xff]
                %1243 = vst [vmem:[%s1157 + $0x3f0] sm:$0xff] %v1242
                %v1244 = vld [vmem:[%s1156 + $0x158] sm:$0xff]
                %1245 = vst [vmem:[%s1157 + $0x3f8] sm:$0xff] %v1244
                %v1246 = vld [vmem:[%s1156 + $0x160] sm:$0xff]
                %1247 = vst [vmem:[%s1157 + $0x420] sm:$0xff] %v1246
                %v1248 = vld [vmem:[%s1156 + $0x168] sm:$0xff]
                %1249 = vst [vmem:[%s1157 + $0x428] sm:$0xff] %v1248
                %v1250 = vld [vmem:[%s1156 + $0x170] sm:$0xff]
                %1251 = vst [vmem:[%s1157 + $0x450] sm:$0xff] %v1250
                %v1252 = vld [vmem:[%s1156 + $0x178] sm:$0xff]
                %1253 = vst [vmem:[%s1157 + $0x458] sm:$0xff] %v1252
                %v1254 = vld [vmem:[%s1156 + $0x180] sm:$0xff]
                %1255 = vst [vmem:[%s1157 + $0x480] sm:$0xff] %v1254
                %v1256 = vld [vmem:[%s1156 + $0x188] sm:$0xff]
                %1257 = vst [vmem:[%s1157 + $0x488] sm:$0xff] %v1256
                %v1258 = vld [vmem:[%s1156 + $0x190] sm:$0xff]
                %1259 = vst [vmem:[%s1157 + $0x4b0] sm:$0xff] %v1258
                %v1260 = vld [vmem:[%s1156 + $0x198] sm:$0xff]
                %1261 = vst [vmem:[%s1157 + $0x4b8] sm:$0xff] %v1260
                %v1262 = vld [vmem:[%s1156 + $0x1a0] sm:$0xff]
                %1263 = vst [vmem:[%s1157 + $0x4e0] sm:$0xff] %v1262
                %v1264 = vld [vmem:[%s1156 + $0x1a8] sm:$0xff]
                %1265 = vst [vmem:[%s1157 + $0x4e8] sm:$0xff] %v1264
                %v1266 = vld [vmem:[%s1156 + $0x1b0] sm:$0xff]
                %1267 = vst [vmem:[%s1157 + $0x510] sm:$0xff] %v1266
                %v1268 = vld [vmem:[%s1156 + $0x1b8] sm:$0xff]
                %1269 = vst [vmem:[%s1157 + $0x518] sm:$0xff] %v1268
                %v1270 = vld [vmem:[%s1156 + $0x1c0] sm:$0xff]
                %1271 = vst [vmem:[%s1157 + $0x540] sm:$0xff] %v1270
                %v1272 = vld [vmem:[%s1156 + $0x1c8] sm:$0xff]
                %1273 = vst [vmem:[%s1157 + $0x548] sm:$0xff] %v1272
                %v1274 = vld [vmem:[%s1156 + $0x1d0] sm:$0xff]
                %1275 = vst [vmem:[%s1157 + $0x570] sm:$0xff] %v1274
                %v1276 = vld [vmem:[%s1156 + $0x1d8] sm:$0xff]
                %1277 = vst [vmem:[%s1157 + $0x578] sm:$0xff] %v1276
                %v1278 = vld [vmem:[%s1156 + $0x1e0] sm:$0xff]
                %1279 = vst [vmem:[%s1157 + $0x5a0] sm:$0xff] %v1278
                %v1280 = vld [vmem:[%s1156 + $0x1e8] sm:$0xff]
                %1281 = vst [vmem:[%s1157 + $0x5a8] sm:$0xff] %v1280
                %v1282 = vld [vmem:[%s1156 + $0x1f0] sm:$0xff]
                %1283 = vst [vmem:[%s1157 + $0x5d0] sm:$0xff] %v1282
                %v1284 = vld [vmem:[%s1156 + $0x1f8] sm:$0xff]
                %1285 = vst [vmem:[%s1157 + $0x5d8] sm:$0xff] %v1284
              $region65: #{attention_forward.3} parent=59 // loop_footer
                %s1155 = sadd.s32 1, %s1151
              $region66: #{attention_forward.3} parent=59 // loop_footer_branch
                %1150 = sbr.rel target = $region62
              $region67: #{attention_forward.3} parent=59 // loop_exit
                _
            $region60: #{attention_forward.3} parent=55 // pred_fallthru
              _
            // Predicated region
            $region68: #{attention_forward.3} parent=55 // pred_check
              _
            $region69: #{attention_forward.3} parent=55 // pred_check_branch
              %1287 = sbr.rel target = $region71
            $region70: #{attention_forward.3} parent=55 // pred_region
              _
            $region71: #{attention_forward.3} parent=55 // pred_fallthru
              _
          $region56: #{attention_forward.3} parent=51 // pred_fallthru
            _
          %1288 = vnop
        $region52: #{attention_forward.3} parent=31 // pred_fallthru
          _
      $region32: #{attention_forward.3} parent=5 // pred_fallthru
        _
      %p1289 = scmp.le.s32.totalorder 2, %s15
      // Predicated region
      $region72: #{attention_forward.3} parent=5 // pred_check
        %p1290 = pneg %p1289
      $region73: #{attention_forward.3} parent=5 // pred_check_branch
        %1292 = sbr.rel (%p1290) target = $region75
      $region74: #{attention_forward.3} parent=5 // pred_region
        %s1293 = ssub.s32 %s15, 2
        // Predicated region
        $region76: #{attention_forward.3} parent=74 // pred_check
          %p1294 = pneg %p147
        $region77: #{attention_forward.3} parent=74 // pred_check_branch
          %1296 = sbr.rel (%p1294) target = $region79
        $region78: #{attention_forward.3} parent=74 // pred_region
          %s1297 = sand.u32 %s132, 1
          %s1298 = sand.u32 %s132, 1
          %s1299 = smul.addr %s1298, 512
          %s1300 = scalar_lea.vmem [#allocation7], %s1299
        $region79: #{attention_forward.3} parent=74 // pred_fallthru
          _
      $region75: #{attention_forward.3} parent=5 // pred_fallthru
        _
    $region6: #{attention_forward.3} parent=1 // loop_footer
      %s19 = sadd.s32 1, %s15
    $region7: #{attention_forward.3} parent=1 // loop_footer_branch
      %14 = sbr.rel target = $region3
    $region8: #{attention_forward.3} parent=1 // loop_exit
      _
    %1301 = vsyncpa [#allocation4], 1
    %s1302 = scalar_lea.sflag [#allocation4], 1
    %1303 = vsyncpa %s1302, 1
    %1304 = vsyncpa [#allocation6], 1
    %s1305 = scalar_lea.sflag [#allocation6], 1
    %1306 = vsyncpa %s1305, 1

// kernel: attention_forward.4
$region0: #{attention_forward.4}
  #allocation0 [shape = 'u32[]', space=smem, size = 0x4, offset = 0x4, fixed_abs, tag = 'smem constant byte address 0x4 - core index']
  #allocation1 [shape = 'u32[144,128]{1,0:T(1,128)}', space=vmem, size = 0x12000, scoped, tag = 'internal scratch']
  #allocation2 [shape = 'f32[256,1]{1,0:T(8,128)}', space=vmem, size = 0x20000, scoped, tag = 'scratch operand']
  #allocation3 [shape = 'f32[256,1]{1,0:T(8,128)}', space=vmem, size = 0x20000, scoped, tag = 'scratch operand']
  #allocation4 [shape = 'f32[256,128]{1,0:T(8,128)}', space=vmem, size = 0x20000, scoped, tag = 'scratch operand']
  %s0 = inlined_call_operand.vmem [shape: f32[2,256,768], index: 0, kind: input, shape index: {}, may-alias: {0,1,2}]
  %s1 = inlined_call_operand.vmem [shape: f32[2,256,768], index: 1, kind: input, shape index: {}, may-alias: {0,1,2}]
  %s2 = inlined_call_operand.vmem [shape: f32[2,256,768], index: 2, kind: input, shape index: {}, may-alias: {0,1,2}]
  %s3 = inlined_call_operand.vmem [shape: f32[2,256,256], index: 3, kind: output, shape index: {}]
  %s4 = sld [smem:[#allocation0]]
  $region201: #{attention_forward.4} parent=0
    _
  %s6 = ssub.s32 1, %s4
  %s7 = scalar_select 0, %s6, %s4
  $region1: #{attention_forward.4} parent=0
    #allocation5 [shape = 'u8[262144]{0}', space=vmem, size = 0x40000, scoped, tag = 'input window, operand 0']
    #allocation6 [shape = 'u8[262144]{0}', space=vmem, size = 0x40000, scoped, tag = 'input window, operand 1']
    #allocation7 [shape = 'u8[262144]{0}', space=vmem, size = 0x40000, scoped, tag = 'input window, operand 2']
    #allocation8 [shape = 'u8[262144]{0}', space=vmem, size = 0x40000, scoped, tag = 'output window, operand 0']
    loop: start=0, step=1, limit=6
    $region2: #{attention_forward.4} parent=1 // loop_pre_header
      _
    $region3: #{attention_forward.4} parent=1 // loop_header
      %s9 = sphi 0, %s13
      %p10 = scmp.ge.s32.totalorder %s9, 6
      %s16 = sphi 0, %s42
      %s17 = sphi 0, %s38
      %s18 = sphi 0, %s34
      %s19 = sphi 0, %s30
      %s20 = sphi 0, %s16
      %s21 = sphi 0, %s17
      %s22 = sphi 0, %s18
      %s23 = sphi 0, %s19
      %s24 = sphi 0, %s20
      %s25 = sphi 0, %s21
      %s26 = sphi 0, %s22
      %s27 = sphi 0, %s23
      %s51 = sphi 0, %s53
      %s54 = sphi 0, %s51
      %s55 = sphi 0, %s54
      %s71 = sphi 0, %s55
      %s85 = sphi 0, %s87
      %s88 = sphi 0, %s85
      %s89 = sphi 0, %s88
      %s105 = sphi 0, %s89
      %s119 = sphi 0, %s121
      %s122 = sphi 0, %s119
      %s123 = sphi 0, %s122
      %s139 = sphi 0, %s123
      %s149 = sphi 0, %s151
      %s152 = sphi 0, %s149
      %s153 = sphi 0, %s152
      %s169 = sphi 0, %s153
    $region4: #{attention_forward.4} parent=1 // loop_header_branch
      %12 = sbr.rel (%p10) target = $region8
    $region5: #{attention_forward.4} parent=1 // loop_body
      %s14 = ssub.s32 %s9, 1
      %s15 = ssub.s32 %s9, 2
      %s28 = sadd.s32 1, %s19
      %p29 = scmp.ge.s32.totalorder %s28, 1
      %s30 = scalar_select %p29, 0, %s28
      %s31 = sadd.s32 1, %s18
      %s32 = scalar_select %p29, %s31, %s18
      %p33 = scmp.ge.s32.totalorder %s32, 1
      %s34 = scalar_select %p33, 0, %s32
      %s35 = sadd.s32 1, %s17
      %s36 = scalar_select %p33, %s35, %s17
      %p37 = scmp.ge.s32.totalorder %s36, 2
      %s38 = scalar_select %p37, 0, %s36
      %s39 = sadd.s32 1, %s16
      %s40 = scalar_select %p37, %s39, %s16
      %p41 = scmp.ge.s32.totalorder %s40, 2
      %s42 = scalar_select %p41, 0, %s40
      %s43 = smul.u32 %s17, 3
      %s44 = smul.u32 %s38, 3
      %s45 = ssub.s32 %s16, %s42
      %s46 = ssub.s32 %s18, %s34
      %s47 = sor.u32 %s45, %s46
      %s48 = ssub.s32 %s43, %s44
      %s49 = sor.u32 %s47, %s48
      %p50 = scmp.eq.s32.totalorder %s49, 0
      %s52 = sadd.s32 %s51, 1
      %s53 = scalar_select %p50, %s51, %s52
      %p56 = pneg %p50
      %p57 = scmp.eq.s32.totalorder %s9, 3
      %p58 = por %p56, %p57
      %p59 = scmp.ne.s32.totalorder %s51, %s54
      %p60 = scmp.eq.s32.totalorder %s9, 0
      %p61 = por %p59, %p60
      %p62 = scmp.ne.s32.totalorder %s51, %s54
      %p63 = scmp.eq.s32.totalorder %s14, 3
      %p64 = por %p62, %p63
      %p65 = scmp.ne.s32.totalorder %s54, %s55
      %p66 = scmp.eq.s32.totalorder %s14, 0
      %p67 = por %p65, %p66
      %p68 = scmp.ne.s32.totalorder %s54, %s55
      %p69 = scmp.eq.s32.totalorder %s15, 3
      %p70 = por %p68, %p69
      %p72 = scmp.ne.s32.totalorder %s55, %s71
      %p73 = scmp.eq.s32.totalorder %s15, 0
      %p74 = por %p72, %p73
      %s75 = smul.u32 %s17, 3
      %s76 = sadd.s32 %s75, 1
      %s77 = smul.u32 %s38, 3
      %s78 = sadd.s32 %s77, 1
      %s79 = ssub.s32 %s16, %s42
      %s80 = ssub.s32 %s19, %s30
      %s81 = sor.u32 %s79, %s80
      %s82 = ssub.s32 %s76, %s78
      %s83 = sor.u32 %s81, %s82
      %p84 = scmp.eq.s32.totalorder %s83, 0
      %s86 = sadd.s32 %s85, 1
      %s87 = scalar_select %p84, %s85, %s86
      %p90 = pneg %p84
      %p91 = scmp.eq.s32.totalorder %s9, 3
      %p92 = por %p90, %p91
      %p93 = scmp.ne.s32.totalorder %s85, %s88
      %p94 = scmp.eq.s32.totalorder %s9, 0
      %p95 = por %p93, %p94
      %p96 = scmp.ne.s32.totalorder %s85, %s88
      %p97 = scmp.eq.s32.totalorder %s14, 3
      %p98 = por %p96, %p97
      %p99 = scmp.ne.s32.totalorder %s88, %s89
      %p100 = scmp.eq.s32.totalorder %s14, 0
      %p101 = por %p99, %p100
      %p102 = scmp.ne.s32.totalorder %s88, %s89
      %p103 = scmp.eq.s32.totalorder %s15, 3
      %p104 = por %p102, %p103
      %p106 = scmp.ne.s32.totalorder %s89, %s105
      %p107 = scmp.eq.s32.totalorder %s15, 0
      %p108 = por %p106, %p107
      %s109 = smul.u32 %s17, 3
      %s110 = sadd.s32 %s109, 2
      %s111 = smul.u32 %s38, 3
      %s112 = sadd.s32 %s111, 2
      %s113 = ssub.s32 %s16, %s42
      %s114 = ssub.s32 %s19, %s30
      %s115 = sor.u32 %s113, %s114
      %s116 = ssub.s32 %s110, %s112
      %s117 = sor.u32 %s115, %s116
      %p118 = scmp.eq.s32.totalorder %s117, 0
      %s120 = sadd.s32 %s119, 1
      %s121 = scalar_select %p118, %s119, %s120
      %p124 = pneg %p118
      %p125 = scmp.eq.s32.totalorder %s9, 3
      %p126 = por %p124, %p125
      %p127 = scmp.ne.s32.totalorder %s119, %s122
      %p128 = scmp.eq.s32.totalorder %s9, 0
      %p129 = por %p127, %p128
      %p130 = scmp.ne.s32.totalorder %s119, %s122
      %p131 = scmp.eq.s32.totalorder %s14, 3
      %p132 = por %p130, %p131
      %p133 = scmp.ne.s32.totalorder %s122, %s123
      %p134 = scmp.eq.s32.totalorder %s14, 0
      %p135 = por %p133, %p134
      %p136 = scmp.ne.s32.totalorder %s122, %s123
      %p137 = scmp.eq.s32.totalorder %s15, 3
      %p138 = por %p136, %p137
      %p140 = scmp.ne.s32.totalorder %s123, %s139
      %p141 = scmp.eq.s32.totalorder %s15, 0
      %p142 = por %p140, %p141
      %s143 = ssub.s32 %s16, %s42
      %s144 = ssub.s32 %s18, %s34
      %s145 = sor.u32 %s143, %s144
      %s146 = ssub.s32 %s17, %s38
      %s147 = sor.u32 %s145, %s146
      %p148 = scmp.eq.s32.totalorder %s147, 0
      %s150 = sadd.s32 %s149, 1
      %s151 = scalar_select %p148, %s149, %s150
      %p154 = pneg %p148
      %p155 = scmp.eq.s32.totalorder %s9, 3
      %p156 = por %p154, %p155
      %p157 = scmp.ne.s32.totalorder %s149, %s152
      %p158 = scmp.eq.s32.totalorder %s9, 0
      %p159 = por %p157, %p158
      %p160 = scmp.ne.s32.totalorder %s149, %s152
      %p161 = scmp.eq.s32.totalorder %s14, 3
      %p162 = por %p160, %p161
      %p163 = scmp.ne.s32.totalorder %s152, %s153
      %p164 = scmp.eq.s32.totalorder %s14, 0
      %p165 = por %p163, %p164
      %p166 = scmp.ne.s32.totalorder %s152, %s153
      %p167 = scmp.eq.s32.totalorder %s15, 3
      %p168 = por %p166, %p167
      %p170 = scmp.ne.s32.totalorder %s153, %s169
      %p171 = scmp.eq.s32.totalorder %s15, 0
      %p172 = por %p170, %p171
      %p173 = scmp.le.s32.totalorder 1, %s9
      %p174 = scmp.lt.s32.totalorder %s9, 5
      %p175 = pnand %p173, %p174
      %p176 = pneg %p175
      // Predicated region
      $region9: #{attention_forward.4} parent=5 // pred_check
        _
      $region10: #{attention_forward.4} parent=5 // pred_check_branch
        %178 = sbr.rel (%p175) target = $region12
      $region11: #{attention_forward.4} parent=5 // pred_region
        %s179 = ssub.s32 %s9, 1
      $region12: #{attention_forward.4} parent=5 // pred_fallthru
        _
      %p180 = scmp.lt.s32.totalorder %s9, 4
      // Predicated region
      $region13: #{attention_forward.4} parent=5 // pred_check
        %p181 = pneg %p180
      $region14: #{attention_forward.4} parent=5 // pred_check_branch
        %183 = sbr.rel (%p181) target = $region16
      $region15: #{attention_forward.4} parent=5 // pred_region
        // Predicated region
        $region17: #{attention_forward.4} parent=15 // pred_check
          %p184 = pneg %p61
        $region18: #{attention_forward.4} parent=15 // pred_check_branch
          %186 = sbr.rel (%p184) target = $region20
        $region19: #{attention_forward.4} parent=15 // pred_region
          %s187 = sand.u32 %s51, 1
          %s188 = sand.u32 %s51, 1
          %s189 = smul.addr %s188, 256
          %s190 = scalar_lea.vmem [#allocation5], %s189
          %s191 = smul.u32 %s17, 3
          %s192 = smul.u32 32, %s18
          %s193 = smul.addr %s192, 6
          %s194 = sadd.s32 %s191, %s193
          %s195 = smul.addr %s16, 192
          %s196 = sadd.s32 %s194, %s195
          %s197 = smul.addr %s196, 8
          %s198 = scalar_lea.vmem %s0, %s197
          // Predicated region
          $region21: #{attention_forward.4} parent=19 // pred_check
            _
          $region22: #{attention_forward.4} parent=19 // pred_check_branch
            %200 = sbr.rel (0) target = $region24
          $region23: #{attention_forward.4} parent=19 // pred_region
            // Predicated region
            $region25: #{attention_forward.4} parent=23 // pred_check
              _
            $region26: #{attention_forward.4} parent=23 // pred_check_branch
              %202 = sbr.rel (0) target = $region28
            $region27: #{attention_forward.4} parent=23 // pred_region
              // Predicated region
              $region40: #{attention_forward.4} parent=27 // pred_check
                _
              $region41: #{attention_forward.4} parent=27 // pred_check_branch
                %279 = sbr.rel (0) target = $region43
              $region42: #{attention_forward.4} parent=27 // pred_region
                loop: start=0, step=1, limit=1
                $region44: #{attention_forward.4} parent=42 // loop_pre_header
                  _
                $region45: #{attention_forward.4} parent=42 // loop_header
                  %s281 = sphi 0, %s285
                  %p282 = scmp.ge.s32.totalorder %s281, 1
                  %s286 = sphi %s198, %s198
                  %s287 = sphi %s190, %s190
                $region46: #{attention_forward.4} parent=42 // loop_header_branch
                  %284 = sbr.rel (%p282) target = $region50
                $region47: #{attention_forward.4} parent=42 // loop_body
                  %v288 = vld [vmem:[%s286] sm:$0xff]
                  %289 = vst [vmem:[%s287] sm:$0xff] %v288
                  %v290 = vld [vmem:[%s286 + $0x30] sm:$0xff]
                  %291 = vst [vmem:[%s287 + $0x8] sm:$0xff] %v290
                  %v292 = vld [vmem:[%s286 + $0x60] sm:$0xff]
                  %293 = vst [vmem:[%s287 + $0x10] sm:$0xff] %v292
                  %v294 = vld [vmem:[%s286 + $0x90] sm:$0xff]
                  %295 = vst [vmem:[%s287 + $0x18] sm:$0xff] %v294
                  %v296 = vld [vmem:[%s286 + $0xc0] sm:$0xff]
                  %297 = vst [vmem:[%s287 + $0x20] sm:$0xff] %v296
                  %v298 = vld [vmem:[%s286 + $0xf0] sm:$0xff]
                  %299 = vst [vmem:[%s287 + $0x28] sm:$0xff] %v298
                  %v300 = vld [vmem:[%s286 + $0x120] sm:$0xff]
                  %301 = vst [vmem:[%s287 + $0x30] sm:$0xff] %v300
                  %v302 = vld [vmem:[%s286 + $0x150] sm:$0xff]
                  %303 = vst [vmem:[%s287 + $0x38] sm:$0xff] %v302
                  %v304 = vld [vmem:[%s286 + $0x180] sm:$0xff]
                  %305 = vst [vmem:[%s287 + $0x40] sm:$0xff] %v304
                  %v306 = vld [vmem:[%s286 + $0x1b0] sm:$0xff]
                  %307 = vst [vmem:[%s287 + $0x48] sm:$0xff] %v306
                  %v308 = vld [vmem:[%s286 + $0x1e0] sm:$0xff]
                  %309 = vst [vmem:[%s287 + $0x50] sm:$0xff] %v308
                  %v310 = vld [vmem:[%s286 + $0x210] sm:$0xff]
                  %311 = vst [vmem:[%s287 + $0x58] sm:$0xff] %v310
                  %v312 = vld [vmem:[%s286 + $0x240] sm:$0xff]
                  %313 = vst [vmem:[%s287 + $0x60] sm:$0xff] %v312
                  %v314 = vld [vmem:[%s286 + $0x270] sm:$0xff]
                  %315 = vst [vmem:[%s287 + $0x68] sm:$0xff] %v314
                  %v316 = vld [vmem:[%s286 + $0x2a0] sm:$0xff]
                  %317 = vst [vmem:[%s287 + $0x70] sm:$0xff] %v316
                  %v318 = vld [vmem:[%s286 + $0x2d0] sm:$0xff]
                  %319 = vst [vmem:[%s287 + $0x78] sm:$0xff] %v318
                  %v320 = vld [vmem:[%s286 + $0x300] sm:$0xff]
                  %321 = vst [vmem:[%s287 + $0x80] sm:$0xff] %v320
                  %v322 = vld [vmem:[%s286 + $0x330] sm:$0xff]
                  %323 = vst [vmem:[%s287 + $0x88] sm:$0xff] %v322
                  %v324 = vld [vmem:[%s286 + $0x360] sm:$0xff]
                  %325 = vst [vmem:[%s287 + $0x90] sm:$0xff] %v324
                  %v326 = vld [vmem:[%s286 + $0x390] sm:$0xff]
                  %327 = vst [vmem:[%s287 + $0x98] sm:$0xff] %v326
                  %v328 = vld [vmem:[%s286 + $0x3c0] sm:$0xff]
                  %329 = vst [vmem:[%s287 + $0xa0] sm:$0xff] %v328
                  %v330 = vld [vmem:[%s286 + $0x3f0] sm:$0xff]
                  %331 = vst [vmem:[%s287 + $0xa8] sm:$0xff] %v330
                  %v332 = vld [vmem:[%s286 + $0x420] sm:$0xff]
                  %333 = vst [vmem:[%s287 + $0xb0] sm:$0xff] %v332
                  %v334 = vld [vmem:[%s286 + $0x450] sm:$0xff]
                  %335 = vst [vmem:[%s287 + $0xb8] sm:$0xff] %v334
                  %v336 = vld [vmem:[%s286 + $0x480] sm:$0xff]
                  %337 = vst [vmem:[%s287 + $0xc0] sm:$0xff] %v336
                  %v338 = vld [vmem:[%s286 + $0x4b0] sm:$0xff]
                  %339 = vst [vmem:[%s287 + $0xc8] sm:$0xff] %v338
                  %v340 = vld [vmem:[%s286 + $0x4e0] sm:$0xff]
                  %341 = vst [vmem:[%s287 + $0xd0] sm:$0xff] %v340
                  %v342 = vld [vmem:[%s286 + $0x510] sm:$0xff]
                  %343 = vst [vmem:[%s287 + $0xd8] sm:$0xff] %v342
                  %v344 = vld [vmem:[%s286 + $0x540] sm:$0xff]
                  %345 = vst [vmem:[%s287 + $0xe0] sm:$0xff] %v344
                  %v346 = vld [vmem:[%s286 + $0x570] sm:$0xff]
                  %347 = vst [vmem:[%s287 + $0xe8] sm:$0xff] %v346
                  %v348 = vld [vmem:[%s286 + $0x5a0] sm:$0xff]
                  %349 = vst [vmem:[%s287 + $0xf0] sm:$0xff] %v348
                  %v350 = vld [vmem:[%s286 + $0x5d0] sm:$0xff]
                  %351 = vst [vmem:[%s287 + $0xf8] sm:$0xff] %v350
                $region48: #{attention_forward.4} parent=42 // loop_footer
                  %s285 = sadd.s32 1, %s281
                $region49: #{attention_forward.4} parent=42 // loop_footer_branch
                  %280 = sbr.rel target = $region45
                $region50: #{attention_forward.4} parent=42 // loop_exit
                  _
              $region43: #{attention_forward.4} parent=27 // pred_fallthru
                _
              // Predicated region
              $region51: #{attention_forward.4} parent=27 // pred_check
                _
              $region52: #{attention_forward.4} parent=27 // pred_check_branch
                %353 = sbr.rel target = $region54
              $region53: #{attention_forward.4} parent=27 // pred_region
                _
              $region54: #{attention_forward.4} parent=27 // pred_fallthru
                _
            $region28: #{attention_forward.4} parent=23 // pred_fallthru
              _
            // Predicated region
            $region29: #{attention_forward.4} parent=23 // pred_check
              _
            $region30: #{attention_forward.4} parent=23 // pred_check_branch
              %204 = sbr.rel target = $region32
            $region31: #{attention_forward.4} parent=23 // pred_region
              loop: start=0, step=1, limit=1
              $region33: #{attention_forward.4} parent=31 // loop_pre_header
                _
              $region34: #{attention_forward.4} parent=31 // loop_header
                %s207 = sphi 0, %s211
                %p208 = scmp.ge.s32.totalorder %s207, 1
                %s212 = sphi %s198, %s198
                %s213 = sphi %s190, %s190
              $region35: #{attention_forward.4} parent=31 // loop_header_branch
                %210 = sbr.rel (%p208) target = $region39
              $region36: #{attention_forward.4} parent=31 // loop_body
                %v214 = vld [vmem:[%s212] sm:$0xff]
                %215 = vst [vmem:[%s213] sm:$0xff] %v214
                %v216 = vld [vmem:[%s212 + $0x30] sm:$0xff]
                %217 = vst [vmem:[%s213 + $0x8] sm:$0xff] %v216
                %v218 = vld [vmem:[%s212 + $0x60] sm:$0xff]
                %219 = vst [vmem:[%s213 + $0x10] sm:$0xff] %v218
                %v220 = vld [vmem:[%s212 + $0x90] sm:$0xff]
                %221 = vst [vmem:[%s213 + $0x18] sm:$0xff] %v220
                %v222 = vld [vmem:[%s212 + $0xc0] sm:$0xff]
                %223 = vst [vmem:[%s213 + $0x20] sm:$0xff] %v222
                %v224 = vld [vmem:[%s212 + $0xf0] sm:$0xff]
                %225 = vst [vmem:[%s213 + $0x28] sm:$0xff] %v224
                %v226 = vld [vmem:[%s212 + $0x120] sm:$0xff]
                %227 = vst [vmem:[%s213 + $0x30] sm:$0xff] %v226
                %v228 = vld [vmem:[%s212 + $0x150] sm:$0xff]
                %229 = vst [vmem:[%s213 + $0x38] sm:$0xff] %v228
                %v230 = vld [vmem:[%s212 + $0x180] sm:$0xff]
                %231 = vst [vmem:[%s213 + $0x40] sm:$0xff] %v230
                %v232 = vld [vmem:[%s212 + $0x1b0] sm:$0xff]
                %233 = vst [vmem:[%s213 + $0x48] sm:$0xff] %v232
                %v234 = vld [vmem:[%s212 + $0x1e0] sm:$0xff]
                %235 = vst [vmem:[%s213 + $0x50] sm:$0xff] %v234
                %v236 = vld [vmem:[%s212 + $0x210] sm:$0xff]
                %237 = vst [vmem:[%s213 + $0x58] sm:$0xff] %v236
                %v238 = vld [vmem:[%s212 + $0x240] sm:$0xff]
                %239 = vst [vmem:[%s213 + $0x60] sm:$0xff] %v238
                %v240 = vld [vmem:[%s212 + $0x270] sm:$0xff]
                %241 = vst [vmem:[%s213 + $0x68] sm:$0xff] %v240
                %v242 = vld [vmem:[%s212 + $0x2a0] sm:$0xff]
                %243 = vst [vmem:[%s213 + $0x70] sm:$0xff] %v242
                %v244 = vld [vmem:[%s212 + $0x2d0] sm:$0xff]
                %245 = vst [vmem:[%s213 + $0x78] sm:$0xff] %v244
                %v246 = vld [vmem:[%s212 + $0x300] sm:$0xff]
                %247 = vst [vmem:[%s213 + $0x80] sm:$0xff] %v246
                %v248 = vld [vmem:[%s212 + $0x330] sm:$0xff]
                %249 = vst [vmem:[%s213 + $0x88] sm:$0xff] %v248
                %v250 = vld [vmem:[%s212 + $0x360] sm:$0xff]
                %251 = vst [vmem:[%s213 + $0x90] sm:$0xff] %v250
                %v252 = vld [vmem:[%s212 + $0x390] sm:$0xff]
                %253 = vst [vmem:[%s213 + $0x98] sm:$0xff] %v252
                %v254 = vld [vmem:[%s212 + $0x3c0] sm:$0xff]
                %255 = vst [vmem:[%s213 + $0xa0] sm:$0xff] %v254
                %v256 = vld [vmem:[%s212 + $0x3f0] sm:$0xff]
                %257 = vst [vmem:[%s213 + $0xa8] sm:$0xff] %v256
                %v258 = vld [vmem:[%s212 + $0x420] sm:$0xff]
                %259 = vst [vmem:[%s213 + $0xb0] sm:$0xff] %v258
                %v260 = vld [vmem:[%s212 + $0x450] sm:$0xff]
                %261 = vst [vmem:[%s213 + $0xb8] sm:$0xff] %v260
                %v262 = vld [vmem:[%s212 + $0x480] sm:$0xff]
                %263 = vst [vmem:[%s213 + $0xc0] sm:$0xff] %v262
                %v264 = vld [vmem:[%s212 + $0x4b0] sm:$0xff]
                %265 = vst [vmem:[%s213 + $0xc8] sm:$0xff] %v264
                %v266 = vld [vmem:[%s212 + $0x4e0] sm:$0xff]
                %267 = vst [vmem:[%s213 + $0xd0] sm:$0xff] %v266
                %v268 = vld [vmem:[%s212 + $0x510] sm:$0xff]
                %269 = vst [vmem:[%s213 + $0xd8] sm:$0xff] %v268
                %v270 = vld [vmem:[%s212 + $0x540] sm:$0xff]
                %271 = vst [vmem:[%s213 + $0xe0] sm:$0xff] %v270
                %v272 = vld [vmem:[%s212 + $0x570] sm:$0xff]
                %273 = vst [vmem:[%s213 + $0xe8] sm:$0xff] %v272
                %v274 = vld [vmem:[%s212 + $0x5a0] sm:$0xff]
                %275 = vst [vmem:[%s213 + $0xf0] sm:$0xff] %v274
                %v276 = vld [vmem:[%s212 + $0x5d0] sm:$0xff]
                %277 = vst [vmem:[%s213 + $0xf8] sm:$0xff] %v276
              $region37: #{attention_forward.4} parent=31 // loop_footer
                %s211 = sadd.s32 1, %s207
              $region38: #{attention_forward.4} parent=31 // loop_footer_branch
                %206 = sbr.rel target = $region34
              $region39: #{attention_forward.4} parent=31 // loop_exit
                _
            $region32: #{attention_forward.4} parent=23 // pred_fallthru
              _
          $region24: #{attention_forward.4} parent=19 // pred_fallthru
            _
          %354 = vnop
        $region20: #{attention_forward.4} parent=15 // pred_fallthru
          _
        // Predicated region
        $region55: #{attention_forward.4} parent=15 // pred_check
          %p355 = pneg %p95
        $region56: #{attention_forward.4} parent=15 // pred_check_branch
          %357 = sbr.rel (%p355) target = $region58
        $region57: #{attention_forward.4} parent=15 // pred_region
          %s358 = sand.u32 %s85, 1
          %s359 = sand.u32 %s85, 1
          %s360 = smul.addr %s359, 256
          %s361 = scalar_lea.vmem [#allocation6], %s360
          %s362 = smul.u32 %s17, 3
          %s363 = sadd.s32 %s362, 1
          %s364 = smul.u32 32, %s19
          %s365 = smul.addr %s364, 6
          %s366 = sadd.s32 %s363, %s365
          %s367 = smul.addr %s16, 192
          %s368 = sadd.s32 %s366, %s367
          %s369 = smul.addr %s368, 8
          %s370 = scalar_lea.vmem %s1, %s369
          // Predicated region
          $region59: #{attention_forward.4} parent=57 // pred_check
            _
          $region60: #{attention_forward.4} parent=57 // pred_check_branch
            %372 = sbr.rel (0) target = $region62
          $region61: #{attention_forward.4} parent=57 // pred_region
            // Predicated region
            $region63: #{attention_forward.4} parent=61 // pred_check
              _
            $region64: #{attention_forward.4} parent=61 // pred_check_branch
              %374 = sbr.rel (0) target = $region66
            $region65: #{attention_forward.4} parent=61 // pred_region
              // Predicated region
              $region78: #{attention_forward.4} parent=65 // pred_check
                _
              $region79: #{attention_forward.4} parent=65 // pred_check_branch
                %451 = sbr.rel (0) target = $region81
              $region80: #{attention_forward.4} parent=65 // pred_region
                loop: start=0, step=1, limit=1
                $region82: #{attention_forward.4} parent=80 // loop_pre_header
                  _
                $region83: #{attention_forward.4} parent=80 // loop_header
                  %s453 = sphi 0, %s457
                  %p454 = scmp.ge.s32.totalorder %s453, 1
                  %s458 = sphi %s370, %s370
                  %s459 = sphi %s361, %s361
                $region84: #{attention_forward.4} parent=80 // loop_header_branch
                  %456 = sbr.rel (%p454) target = $region88
                $region85: #{attention_forward.4} parent=80 // loop_body
                  %v460 = vld [vmem:[%s458] sm:$0xff]
                  %461 = vst [vmem:[%s459] sm:$0xff] %v460
                  %v462 = vld [vmem:[%s458 + $0x30] sm:$0xff]
                  %463 = vst [vmem:[%s459 + $0x8] sm:$0xff] %v462
                  %v464 = vld [vmem:[%s458 + $0x60] sm:$0xff]
                  %465 = vst [vmem:[%s459 + $0x10] sm:$0xff] %v464
                  %v466 = vld [vmem:[%s458 + $0x90] sm:$0xff]
                  %467 = vst [vmem:[%s459 + $0x18] sm:$0xff] %v466
                  %v468 = vld [vmem:[%s458 + $0xc0] sm:$0xff]
                  %469 = vst [vmem:[%s459 + $0x20] sm:$0xff] %v468
                  %v470 = vld [vmem:[%s458 + $0xf0] sm:$0xff]
                  %471 = vst [vmem:[%s459 + $0x28] sm:$0xff] %v470
                  %v472 = vld [vmem:[%s458 + $0x120] sm:$0xff]
                  %473 = vst [vmem:[%s459 + $0x30] sm:$0xff] %v472
                  %v474 = vld [vmem:[%s458 + $0x150] sm:$0xff]
                  %475 = vst [vmem:[%s459 + $0x38] sm:$0xff] %v474
                  %v476 = vld [vmem:[%s458 + $0x180] sm:$0xff]
                  %477 = vst [vmem:[%s459 + $0x40] sm:$0xff] %v476
                  %v478 = vld [vmem:[%s458 + $0x1b0] sm:$0xff]
                  %479 = vst [vmem:[%s459 + $0x48] sm:$0xff] %v478
                  %v480 = vld [vmem:[%s458 + $0x1e0] sm:$0xff]
                  %481 = vst [vmem:[%s459 + $0x50] sm:$0xff] %v480
                  %v482 = vld [vmem:[%s458 + $0x210] sm:$0xff]
                  %483 = vst [vmem:[%s459 + $0x58] sm:$0xff] %v482
                  %v484 = vld [vmem:[%s458 + $0x240] sm:$0xff]
                  %485 = vst [vmem:[%s459 + $0x60] sm:$0xff] %v484
                  %v486 = vld [vmem:[%s458 + $0x270] sm:$0xff]
                  %487 = vst [vmem:[%s459 + $0x68] sm:$0xff] %v486
                  %v488 = vld [vmem:[%s458 + $0x2a0] sm:$0xff]
                  %489 = vst [vmem:[%s459 + $0x70] sm:$0xff] %v488
                  %v490 = vld [vmem:[%s458 + $0x2d0] sm:$0xff]
                  %491 = vst [vmem:[%s459 + $0x78] sm:$0xff] %v490
                  %v492 = vld [vmem:[%s458 + $0x300] sm:$0xff]
                  %493 = vst [vmem:[%s459 + $0x80] sm:$0xff] %v492
                  %v494 = vld [vmem:[%s458 + $0x330] sm:$0xff]
                  %495 = vst [vmem:[%s459 + $0x88] sm:$0xff] %v494
                  %v496 = vld [vmem:[%s458 + $0x360] sm:$0xff]
                  %497 = vst [vmem:[%s459 + $0x90] sm:$0xff] %v496
                  %v498 = vld [vmem:[%s458 + $0x390] sm:$0xff]
                  %499 = vst [vmem:[%s459 + $0x98] sm:$0xff] %v498
                  %v500 = vld [vmem:[%s458 + $0x3c0] sm:$0xff]
                  %501 = vst [vmem:[%s459 + $0xa0] sm:$0xff] %v500
                  %v502 = vld [vmem:[%s458 + $0x3f0] sm:$0xff]
                  %503 = vst [vmem:[%s459 + $0xa8] sm:$0xff] %v502
                  %v504 = vld [vmem:[%s458 + $0x420] sm:$0xff]
                  %505 = vst [vmem:[%s459 + $0xb0] sm:$0xff] %v504
                  %v506 = vld [vmem:[%s458 + $0x450] sm:$0xff]
                  %507 = vst [vmem:[%s459 + $0xb8] sm:$0xff] %v506
                  %v508 = vld [vmem:[%s458 + $0x480] sm:$0xff]
                  %509 = vst [vmem:[%s459 + $0xc0] sm:$0xff] %v508
                  %v510 = vld [vmem:[%s458 + $0x4b0] sm:$0xff]
                  %511 = vst [vmem:[%s459 + $0xc8] sm:$0xff] %v510
                  %v512 = vld [vmem:[%s458 + $0x4e0] sm:$0xff]
                  %513 = vst [vmem:[%s459 + $0xd0] sm:$0xff] %v512
                  %v514 = vld [vmem:[%s458 + $0x510] sm:$0xff]
                  %515 = vst [vmem:[%s459 + $0xd8] sm:$0xff] %v514
                  %v516 = vld [vmem:[%s458 + $0x540] sm:$0xff]
                  %517 = vst [vmem:[%s459 + $0xe0] sm:$0xff] %v516
                  %v518 = vld [vmem:[%s458 + $0x570] sm:$0xff]
                  %519 = vst [vmem:[%s459 + $0xe8] sm:$0xff] %v518
                  %v520 = vld [vmem:[%s458 + $0x5a0] sm:$0xff]
                  %521 = vst [vmem:[%s459 + $0xf0] sm:$0xff] %v520
                  %v522 = vld [vmem:[%s458 + $0x5d0] sm:$0xff]
                  %523 = vst [vmem:[%s459 + $0xf8] sm:$0xff] %v522
                $region86: #{attention_forward.4} parent=80 // loop_footer
                  %s457 = sadd.s32 1, %s453
                $region87: #{attention_forward.4} parent=80 // loop_footer_branch
                  %452 = sbr.rel target = $region83
                $region88: #{attention_forward.4} parent=80 // loop_exit
                  _
              $region81: #{attention_forward.4} parent=65 // pred_fallthru
                _
              // Predicated region
              $region89: #{attention_forward.4} parent=65 // pred_check
                _
              $region90: #{attention_forward.4} parent=65 // pred_check_branch
                %525 = sbr.rel target = $region92
              $region91: #{attention_forward.4} parent=65 // pred_region
                _
              $region92: #{attention_forward.4} parent=65 // pred_fallthru
                _
            $region66: #{attention_forward.4} parent=61 // pred_fallthru
              _
            // Predicated region
            $region67: #{attention_forward.4} parent=61 // pred_check
              _
            $region68: #{attention_forward.4} parent=61 // pred_check_branch
              %376 = sbr.rel target = $region70
            $region69: #{attention_forward.4} parent=61 // pred_region
              loop: start=0, step=1, limit=1
              $region71: #{attention_forward.4} parent=69 // loop_pre_header
                _
              $region72: #{attention_forward.4} parent=69 // loop_header
                %s379 = sphi 0, %s383
                %p380 = scmp.ge.s32.totalorder %s379, 1
                %s384 = sphi %s370, %s370
                %s385 = sphi %s361, %s361
              $region73: #{attention_forward.4} parent=69 // loop_header_branch
                %382 = sbr.rel (%p380) target = $region77
              $region74: #{attention_forward.4} parent=69 // loop_body
                %v386 = vld [vmem:[%s384] sm:$0xff]
                %387 = vst [vmem:[%s385] sm:$0xff] %v386
                %v388 = vld [vmem:[%s384 + $0x30] sm:$0xff]
                %389 = vst [vmem:[%s385 + $0x8] sm:$0xff] %v388
                %v390 = vld [vmem:[%s384 + $0x60] sm:$0xff]
                %391 = vst [vmem:[%s385 + $0x10] sm:$0xff] %v390
                %v392 = vld [vmem:[%s384 + $0x90] sm:$0xff]
                %393 = vst [vmem:[%s385 + $0x18] sm:$0xff] %v392
                %v394 = vld [vmem:[%s384 + $0xc0] sm:$0xff]
                %395 = vst [vmem:[%s385 + $0x20] sm:$0xff] %v394
                %v396 = vld [vmem:[%s384 + $0xf0] sm:$0xff]
                %397 = vst [vmem:[%s385 + $0x28] sm:$0xff] %v396
                %v398 = vld [vmem:[%s384 + $0x120] sm:$0xff]
                %399 = vst [vmem:[%s385 + $0x30] sm:$0xff] %v398
                %v400 = vld [vmem:[%s384 + $0x150] sm:$0xff]
                %401 = vst [vmem:[%s385 + $0x38] sm:$0xff] %v400
                %v402 = vld [vmem:[%s384 + $0x180] sm:$0xff]
                %403 = vst [vmem:[%s385 + $0x40] sm:$0xff] %v402
                %v404 = vld [vmem:[%s384 + $0x1b0] sm:$0xff]
                %405 = vst [vmem:[%s385 + $0x48] sm:$0xff] %v404
                %v406 = vld [vmem:[%s384 + $0x1e0] sm:$0xff]
                %407 = vst [vmem:[%s385 + $0x50] sm:$0xff] %v406
                %v408 = vld [vmem:[%s384 + $0x210] sm:$0xff]
                %409 = vst [vmem:[%s385 + $0x58] sm:$0xff] %v408
                %v410 = vld [vmem:[%s384 + $0x240] sm:$0xff]
                %411 = vst [vmem:[%s385 + $0x60] sm:$0xff] %v410
                %v412 = vld [vmem:[%s384 + $0x270] sm:$0xff]
                %413 = vst [vmem:[%s385 + $0x68] sm:$0xff] %v412
                %v414 = vld [vmem:[%s384 + $0x2a0] sm:$0xff]
                %415 = vst [vmem:[%s385 + $0x70] sm:$0xff] %v414
                %v416 = vld [vmem:[%s384 + $0x2d0] sm:$0xff]
                %417 = vst [vmem:[%s385 + $0x78] sm:$0xff] %v416
                %v418 = vld [vmem:[%s384 + $0x300] sm:$0xff]
                %419 = vst [vmem:[%s385 + $0x80] sm:$0xff] %v418
                %v420 = vld [vmem:[%s384 + $0x330] sm:$0xff]
                %421 = vst [vmem:[%s385 + $0x88] sm:$0xff] %v420
                %v422 = vld [vmem:[%s384 + $0x360] sm:$0xff]
                %423 = vst [vmem:[%s385 + $0x90] sm:$0xff] %v422
                %v424 = vld [vmem:[%s384 + $0x390] sm:$0xff]
                %425 = vst [vmem:[%s385 + $0x98] sm:$0xff] %v424
                %v426 = vld [vmem:[%s384 + $0x3c0] sm:$0xff]
                %427 = vst [vmem:[%s385 + $0xa0] sm:$0xff] %v426
                %v428 = vld [vmem:[%s384 + $0x3f0] sm:$0xff]
                %429 = vst [vmem:[%s385 + $0xa8] sm:$0xff] %v428
                %v430 = vld [vmem:[%s384 + $0x420] sm:$0xff]
                %431 = vst [vmem:[%s385 + $0xb0] sm:$0xff] %v430
                %v432 = vld [vmem:[%s384 + $0x450] sm:$0xff]
                %433 = vst [vmem:[%s385 + $0xb8] sm:$0xff] %v432
                %v434 = vld [vmem:[%s384 + $0x480] sm:$0xff]
                %435 = vst [vmem:[%s385 + $0xc0] sm:$0xff] %v434
                %v436 = vld [vmem:[%s384 + $0x4b0] sm:$0xff]
                %437 = vst [vmem:[%s385 + $0xc8] sm:$0xff] %v436
                %v438 = vld [vmem:[%s384 + $0x4e0] sm:$0xff]
                %439 = vst [vmem:[%s385 + $0xd0] sm:$0xff] %v438
                %v440 = vld [vmem:[%s384 + $0x510] sm:$0xff]
                %441 = vst [vmem:[%s385 + $0xd8] sm:$0xff] %v440
                %v442 = vld [vmem:[%s384 + $0x540] sm:$0xff]
                %443 = vst [vmem:[%s385 + $0xe0] sm:$0xff] %v442
                %v444 = vld [vmem:[%s384 + $0x570] sm:$0xff]
                %445 = vst [vmem:[%s385 + $0xe8] sm:$0xff] %v444
                %v446 = vld [vmem:[%s384 + $0x5a0] sm:$0xff]
                %447 = vst [vmem:[%s385 + $0xf0] sm:$0xff] %v446
                %v448 = vld [vmem:[%s384 + $0x5d0] sm:$0xff]
                %449 = vst [vmem:[%s385 + $0xf8] sm:$0xff] %v448
              $region75: #{attention_forward.4} parent=69 // loop_footer
                %s383 = sadd.s32 1, %s379
              $region76: #{attention_forward.4} parent=69 // loop_footer_branch
                %378 = sbr.rel target = $region72
              $region77: #{attention_forward.4} parent=69 // loop_exit
                _
            $region70: #{attention_forward.4} parent=61 // pred_fallthru
              _
          $region62: #{attention_forward.4} parent=57 // pred_fallthru
            _
          %526 = vnop
        $region58: #{attention_forward.4} parent=15 // pred_fallthru
          _
        // Predicated region
        $region93: #{attention_forward.4} parent=15 // pred_check
          %p527 = pneg %p129
        $region94: #{attention_forward.4} parent=15 // pred_check_branch
          %529 = sbr.rel (%p527) target = $region96
        $region95: #{attention_forward.4} parent=15 // pred_region
          %s530 = sand.u32 %s119, 1
          %s531 = sand.u32 %s119, 1
          %s532 = smul.addr %s531, 256
          %s533 = scalar_lea.vmem [#allocation7], %s532
          %s534 = smul.u32 %s17, 3
          %s535 = sadd.s32 %s534, 2
          %s536 = smul.u32 32, %s19
          %s537 = smul.addr %s536, 6
          %s538 = sadd.s32 %s535, %s537
          %s539 = smul.addr %s16, 192
          %s540 = sadd.s32 %s538, %s539
          %s541 = smul.addr %s540, 8
          %s542 = scalar_lea.vmem %s2, %s541
          // Predicated region
          $region97: #{attention_forward.4} parent=95 // pred_check
            _
          $region98: #{attention_forward.4} parent=95 // pred_check_branch
            %544 = sbr.rel (0) target = $region100
          $region99: #{attention_forward.4} parent=95 // pred_region
            // Predicated region
            $region101: #{attention_forward.4} parent=99 // pred_check
              _
            $region102: #{attention_forward.4} parent=99 // pred_check_branch
              %546 = sbr.rel (0) target = $region104
            $region103: #{attention_forward.4} parent=99 // pred_region
              // Predicated region
              $region116: #{attention_forward.4} parent=103 // pred_check
                _
              $region117: #{attention_forward.4} parent=103 // pred_check_branch
                %623 = sbr.rel (0) target = $region119
              $region118: #{attention_forward.4} parent=103 // pred_region
                loop: start=0, step=1, limit=1
                $region120: #{attention_forward.4} parent=118 // loop_pre_header
                  _
                $region121: #{attention_forward.4} parent=118 // loop_header
                  %s625 = sphi 0, %s629
                  %p626 = scmp.ge.s32.totalorder %s625, 1
                  %s630 = sphi %s542, %s542
                  %s631 = sphi %s533, %s533
                $region122: #{attention_forward.4} parent=118 // loop_header_branch
                  %628 = sbr.rel (%p626) target = $region126
                $region123: #{attention_forward.4} parent=118 // loop_body
                  %v632 = vld [vmem:[%s630] sm:$0xff]
                  %633 = vst [vmem:[%s631] sm:$0xff] %v632
                  %v634 = vld [vmem:[%s630 + $0x30] sm:$0xff]
                  %635 = vst [vmem:[%s631 + $0x8] sm:$0xff] %v634
                  %v636 = vld [vmem:[%s630 + $0x60] sm:$0xff]
                  %637 = vst [vmem:[%s631 + $0x10] sm:$0xff] %v636
                  %v638 = vld [vmem:[%s630 + $0x90] sm:$0xff]
                  %639 = vst [vmem:[%s631 + $0x18] sm:$0xff] %v638
                  %v640 = vld [vmem:[%s630 + $0xc0] sm:$0xff]
                  %641 = vst [vmem:[%s631 + $0x20] sm:$0xff] %v640
                  %v642 = vld [vmem:[%s630 + $0xf0] sm:$0xff]
                  %643 = vst [vmem:[%s631 + $0x28] sm:$0xff] %v642
                  %v644 = vld [vmem:[%s630 + $0x120] sm:$0xff]
                  %645 = vst [vmem:[%s631 + $0x30] sm:$0xff] %v644
                  %v646 = vld [vmem:[%s630 + $0x150] sm:$0xff]
                  %647 = vst [vmem:[%s631 + $0x38] sm:$0xff] %v646
                  %v648 = vld [vmem:[%s630 + $0x180] sm:$0xff]
                  %649 = vst [vmem:[%s631 + $0x40] sm:$0xff] %v648
                  %v650 = vld [vmem:[%s630 + $0x1b0] sm:$0xff]
                  %651 = vst [vmem:[%s631 + $0x48] sm:$0xff] %v650
                  %v652 = vld [vmem:[%s630 + $0x1e0] sm:$0xff]
                  %653 = vst [vmem:[%s631 + $0x50] sm:$0xff] %v652
                  %v654 = vld [vmem:[%s630 + $0x210] sm:$0xff]
                  %655 = vst [vmem:[%s631 + $0x58] sm:$0xff] %v654
                  %v656 = vld [vmem:[%s630 + $0x240] sm:$0xff]
                  %657 = vst [vmem:[%s631 + $0x60] sm:$0xff] %v656
                  %v658 = vld [vmem:[%s630 + $0x270] sm:$0xff]
                  %659 = vst [vmem:[%s631 + $0x68] sm:$0xff] %v658
                  %v660 = vld [vmem:[%s630 + $0x2a0] sm:$0xff]
                  %661 = vst [vmem:[%s631 + $0x70] sm:$0xff] %v660
                  %v662 = vld [vmem:[%s630 + $0x2d0] sm:$0xff]
                  %663 = vst [vmem:[%s631 + $0x78] sm:$0xff] %v662
                  %v664 = vld [vmem:[%s630 + $0x300] sm:$0xff]
                  %665 = vst [vmem:[%s631 + $0x80] sm:$0xff] %v664
                  %v666 = vld [vmem:[%s630 + $0x330] sm:$0xff]
                  %667 = vst [vmem:[%s631 + $0x88] sm:$0xff] %v666
                  %v668 = vld [vmem:[%s630 + $0x360] sm:$0xff]
                  %669 = vst [vmem:[%s631 + $0x90] sm:$0xff] %v668
                  %v670 = vld [vmem:[%s630 + $0x390] sm:$0xff]
                  %671 = vst [vmem:[%s631 + $0x98] sm:$0xff] %v670
                  %v672 = vld [vmem:[%s630 + $0x3c0] sm:$0xff]
                  %673 = vst [vmem:[%s631 + $0xa0] sm:$0xff] %v672
                  %v674 = vld [vmem:[%s630 + $0x3f0] sm:$0xff]
                  %675 = vst [vmem:[%s631 + $0xa8] sm:$0xff] %v674
                  %v676 = vld [vmem:[%s630 + $0x420] sm:$0xff]
                  %677 = vst [vmem:[%s631 + $0xb0] sm:$0xff] %v676
                  %v678 = vld [vmem:[%s630 + $0x450] sm:$0xff]
                  %679 = vst [vmem:[%s631 + $0xb8] sm:$0xff] %v678
                  %v680 = vld [vmem:[%s630 + $0x480] sm:$0xff]
                  %681 = vst [vmem:[%s631 + $0xc0] sm:$0xff] %v680
                  %v682 = vld [vmem:[%s630 + $0x4b0] sm:$0xff]
                  %683 = vst [vmem:[%s631 + $0xc8] sm:$0xff] %v682
                  %v684 = vld [vmem:[%s630 + $0x4e0] sm:$0xff]
                  %685 = vst [vmem:[%s631 + $0xd0] sm:$0xff] %v684
                  %v686 = vld [vmem:[%s630 + $0x510] sm:$0xff]
                  %687 = vst [vmem:[%s631 + $0xd8] sm:$0xff] %v686
                  %v688 = vld [vmem:[%s630 + $0x540] sm:$0xff]
                  %689 = vst [vmem:[%s631 + $0xe0] sm:$0xff] %v688
                  %v690 = vld [vmem:[%s630 + $0x570] sm:$0xff]
                  %691 = vst [vmem:[%s631 + $0xe8] sm:$0xff] %v690
                  %v692 = vld [vmem:[%s630 + $0x5a0] sm:$0xff]
                  %693 = vst [vmem:[%s631 + $0xf0] sm:$0xff] %v692
                  %v694 = vld [vmem:[%s630 + $0x5d0] sm:$0xff]
                  %695 = vst [vmem:[%s631 + $0xf8] sm:$0xff] %v694
                $region124: #{attention_forward.4} parent=118 // loop_footer
                  %s629 = sadd.s32 1, %s625
                $region125: #{attention_forward.4} parent=118 // loop_footer_branch
                  %624 = sbr.rel target = $region121
                $region126: #{attention_forward.4} parent=118 // loop_exit
                  _
              $region119: #{attention_forward.4} parent=103 // pred_fallthru
                _
              // Predicated region
              $region127: #{attention_forward.4} parent=103 // pred_check
                _
              $region128: #{attention_forward.4} parent=103 // pred_check_branch
                %697 = sbr.rel target = $region130
              $region129: #{attention_forward.4} parent=103 // pred_region
                _
              $region130: #{attention_forward.4} parent=103 // pred_fallthru
                _
            $region104: #{attention_forward.4} parent=99 // pred_fallthru
              _
            // Predicated region
            $region105: #{attention_forward.4} parent=99 // pred_check
              _
            $region106: #{attention_forward.4} parent=99 // pred_check_branch
              %548 = sbr.rel target = $region108
            $region107: #{attention_forward.4} parent=99 // pred_region
              loop: start=0, step=1, limit=1
              $region109: #{attention_forward.4} parent=107 // loop_pre_header
                _
              $region110: #{attention_forward.4} parent=107 // loop_header
                %s551 = sphi 0, %s555
                %p552 = scmp.ge.s32.totalorder %s551, 1
                %s556 = sphi %s542, %s542
                %s557 = sphi %s533, %s533
              $region111: #{attention_forward.4} parent=107 // loop_header_branch
                %554 = sbr.rel (%p552) target = $region115
              $region112: #{attention_forward.4} parent=107 // loop_body
                %v558 = vld [vmem:[%s556] sm:$0xff]
                %559 = vst [vmem:[%s557] sm:$0xff] %v558
                %v560 = vld [vmem:[%s556 + $0x30] sm:$0xff]
                %561 = vst [vmem:[%s557 + $0x8] sm:$0xff] %v560
                %v562 = vld [vmem:[%s556 + $0x60] sm:$0xff]
                %563 = vst [vmem:[%s557 + $0x10] sm:$0xff] %v562
                %v564 = vld [vmem:[%s556 + $0x90] sm:$0xff]
                %565 = vst [vmem:[%s557 + $0x18] sm:$0xff] %v564
                %v566 = vld [vmem:[%s556 + $0xc0] sm:$0xff]
                %567 = vst [vmem:[%s557 + $0x20] sm:$0xff] %v566
                %v568 = vld [vmem:[%s556 + $0xf0] sm:$0xff]
                %569 = vst [vmem:[%s557 + $0x28] sm:$0xff] %v568
                %v570 = vld [vmem:[%s556 + $0x120] sm:$0xff]
                %571 = vst [vmem:[%s557 + $0x30] sm:$0xff] %v570
                %v572 = vld [vmem:[%s556 + $0x150] sm:$0xff]
                %573 = vst [vmem:[%s557 + $0x38] sm:$0xff] %v572
                %v574 = vld [vmem:[%s556 + $0x180] sm:$0xff]
                %575 = vst [vmem:[%s557 + $0x40] sm:$0xff] %v574
                %v576 = vld [vmem:[%s556 + $0x1b0] sm:$0xff]
                %577 = vst [vmem:[%s557 + $0x48] sm:$0xff] %v576
                %v578 = vld [vmem:[%s556 + $0x1e0] sm:$0xff]
                %579 = vst [vmem:[%s557 + $0x50] sm:$0xff] %v578
                %v580 = vld [vmem:[%s556 + $0x210] sm:$0xff]
                %581 = vst [vmem:[%s557 + $0x58] sm:$0xff] %v580
                %v582 = vld [vmem:[%s556 + $0x240] sm:$0xff]
                %583 = vst [vmem:[%s557 + $0x60] sm:$0xff] %v582
                %v584 = vld [vmem:[%s556 + $0x270] sm:$0xff]
                %585 = vst [vmem:[%s557 + $0x68] sm:$0xff] %v584
                %v586 = vld [vmem:[%s556 + $0x2a0] sm:$0xff]
                %587 = vst [vmem:[%s557 + $0x70] sm:$0xff] %v586
                %v588 = vld [vmem:[%s556 + $0x2d0] sm:$0xff]
                %589 = vst [vmem:[%s557 + $0x78] sm:$0xff] %v588
                %v590 = vld [vmem:[%s556 + $0x300] sm:$0xff]
                %591 = vst [vmem:[%s557 + $0x80] sm:$0xff] %v590
                %v592 = vld [vmem:[%s556 + $0x330] sm:$0xff]
                %593 = vst [vmem:[%s557 + $0x88] sm:$0xff] %v592
                %v594 = vld [vmem:[%s556 + $0x360] sm:$0xff]
                %595 = vst [vmem:[%s557 + $0x90] sm:$0xff] %v594
                %v596 = vld [vmem:[%s556 + $0x390] sm:$0xff]
                %597 = vst [vmem:[%s557 + $0x98] sm:$0xff] %v596
                %v598 = vld [vmem:[%s556 + $0x3c0] sm:$0xff]
                %599 = vst [vmem:[%s557 + $0xa0] sm:$0xff] %v598
                %v600 = vld [vmem:[%s556 + $0x3f0] sm:$0xff]
                %601 = vst [vmem:[%s557 + $0xa8] sm:$0xff] %v600
                %v602 = vld [vmem:[%s556 + $0x420] sm:$0xff]
                %603 = vst [vmem:[%s557 + $0xb0] sm:$0xff] %v602
                %v604 = vld [vmem:[%s556 + $0x450] sm:$0xff]
                %605 = vst [vmem:[%s557 + $0xb8] sm:$0xff] %v604
                %v606 = vld [vmem:[%s556 + $0x480] sm:$0xff]
                %607 = vst [vmem:[%s557 + $0xc0] sm:$0xff] %v606
                %v608 = vld [vmem:[%s556 + $0x4b0] sm:$0xff]
                %609 = vst [vmem:[%s557 + $0xc8] sm:$0xff] %v608
                %v610 = vld [vmem:[%s556 + $0x4e0] sm:$0xff]
                %611 = vst [vmem:[%s557 + $0xd0] sm:$0xff] %v610
                %v612 = vld [vmem:[%s556 + $0x510] sm:$0xff]
                %613 = vst [vmem:[%s557 + $0xd8] sm:$0xff] %v612
                %v614 = vld [vmem:[%s556 + $0x540] sm:$0xff]
                %615 = vst [vmem:[%s557 + $0xe0] sm:$0xff] %v614
                %v616 = vld [vmem:[%s556 + $0x570] sm:$0xff]
                %617 = vst [vmem:[%s557 + $0xe8] sm:$0xff] %v616
                %v618 = vld [vmem:[%s556 + $0x5a0] sm:$0xff]
                %619 = vst [vmem:[%s557 + $0xf0] sm:$0xff] %v618
                %v620 = vld [vmem:[%s556 + $0x5d0] sm:$0xff]
                %621 = vst [vmem:[%s557 + $0xf8] sm:$0xff] %v620
              $region113: #{attention_forward.4} parent=107 // loop_footer
                %s555 = sadd.s32 1, %s551
              $region114: #{attention_forward.4} parent=107 // loop_footer_branch
                %550 = sbr.rel target = $region110
              $region115: #{attention_forward.4} parent=107 // loop_exit
                _
            $region108: #{attention_forward.4} parent=99 // pred_fallthru
              _
          $region100: #{attention_forward.4} parent=95 // pred_fallthru
            _
          %698 = vnop
        $region96: #{attention_forward.4} parent=15 // pred_fallthru
          _
      $region16: #{attention_forward.4} parent=5 // pred_fallthru
        _
      %p699 = scmp.le.s32.totalorder 1, %s9
      %p700 = scmp.lt.s32.totalorder %s9, 5
      %p701 = pnand %p699, %p700
      %p702 = pneg %p701
      // Predicated region
      $region131: #{attention_forward.4} parent=5 // pred_check
        _
      $region132: #{attention_forward.4} parent=5 // pred_check_branch
        %704 = sbr.rel (%p701) target = $region134
      $region133: #{attention_forward.4} parent=5 // pred_region
        %s705 = ssub.s32 %s9, 1
        %s706 = sand.u32 %s54, 1
        %s707 = sand.u32 %s54, 1
        %s708 = smul.addr %s707, 256
        %s709 = scalar_lea.vmem [#allocation5], %s708
        // Predicated region
        $region135: #{attention_forward.4} parent=133 // pred_check
          %p710 = pneg %p67
        $region136: #{attention_forward.4} parent=133 // pred_check_branch
          %712 = sbr.rel (%p710) target = $region138
        $region137: #{attention_forward.4} parent=133 // pred_region
          _
        $region138: #{attention_forward.4} parent=133 // pred_fallthru
          _
        %s713 = sand.u32 %s88, 1
        %s714 = sand.u32 %s88, 1
        %s715 = smul.addr %s714, 256
        %s716 = scalar_lea.vmem [#allocation6], %s715
        // Predicated region
        $region139: #{attention_forward.4} parent=133 // pred_check
          %p717 = pneg %p101
        $region140: #{attention_forward.4} parent=133 // pred_check_branch
          %719 = sbr.rel (%p717) target = $region142
        $region141: #{attention_forward.4} parent=133 // pred_region
          _
        $region142: #{attention_forward.4} parent=133 // pred_fallthru
          _
        %s720 = sand.u32 %s122, 1
        %s721 = sand.u32 %s122, 1
        %s722 = smul.addr %s721, 256
        %s723 = scalar_lea.vmem [#allocation7], %s722
        // Predicated region
        $region143: #{attention_forward.4} parent=133 // pred_check
          %p724 = pneg %p135
        $region144: #{attention_forward.4} parent=133 // pred_check_branch
          %726 = sbr.rel (%p724) target = $region146
        $region145: #{attention_forward.4} parent=133 // pred_region
          _
        $region146: #{attention_forward.4} parent=133 // pred_fallthru
          _
        %s727 = sand.u32 %s54, 1
        %s728 = sand.u32 %s54, 1
        %s729 = smul.addr %s728, 256
        %s730 = scalar_lea.vmem [#allocation5], %s729
        %p731 = pneg %p67
        %p732 = pneg %p64
        %s733 = sand.u32 %s88, 1
        %s734 = sand.u32 %s88, 1
        %s735 = smul.addr %s734, 256
        %s736 = scalar_lea.vmem [#allocation6], %s735
        %p737 = pneg %p101
        %p738 = pneg %p98
        %s739 = sand.u32 %s122, 1
        %s740 = sand.u32 %s122, 1
        %s741 = smul.addr %s740, 256
        %s742 = scalar_lea.vmem [#allocation7], %s741
        %p743 = pneg %p135
        %p744 = pneg %p132
        %p745 = pneg %p165
        %p746 = pneg %p162
        %s747 = sand.u32 %s152, 1
        %s748 = sand.u32 %s152, 1
        %s749 = smul.addr %s748, 256
        %s750 = scalar_lea.vmem [#allocation8], %s749
        %s751 = smul.u32 %s21, 3
        %s752 = smul.u32 32, %s22
        %s753 = smul.u32 %s21, 3
        %s754 = sadd.s32 %s753, 1
        %s755 = smul.u32 32, %s23
        %s756 = smul.u32 %s21, 3
        %s757 = sadd.s32 %s756, 2
        %s758 = smul.u32 32, %s23
        %s759 = smul.u32 32, %s22
        %p760 = scmp.eq.s32.totalorder %s23, 0
        // Predicated region
        $region147: #{attention_forward.4} parent=133 // pred_check
          %p761 = pneg %p760
        $region148: #{attention_forward.4} parent=133 // pred_check_branch
          %763 = sbr.rel (%p761) target = $region150
        $region149: #{attention_forward.4} parent=133 // pred_region
          %vm764 = vcmask 7168
          %765 = vst.msk [vmem:[#allocation2] sm:$0xff] %vm764, -inf
          %766 = vst.msk [vmem:[#allocation2 + $0x8] sm:$0xff] %vm764, -inf
          %767 = vst.msk [vmem:[#allocation2 + $0x10] sm:$0xff] %vm764, -inf
          %768 = vst.msk [vmem:[#allocation2 + $0x18] sm:$0xff] %vm764, -inf
          %769 = vst.msk [vmem:[#allocation2 + $0x20] sm:$0xff] %vm764, -inf
          %770 = vst.msk [vmem:[#allocation2 + $0x28] sm:$0xff] %vm764, -inf
          %771 = vst.msk [vmem:[#allocation2 + $0x30] sm:$0xff] %vm764, -inf
          %772 = vst.msk [vmem:[#allocation2 + $0x38] sm:$0xff] %vm764, -inf
          %773 = vst.msk [vmem:[#allocation2 + $0x40] sm:$0xff] %vm764, -inf
          %774 = vst.msk [vmem:[#allocation2 + $0x48] sm:$0xff] %vm764, -inf
          %775 = vst.msk [vmem:[#allocation2 + $0x50] sm:$0xff] %vm764, -inf
          %776 = vst.msk [vmem:[#allocation2 + $0x58] sm:$0xff] %vm764, -inf
          %777 = vst.msk [vmem:[#allocation2 + $0x60] sm:$0xff] %vm764, -inf
          %778 = vst.msk [vmem:[#allocation2 + $0x68] sm:$0xff] %vm764, -inf
          %779 = vst.msk [vmem:[#allocation2 + $0x70] sm:$0xff] %vm764, -inf
          %780 = vst.msk [vmem:[#allocation2 + $0x78] sm:$0xff] %vm764, -inf
          %781 = vst.msk [vmem:[#allocation2 + $0x80] sm:$0xff] %vm764, -inf
          %782 = vst.msk [vmem:[#allocation2 + $0x88] sm:$0xff] %vm764, -inf
          %783 = vst.msk [vmem:[#allocation2 + $0x90] sm:$0xff] %vm764, -inf
          %784 = vst.msk [vmem:[#allocation2 + $0x98] sm:$0xff] %vm764, -inf
          %785 = vst.msk [vmem:[#allocation2 + $0xa0] sm:$0xff] %vm764, -inf
          %786 = vst.msk [vmem:[#allocation2 + $0xa8] sm:$0xff] %vm764, -inf
          %787 = vst.msk [vmem:[#allocation2 + $0xb0] sm:$0xff] %vm764, -inf
          %788 = vst.msk [vmem:[#allocation2 + $0xb8] sm:$0xff] %vm764, -inf
          %789 = vst.msk [vmem:[#allocation2 + $0xc0] sm:$0xff] %vm764, -inf
          %790 = vst.msk [vmem:[#allocation2 + $0xc8] sm:$0xff] %vm764, -inf
          %791 = vst.msk [vmem:[#allocation2 + $0xd0] sm:$0xff] %vm764, -inf
          %792 = vst.msk [vmem:[#allocation2 + $0xd8] sm:$0xff] %vm764, -inf
          %793 = vst.msk [vmem:[#allocation2 + $0xe0] sm:$0xff] %vm764, -inf
          %794 = vst.msk [vmem:[#allocation2 + $0xe8] sm:$0xff] %vm764, -inf
          %795 = vst.msk [vmem:[#allocation2 + $0xf0] sm:$0xff] %vm764, -inf
          %796 = vst.msk [vmem:[#allocation2 + $0xf8] sm:$0xff] %vm764, -inf
          %797 = vst.msk [vmem:[#allocation3] sm:$0xff] %vm764, 0.0
          %798 = vst.msk [vmem:[#allocation3 + $0x8] sm:$0xff] %vm764, 0.0
          %799 = vst.msk [vmem:[#allocation3 + $0x10] sm:$0xff] %vm764, 0.0
          %800 = vst.msk [vmem:[#allocation3 + $0x18] sm:$0xff] %vm764, 0.0
          %801 = vst.msk [vmem:[#allocation3 + $0x20] sm:$0xff] %vm764, 0.0
          %802 = vst.msk [vmem:[#allocation3 + $0x28] sm:$0xff] %vm764, 0.0
          %803 = vst.msk [vmem:[#allocation3 + $0x30] sm:$0xff] %vm764, 0.0
          %804 = vst.msk [vmem:[#allocation3 + $0x38] sm:$0xff] %vm764, 0.0
          %805 = vst.msk [vmem:[#allocation3 + $0x40] sm:$0xff] %vm764, 0.0
          %806 = vst.msk [vmem:[#allocation3 + $0x48] sm:$0xff] %vm764, 0.0
          %807 = vst.msk [vmem:[#allocation3 + $0x50] sm:$0xff] %vm764, 0.0
          %808 = vst.msk [vmem:[#allocation3 + $0x58] sm:$0xff] %vm764, 0.0
          %809 = vst.msk [vmem:[#allocation3 + $0x60] sm:$0xff] %vm764, 0.0
          %810 = vst.msk [vmem:[#allocation3 + $0x68] sm:$0xff] %vm764, 0.0
          %811 = vst.msk [vmem:[#allocation3 + $0x70] sm:$0xff] %vm764, 0.0
          %812 = vst.msk [vmem:[#allocation3 + $0x78] sm:$0xff] %vm764, 0.0
          %813 = vst.msk [vmem:[#allocation3 + $0x80] sm:$0xff] %vm764, 0.0
          %814 = vst.msk [vmem:[#allocation3 + $0x88] sm:$0xff] %vm764, 0.0
          %815 = vst.msk [vmem:[#allocation3 + $0x90] sm:$0xff] %vm764, 0.0
          %816 = vst.msk [vmem:[#allocation3 + $0x98] sm:$0xff] %vm764, 0.0
          %817 = vst.msk [vmem:[#allocation3 + $0xa0] sm:$0xff] %vm764, 0.0
          %818 = vst.msk [vmem:[#allocation3 + $0xa8] sm:$0xff] %vm764, 0.0
          %819 = vst.msk [vmem:[#allocation3 + $0xb0] sm:$0xff] %vm764, 0.0
          %820 = vst.msk [vmem:[#allocation3 + $0xb8] sm:$0xff] %vm764, 0.0
          %821 = vst.msk [vmem:[#allocation3 + $0xc0] sm:$0xff] %vm764, 0.0
          %822 = vst.msk [vmem:[#allocation3 + $0xc8] sm:$0xff] %vm764, 0.0
          %823 = vst.msk [vmem:[#allocation3 + $0xd0] sm:$0xff] %vm764, 0.0
          %824 = vst.msk [vmem:[#allocation3 + $0xd8] sm:$0xff] %vm764, 0.0
          %825 = vst.msk [vmem:[#allocation3 + $0xe0] sm:$0xff] %vm764, 0.0
          %826 = vst.msk [vmem:[#allocation3 + $0xe8] sm:$0xff] %vm764, 0.0
          %827 = vst.msk [vmem:[#allocation3 + $0xf0] sm:$0xff] %vm764, 0.0
          %828 = vst.msk [vmem:[#allocation3 + $0xf8] sm:$0xff] %vm764, 0.0
          %829 = vst [vmem:[#allocation4] sm:$0xff] 0.0
          %830 = vst [vmem:[#allocation4 + $0x8] sm:$0xff] 0.0
          %831 = vst [vmem:[#allocation4 + $0x10] sm:$0xff] 0.0
          %832 = vst [vmem:[#allocation4 + $0x18] sm:$0xff] 0.0
          %833 = vst [vmem:[#allocation4 + $0x20] sm:$0xff] 0.0
          %834 = vst [vmem:[#allocation4 + $0x28] sm:$0xff] 0.0
          %835 = vst [vmem:[#allocation4 + $0x30] sm:$0xff] 0.0
          %836 = vst [vmem:[#allocation4 + $0x38] sm:$0xff] 0.0
          %837 = vst [vmem:[#allocation4 + $0x40] sm:$0xff] 0.0
          %838 = vst [vmem:[#allocation4 + $0x48] sm:$0xff] 0.0
          %839 = vst [vmem:[#allocation4 + $0x50] sm:$0xff] 0.0
          %840 = vst [vmem:[#allocation4 + $0x58] sm:$0xff] 0.0
          %841 = vst [vmem:[#allocation4 + $0x60] sm:$0xff] 0.0
          %842 = vst [vmem:[#allocation4 + $0x68] sm:$0xff] 0.0
          %843 = vst [vmem:[#allocation4 + $0x70] sm:$0xff] 0.0
          %844 = vst [vmem:[#allocation4 + $0x78] sm:$0xff] 0.0
          %845 = vst [vmem:[#allocation4 + $0x80] sm:$0xff] 0.0
          %846 = vst [vmem:[#allocation4 + $0x88] sm:$0xff] 0.0
          %847 = vst [vmem:[#allocation4 + $0x90] sm:$0xff] 0.0
          %848 = vst [vmem:[#allocation4 + $0x98] sm:$0xff] 0.0
          %849 = vst [vmem:[#allocation4 + $0xa0] sm:$0xff] 0.0
          %850 = vst [vmem:[#allocation4 + $0xa8] sm:$0xff] 0.0
          %851 = vst [vmem:[#allocation4 + $0xb0] sm:$0xff] 0.0
          %852 = vst [vmem:[#allocation4 + $0xb8] sm:$0xff] 0.0
          %853 = vst [vmem:[#allocation4 + $0xc0] sm:$0xff] 0.0
          %854 = vst [vmem:[#allocation4 + $0xc8] sm:$0xff] 0.0
          %855 = vst [vmem:[#allocation4 + $0xd0] sm:$0xff] 0.0
          %856 = vst [vmem:[#allocation4 + $0xd8] sm:$0xff] 0.0
          %857 = vst [vmem:[#allocation4 + $0xe0] sm:$0xff] 0.0
          %858 = vst [vmem:[#allocation4 + $0xe8] sm:$0xff] 0.0
          %859 = vst [vmem:[#allocation4 + $0xf0] sm:$0xff] 0.0
          %860 = vst [vmem:[#allocation4 + $0xf8] sm:$0xff] 0.0
        $region150: #{attention_forward.4} parent=133 // pred_fallthru
          _
        %v861 = vld [vmem:[%s709] sm:$0xff]
        %v862 = vld [vmem:[%s709 + $0x8] sm:$0xff]
        %v863 = vld [vmem:[%s709 + $0x10] sm:$0xff]
        %v864 = vld [vmem:[%s709 + $0x18] sm:$0xff]
        %v865 = vld [vmem:[%s709 + $0x20] sm:$0xff]
        %v866 = vld [vmem:[%s709 + $0x28] sm:$0xff]
        %v867 = vld [vmem:[%s709 + $0x30] sm:$0xff]
        %v868 = vld [vmem:[%s709 + $0x38] sm:$0xff]
        %v869 = vld [vmem:[%s709 + $0x40] sm:$0xff]
        %v870 = vld [vmem:[%s709 + $0x48] sm:$0xff]
        %v871 = vld [vmem:[%s709 + $0x50] sm:$0xff]
        %v872 = vld [vmem:[%s709 + $0x58] sm:$0xff]
        %v873 = vld [vmem:[%s709 + $0x60] sm:$0xff]
        %v874 = vld [vmem:[%s709 + $0x68] sm:$0xff]
        %v875 = vld [vmem:[%s709 + $0x70] sm:$0xff]
        %v876 = vld [vmem:[%s709 + $0x78] sm:$0xff]
        %v877 = vld [vmem:[%s709 + $0x80] sm:$0xff]
        %v878 = vld [vmem:[%s709 + $0x88] sm:$0xff]
        %v879 = vld [vmem:[%s709 + $0x90] sm:$0xff]
        %v880 = vld [vmem:[%s709 + $0x98] sm:$0xff]
        %v881 = vld [vmem:[%s709 + $0xa0] sm:$0xff]
        %v882 = vld [vmem:[%s709 + $0xa8] sm:$0xff]
        %v883 = vld [vmem:[%s709 + $0xb0] sm:$0xff]
        %v884 = vld [vmem:[%s709 + $0xb8] sm:$0xff]
        %v885 = vld [vmem:[%s709 + $0xc0] sm:$0xff]
        %v886 = vld [vmem:[%s709 + $0xc8] sm:$0xff]
        %v887 = vld [vmem:[%s709 + $0xd0] sm:$0xff]
        %v888 = vld [vmem:[%s709 + $0xd8] sm:$0xff]
        %v889 = vld [vmem:[%s709 + $0xe0] sm:$0xff]
        %v890 = vld [vmem:[%s709 + $0xe8] sm:$0xff]
        %v891 = vld [vmem:[%s709 + $0xf0] sm:$0xff]
        %v892 = vld [vmem:[%s709 + $0xf8] sm:$0xff]
        %v893 = vmul.f32 %v861, 0.088388346
        %v894 = vmul.f32 %v862, 0.088388346
        %v895 = vmul.f32 %v863, 0.088388346
        %v896 = vmul.f32 %v864, 0.088388346
        %v897 = vmul.f32 %v865, 0.088388346
        %v898 = vmul.f32 %v866, 0.088388346
        %v899 = vmul.f32 %v867, 0.088388346
        %v900 = vmul.f32 %v868, 0.088388346
        %v901 = vmul.f32 %v869, 0.088388346
        %v902 = vmul.f32 %v870, 0.088388346
        %v903 = vmul.f32 %v871, 0.088388346
        %v904 = vmul.f32 %v872, 0.088388346
        %v905 = vmul.f32 %v873, 0.088388346
        %v906 = vmul.f32 %v874, 0.088388346
        %v907 = vmul.f32 %v875, 0.088388346
        %v908 = vmul.f32 %v876, 0.088388346
        %v909 = vmul.f32 %v877, 0.088388346
        %v910 = vmul.f32 %v878, 0.088388346
        %v911 = vmul.f32 %v879, 0.088388346
        %v912 = vmul.f32 %v880, 0.088388346
        %v913 = vmul.f32 %v881, 0.088388346
        %v914 = vmul.f32 %v882, 0.088388346
        %v915 = vmul.f32 %v883, 0.088388346
        %v916 = vmul.f32 %v884, 0.088388346
        %v917 = vmul.f32 %v885, 0.088388346
        %v918 = vmul.f32 %v886, 0.088388346
        %v919 = vmul.f32 %v887, 0.088388346
        %v920 = vmul.f32 %v888, 0.088388346
        %v921 = vmul.f32 %v889, 0.088388346
        %v922 = vmul.f32 %v890, 0.088388346
        %v923 = vmul.f32 %v891, 0.088388346
        %v924 = vmul.f32 %v892, 0.088388346
        %v925 = vld [vmem:[%s716] sm:$0xff]
        %v926 = vld [vmem:[%s716 + $0x8] sm:$0xff]
        %v927 = vld [vmem:[%s716 + $0x10] sm:$0xff]
        %v928 = vld [vmem:[%s716 + $0x18] sm:$0xff]
        %v929 = vld [vmem:[%s716 + $0x20] sm:$0xff]
        %v930 = vld [vmem:[%s716 + $0x28] sm:$0xff]
        %v931 = vld [vmem:[%s716 + $0x30] sm:$0xff]
        %v932 = vld [vmem:[%s716 + $0x38] sm:$0xff]
        %v933 = vld [vmem:[%s716 + $0x40] sm:$0xff]
        %v934 = vld [vmem:[%s716 + $0x48] sm:$0xff]
        %v935 = vld [vmem:[%s716 + $0x50] sm:$0xff]
        %v936 = vld [vmem:[%s716 + $0x58] sm:$0xff]
        %v937 = vld [vmem:[%s716 + $0x60] sm:$0xff]
        %v938 = vld [vmem:[%s716 + $0x68] sm:$0xff]
        %v939 = vld [vmem:[%s716 + $0x70] sm:$0xff]
        %v940 = vld [vmem:[%s716 + $0x78] sm:$0xff]
        %v941 = vld [vmem:[%s716 + $0x80] sm:$0xff]
        %v942 = vld [vmem:[%s716 + $0x88] sm:$0xff]
        %v943 = vld [vmem:[%s716 + $0x90] sm:$0xff]
        %v944 = vld [vmem:[%s716 + $0x98] sm:$0xff]
        %v945 = vld [vmem:[%s716 + $0xa0] sm:$0xff]
        %v946 = vld [vmem:[%s716 + $0xa8] sm:$0xff]
        %v947 = vld [vmem:[%s716 + $0xb0] sm:$0xff]
        %v948 = vld [vmem:[%s716 + $0xb8] sm:$0xff]
        %v949 = vld [vmem:[%s716 + $0xc0] sm:$0xff]
        %v950 = vld [vmem:[%s716 + $0xc8] sm:$0xff]
        %v951 = vld [vmem:[%s716 + $0xd0] sm:$0xff]
        %v952 = vld [vmem:[%s716 + $0xd8] sm:$0xff]
        %v953 = vld [vmem:[%s716 + $0xe0] sm:$0xff]
        %v954 = vld [vmem:[%s716 + $0xe8] sm:$0xff]
        %v955 = vld [vmem:[%s716 + $0xf0] sm:$0xff]
        %v956 = vld [vmem:[%s716 + $0xf8] sm:$0xff]
        %v957 = vld [vmem:[%s723] sm:$0xff]
        %v958 = vld [vmem:[%s723 + $0x8] sm:$0xff]
        %v959 = vld [vmem:[%s723 + $0x10] sm:$0xff]
        %v960 = vld [vmem:[%s723 + $0x18] sm:$0xff]
        %v961 = vld [vmem:[%s723 + $0x20] sm:$0xff]
        %v962 = vld [vmem:[%s723 + $0x28] sm:$0xff]
        %v963 = vld [vmem:[%s723 + $0x30] sm:$0xff]
        %v964 = vld [vmem:[%s723 + $0x38] sm:$0xff]
        %v965 = vld [vmem:[%s723 + $0x40] sm:$0xff]
        %v966 = vld [vmem:[%s723 + $0x48] sm:$0xff]
        %v967 = vld [vmem:[%s723 + $0x50] sm:$0xff]
        %v968 = vld [vmem:[%s723 + $0x58] sm:$0xff]
        %v969 = vld [vmem:[%s723 + $0x60] sm:$0xff]
        %v970 = vld [vmem:[%s723 + $0x68] sm:$0xff]
        %v971 = vld [vmem:[%s723 + $0x70] sm:$0xff]
        %v972 = vld [vmem:[%s723 + $0x78] sm:$0xff]
        %v973 = vld [vmem:[%s723 + $0x80] sm:$0xff]
        %v974 = vld [vmem:[%s723 + $0x88] sm:$0xff]
        %v975 = vld [vmem:[%s723 + $0x90] sm:$0xff]
        %v976 = vld [vmem:[%s723 + $0x98] sm:$0xff]
        %v977 = vld [vmem:[%s723 + $0xa0] sm:$0xff]
        %v978 = vld [vmem:[%s723 + $0xa8] sm:$0xff]
        %v979 = vld [vmem:[%s723 + $0xb0] sm:$0xff]
        %v980 = vld [vmem:[%s723 + $0xb8] sm:$0xff]
        %v981 = vld [vmem:[%s723 + $0xc0] sm:$0xff]
        %v982 = vld [vmem:[%s723 + $0xc8] sm:$0xff]
        %v983 = vld [vmem:[%s723 + $0xd0] sm:$0xff]
        %v984 = vld [vmem:[%s723 + $0xd8] sm:$0xff]
        %v985 = vld [vmem:[%s723 + $0xe0] sm:$0xff]
        %v986 = vld [vmem:[%s723 + $0xe8] sm:$0xff]
        %v987 = vld [vmem:[%s723 + $0xf0] sm:$0xff]
        %v988 = vld [vmem:[%s723 + $0xf8] sm:$0xff]
        %989 = vmatprep.subr.mxu0 0.0
        %990 = vmatpush1.xpose.msra.mxu0 %v925
        %991 = vmatprep.subr.mxu0 0.0
        %992 = vmatpush1.xpose.msra.mxu0 %v926
        %993 = vmatprep.subr.mxu0 0.0
        %994 = vmatpush1.xpose.msra.mxu0 %v927
        %995 = vmatprep.subr.mxu0 0.0
        %996 = vmatpush1.xpose.msra.mxu0 %v928
        %997 = vmatprep.subr.mxu0 0.0
        %998 = vmatpush1.xpose.msra.mxu0 %v929
        %999 = vmatprep.subr.mxu0 0.0
        %1000 = vmatpush1.xpose.msra.mxu0 %v930
        %1001 = vmatprep.subr.mxu0 0.0
        %1002 = vmatpush1.xpose.msra.mxu0 %v931
        %1003 = vmatprep.subr.mxu0 0.0
        %1004 = vmatpush1.xpose.msra.mxu0 %v932
        %1005 = vmatprep.subr.mxu0 0.0
        %1006 = vmatpush1.xpose.msra.mxu0 %v933
        %1007 = vmatprep.subr.mxu0 0.0
        %1008 = vmatpush1.xpose.msra.mxu0 %v934
        %1009 = vmatprep.subr.mxu0 0.0
        %1010 = vmatpush1.xpose.msra.mxu0 %v935
        %1011 = vmatprep.subr.mxu0 0.0
        %1012 = vmatpush1.xpose.msra.mxu0 %v936
        %1013 = vmatprep.subr.mxu0 0.0
        %1014 = vmatpush1.xpose.msra.mxu0 %v937
        %1015 = vmatprep.subr.mxu0 0.0
        %1016 = vmatpush1.xpose.msra.mxu0 %v938
        %1017 = vmatprep.subr.mxu0 0.0
        %1018 = vmatpush1.xpose.msra.mxu0 %v939
        %1019 = vmatprep.subr.mxu0 0.0
        %1020 = vmatpush1.xpose.msra.mxu0 %v940
        %1021 = vmatprep.subr.mxu0 0.0
        %1022 = vmatpush1.xpose.msra.mxu0 %v941
        %1023 = vmatprep.subr.mxu0 0.0
        %1024 = vmatpush1.xpose.msra.mxu0 %v942
        %1025 = vmatprep.subr.mxu0 0.0
        %1026 = vmatpush1.xpose.msra.mxu0 %v943
        %1027 = vmatprep.subr.mxu0 0.0
        %1028 = vmatpush1.xpose.msra.mxu0 %v944
        %1029 = vmatprep.subr.mxu0 0.0
        %1030 = vmatpush1.xpose.msra.mxu0 %v945
        %1031 = vmatprep.subr.mxu0 0.0
        %1032 = vmatpush1.xpose.msra.mxu0 %v946
        %1033 = vmatprep.subr.mxu0 0.0
        %1034 = vmatpush1.xpose.msra.mxu0 %v947
        %1035 = vmatprep.subr.mxu0 0.0
        %1036 = vmatpush1.xpose.msra.mxu0 %v948
        %1037 = vmatprep.subr.mxu0 0.0
        %1038 = vmatpush1.xpose.msra.mxu0 %v949
        %1039 = vmatprep.subr.mxu0 0.0
        %1040 = vmatpush1.xpose.msra.mxu0 %v950
        %1041 = vmatprep.subr.mxu0 0.0
        %1042 = vmatpush1.xpose.msra.mxu0 %v951
        %1043 = vmatprep.subr.mxu0 0.0
        %1044 = vmatpush1.xpose.msra.mxu0 %v952
        %1045 = vmatprep.subr.mxu0 0.0
        %1046 = vmatpush1.xpose.msra.mxu0 %v953
        %1047 = vmatprep.subr.mxu0 0.0
        %1048 = vmatpush1.xpose.msra.mxu0 %v954
        %1049 = vmatprep.subr.mxu0 0.0
        %1050 = vmatpush1.xpose.msra.mxu0 %v955
        %1051 = vmatprep.subr.mxu0 0.0
        %1052 = vmatpush1.xpose.msra.mxu0 %v956
        %1053 = vmatprep.mubr.f32.mxu0 0.0
        %1054 = vmatmul.mubr.f32.gmra.mrb[0].mxu0 %v893
        %v1055 = vpop.f32.mrb[0].mxu0
        %v1056 = vadd.f32 0.0, %v1055
        %v1057 = vpop.f32.mrb[0].mxu0
        %v1058 = vadd.f32 0.0, %v1057
        %1059 = vmatprep.mubr.f32.mxu0 0.0
        %1060 = vmatmul.mubr.f32.gmra.mrb[0].mxu0 %v894
        %v1061 = vpop.f32.mrb[0].mxu0
        %v1062 = vadd.f32 0.0, %v1061
        %v1063 = vpop.f32.mrb[0].mxu0
        %v1064 = vadd.f32 0.0, %v1063
        %1065 = vmatprep.mubr.f32.mxu0 0.0
        %1066 = vmatmul.mubr.f32.gmra.mrb[0].mxu0 %v895
        %v1067 = vpop.f32.mrb[0].mxu0
        %v1068 = vadd.f32 0.0, %v1067
        %v1069 = vpop.f32.mrb[0].mxu0
        %v1070 = vadd.f32 0.0, %v1069
        %1071 = vmatprep.mubr.f32.mxu0 0.0
        %1072 = vmatmul.mubr.f32.gmra.mrb[0].mxu0 %v896
        %v1073 = vpop.f32.mrb[0].mxu0
        %v1074 = vadd.f32 0.0, %v1073
        %v1075 = vpop.f32.mrb[0].mxu0
        %v1076 = vadd.f32 0.0, %v1075
        %1077 = vmatprep.mubr.f32.mxu0 0.0
        %1078 = vmatmul.mubr.f32.gmra.mrb[0].mxu0 %v897
        %v1079 = vpop.f32.mrb[0].mxu0
        %v1080 = vadd.f32 0.0, %v1079
        %v1081 = vpop.f32.mrb[0].mxu0
        %v1082 = vadd.f32 0.0, %v1081
        %1083 = vmatprep.mubr.f32.mxu0 0.0
        %1084 = vmatmul.mubr.f32.gmra.mrb[0].mxu0 %v898
        %v1085 = vpop.f32.mrb[0].mxu0
        %v1086 = vadd.f32 0.0, %v1085
        %v1087 = vpop.f32.mrb[0].mxu0
        %v1088 = vadd.f32 0.0, %v1087
        %1089 = vmatprep.mubr.f32.mxu0 0.0
        %1090 = vmatmul.mubr.f32.gmra.mrb[0].mxu0 %v899
        %v1091 = vpop.f32.mrb[0].mxu0
        %v1092 = vadd.f32 0.0, %v1091
        %v1093 = vpop.f32.mrb[0].mxu0
        %v1094 = vadd.f32 0.0, %v1093
        %1095 = vmatprep.mubr.f32.mxu0 0.0
        %1096 = vmatmul.mubr.f32.gmra.mrb[0].mxu0 %v900
        %v1097 = vpop.f32.mrb[0].mxu0
        %v1098 = vadd.f32 0.0, %v1097
        %v1099 = vpop.f32.mrb[0].mxu0
        %v1100 = vadd.f32 0.0, %v1099
        %1101 = vmatprep.mubr.f32.mxu0 0.0
        %1102 = vmatmul.mubr.f32.gmra.mrb[0].mxu0 %v901
        %v1103 = vpop.f32.mrb[0].mxu0
        %v1104 = vadd.f32 0.0, %v1103
        %v1105 = vpop.f32.mrb[0].mxu0
        %v1106 = vadd.f32 0.0, %v1105
        %1107 = vmatprep.mubr.f32.mxu0 0.0
        %1108 = vmatmul.mubr.f32.gmra.mrb[0].mxu0 %v902
        %v1109 = vpop.f32.mrb[0].mxu0
        %v1110 = vadd.f32 0.0, %v1109
        %v1111 = vpop.f32.mrb[0].mxu0
        %v1112 = vadd.f32 0.0, %v1111
        %1113 = vmatprep.mubr.f32.mxu0 0.0
        %1114 = vmatmul.mubr.f32.gmra.mrb[0].mxu0 %v903
        %v1115 = vpop.f32.mrb[0].mxu0
        %v1116 = vadd.f32 0.0, %v1115
        %v1117 = vpop.f32.mrb[0].mxu0
        %v1118 = vadd.f32 0.0, %v1117
        %1119 = vmatprep.mubr.f32.mxu0 0.0
        %1120 = vmatmul.mubr.f32.gmra.mrb[0].mxu0 %v904
        %v1121 = vpop.f32.mrb[0].mxu0
        %v1122 = vadd.f32 0.0, %v1121
        %v1123 = vpop.f32.mrb[0].mxu0
        %v1124 = vadd.f32 0.0, %v1123
        %1125 = vmatprep.mubr.f32.mxu0 0.0
        %1126 = vmatmul.mubr.f32.gmra.mrb[0].mxu0 %v905
        %v1127 = vpop.f32.mrb[0].mxu0
        %v1128 = vadd.f32 0.0, %v1127
        %v1129 = vpop.f32.mrb[0].mxu0
        %v1130 = vadd.f32 0.0, %v1129
        %1131 = vmatprep.mubr.f32.mxu0 0.0
        %1132 = vmatmul.mubr.f32.gmra.mrb[0].mxu0 %v906
        %v1133 = vpop.f32.mrb[0].mxu0
        %v1134 = vadd.f32 0.0, %v1133
        %v1135 = vpop.f32.mrb[0].mxu0
        %v1136 = vadd.f32 0.0, %v1135
        %1137 = vmatprep.mubr.f32.mxu0 0.0
        %1138 = vmatmul.mubr.f32.gmra.mrb[0].mxu0 %v907
        %v1139 = vpop.f32.mrb[0].mxu0
        %v1140 = vadd.f32 0.0, %v1139
        %v1141 = vpop.f32.mrb[0].mxu0
        %v1142 = vadd.f32 0.0, %v1141
        %1143 = vmatprep.mubr.f32.mxu0 0.0
        %1144 = vmatmul.mubr.f32.gmra.mrb[0].mxu0 %v908
        %v1145 = vpop.f32.mrb[0].mxu0
        %v1146 = vadd.f32 0.0, %v1145
        %v1147 = vpop.f32.mrb[0].mxu0
        %v1148 = vadd.f32 0.0, %v1147
        %1149 = vmatprep.mubr.f32.mxu0 0.0
        %1150 = vmatmul.mubr.f32.gmra.mrb[0].mxu0 %v909
        %v1151 = vpop.f32.mrb[0].mxu0
        %v1152 = vadd.f32 0.0, %v1151
        %v1153 = vpop.f32.mrb[0].mxu0
        %v1154 = vadd.f32 0.0, %v1153
        %1155 = vmatprep.mubr.f32.mxu0 0.0
        %1156 = vmatmul.mubr.f32.gmra.mrb[0].mxu0 %v910
        %v1157 = vpop.f32.mrb[0].mxu0
        %v1158 = vadd.f32 0.0, %v1157
        %v1159 = vpop.f32.mrb[0].mxu0
        %v1160 = vadd.f32 0.0, %v1159
        %1161 = vmatprep.mubr.f32.mxu0 0.0
        %1162 = vmatmul.mubr.f32.gmra.mrb[0].mxu0 %v911
        %v1163 = vpop.f32.mrb[0].mxu0
        %v1164 = vadd.f32 0.0, %v1163
        %v1165 = vpop.f32.mrb[0].mxu0
        %v1166 = vadd.f32 0.0, %v1165
        %1167 = vmatprep.mubr.f32.mxu0 0.0
        %1168 = vmatmul.mubr.f32.gmra.mrb[0].mxu0 %v912
        %v1169 = vpop.f32.mrb[0].mxu0
        %v1170 = vadd.f32 0.0, %v1169
        %v1171 = vpop.f32.mrb[0].mxu0
        %v1172 = vadd.f32 0.0, %v1171
        %1173 = vmatprep.mubr.f32.mxu0 0.0
        %1174 = vmatmul.mubr.f32.gmra.mrb[0].mxu0 %v913
        %v1175 = vpop.f32.mrb[0].mxu0
        %v1176 = vadd.f32 0.0, %v1175
        %v1177 = vpop.f32.mrb[0].mxu0
        %v1178 = vadd.f32 0.0, %v1177
        %1179 = vmatprep.mubr.f32.mxu0 0.0
        %1180 = vmatmul.mubr.f32.gmra.mrb[0].mxu0 %v914
        %v1181 = vpop.f32.mrb[0].mxu0
        %v1182 = vadd.f32 0.0, %v1181
        %v1183 = vpop.f32.mrb[0].mxu0
        %v1184 = vadd.f32 0.0, %v1183
        %1185 = vmatprep.mubr.f32.mxu0 0.0
        %1186 = vmatmul.mubr.f32.gmra.mrb[0].mxu0 %v915
        %v1187 = vpop.f32.mrb[0].mxu0
        %v1188 = vadd.f32 0.0, %v1187
        %v1189 = vpop.f32.mrb[0].mxu0
        %v1190 = vadd.f32 0.0, %v1189
        %1191 = vmatprep.mubr.f32.mxu0 0.0
        %1192 = vmatmul.mubr.f32.gmra.mrb[0].mxu0 %v916
        %v1193 = vpop.f32.mrb[0].mxu0
        %v1194 = vadd.f32 0.0, %v1193
        %v1195 = vpop.f32.mrb[0].mxu0
        %v1196 = vadd.f32 0.0, %v1195
        %1197 = vmatprep.mubr.f32.mxu0 0.0
        %1198 = vmatmul.mubr.f32.gmra.mrb[0].mxu0 %v917
        %v1199 = vpop.f32.mrb[0].mxu0
        %v1200 = vadd.f32 0.0, %v1199
        %v1201 = vpop.f32.mrb[0].mxu0
        %v1202 = vadd.f32 0.0, %v1201
        %1203 = vmatprep.mubr.f32.mxu0 0.0
        %1204 = vmatmul.mubr.f32.gmra.mrb[0].mxu0 %v918
        %v1205 = vpop.f32.mrb[0].mxu0
        %v1206 = vadd.f32 0.0, %v1205
        %v1207 = vpop.f32.mrb[0].mxu0
        %v1208 = vadd.f32 0.0, %v1207
        %1209 = vmatprep.mubr.f32.mxu0 0.0
        %1210 = vmatmul.mubr.f32.gmra.mrb[0].mxu0 %v919
        %v1211 = vpop.f32.mrb[0].mxu0
        %v1212 = vadd.f32 0.0, %v1211
        %v1213 = vpop.f32.mrb[0].mxu0
        %v1214 = vadd.f32 0.0, %v1213
        %1215 = vmatprep.mubr.f32.mxu0 0.0
        %1216 = vmatmul.mubr.f32.gmra.mrb[0].mxu0 %v920
        %v1217 = vpop.f32.mrb[0].mxu0
        %v1218 = vadd.f32 0.0, %v1217
        %v1219 = vpop.f32.mrb[0].mxu0
        %v1220 = vadd.f32 0.0, %v1219
        %1221 = vmatprep.mubr.f32.mxu0 0.0
        %1222 = vmatmul.mubr.f32.gmra.mrb[0].mxu0 %v921
        %v1223 = vpop.f32.mrb[0].mxu0
        %v1224 = vadd.f32 0.0, %v1223
        %v1225 = vpop.f32.mrb[0].mxu0
        %v1226 = vadd.f32 0.0, %v1225
        %1227 = vmatprep.mubr.f32.mxu0 0.0
        %1228 = vmatmul.mubr.f32.gmra.mrb[0].mxu0 %v922
        %v1229 = vpop.f32.mrb[0].mxu0
        %v1230 = vadd.f32 0.0, %v1229
        %v1231 = vpop.f32.mrb[0].mxu0
        %v1232 = vadd.f32 0.0, %v1231
        %1233 = vmatprep.mubr.f32.mxu0 0.0
        %1234 = vmatmul.mubr.f32.gmra.mrb[0].mxu0 %v923
        %v1235 = vpop.f32.mrb[0].mxu0
        %v1236 = vadd.f32 0.0, %v1235
        %v1237 = vpop.f32.mrb[0].mxu0
        %v1238 = vadd.f32 0.0, %v1237
        %1239 = vmatprep.mubr.f32.mxu0 0.0
        %1240 = vmatmul.mubr.f32.gmra.mrb[0].mxu0 %v924
        %v1241 = vpop.f32.mrb[0].mxu0
        %v1242 = vadd.f32 0.0, %v1241
        %v1243 = vpop.f32.mrb[0].mxu0
        %v1244 = vadd.f32 0.0, %v1243
        %1245 = vdwg.mxu0
        %v1246 = vld [vmem:[#allocation2] sm:$0xff]
        %v1247 = vld [vmem:[#allocation2 + $0x8] sm:$0xff]
        %v1248 = vld [vmem:[#allocation2 + $0x10] sm:$0xff]
        %v1249 = vld [vmem:[#allocation2 + $0x18] sm:$0xff]
        %v1250 = vld [vmem:[#allocation2 + $0x20] sm:$0xff]
        %v1251 = vld [vmem:[#allocation2 + $0x28] sm:$0xff]
        %v1252 = vld [vmem:[#allocation2 + $0x30] sm:$0xff]
        %v1253 = vld [vmem:[#allocation2 + $0x38] sm:$0xff]
        %v1254 = vld [vmem:[#allocation2 + $0x40] sm:$0xff]
        %v1255 = vld [vmem:[#allocation2 + $0x48] sm:$0xff]
        %v1256 = vld [vmem:[#allocation2 + $0x50] sm:$0xff]
        %v1257 = vld [vmem:[#allocation2 + $0x58] sm:$0xff]
        %v1258 = vld [vmem:[#allocation2 + $0x60] sm:$0xff]
        %v1259 = vld [vmem:[#allocation2 + $0x68] sm:$0xff]
        %v1260 = vld [vmem:[#allocation2 + $0x70] sm:$0xff]
        %v1261 = vld [vmem:[#allocation2 + $0x78] sm:$0xff]
        %v1262 = vld [vmem:[#allocation2 + $0x80] sm:$0xff]
        %v1263 = vld [vmem:[#allocation2 + $0x88] sm:$0xff]
        %v1264 = vld [vmem:[#allocation2 + $0x90] sm:$0xff]
        %v1265 = vld [vmem:[#allocation2 + $0x98] sm:$0xff]
        %v1266 = vld [vmem:[#allocation2 + $0xa0] sm:$0xff]
        %v1267 = vld [vmem:[#allocation2 + $0xa8] sm:$0xff]
        %v1268 = vld [vmem:[#allocation2 + $0xb0] sm:$0xff]
        %v1269 = vld [vmem:[#allocation2 + $0xb8] sm:$0xff]
        %v1270 = vld [vmem:[#allocation2 + $0xc0] sm:$0xff]
        %v1271 = vld [vmem:[#allocation2 + $0xc8] sm:$0xff]
        %v1272 = vld [vmem:[#allocation2 + $0xd0] sm:$0xff]
        %v1273 = vld [vmem:[#allocation2 + $0xd8] sm:$0xff]
        %v1274 = vld [vmem:[#allocation2 + $0xe0] sm:$0xff]
        %v1275 = vld [vmem:[#allocation2 + $0xe8] sm:$0xff]
        %v1276 = vld [vmem:[#allocation2 + $0xf0] sm:$0xff]
        %v1277 = vld [vmem:[#allocation2 + $0xf8] sm:$0xff]
        %v1278 = vmax.f32 %v1056, %v1058
        %1279 = vmax.xlane.f32.xlu0 %v1278
        %v1280 = vpop.xlane.xlu0 %1279
        %v1281 = vmax.f32 %v1062, %v1064
        %1282 = vmax.xlane.f32.xlu0 %v1281
        %v1283 = vpop.xlane.xlu0 %1282
        %v1284 = vmax.f32 %v1068, %v1070
        %1285 = vmax.xlane.f32.xlu0 %v1284
        %v1286 = vpop.xlane.xlu0 %1285
        %v1287 = vmax.f32 %v1074, %v1076
        %1288 = vmax.xlane.f32.xlu0 %v1287
        %v1289 = vpop.xlane.xlu0 %1288
        %v1290 = vmax.f32 %v1080, %v1082
        %1291 = vmax.xlane.f32.xlu0 %v1290
        %v1292 = vpop.xlane.xlu0 %1291
        %v1293 = vmax.f32 %v1086, %v1088
        %1294 = vmax.xlane.f32.xlu0 %v1293
        %v1295 = vpop.xlane.xlu0 %1294
        %v1296 = vmax.f32 %v1092, %v1094
        %1297 = vmax.xlane.f32.xlu0 %v1296
        %v1298 = vpop.xlane.xlu0 %1297
        %v1299 = vmax.f32 %v1098, %v1100
        %1300 = vmax.xlane.f32.xlu0 %v1299
        %v1301 = vpop.xlane.xlu0 %1300
        %v1302 = vmax.f32 %v1104, %v1106
        %1303 = vmax.xlane.f32.xlu0 %v1302
        %v1304 = vpop.xlane.xlu0 %1303
        %v1305 = vmax.f32 %v1110, %v1112
        %1306 = vmax.xlane.f32.xlu0 %v1305
        %v1307 = vpop.xlane.xlu0 %1306
        %v1308 = vmax.f32 %v1116, %v1118
        %1309 = vmax.xlane.f32.xlu0 %v1308
        %v1310 = vpop.xlane.xlu0 %1309
        %v1311 = vmax.f32 %v1122, %v1124
        %1312 = vmax.xlane.f32.xlu0 %v1311
        %v1313 = vpop.xlane.xlu0 %1312
        %v1314 = vmax.f32 %v1128, %v1130
        %1315 = vmax.xlane.f32.xlu0 %v1314
        %v1316 = vpop.xlane.xlu0 %1315
        %v1317 = vmax.f32 %v1134, %v1136
        %1318 = vmax.xlane.f32.xlu0 %v1317
        %v1319 = vpop.xlane.xlu0 %1318
        %v1320 = vmax.f32 %v1140, %v1142
        %1321 = vmax.xlane.f32.xlu0 %v1320
        %v1322 = vpop.xlane.xlu0 %1321
        %v1323 = vmax.f32 %v1146, %v1148
        %1324 = vmax.xlane.f32.xlu0 %v1323
        %v1325 = vpop.xlane.xlu0 %1324
        %v1326 = vmax.f32 %v1152, %v1154
        %1327 = vmax.xlane.f32.xlu0 %v1326
        %v1328 = vpop.xlane.xlu0 %1327
        %v1329 = vmax.f32 %v1158, %v1160
        %1330 = vmax.xlane.f32.xlu0 %v1329
        %v1331 = vpop.xlane.xlu0 %1330
        %v1332 = vmax.f32 %v1164, %v1166
        %1333 = vmax.xlane.f32.xlu0 %v1332
        %v1334 = vpop.xlane.xlu0 %1333
        %v1335 = vmax.f32 %v1170, %v1172
        %1336 = vmax.xlane.f32.xlu0 %v1335
        %v1337 = vpop.xlane.xlu0 %1336
        %v1338 = vmax.f32 %v1176, %v1178
        %1339 = vmax.xlane.f32.xlu0 %v1338
        %v1340 = vpop.xlane.xlu0 %1339
        %v1341 = vmax.f32 %v1182, %v1184
        %1342 = vmax.xlane.f32.xlu0 %v1341
        %v1343 = vpop.xlane.xlu0 %1342
        %v1344 = vmax.f32 %v1188, %v1190
        %1345 = vmax.xlane.f32.xlu0 %v1344
        %v1346 = vpop.xlane.xlu0 %1345
        %v1347 = vmax.f32 %v1194, %v1196
        %1348 = vmax.xlane.f32.xlu0 %v1347
        %v1349 = vpop.xlane.xlu0 %1348
        %v1350 = vmax.f32 %v1200, %v1202
        %1351 = vmax.xlane.f32.xlu0 %v1350
        %v1352 = vpop.xlane.xlu0 %1351
        %v1353 = vmax.f32 %v1206, %v1208
        %1354 = vmax.xlane.f32.xlu0 %v1353
        %v1355 = vpop.xlane.xlu0 %1354
        %v1356 = vmax.f32 %v1212, %v1214
        %1357 = vmax.xlane.f32.xlu0 %v1356
        %v1358 = vpop.xlane.xlu0 %1357
        %v1359 = vmax.f32 %v1218, %v1220
        %1360 = vmax.xlane.f32.xlu0 %v1359
        %v1361 = vpop.xlane.xlu0 %1360
        %v1362 = vmax.f32 %v1224, %v1226
        %1363 = vmax.xlane.f32.xlu0 %v1362
        %v1364 = vpop.xlane.xlu0 %1363
        %v1365 = vmax.f32 %v1230, %v1232
        %1366 = vmax.xlane.f32.xlu0 %v1365
        %v1367 = vpop.xlane.xlu0 %1366
        %v1368 = vmax.f32 %v1236, %v1238
        %1369 = vmax.xlane.f32.xlu0 %v1368
        %v1370 = vpop.xlane.xlu0 %1369
        %v1371 = vmax.f32 %v1242, %v1244
        %1372 = vmax.xlane.f32.xlu0 %v1371
        %v1373 = vpop.xlane.xlu0 %1372
        %v1374 = vmax.f32 %v1246, %v1280
        %v1375 = vmax.f32 %v1247, %v1283
        %v1376 = vmax.f32 %v1248, %v1286
        %v1377 = vmax.f32 %v1249, %v1289
        %v1378 = vmax.f32 %v1250, %v1292
        %v1379 = vmax.f32 %v1251, %v1295
        %v1380 = vmax.f32 %v1252, %v1298
        %v1381 = vmax.f32 %v1253, %v1301
        %v1382 = vmax.f32 %v1254, %v1304
        %v1383 = vmax.f32 %v1255, %v1307
        %v1384 = vmax.f32 %v1256, %v1310
        %v1385 = vmax.f32 %v1257, %v1313
        %v1386 = vmax.f32 %v1258, %v1316
        %v1387 = vmax.f32 %v1259, %v1319
        %v1388 = vmax.f32 %v1260, %v1322
        %v1389 = vmax.f32 %v1261, %v1325
        %v1390 = vmax.f32 %v1262, %v1328
        %v1391 = vmax.f32 %v1263, %v1331
        %v1392 = vmax.f32 %v1264, %v1334
        %v1393 = vmax.f32 %v1265, %v1337
        %v1394 = vmax.f32 %v1266, %v1340
        %v1395 = vmax.f32 %v1267, %v1343
        %v1396 = vmax.f32 %v1268, %v1346
        %v1397 = vmax.f32 %v1269, %v1349
        %v1398 = vmax.f32 %v1270, %v1352
        %v1399 = vmax.f32 %v1271, %v1355
        %v1400 = vmax.f32 %v1272, %v1358
        %v1401 = vmax.f32 %v1273, %v1361
        %v1402 = vmax.f32 %v1274, %v1364
        %v1403 = vmax.f32 %v1275, %v1367
        %v1404 = vmax.f32 %v1276, %v1370
        %v1405 = vmax.f32 %v1277, %v1373
        %v1406 = vsub.f32 %v1246, %v1374
        %v1407 = vsub.f32 %v1247, %v1375
        %v1408 = vsub.f32 %v1248, %v1376
        %v1409 = vsub.f32 %v1249, %v1377
        %v1410 = vsub.f32 %v1250, %v1378
        %v1411 = vsub.f32 %v1251, %v1379
        %v1412 = vsub.f32 %v1252, %v1380
        %v1413 = vsub.f32 %v1253, %v1381
        %v1414 = vsub.f32 %v1254, %v1382
        %v1415 = vsub.f32 %v1255, %v1383
        %v1416 = vsub.f32 %v1256, %v1384
        %v1417 = vsub.f32 %v1257, %v1385
        %v1418 = vsub.f32 %v1258, %v1386
        %v1419 = vsub.f32 %v1259, %v1387
        %v1420 = vsub.f32 %v1260, %v1388
        %v1421 = vsub.f32 %v1261, %v1389
        %v1422 = vsub.f32 %v1262, %v1390
        %v1423 = vsub.f32 %v1263, %v1391
        %v1424 = vsub.f32 %v1264, %v1392
        %v1425 = vsub.f32 %v1265, %v1393
        %v1426 = vsub.f32 %v1266, %v1394
        %v1427 = vsub.f32 %v1267, %v1395
        %v1428 = vsub.f32 %v1268, %v1396
        %v1429 = vsub.f32 %v1269, %v1397
        %v1430 = vsub.f32 %v1270, %v1398
        %v1431 = vsub.f32 %v1271, %v1399
        %v1432 = vsub.f32 %v1272, %v1400
        %v1433 = vsub.f32 %v1273, %v1401
        %v1434 = vsub.f32 %v1274, %v1402
        %v1435 = vsub.f32 %v1275, %v1403
        %v1436 = vsub.f32 %v1276, %v1404
        %v1437 = vsub.f32 %v1277, %v1405
        %v1438 = vmul.f32 %v1406, 1.442695
        %v1439 = vpow.pop %v1438
        %v1440 = vmul.f32 %v1407, 1.442695
        %v1441 = vpow.pop %v1440
        %v1442 = vmul.f32 %v1408, 1.442695
        %v1443 = vpow.pop %v1442
        %v1444 = vmul.f32 %v1409, 1.442695
        %v1445 = vpow.pop %v1444
        %v1446 = vmul.f32 %v1410, 1.442695
        %v1447 = vpow.pop %v1446
        %v1448 = vmul.f32 %v1411, 1.442695
        %v1449 = vpow.pop %v1448
        %v1450 = vmul.f32 %v1412, 1.442695
        %v1451 = vpow.pop %v1450
        %v1452 = vmul.f32 %v1413, 1.442695
        %v1453 = vpow.pop %v1452
        %v1454 = vmul.f32 %v1414, 1.442695
        %v1455 = vpow.pop %v1454
        %v1456 = vmul.f32 %v1415, 1.442695
        %v1457 = vpow.pop %v1456
        %v1458 = vmul.f32 %v1416, 1.442695
        %v1459 = vpow.pop %v1458
        %v1460 = vmul.f32 %v1417, 1.442695
        %v1461 = vpow.pop %v1460
        %v1462 = vmul.f32 %v1418, 1.442695
        %v1463 = vpow.pop %v1462
        %v1464 = vmul.f32 %v1419, 1.442695
        %v1465 = vpow.pop %v1464
        %v1466 = vmul.f32 %v1420, 1.442695
        %v1467 = vpow.pop %v1466
        %v1468 = vmul.f32 %v1421, 1.442695
        %v1469 = vpow.pop %v1468
        %v1470 = vmul.f32 %v1422, 1.442695
        %v1471 = vpow.pop %v1470
        %v1472 = vmul.f32 %v1423, 1.442695
        %v1473 = vpow.pop %v1472
        %v1474 = vmul.f32 %v1424, 1.442695
        %v1475 = vpow.pop %v1474
        %v1476 = vmul.f32 %v1425, 1.442695
        %v1477 = vpow.pop %v1476
        %v1478 = vmul.f32 %v1426, 1.442695
        %v1479 = vpow.pop %v1478
        %v1480 = vmul.f32 %v1427, 1.442695
        %v1481 = vpow.pop %v1480
        %v1482 = vmul.f32 %v1428, 1.442695
        %v1483 = vpow.pop %v1482
        %v1484 = vmul.f32 %v1429, 1.442695
        %v1485 = vpow.pop %v1484
        %v1486 = vmul.f32 %v1430, 1.442695
        %v1487 = vpow.pop %v1486
        %v1488 = vmul.f32 %v1431, 1.442695
        %v1489 = vpow.pop %v1488
        %v1490 = vmul.f32 %v1432, 1.442695
        %v1491 = vpow.pop %v1490
        %v1492 = vmul.f32 %v1433, 1.442695
        %v1493 = vpow.pop %v1492
        %v1494 = vmul.f32 %v1434, 1.442695
        %v1495 = vpow.pop %v1494
        %v1496 = vmul.f32 %v1435, 1.442695
        %v1497 = vpow.pop %v1496
        %v1498 = vmul.f32 %v1436, 1.442695
        %v1499 = vpow.pop %v1498
        %v1500 = vmul.f32 %v1437, 1.442695
        %v1501 = vpow.pop %v1500
        %1503 = vset.pattern.permute.xlu0 0
        %1504 = vperm.xlu0 %1503, %v1374
        %v1505 = vpop.permute.xlu0 %1504
        %1508 = vset.pattern.permute.xlu0 0
        %1509 = vperm.xlu0 %1508, %v1375
        %v1510 = vpop.permute.xlu0 %1509
        %1513 = vset.pattern.permute.xlu0 0
        %1514 = vperm.xlu0 %1513, %v1376
        %v1515 = vpop.permute.xlu0 %1514
        %1518 = vset.pattern.permute.xlu0 0
        %1519 = vperm.xlu0 %1518, %v1377
        %v1520 = vpop.permute.xlu0 %1519
        %1523 = vset.pattern.permute.xlu0 0
        %1524 = vperm.xlu0 %1523, %v1378
        %v1525 = vpop.permute.xlu0 %1524
        %1528 = vset.pattern.permute.xlu0 0
        %1529 = vperm.xlu0 %1528, %v1379
        %v1530 = vpop.permute.xlu0 %1529
        %1533 = vset.pattern.permute.xlu0 0
        %1534 = vperm.xlu0 %1533, %v1380
        %v1535 = vpop.permute.xlu0 %1534
        %1538 = vset.pattern.permute.xlu0 0
        %1539 = vperm.xlu0 %1538, %v1381
        %v1540 = vpop.permute.xlu0 %1539
        %1543 = vset.pattern.permute.xlu0 0
        %1544 = vperm.xlu0 %1543, %v1382
        %v1545 = vpop.permute.xlu0 %1544
        %1548 = vset.pattern.permute.xlu0 0
        %1549 = vperm.xlu0 %1548, %v1383
        %v1550 = vpop.permute.xlu0 %1549
        %1553 = vset.pattern.permute.xlu0 0
        %1554 = vperm.xlu0 %1553, %v1384
        %v1555 = vpop.permute.xlu0 %1554
        %1558 = vset.pattern.permute.xlu0 0
        %1559 = vperm.xlu0 %1558, %v1385
        %v1560 = vpop.permute.xlu0 %1559
        %1563 = vset.pattern.permute.xlu0 0
        %1564 = vperm.xlu0 %1563, %v1386
        %v1565 = vpop.permute.xlu0 %1564
        %1568 = vset.pattern.permute.xlu0 0
        %1569 = vperm.xlu0 %1568, %v1387
        %v1570 = vpop.permute.xlu0 %1569
        %1573 = vset.pattern.permute.xlu0 0
        %1574 = vperm.xlu0 %1573, %v1388
        %v1575 = vpop.permute.xlu0 %1574
        %1578 = vset.pattern.permute.xlu0 0
        %1579 = vperm.xlu0 %1578, %v1389
        %v1580 = vpop.permute.xlu0 %1579
        %1583 = vset.pattern.permute.xlu0 0
        %1584 = vperm.xlu0 %1583, %v1390
        %v1585 = vpop.permute.xlu0 %1584
        %1588 = vset.pattern.permute.xlu0 0
        %1589 = vperm.xlu0 %1588, %v1391
        %v1590 = vpop.permute.xlu0 %1589
        %1593 = vset.pattern.permute.xlu0 0
        %1594 = vperm.xlu0 %1593, %v1392
        %v1595 = vpop.permute.xlu0 %1594
        %1598 = vset.pattern.permute.xlu0 0
        %1599 = vperm.xlu0 %1598, %v1393
        %v1600 = vpop.permute.xlu0 %1599
        %1603 = vset.pattern.permute.xlu0 0
        %1604 = vperm.xlu0 %1603, %v1394
        %v1605 = vpop.permute.xlu0 %1604
        %1608 = vset.pattern.permute.xlu0 0
        %1609 = vperm.xlu0 %1608, %v1395
        %v1610 = vpop.permute.xlu0 %1609
        %1613 = vset.pattern.permute.xlu0 0
        %1614 = vperm.xlu0 %1613, %v1396
        %v1615 = vpop.permute.xlu0 %1614
        %1618 = vset.pattern.permute.xlu0 0
        %1619 = vperm.xlu0 %1618, %v1397
        %v1620 = vpop.permute.xlu0 %1619
        %1623 = vset.pattern.permute.xlu0 0
        %1624 = vperm.xlu0 %1623, %v1398
        %v1625 = vpop.permute.xlu0 %1624
        %1628 = vset.pattern.permute.xlu0 0
        %1629 = vperm.xlu0 %1628, %v1399
        %v1630 = vpop.permute.xlu0 %1629
        %1633 = vset.pattern.permute.xlu0 0
        %1634 = vperm.xlu0 %1633, %v1400
        %v1635 = vpop.permute.xlu0 %1634
        %1638 = vset.pattern.permute.xlu0 0
        %1639 = vperm.xlu0 %1638, %v1401
        %v1640 = vpop.permute.xlu0 %1639
        %1643 = vset.pattern.permute.xlu0 0
        %1644 = vperm.xlu0 %1643, %v1402
        %v1645 = vpop.permute.xlu0 %1644
        %1648 = vset.pattern.permute.xlu0 0
        %1649 = vperm.xlu0 %1648, %v1403
        %v1650 = vpop.permute.xlu0 %1649
        %1653 = vset.pattern.permute.xlu0 0
        %1654 = vperm.xlu0 %1653, %v1404
        %v1655 = vpop.permute.xlu0 %1654
        %1658 = vset.pattern.permute.xlu0 0
        %1659 = vperm.xlu0 %1658, %v1405
        %v1660 = vpop.permute.xlu0 %1659
        %v1662 = vsub.f32 %v1056, %v1505
        %v1663 = vsub.f32 %v1058, %v1505
        %v1664 = vsub.f32 %v1062, %v1510
        %v1665 = vsub.f32 %v1064, %v1510
        %v1666 = vsub.f32 %v1068, %v1515
        %v1667 = vsub.f32 %v1070, %v1515
        %v1668 = vsub.f32 %v1074, %v1520
        %v1669 = vsub.f32 %v1076, %v1520
        %v1670 = vsub.f32 %v1080, %v1525
        %v1671 = vsub.f32 %v1082, %v1525
        %v1672 = vsub.f32 %v1086, %v1530
        %v1673 = vsub.f32 %v1088, %v1530
        %v1674 = vsub.f32 %v1092, %v1535
        %v1675 = vsub.f32 %v1094, %v1535
        %v1676 = vsub.f32 %v1098, %v1540
        %v1677 = vsub.f32 %v1100, %v1540
        %v1678 = vsub.f32 %v1104, %v1545
        %v1679 = vsub.f32 %v1106, %v1545
        %v1680 = vsub.f32 %v1110, %v1550
        %v1681 = vsub.f32 %v1112, %v1550
        %v1682 = vsub.f32 %v1116, %v1555
        %v1683 = vsub.f32 %v1118, %v1555
        %v1684 = vsub.f32 %v1122, %v1560
        %v1685 = vsub.f32 %v1124, %v1560
        %v1686 = vsub.f32 %v1128, %v1565
        %v1687 = vsub.f32 %v1130, %v1565
        %v1688 = vsub.f32 %v1134, %v1570
        %v1689 = vsub.f32 %v1136, %v1570
        %v1690 = vsub.f32 %v1140, %v1575
        %v1691 = vsub.f32 %v1142, %v1575
        %v1692 = vsub.f32 %v1146, %v1580
        %v1693 = vsub.f32 %v1148, %v1580
        %v1694 = vsub.f32 %v1152, %v1585
        %v1695 = vsub.f32 %v1154, %v1585
        %v1696 = vsub.f32 %v1158, %v1590
        %v1697 = vsub.f32 %v1160, %v1590
        %v1698 = vsub.f32 %v1164, %v1595
        %v1699 = vsub.f32 %v1166, %v1595
        %v1700 = vsub.f32 %v1170, %v1600
        %v1701 = vsub.f32 %v1172, %v1600
        %v1702 = vsub.f32 %v1176, %v1605
        %v1703 = vsub.f32 %v1178, %v1605
        %v1704 = vsub.f32 %v1182, %v1610
        %v1705 = vsub.f32 %v1184, %v1610
        %v1706 = vsub.f32 %v1188, %v1615
        %v1707 = vsub.f32 %v1190, %v1615
        %v1708 = vsub.f32 %v1194, %v1620
        %v1709 = vsub.f32 %v1196, %v1620
        %v1710 = vsub.f32 %v1200, %v1625
        %v1711 = vsub.f32 %v1202, %v1625
        %v1712 = vsub.f32 %v1206, %v1630
        %v1713 = vsub.f32 %v1208, %v1630
        %v1714 = vsub.f32 %v1212, %v1635
        %v1715 = vsub.f32 %v1214, %v1635
        %v1716 = vsub.f32 %v1218, %v1640
        %v1717 = vsub.f32 %v1220, %v1640
        %v1718 = vsub.f32 %v1224, %v1645
        %v1719 = vsub.f32 %v1226, %v1645
        %v1720 = vsub.f32 %v1230, %v1650
        %v1721 = vsub.f32 %v1232, %v1650
        %v1722 = vsub.f32 %v1236, %v1655
        %v1723 = vsub.f32 %v1238, %v1655
        %v1724 = vsub.f32 %v1242, %v1660
        %v1725 = vsub.f32 %v1244, %v1660
        %v1726 = vmul.f32 %v1662, 1.442695
        %v1727 = vpow.pop %v1726
        %v1728 = vmul.f32 %v1663, 1.442695
        %v1729 = vpow.pop %v1728
        %v1730 = vmul.f32 %v1664, 1.442695
        %v1731 = vpow.pop %v1730
        %v1732 = vmul.f32 %v1665, 1.442695
        %v1733 = vpow.pop %v1732
        %v1734 = vmul.f32 %v1666, 1.442695
        %v1735 = vpow.pop %v1734
        %v1736 = vmul.f32 %v1667, 1.442695
        %v1737 = vpow.pop %v1736
        %v1738 = vmul.f32 %v1668, 1.442695
        %v1739 = vpow.pop %v1738
        %v1740 = vmul.f32 %v1669, 1.442695
        %v1741 = vpow.pop %v1740
        %v1742 = vmul.f32 %v1670, 1.442695
        %v1743 = vpow.pop %v1742
        %v1744 = vmul.f32 %v1671, 1.442695
        %v1745 = vpow.pop %v1744
        %v1746 = vmul.f32 %v1672, 1.442695
        %v1747 = vpow.pop %v1746
        %v1748 = vmul.f32 %v1673, 1.442695
        %v1749 = vpow.pop %v1748
        %v1750 = vmul.f32 %v1674, 1.442695
        %v1751 = vpow.pop %v1750
        %v1752 = vmul.f32 %v1675, 1.442695
        %v1753 = vpow.pop %v1752
        %v1754 = vmul.f32 %v1676, 1.442695
        %v1755 = vpow.pop %v1754
        %v1756 = vmul.f32 %v1677, 1.442695
        %v1757 = vpow.pop %v1756
        %v1758 = vmul.f32 %v1678, 1.442695
        %v1759 = vpow.pop %v1758
        %v1760 = vmul.f32 %v1679, 1.442695
        %v1761 = vpow.pop %v1760
        %v1762 = vmul.f32 %v1680, 1.442695
        %v1763 = vpow.pop %v1762
        %v1764 = vmul.f32 %v1681, 1.442695
        %v1765 = vpow.pop %v1764
        %v1766 = vmul.f32 %v1682, 1.442695
        %v1767 = vpow.pop %v1766
        %v1768 = vmul.f32 %v1683, 1.442695
        %v1769 = vpow.pop %v1768
        %v1770 = vmul.f32 %v1684, 1.442695
        %v1771 = vpow.pop %v1770
        %v1772 = vmul.f32 %v1685, 1.442695
        %v1773 = vpow.pop %v1772
        %v1774 = vmul.f32 %v1686, 1.442695
        %v1775 = vpow.pop %v1774
        %v1776 = vmul.f32 %v1687, 1.442695
        %v1777 = vpow.pop %v1776
        %v1778 = vmul.f32 %v1688, 1.442695
        %v1779 = vpow.pop %v1778
        %v1780 = vmul.f32 %v1689, 1.442695
        %v1781 = vpow.pop %v1780
        %v1782 = vmul.f32 %v1690, 1.442695
        %v1783 = vpow.pop %v1782
        %v1784 = vmul.f32 %v1691, 1.442695
        %v1785 = vpow.pop %v1784
        %v1786 = vmul.f32 %v1692, 1.442695
        %v1787 = vpow.pop %v1786
        %v1788 = vmul.f32 %v1693, 1.442695
        %v1789 = vpow.pop %v1788
        %v1790 = vmul.f32 %v1694, 1.442695
        %v1791 = vpow.pop %v1790
        %v1792 = vmul.f32 %v1695, 1.442695
        %v1793 = vpow.pop %v1792
        %v1794 = vmul.f32 %v1696, 1.442695
        %v1795 = vpow.pop %v1794
        %v1796 = vmul.f32 %v1697, 1.442695
        %v1797 = vpow.pop %v1796
        %v1798 = vmul.f32 %v1698, 1.442695
        %v1799 = vpow.pop %v1798
        %v1800 = vmul.f32 %v1699, 1.442695
        %v1801 = vpow.pop %v1800
        %v1802 = vmul.f32 %v1700, 1.442695
        %v1803 = vpow.pop %v1802
        %v1804 = vmul.f32 %v1701, 1.442695
        %v1805 = vpow.pop %v1804
        %v1806 = vmul.f32 %v1702, 1.442695
        %v1807 = vpow.pop %v1806
        %v1808 = vmul.f32 %v1703, 1.442695
        %v1809 = vpow.pop %v1808
        %v1810 = vmul.f32 %v1704, 1.442695
        %v1811 = vpow.pop %v1810
        %v1812 = vmul.f32 %v1705, 1.442695
        %v1813 = vpow.pop %v1812
        %v1814 = vmul.f32 %v1706, 1.442695
        %v1815 = vpow.pop %v1814
        %v1816 = vmul.f32 %v1707, 1.442695
        %v1817 = vpow.pop %v1816
        %v1818 = vmul.f32 %v1708, 1.442695
        %v1819 = vpow.pop %v1818
        %v1820 = vmul.f32 %v1709, 1.442695
        %v1821 = vpow.pop %v1820
        %v1822 = vmul.f32 %v1710, 1.442695
        %v1823 = vpow.pop %v1822
        %v1824 = vmul.f32 %v1711, 1.442695
        %v1825 = vpow.pop %v1824
        %v1826 = vmul.f32 %v1712, 1.442695
        %v1827 = vpow.pop %v1826
        %v1828 = vmul.f32 %v1713, 1.442695
        %v1829 = vpow.pop %v1828
        %v1830 = vmul.f32 %v1714, 1.442695
        %v1831 = vpow.pop %v1830
        %v1832 = vmul.f32 %v1715, 1.442695
        %v1833 = vpow.pop %v1832
        %v1834 = vmul.f32 %v1716, 1.442695
        %v1835 = vpow.pop %v1834
        %v1836 = vmul.f32 %v1717, 1.442695
        %v1837 = vpow.pop %v1836
        %v1838 = vmul.f32 %v1718, 1.442695
        %v1839 = vpow.pop %v1838
        %v1840 = vmul.f32 %v1719, 1.442695
        %v1841 = vpow.pop %v1840
        %v1842 = vmul.f32 %v1720, 1.442695
        %v1843 = vpow.pop %v1842
        %v1844 = vmul.f32 %v1721, 1.442695
        %v1845 = vpow.pop %v1844
        %v1846 = vmul.f32 %v1722, 1.442695
        %v1847 = vpow.pop %v1846
        %v1848 = vmul.f32 %v1723, 1.442695
        %v1849 = vpow.pop %v1848
        %v1850 = vmul.f32 %v1724, 1.442695
        %v1851 = vpow.pop %v1850
        %v1852 = vmul.f32 %v1725, 1.442695
        %v1853 = vpow.pop %v1852
        %v1854 = vld [vmem:[#allocation3] sm:$0xff]
        %v1855 = vld [vmem:[#allocation3 + $0x8] sm:$0xff]
        %v1856 = vld [vmem:[#allocation3 + $0x10] sm:$0xff]
        %v1857 = vld [vmem:[#allocation3 + $0x18] sm:$0xff]
        %v1858 = vld [vmem:[#allocation3 + $0x20] sm:$0xff]
        %v1859 = vld [vmem:[#allocation3 + $0x28] sm:$0xff]
        %v1860 = vld [vmem:[#allocation3 + $0x30] sm:$0xff]
        %v1861 = vld [vmem:[#allocation3 + $0x38] sm:$0xff]
        %v1862 = vld [vmem:[#allocation3 + $0x40] sm:$0xff]
        %v1863 = vld [vmem:[#allocation3 + $0x48] sm:$0xff]
        %v1864 = vld [vmem:[#allocation3 + $0x50] sm:$0xff]
        %v1865 = vld [vmem:[#allocation3 + $0x58] sm:$0xff]
        %v1866 = vld [vmem:[#allocation3 + $0x60] sm:$0xff]
        %v1867 = vld [vmem:[#allocation3 + $0x68] sm:$0xff]
        %v1868 = vld [vmem:[#allocation3 + $0x70] sm:$0xff]
        %v1869 = vld [vmem:[#allocation3 + $0x78] sm:$0xff]
        %v1870 = vld [vmem:[#allocation3 + $0x80] sm:$0xff]
        %v1871 = vld [vmem:[#allocation3 + $0x88] sm:$0xff]
        %v1872 = vld [vmem:[#allocation3 + $0x90] sm:$0xff]
        %v1873 = vld [vmem:[#allocation3 + $0x98] sm:$0xff]
        %v1874 = vld [vmem:[#allocation3 + $0xa0] sm:$0xff]
        %v1875 = vld [vmem:[#allocation3 + $0xa8] sm:$0xff]
        %v1876 = vld [vmem:[#allocation3 + $0xb0] sm:$0xff]
        %v1877 = vld [vmem:[#allocation3 + $0xb8] sm:$0xff]
        %v1878 = vld [vmem:[#allocation3 + $0xc0] sm:$0xff]
        %v1879 = vld [vmem:[#allocation3 + $0xc8] sm:$0xff]
        %v1880 = vld [vmem:[#allocation3 + $0xd0] sm:$0xff]
        %v1881 = vld [vmem:[#allocation3 + $0xd8] sm:$0xff]
        %v1882 = vld [vmem:[#allocation3 + $0xe0] sm:$0xff]
        %v1883 = vld [vmem:[#allocation3 + $0xe8] sm:$0xff]
        %v1884 = vld [vmem:[#allocation3 + $0xf0] sm:$0xff]
        %v1885 = vld [vmem:[#allocation3 + $0xf8] sm:$0xff]
        %v1886 = vmul.f32 %v1439, %v1854
        %v1887 = vmul.f32 %v1441, %v1855
        %v1888 = vmul.f32 %v1443, %v1856
        %v1889 = vmul.f32 %v1445, %v1857
        %v1890 = vmul.f32 %v1447, %v1858
        %v1891 = vmul.f32 %v1449, %v1859
        %v1892 = vmul.f32 %v1451, %v1860
        %v1893 = vmul.f32 %v1453, %v1861
        %v1894 = vmul.f32 %v1455, %v1862
        %v1895 = vmul.f32 %v1457, %v1863
        %v1896 = vmul.f32 %v1459, %v1864
        %v1897 = vmul.f32 %v1461, %v1865
        %v1898 = vmul.f32 %v1463, %v1866
        %v1899 = vmul.f32 %v1465, %v1867
        %v1900 = vmul.f32 %v1467, %v1868
        %v1901 = vmul.f32 %v1469, %v1869
        %v1902 = vmul.f32 %v1471, %v1870
        %v1903 = vmul.f32 %v1473, %v1871
        %v1904 = vmul.f32 %v1475, %v1872
        %v1905 = vmul.f32 %v1477, %v1873
        %v1906 = vmul.f32 %v1479, %v1874
        %v1907 = vmul.f32 %v1481, %v1875
        %v1908 = vmul.f32 %v1483, %v1876
        %v1909 = vmul.f32 %v1485, %v1877
        %v1910 = vmul.f32 %v1487, %v1878
        %v1911 = vmul.f32 %v1489, %v1879
        %v1912 = vmul.f32 %v1491, %v1880
        %v1913 = vmul.f32 %v1493, %v1881
        %v1914 = vmul.f32 %v1495, %v1882
        %v1915 = vmul.f32 %v1497, %v1883
        %v1916 = vmul.f32 %v1499, %v1884
        %v1917 = vmul.f32 %v1501, %v1885
        %v1918 = vadd.f32 %v1727, %v1729
        %1919 = vadd.xlane.f32.xlu0 %v1918
        %v1920 = vpop.xlane.xlu0 %1919
        %v1921 = vadd.f32 %v1731, %v1733
        %1922 = vadd.xlane.f32.xlu0 %v1921
        %v1923 = vpop.xlane.xlu0 %1922
        %v1924 = vadd.f32 %v1735, %v1737
        %1925 = vadd.xlane.f32.xlu0 %v1924
        %v1926 = vpop.xlane.xlu0 %1925
        %v1927 = vadd.f32 %v1739, %v1741
        %1928 = vadd.xlane.f32.xlu0 %v1927
        %v1929 = vpop.xlane.xlu0 %1928
        %v1930 = vadd.f32 %v1743, %v1745
        %1931 = vadd.xlane.f32.xlu0 %v1930
        %v1932 = vpop.xlane.xlu0 %1931
        %v1933 = vadd.f32 %v1747, %v1749
        %1934 = vadd.xlane.f32.xlu0 %v1933
        %v1935 = vpop.xlane.xlu0 %1934
        %v1936 = vadd.f32 %v1751, %v1753
        %1937 = vadd.xlane.f32.xlu0 %v1936
        %v1938 = vpop.xlane.xlu0 %1937
        %v1939 = vadd.f32 %v1755, %v1757
        %1940 = vadd.xlane.f32.xlu0 %v1939
        %v1941 = vpop.xlane.xlu0 %1940
        %v1942 = vadd.f32 %v1759, %v1761
        %1943 = vadd.xlane.f32.xlu0 %v1942
        %v1944 = vpop.xlane.xlu0 %1943
        %v1945 = vadd.f32 %v1763, %v1765
        %1946 = vadd.xlane.f32.xlu0 %v1945
        %v1947 = vpop.xlane.xlu0 %1946
        %v1948 = vadd.f32 %v1767, %v1769
        %1949 = vadd.xlane.f32.xlu0 %v1948
        %v1950 = vpop.xlane.xlu0 %1949
        %v1951 = vadd.f32 %v1771, %v1773
        %1952 = vadd.xlane.f32.xlu0 %v1951
        %v1953 = vpop.xlane.xlu0 %1952
        %v1954 = vadd.f32 %v1775, %v1777
        %1955 = vadd.xlane.f32.xlu0 %v1954
        %v1956 = vpop.xlane.xlu0 %1955
        %v1957 = vadd.f32 %v1779, %v1781
        %1958 = vadd.xlane.f32.xlu0 %v1957
        %v1959 = vpop.xlane.xlu0 %1958
        %v1960 = vadd.f32 %v1783, %v1785
        %1961 = vadd.xlane.f32.xlu0 %v1960
        %v1962 = vpop.xlane.xlu0 %1961
        %v1963 = vadd.f32 %v1787, %v1789
        %1964 = vadd.xlane.f32.xlu0 %v1963
        %v1965 = vpop.xlane.xlu0 %1964
        %v1966 = vadd.f32 %v1791, %v1793
        %1967 = vadd.xlane.f32.xlu0 %v1966
        %v1968 = vpop.xlane.xlu0 %1967
        %v1969 = vadd.f32 %v1795, %v1797
        %1970 = vadd.xlane.f32.xlu0 %v1969
        %v1971 = vpop.xlane.xlu0 %1970
        %v1972 = vadd.f32 %v1799, %v1801
        %1973 = vadd.xlane.f32.xlu0 %v1972
        %v1974 = vpop.xlane.xlu0 %1973
        %v1975 = vadd.f32 %v1803, %v1805
        %1976 = vadd.xlane.f32.xlu0 %v1975
        %v1977 = vpop.xlane.xlu0 %1976
        %v1978 = vadd.f32 %v1807, %v1809
        %1979 = vadd.xlane.f32.xlu0 %v1978
        %v1980 = vpop.xlane.xlu0 %1979
        %v1981 = vadd.f32 %v1811, %v1813
        %1982 = vadd.xlane.f32.xlu0 %v1981
        %v1983 = vpop.xlane.xlu0 %1982
        %v1984 = vadd.f32 %v1815, %v1817
        %1985 = vadd.xlane.f32.xlu0 %v1984
        %v1986 = vpop.xlane.xlu0 %1985
        %v1987 = vadd.f32 %v1819, %v1821
        %1988 = vadd.xlane.f32.xlu0 %v1987
        %v1989 = vpop.xlane.xlu0 %1988
        %v1990 = vadd.f32 %v1823, %v1825
        %1991 = vadd.xlane.f32.xlu0 %v1990
        %v1992 = vpop.xlane.xlu0 %1991
        %v1993 = vadd.f32 %v1827, %v1829
        %1994 = vadd.xlane.f32.xlu0 %v1993
        %v1995 = vpop.xlane.xlu0 %1994
        %v1996 = vadd.f32 %v1831, %v1833
        %1997 = vadd.xlane.f32.xlu0 %v1996
        %v1998 = vpop.xlane.xlu0 %1997
        %v1999 = vadd.f32 %v1835, %v1837
        %2000 = vadd.xlane.f32.xlu0 %v1999
        %v2001 = vpop.xlane.xlu0 %2000
        %v2002 = vadd.f32 %v1839, %v1841
        %2003 = vadd.xlane.f32.xlu0 %v2002
        %v2004 = vpop.xlane.xlu0 %2003
        %v2005 = vadd.f32 %v1843, %v1845
        %2006 = vadd.xlane.f32.xlu0 %v2005
        %v2007 = vpop.xlane.xlu0 %2006
        %v2008 = vadd.f32 %v1847, %v1849
        %2009 = vadd.xlane.f32.xlu0 %v2008
        %v2010 = vpop.xlane.xlu0 %2009
        %v2011 = vadd.f32 %v1851, %v1853
        %2012 = vadd.xlane.f32.xlu0 %v2011
        %v2013 = vpop.xlane.xlu0 %2012
        %v2014 = vadd.f32 %v1886, %v1920
        %v2015 = vadd.f32 %v1887, %v1923
        %v2016 = vadd.f32 %v1888, %v1926
        %v2017 = vadd.f32 %v1889, %v1929
        %v2018 = vadd.f32 %v1890, %v1932
        %v2019 = vadd.f32 %v1891, %v1935
        %v2020 = vadd.f32 %v1892, %v1938
        %v2021 = vadd.f32 %v1893, %v1941
        %v2022 = vadd.f32 %v1894, %v1944
        %v2023 = vadd.f32 %v1895, %v1947
        %v2024 = vadd.f32 %v1896, %v1950
        %v2025 = vadd.f32 %v1897, %v1953
        %v2026 = vadd.f32 %v1898, %v1956
        %v2027 = vadd.f32 %v1899, %v1959
        %v2028 = vadd.f32 %v1900, %v1962
        %v2029 = vadd.f32 %v1901, %v1965
        %v2030 = vadd.f32 %v1902, %v1968
        %v2031 = vadd.f32 %v1903, %v1971
        %v2032 = vadd.f32 %v1904, %v1974
        %v2033 = vadd.f32 %v1905, %v1977
        %v2034 = vadd.f32 %v1906, %v1980
        %v2035 = vadd.f32 %v1907, %v1983
        %v2036 = vadd.f32 %v1908, %v1986
        %v2037 = vadd.f32 %v1909, %v1989
        %v2038 = vadd.f32 %v1910, %v1992
        %v2039 = vadd.f32 %v1911, %v1995
        %v2040 = vadd.f32 %v1912, %v1998
        %v2041 = vadd.f32 %v1913, %v2001
        %v2042 = vadd.f32 %v1914, %v2004
        %v2043 = vadd.f32 %v1915, %v2007
        %v2044 = vadd.f32 %v1916, %v2010
        %v2045 = vadd.f32 %v1917, %v2013
        %vm2046 = vcmask 7168
        %2047 = vst.msk [vmem:[#allocation3] sm:$0xff] %vm2046, %v2014
        %2048 = vst.msk [vmem:[#allocation3 + $0x8] sm:$0xff] %vm2046, %v2015
        %2049 = vst.msk [vmem:[#allocation3 + $0x10] sm:$0xff] %vm2046, %v2016
        %2050 = vst.msk [vmem:[#allocation3 + $0x18] sm:$0xff] %vm2046, %v2017
        %2051 = vst.msk [vmem:[#allocation3 + $0x20] sm:$0xff] %vm2046, %v2018
        %2052 = vst.msk [vmem:[#allocation3 + $0x28] sm:$0xff] %vm2046, %v2019
        %2053 = vst.msk [vmem:[#allocation3 + $0x30] sm:$0xff] %vm2046, %v2020
        %2054 = vst.msk [vmem:[#allocation3 + $0x38] sm:$0xff] %vm2046, %v2021
        %2055 = vst.msk [vmem:[#allocation3 + $0x40] sm:$0xff] %vm2046, %v2022
        %2056 = vst.msk [vmem:[#allocation3 + $0x48] sm:$0xff] %vm2046, %v2023
        %2057 = vst.msk [vmem:[#allocation3 + $0x50] sm:$0xff] %vm2046, %v2024
        %2058 = vst.msk [vmem:[#allocation3 + $0x58] sm:$0xff] %vm2046, %v2025
        %2059 = vst.msk [vmem:[#allocation3 + $0x60] sm:$0xff] %vm2046, %v2026
        %2060 = vst.msk [vmem:[#allocation3 + $0x68] sm:$0xff] %vm2046, %v2027
        %2061 = vst.msk [vmem:[#allocation3 + $0x70] sm:$0xff] %vm2046, %v2028
        %2062 = vst.msk [vmem:[#allocation3 + $0x78] sm:$0xff] %vm2046, %v2029
        %2063 = vst.msk [vmem:[#allocation3 + $0x80] sm:$0xff] %vm2046, %v2030
        %2064 = vst.msk [vmem:[#allocation3 + $0x88] sm:$0xff] %vm2046, %v2031
        %2065 = vst.msk [vmem:[#allocation3 + $0x90] sm:$0xff] %vm2046, %v2032
        %2066 = vst.msk [vmem:[#allocation3 + $0x98] sm:$0xff] %vm2046, %v2033
        %2067 = vst.msk [vmem:[#allocation3 + $0xa0] sm:$0xff] %vm2046, %v2034
        %2068 = vst.msk [vmem:[#allocation3 + $0xa8] sm:$0xff] %vm2046, %v2035
        %2069 = vst.msk [vmem:[#allocation3 + $0xb0] sm:$0xff] %vm2046, %v2036
        %2070 = vst.msk [vmem:[#allocation3 + $0xb8] sm:$0xff] %vm2046, %v2037
        %2071 = vst.msk [vmem:[#allocation3 + $0xc0] sm:$0xff] %vm2046, %v2038
        %2072 = vst.msk [vmem:[#allocation3 + $0xc8] sm:$0xff] %vm2046, %v2039
        %2073 = vst.msk [vmem:[#allocation3 + $0xd0] sm:$0xff] %vm2046, %v2040
        %2074 = vst.msk [vmem:[#allocation3 + $0xd8] sm:$0xff] %vm2046, %v2041
        %2075 = vst.msk [vmem:[#allocation3 + $0xe0] sm:$0xff] %vm2046, %v2042
        %2076 = vst.msk [vmem:[#allocation3 + $0xe8] sm:$0xff] %vm2046, %v2043
        %2077 = vst.msk [vmem:[#allocation3 + $0xf0] sm:$0xff] %vm2046, %v2044
        %2078 = vst.msk [vmem:[#allocation3 + $0xf8] sm:$0xff] %vm2046, %v2045
        %v2079 = vld [vmem:[#allocation4] sm:$0xff]
        %v2080 = vld [vmem:[#allocation4 + $0x8] sm:$0xff]
        %v2081 = vld [vmem:[#allocation4 + $0x10] sm:$0xff]
        %v2082 = vld [vmem:[#allocation4 + $0x18] sm:$0xff]
        %v2083 = vld [vmem:[#allocation4 + $0x20] sm:$0xff]
        %v2084 = vld [vmem:[#allocation4 + $0x28] sm:$0xff]
        %v2085 = vld [vmem:[#allocation4 + $0x30] sm:$0xff]
        %v2086 = vld [vmem:[#allocation4 + $0x38] sm:$0xff]
        %v2087 = vld [vmem:[#allocation4 + $0x40] sm:$0xff]
        %v2088 = vld [vmem:[#allocation4 + $0x48] sm:$0xff]
        %v2089 = vld [vmem:[#allocation4 + $0x50] sm:$0xff]
        %v2090 = vld [vmem:[#allocation4 + $0x58] sm:$0xff]
        %v2091 = vld [vmem:[#allocation4 + $0x60] sm:$0xff]
        %v2092 = vld [vmem:[#allocation4 + $0x68] sm:$0xff]
        %v2093 = vld [vmem:[#allocation4 + $0x70] sm:$0xff]
        %v2094 = vld [vmem:[#allocation4 + $0x78] sm:$0xff]
        %v2095 = vld [vmem:[#allocation4 + $0x80] sm:$0xff]
        %v2096 = vld [vmem:[#allocation4 + $0x88] sm:$0xff]
        %v2097 = vld [vmem:[#allocation4 + $0x90] sm:$0xff]
        %v2098 = vld [vmem:[#allocation4 + $0x98] sm:$0xff]
        %v2099 = vld [vmem:[#allocation4 + $0xa0] sm:$0xff]
        %v2100 = vld [vmem:[#allocation4 + $0xa8] sm:$0xff]
        %v2101 = vld [vmem:[#allocation4 + $0xb0] sm:$0xff]
        %v2102 = vld [vmem:[#allocation4 + $0xb8] sm:$0xff]
        %v2103 = vld [vmem:[#allocation4 + $0xc0] sm:$0xff]
        %v2104 = vld [vmem:[#allocation4 + $0xc8] sm:$0xff]
        %v2105 = vld [vmem:[#allocation4 + $0xd0] sm:$0xff]
        %v2106 = vld [vmem:[#allocation4 + $0xd8] sm:$0xff]
        %v2107 = vld [vmem:[#allocation4 + $0xe0] sm:$0xff]
        %v2108 = vld [vmem:[#allocation4 + $0xe8] sm:$0xff]
        %v2109 = vld [vmem:[#allocation4 + $0xf0] sm:$0xff]
        %v2110 = vld [vmem:[#allocation4 + $0xf8] sm:$0xff]
        %2112 = vset.pattern.permute.xlu0 0
        %2113 = vperm.xlu0 %2112, %v1439
        %v2114 = vpop.permute.xlu0 %2113
        %2117 = vset.pattern.permute.xlu0 0
        %2118 = vperm.xlu0 %2117, %v1441
        %v2119 = vpop.permute.xlu0 %2118
        %2122 = vset.pattern.permute.xlu0 0
        %2123 = vperm.xlu0 %2122, %v1443
        %v2124 = vpop.permute.xlu0 %2123
        %2127 = vset.pattern.permute.xlu0 0
        %2128 = vperm.xlu0 %2127, %v1445
        %v2129 = vpop.permute.xlu0 %2128
        %2132 = vset.pattern.permute.xlu0 0
        %2133 = vperm.xlu0 %2132, %v1447
        %v2134 = vpop.permute.xlu0 %2133
        %2137 = vset.pattern.permute.xlu0 0
        %2138 = vperm.xlu0 %2137, %v1449
        %v2139 = vpop.permute.xlu0 %2138
        %2142 = vset.pattern.permute.xlu0 0
        %2143 = vperm.xlu0 %2142, %v1451
        %v2144 = vpop.permute.xlu0 %2143
        %2147 = vset.pattern.permute.xlu0 0
        %2148 = vperm.xlu0 %2147, %v1453
        %v2149 = vpop.permute.xlu0 %2148
        %2152 = vset.pattern.permute.xlu0 0
        %2153 = vperm.xlu0 %2152, %v1455
        %v2154 = vpop.permute.xlu0 %2153
        %2157 = vset.pattern.permute.xlu0 0
        %2158 = vperm.xlu0 %2157, %v1457
        %v2159 = vpop.permute.xlu0 %2158
        %2162 = vset.pattern.permute.xlu0 0
        %2163 = vperm.xlu0 %2162, %v1459
        %v2164 = vpop.permute.xlu0 %2163
        %2167 = vset.pattern.permute.xlu0 0
        %2168 = vperm.xlu0 %2167, %v1461
        %v2169 = vpop.permute.xlu0 %2168
        %2172 = vset.pattern.permute.xlu0 0
        %2173 = vperm.xlu0 %2172, %v1463
        %v2174 = vpop.permute.xlu0 %2173
        %2177 = vset.pattern.permute.xlu0 0
        %2178 = vperm.xlu0 %2177, %v1465
        %v2179 = vpop.permute.xlu0 %2178
        %2182 = vset.pattern.permute.xlu0 0
        %2183 = vperm.xlu0 %2182, %v1467
        %v2184 = vpop.permute.xlu0 %2183
        %2187 = vset.pattern.permute.xlu0 0
        %2188 = vperm.xlu0 %2187, %v1469
        %v2189 = vpop.permute.xlu0 %2188
        %2192 = vset.pattern.permute.xlu0 0
        %2193 = vperm.xlu0 %2192, %v1471
        %v2194 = vpop.permute.xlu0 %2193
        %2197 = vset.pattern.permute.xlu0 0
        %2198 = vperm.xlu0 %2197, %v1473
        %v2199 = vpop.permute.xlu0 %2198
        %2202 = vset.pattern.permute.xlu0 0
        %2203 = vperm.xlu0 %2202, %v1475
        %v2204 = vpop.permute.xlu0 %2203
        %2207 = vset.pattern.permute.xlu0 0
        %2208 = vperm.xlu0 %2207, %v1477
        %v2209 = vpop.permute.xlu0 %2208
        %2212 = vset.pattern.permute.xlu0 0
        %2213 = vperm.xlu0 %2212, %v1479
        %v2214 = vpop.permute.xlu0 %2213
        %2217 = vset.pattern.permute.xlu0 0
        %2218 = vperm.xlu0 %2217, %v1481
        %v2219 = vpop.permute.xlu0 %2218
        %2222 = vset.pattern.permute.xlu0 0
        %2223 = vperm.xlu0 %2222, %v1483
        %v2224 = vpop.permute.xlu0 %2223
        %2227 = vset.pattern.permute.xlu0 0
        %2228 = vperm.xlu0 %2227, %v1485
        %v2229 = vpop.permute.xlu0 %2228
        %2232 = vset.pattern.permute.xlu0 0
        %2233 = vperm.xlu0 %2232, %v1487
        %v2234 = vpop.permute.xlu0 %2233
        %2237 = vset.pattern.permute.xlu0 0
        %2238 = vperm.xlu0 %2237, %v1489
        %v2239 = vpop.permute.xlu0 %2238
        %2242 = vset.pattern.permute.xlu0 0
        %2243 = vperm.xlu0 %2242, %v1491
        %v2244 = vpop.permute.xlu0 %2243
        %2247 = vset.pattern.permute.xlu0 0
        %2248 = vperm.xlu0 %2247, %v1493
        %v2249 = vpop.permute.xlu0 %2248
        %2252 = vset.pattern.permute.xlu0 0
        %2253 = vperm.xlu0 %2252, %v1495
        %v2254 = vpop.permute.xlu0 %2253
        %2257 = vset.pattern.permute.xlu0 0
        %2258 = vperm.xlu0 %2257, %v1497
        %v2259 = vpop.permute.xlu0 %2258
        %2262 = vset.pattern.permute.xlu0 0
        %2263 = vperm.xlu0 %2262, %v1499
        %v2264 = vpop.permute.xlu0 %2263
        %2267 = vset.pattern.permute.xlu0 0
        %2268 = vperm.xlu0 %2267, %v1501
        %v2269 = vpop.permute.xlu0 %2268
        %v2271 = vmul.f32 %v2114, %v2079
        %v2272 = vmul.f32 %v2119, %v2080
        %v2273 = vmul.f32 %v2124, %v2081
        %v2274 = vmul.f32 %v2129, %v2082
        %v2275 = vmul.f32 %v2134, %v2083
        %v2276 = vmul.f32 %v2139, %v2084
        %v2277 = vmul.f32 %v2144, %v2085
        %v2278 = vmul.f32 %v2149, %v2086
        %v2279 = vmul.f32 %v2154, %v2087
        %v2280 = vmul.f32 %v2159, %v2088
        %v2281 = vmul.f32 %v2164, %v2089
        %v2282 = vmul.f32 %v2169, %v2090
        %v2283 = vmul.f32 %v2174, %v2091
        %v2284 = vmul.f32 %v2179, %v2092
        %v2285 = vmul.f32 %v2184, %v2093
        %v2286 = vmul.f32 %v2189, %v2094
        %v2287 = vmul.f32 %v2194, %v2095
        %v2288 = vmul.f32 %v2199, %v2096
        %v2289 = vmul.f32 %v2204, %v2097
        %v2290 = vmul.f32 %v2209, %v2098
        %v2291 = vmul.f32 %v2214, %v2099
        %v2292 = vmul.f32 %v2219, %v2100
        %v2293 = vmul.f32 %v2224, %v2101
        %v2294 = vmul.f32 %v2229, %v2102
        %v2295 = vmul.f32 %v2234, %v2103
        %v2296 = vmul.f32 %v2239, %v2104
        %v2297 = vmul.f32 %v2244, %v2105
        %v2298 = vmul.f32 %v2249, %v2106
        %v2299 = vmul.f32 %v2254, %v2107
        %v2300 = vmul.f32 %v2259, %v2108
        %v2301 = vmul.f32 %v2264, %v2109
        %v2302 = vmul.f32 %v2269, %v2110
        %2303 = vmatprep.subr.mxu0 0.0
        %2304 = vmatpush1.msra.mxu0 %v957
        %2305 = vmatprep.subr.mxu0 0.0
        %2306 = vmatpush1.msra.mxu0 %v958
        %2307 = vmatprep.subr.mxu0 0.0
        %2308 = vmatpush1.msra.mxu0 %v959
        %2309 = vmatprep.subr.mxu0 0.0
        %2310 = vmatpush1.msra.mxu0 %v960
        %2311 = vmatprep.subr.mxu0 0.0
        %2312 = vmatpush1.msra.mxu0 %v961
        %2313 = vmatprep.subr.mxu0 0.0
        %2314 = vmatpush1.msra.mxu0 %v962
        %2315 = vmatprep.subr.mxu0 0.0
        %2316 = vmatpush1.msra.mxu0 %v963
        %2317 = vmatprep.subr.mxu0 0.0
        %2318 = vmatpush1.msra.mxu0 %v964
        %2319 = vmatprep.subr.mxu0 0.0
        %2320 = vmatpush1.msra.mxu0 %v965
        %2321 = vmatprep.subr.mxu0 0.0
        %2322 = vmatpush1.msra.mxu0 %v966
        %2323 = vmatprep.subr.mxu0 0.0
        %2324 = vmatpush1.msra.mxu0 %v967
        %2325 = vmatprep.subr.mxu0 0.0
        %2326 = vmatpush1.msra.mxu0 %v968
        %2327 = vmatprep.subr.mxu0 0.0
        %2328 = vmatpush1.msra.mxu0 %v969
        %2329 = vmatprep.subr.mxu0 0.0
        %2330 = vmatpush1.msra.mxu0 %v970
        %2331 = vmatprep.subr.mxu0 0.0
        %2332 = vmatpush1.msra.mxu0 %v971
        %2333 = vmatprep.subr.mxu0 0.0
        %2334 = vmatpush1.msra.mxu0 %v972
        %2335 = vmatprep.subr.mxu0 0.0
        %2336 = vmatpush1.msra.mxu0 %v973
        %2337 = vmatprep.subr.mxu0 0.0
        %2338 = vmatpush1.msra.mxu0 %v974
        %2339 = vmatprep.subr.mxu0 0.0
        %2340 = vmatpush1.msra.mxu0 %v975
        %2341 = vmatprep.subr.mxu0 0.0
        %2342 = vmatpush1.msra.mxu0 %v976
        %2343 = vmatprep.subr.mxu0 0.0
        %2344 = vmatpush1.msra.mxu0 %v977
        %2345 = vmatprep.subr.mxu0 0.0
        %2346 = vmatpush1.msra.mxu0 %v978
        %2347 = vmatprep.subr.mxu0 0.0
        %2348 = vmatpush1.msra.mxu0 %v979
        %2349 = vmatprep.subr.mxu0 0.0
        %2350 = vmatpush1.msra.mxu0 %v980
        %2351 = vmatprep.subr.mxu0 0.0
        %2352 = vmatpush1.msra.mxu0 %v981
        %2353 = vmatprep.subr.mxu0 0.0
        %2354 = vmatpush1.msra.mxu0 %v982
        %2355 = vmatprep.subr.mxu0 0.0
        %2356 = vmatpush1.msra.mxu0 %v983
        %2357 = vmatprep.subr.mxu0 0.0
        %2358 = vmatpush1.msra.mxu0 %v984
        %2359 = vmatprep.subr.mxu0 0.0
        %2360 = vmatpush1.msra.mxu0 %v985
        %2361 = vmatprep.subr.mxu0 0.0
        %2362 = vmatpush1.msra.mxu0 %v986
        %2363 = vmatprep.subr.mxu0 0.0
        %2364 = vmatpush1.msra.mxu0 %v987
        %2365 = vmatprep.subr.mxu0 0.0
        %2366 = vmatpush1.msra.mxu0 %v988
        %2367 = vmatprep.mubr.f32.mxu0 %v1729
        %2368 = vmatmul.mubr.f32.gmra.mrb[0].mxu0 %v1727
        %v2369 = vpop.f32.mrb[0].mxu0
        %v2370 = vadd.f32 0.0, %v2369
        %v2371 = vpop.f32.mrb[0].mxu0
        %2372 = vmatprep.mubr.f32.mxu0 %v1733
        %2373 = vmatmul.mubr.f32.gmra.mrb[0].mxu0 %v1731
        %v2374 = vpop.f32.mrb[0].mxu0
        %v2375 = vadd.f32 0.0, %v2374
        %v2376 = vpop.f32.mrb[0].mxu0
        %2377 = vmatprep.mubr.f32.mxu0 %v1737
        %2378 = vmatmul.mubr.f32.gmra.mrb[0].mxu0 %v1735
        %v2379 = vpop.f32.mrb[0].mxu0
        %v2380 = vadd.f32 0.0, %v2379
        %v2381 = vpop.f32.mrb[0].mxu0
        %2382 = vmatprep.mubr.f32.mxu0 %v1741
        %2383 = vmatmul.mubr.f32.gmra.mrb[0].mxu0 %v1739
        %v2384 = vpop.f32.mrb[0].mxu0
        %v2385 = vadd.f32 0.0, %v2384
        %v2386 = vpop.f32.mrb[0].mxu0
        %2387 = vmatprep.mubr.f32.mxu0 %v1745
        %2388 = vmatmul.mubr.f32.gmra.mrb[0].mxu0 %v1743
        %v2389 = vpop.f32.mrb[0].mxu0
        %v2390 = vadd.f32 0.0, %v2389
        %v2391 = vpop.f32.mrb[0].mxu0
        %2392 = vmatprep.mubr.f32.mxu0 %v1749
        %2393 = vmatmul.mubr.f32.gmra.mrb[0].mxu0 %v1747
        %v2394 = vpop.f32.mrb[0].mxu0
        %v2395 = vadd.f32 0.0, %v2394
        %v2396 = vpop.f32.mrb[0].mxu0
        %2397 = vmatprep.mubr.f32.mxu0 %v1753
        %2398 = vmatmul.mubr.f32.gmra.mrb[0].mxu0 %v1751
        %v2399 = vpop.f32.mrb[0].mxu0
        %v2400 = vadd.f32 0.0, %v2399
        %v2401 = vpop.f32.mrb[0].mxu0
        %2402 = vmatprep.mubr.f32.mxu0 %v1757
        %2403 = vmatmul.mubr.f32.gmra.mrb[0].mxu0 %v1755
        %v2404 = vpop.f32.mrb[0].mxu0
        %v2405 = vadd.f32 0.0, %v2404
        %v2406 = vpop.f32.mrb[0].mxu0
        %2407 = vmatprep.mubr.f32.mxu0 %v1761
        %2408 = vmatmul.mubr.f32.gmra.mrb[0].mxu0 %v1759
        %v2409 = vpop.f32.mrb[0].mxu0
        %v2410 = vadd.f32 0.0, %v2409
        %v2411 = vpop.f32.mrb[0].mxu0
        %2412 = vmatprep.mubr.f32.mxu0 %v1765
        %2413 = vmatmul.mubr.f32.gmra.mrb[0].mxu0 %v1763
        %v2414 = vpop.f32.mrb[0].mxu0
        %v2415 = vadd.f32 0.0, %v2414
        %v2416 = vpop.f32.mrb[0].mxu0
        %2417 = vmatprep.mubr.f32.mxu0 %v1769
        %2418 = vmatmul.mubr.f32.gmra.mrb[0].mxu0 %v1767
        %v2419 = vpop.f32.mrb[0].mxu0
        %v2420 = vadd.f32 0.0, %v2419
        %v2421 = vpop.f32.mrb[0].mxu0
        %2422 = vmatprep.mubr.f32.mxu0 %v1773
        %2423 = vmatmul.mubr.f32.gmra.mrb[0].mxu0 %v1771
        %v2424 = vpop.f32.mrb[0].mxu0
        %v2425 = vadd.f32 0.0, %v2424
        %v2426 = vpop.f32.mrb[0].mxu0
        %2427 = vmatprep.mubr.f32.mxu0 %v1777
        %2428 = vmatmul.mubr.f32.gmra.mrb[0].mxu0 %v1775
        %v2429 = vpop.f32.mrb[0].mxu0
        %v2430 = vadd.f32 0.0, %v2429
        %v2431 = vpop.f32.mrb[0].mxu0
        %2432 = vmatprep.mubr.f32.mxu0 %v1781
        %2433 = vmatmul.mubr.f32.gmra.mrb[0].mxu0 %v1779
        %v2434 = vpop.f32.mrb[0].mxu0
        %v2435 = vadd.f32 0.0, %v2434
        %v2436 = vpop.f32.mrb[0].mxu0
        %2437 = vmatprep.mubr.f32.mxu0 %v1785
        %2438 = vmatmul.mubr.f32.gmra.mrb[0].mxu0 %v1783
        %v2439 = vpop.f32.mrb[0].mxu0
        %v2440 = vadd.f32 0.0, %v2439
        %v2441 = vpop.f32.mrb[0].mxu0
        %2442 = vmatprep.mubr.f32.mxu0 %v1789
        %2443 = vmatmul.mubr.f32.gmra.mrb[0].mxu0 %v1787
        %v2444 = vpop.f32.mrb[0].mxu0
        %v2445 = vadd.f32 0.0, %v2444
        %v2446 = vpop.f32.mrb[0].mxu0
        %2447 = vmatprep.mubr.f32.mxu0 %v1793
        %2448 = vmatmul.mubr.f32.gmra.mrb[0].mxu0 %v1791
        %v2449 = vpop.f32.mrb[0].mxu0
        %v2450 = vadd.f32 0.0, %v2449
        %v2451 = vpop.f32.mrb[0].mxu0
        %2452 = vmatprep.mubr.f32.mxu0 %v1797
        %2453 = vmatmul.mubr.f32.gmra.mrb[0].mxu0 %v1795
        %v2454 = vpop.f32.mrb[0].mxu0
        %v2455 = vadd.f32 0.0, %v2454
        %v2456 = vpop.f32.mrb[0].mxu0
        %2457 = vmatprep.mubr.f32.mxu0 %v1801
        %2458 = vmatmul.mubr.f32.gmra.mrb[0].mxu0 %v1799
        %v2459 = vpop.f32.mrb[0].mxu0
        %v2460 = vadd.f32 0.0, %v2459
        %v2461 = vpop.f32.mrb[0].mxu0
        %2462 = vmatprep.mubr.f32.mxu0 %v1805
        %2463 = vmatmul.mubr.f32.gmra.mrb[0].mxu0 %v1803
        %v2464 = vpop.f32.mrb[0].mxu0
        %v2465 = vadd.f32 0.0, %v2464
        %v2466 = vpop.f32.mrb[0].mxu0
        %2467 = vmatprep.mubr.f32.mxu0 %v1809
        %2468 = vmatmul.mubr.f32.gmra.mrb[0].mxu0 %v1807
        %v2469 = vpop.f32.mrb[0].mxu0
        %v2470 = vadd.f32 0.0, %v2469
        %v2471 = vpop.f32.mrb[0].mxu0
        %2472 = vmatprep.mubr.f32.mxu0 %v1813
        %2473 = vmatmul.mubr.f32.gmra.mrb[0].mxu0 %v1811
        %v2474 = vpop.f32.mrb[0].mxu0
        %v2475 = vadd.f32 0.0, %v2474
        %v2476 = vpop.f32.mrb[0].mxu0
        %2477 = vmatprep.mubr.f32.mxu0 %v1817
        %2478 = vmatmul.mubr.f32.gmra.mrb[0].mxu0 %v1815
        %v2479 = vpop.f32.mrb[0].mxu0
        %v2480 = vadd.f32 0.0, %v2479
        %v2481 = vpop.f32.mrb[0].mxu0
        %2482 = vmatprep.mubr.f32.mxu0 %v1821
        %2483 = vmatmul.mubr.f32.gmra.mrb[0].mxu0 %v1819
        %v2484 = vpop.f32.mrb[0].mxu0
        %v2485 = vadd.f32 0.0, %v2484
        %v2486 = vpop.f32.mrb[0].mxu0
        %2487 = vmatprep.mubr.f32.mxu0 %v1825
        %2488 = vmatmul.mubr.f32.gmra.mrb[0].mxu0 %v1823
        %v2489 = vpop.f32.mrb[0].mxu0
        %v2490 = vadd.f32 0.0, %v2489
        %v2491 = vpop.f32.mrb[0].mxu0
        %2492 = vmatprep.mubr.f32.mxu0 %v1829
        %2493 = vmatmul.mubr.f32.gmra.mrb[0].mxu0 %v1827
        %v2494 = vpop.f32.mrb[0].mxu0
        %v2495 = vadd.f32 0.0, %v2494
        %v2496 = vpop.f32.mrb[0].mxu0
        %2497 = vmatprep.mubr.f32.mxu0 %v1833
        %2498 = vmatmul.mubr.f32.gmra.mrb[0].mxu0 %v1831
        %v2499 = vpop.f32.mrb[0].mxu0
        %v2500 = vadd.f32 0.0, %v2499
        %v2501 = vpop.f32.mrb[0].mxu0
        %2502 = vmatprep.mubr.f32.mxu0 %v1837
        %2503 = vmatmul.mubr.f32.gmra.mrb[0].mxu0 %v1835
        %v2504 = vpop.f32.mrb[0].mxu0
        %v2505 = vadd.f32 0.0, %v2504
        %v2506 = vpop.f32.mrb[0].mxu0
        %2507 = vmatprep.mubr.f32.mxu0 %v1841
        %2508 = vmatmul.mubr.f32.gmra.mrb[0].mxu0 %v1839
        %v2509 = vpop.f32.mrb[0].mxu0
        %v2510 = vadd.f32 0.0, %v2509
        %v2511 = vpop.f32.mrb[0].mxu0
        %2512 = vmatprep.mubr.f32.mxu0 %v1845
        %2513 = vmatmul.mubr.f32.gmra.mrb[0].mxu0 %v1843
        %v2514 = vpop.f32.mrb[0].mxu0
        %v2515 = vadd.f32 0.0, %v2514
        %v2516 = vpop.f32.mrb[0].mxu0
        %2517 = vmatprep.mubr.f32.mxu0 %v1849
        %2518 = vmatmul.mubr.f32.gmra.mrb[0].mxu0 %v1847
        %v2519 = vpop.f32.mrb[0].mxu0
        %v2520 = vadd.f32 0.0, %v2519
        %v2521 = vpop.f32.mrb[0].mxu0
        %2522 = vmatprep.mubr.f32.mxu0 %v1853
        %2523 = vmatmul.mubr.f32.gmra.mrb[0].mxu0 %v1851
        %v2524 = vpop.f32.mrb[0].mxu0
        %v2525 = vadd.f32 0.0, %v2524
        %v2526 = vpop.f32.mrb[0].mxu0
        %2527 = vdwg.mxu0
        %v2528 = vadd.f32 %v2271, %v2370
        %v2529 = vadd.f32 %v2272, %v2375
        %v2530 = vadd.f32 %v2273, %v2380
        %v2531 = vadd.f32 %v2274, %v2385
        %v2532 = vadd.f32 %v2275, %v2390
        %v2533 = vadd.f32 %v2276, %v2395
        %v2534 = vadd.f32 %v2277, %v2400
        %v2535 = vadd.f32 %v2278, %v2405
        %v2536 = vadd.f32 %v2279, %v2410
        %v2537 = vadd.f32 %v2280, %v2415
        %v2538 = vadd.f32 %v2281, %v2420
        %v2539 = vadd.f32 %v2282, %v2425
        %v2540 = vadd.f32 %v2283, %v2430
        %v2541 = vadd.f32 %v2284, %v2435
        %v2542 = vadd.f32 %v2285, %v2440
        %v2543 = vadd.f32 %v2286, %v2445
        %v2544 = vadd.f32 %v2287, %v2450
        %v2545 = vadd.f32 %v2288, %v2455
        %v2546 = vadd.f32 %v2289, %v2460
        %v2547 = vadd.f32 %v2290, %v2465
        %v2548 = vadd.f32 %v2291, %v2470
        %v2549 = vadd.f32 %v2292, %v2475
        %v2550 = vadd.f32 %v2293, %v2480
        %v2551 = vadd.f32 %v2294, %v2485
        %v2552 = vadd.f32 %v2295, %v2490
        %v2553 = vadd.f32 %v2296, %v2495
        %v2554 = vadd.f32 %v2297, %v2500
        %v2555 = vadd.f32 %v2298, %v2505
        %v2556 = vadd.f32 %v2299, %v2510
        %v2557 = vadd.f32 %v2300, %v2515
        %v2558 = vadd.f32 %v2301, %v2520
        %v2559 = vadd.f32 %v2302, %v2525
        %2560 = vst [vmem:[#allocation4] sm:$0xff] %v2528
        %2561 = vst [vmem:[#allocation4 + $0x8] sm:$0xff] %v2529
        %2562 = vst [vmem:[#allocation4 + $0x10] sm:$0xff] %v2530
        %2563 = vst [vmem:[#allocation4 + $0x18] sm:$0xff] %v2531
        %2564 = vst [vmem:[#allocation4 + $0x20] sm:$0xff] %v2532
        %2565 = vst [vmem:[#allocation4 + $0x28] sm:$0xff] %v2533
        %2566 = vst [vmem:[#allocation4 + $0x30] sm:$0xff] %v2534
        %2567 = vst [vmem:[#allocation4 + $0x38] sm:$0xff] %v2535
        %2568 = vst [vmem:[#allocation4 + $0x40] sm:$0xff] %v2536
        %2569 = vst [vmem:[#allocation4 + $0x48] sm:$0xff] %v2537
        %2570 = vst [vmem:[#allocation4 + $0x50] sm:$0xff] %v2538
        %2571 = vst [vmem:[#allocation4 + $0x58] sm:$0xff] %v2539
        %2572 = vst [vmem:[#allocation4 + $0x60] sm:$0xff] %v2540
        %2573 = vst [vmem:[#allocation4 + $0x68] sm:$0xff] %v2541
        %2574 = vst [vmem:[#allocation4 + $0x70] sm:$0xff] %v2542
        %2575 = vst [vmem:[#allocation4 + $0x78] sm:$0xff] %v2543
        %2576 = vst [vmem:[#allocation4 + $0x80] sm:$0xff] %v2544
        %2577 = vst [vmem:[#allocation4 + $0x88] sm:$0xff] %v2545
        %2578 = vst [vmem:[#allocation4 + $0x90] sm:$0xff] %v2546
        %2579 = vst [vmem:[#allocation4 + $0x98] sm:$0xff] %v2547
        %2580 = vst [vmem:[#allocation4 + $0xa0] sm:$0xff] %v2548
        %2581 = vst [vmem:[#allocation4 + $0xa8] sm:$0xff] %v2549
        %2582 = vst [vmem:[#allocation4 + $0xb0] sm:$0xff] %v2550
        %2583 = vst [vmem:[#allocation4 + $0xb8] sm:$0xff] %v2551
        %2584 = vst [vmem:[#allocation4 + $0xc0] sm:$0xff] %v2552
        %2585 = vst [vmem:[#allocation4 + $0xc8] sm:$0xff] %v2553
        %2586 = vst [vmem:[#allocation4 + $0xd0] sm:$0xff] %v2554
        %2587 = vst [vmem:[#allocation4 + $0xd8] sm:$0xff] %v2555
        %2588 = vst [vmem:[#allocation4 + $0xe0] sm:$0xff] %v2556
        %2589 = vst [vmem:[#allocation4 + $0xe8] sm:$0xff] %v2557
        %2590 = vst [vmem:[#allocation4 + $0xf0] sm:$0xff] %v2558
        %2591 = vst [vmem:[#allocation4 + $0xf8] sm:$0xff] %v2559
        %2592 = vst.msk [vmem:[#allocation2] sm:$0xff] %vm2046, %v1374
        %2593 = vst.msk [vmem:[#allocation2 + $0x8] sm:$0xff] %vm2046, %v1375
        %2594 = vst.msk [vmem:[#allocation2 + $0x10] sm:$0xff] %vm2046, %v1376
        %2595 = vst.msk [vmem:[#allocation2 + $0x18] sm:$0xff] %vm2046, %v1377
        %2596 = vst.msk [vmem:[#allocation2 + $0x20] sm:$0xff] %vm2046, %v1378
        %2597 = vst.msk [vmem:[#allocation2 + $0x28] sm:$0xff] %vm2046, %v1379
        %2598 = vst.msk [vmem:[#allocation2 + $0x30] sm:$0xff] %vm2046, %v1380
        %2599 = vst.msk [vmem:[#allocation2 + $0x38] sm:$0xff] %vm2046, %v1381
        %2600 = vst.msk [vmem:[#allocation2 + $0x40] sm:$0xff] %vm2046, %v1382
        %2601 = vst.msk [vmem:[#allocation2 + $0x48] sm:$0xff] %vm2046, %v1383
        %2602 = vst.msk [vmem:[#allocation2 + $0x50] sm:$0xff] %vm2046, %v1384
        %2603 = vst.msk [vmem:[#allocation2 + $0x58] sm:$0xff] %vm2046, %v1385
        %2604 = vst.msk [vmem:[#allocation2 + $0x60] sm:$0xff] %vm2046, %v1386
        %2605 = vst.msk [vmem:[#allocation2 + $0x68] sm:$0xff] %vm2046, %v1387
        %2606 = vst.msk [vmem:[#allocation2 + $0x70] sm:$0xff] %vm2046, %v1388
        %2607 = vst.msk [vmem:[#allocation2 + $0x78] sm:$0xff] %vm2046, %v1389
        %2608 = vst.msk [vmem:[#allocation2 + $0x80] sm:$0xff] %vm2046, %v1390
        %2609 = vst.msk [vmem:[#allocation2 + $0x88] sm:$0xff] %vm2046, %v1391
        %2610 = vst.msk [vmem:[#allocation2 + $0x90] sm:$0xff] %vm2046, %v1392
        %2611 = vst.msk [vmem:[#allocation2 + $0x98] sm:$0xff] %vm2046, %v1393
        %2612 = vst.msk [vmem:[#allocation2 + $0xa0] sm:$0xff] %vm2046, %v1394
        %2613 = vst.msk [vmem:[#allocation2 + $0xa8] sm:$0xff] %vm2046, %v1395
        %2614 = vst.msk [vmem:[#allocation2 + $0xb0] sm:$0xff] %vm2046, %v1396
        %2615 = vst.msk [vmem:[#allocation2 + $0xb8] sm:$0xff] %vm2046, %v1397
        %2616 = vst.msk [vmem:[#allocation2 + $0xc0] sm:$0xff] %vm2046, %v1398
        %2617 = vst.msk [vmem:[#allocation2 + $0xc8] sm:$0xff] %vm2046, %v1399
        %2618 = vst.msk [vmem:[#allocation2 + $0xd0] sm:$0xff] %vm2046, %v1400
        %2619 = vst.msk [vmem:[#allocation2 + $0xd8] sm:$0xff] %vm2046, %v1401
        %2620 = vst.msk [vmem:[#allocation2 + $0xe0] sm:$0xff] %vm2046, %v1402
        %2621 = vst.msk [vmem:[#allocation2 + $0xe8] sm:$0xff] %vm2046, %v1403
        %2622 = vst.msk [vmem:[#allocation2 + $0xf0] sm:$0xff] %vm2046, %v1404
        %2623 = vst.msk [vmem:[#allocation2 + $0xf8] sm:$0xff] %vm2046, %v1405
        // Predicated region
        $region151: #{attention_forward.4} parent=133 // pred_check
          %p2624 = pneg %p760
        $region152: #{attention_forward.4} parent=133 // pred_check_branch
          %2626 = sbr.rel (%p2624) target = $region154
        $region153: #{attention_forward.4} parent=133 // pred_region
          %v2627 = vld [vmem:[#allocation4] sm:$0xff]
          %v2628 = vld [vmem:[#allocation4 + $0x8] sm:$0xff]
          %v2629 = vld [vmem:[#allocation4 + $0x10] sm:$0xff]
          %v2630 = vld [vmem:[#allocation4 + $0x18] sm:$0xff]
          %v2631 = vld [vmem:[#allocation4 + $0x20] sm:$0xff]
          %v2632 = vld [vmem:[#allocation4 + $0x28] sm:$0xff]
          %v2633 = vld [vmem:[#allocation4 + $0x30] sm:$0xff]
          %v2634 = vld [vmem:[#allocation4 + $0x38] sm:$0xff]
          %v2635 = vld [vmem:[#allocation4 + $0x40] sm:$0xff]
          %v2636 = vld [vmem:[#allocation4 + $0x48] sm:$0xff]
          %v2637 = vld [vmem:[#allocation4 + $0x50] sm:$0xff]
          %v2638 = vld [vmem:[#allocation4 + $0x58] sm:$0xff]
          %v2639 = vld [vmem:[#allocation4 + $0x60] sm:$0xff]
          %v2640 = vld [vmem:[#allocation4 + $0x68] sm:$0xff]
          %v2641 = vld [vmem:[#allocation4 + $0x70] sm:$0xff]
          %v2642 = vld [vmem:[#allocation4 + $0x78] sm:$0xff]
          %v2643 = vld [vmem:[#allocation4 + $0x80] sm:$0xff]
          %v2644 = vld [vmem:[#allocation4 + $0x88] sm:$0xff]
          %v2645 = vld [vmem:[#allocation4 + $0x90] sm:$0xff]
          %v2646 = vld [vmem:[#allocation4 + $0x98] sm:$0xff]
          %v2647 = vld [vmem:[#allocation4 + $0xa0] sm:$0xff]
          %v2648 = vld [vmem:[#allocation4 + $0xa8] sm:$0xff]
          %v2649 = vld [vmem:[#allocation4 + $0xb0] sm:$0xff]
          %v2650 = vld [vmem:[#allocation4 + $0xb8] sm:$0xff]
          %v2651 = vld [vmem:[#allocation4 + $0xc0] sm:$0xff]
          %v2652 = vld [vmem:[#allocation4 + $0xc8] sm:$0xff]
          %v2653 = vld [vmem:[#allocation4 + $0xd0] sm:$0xff]
          %v2654 = vld [vmem:[#allocation4 + $0xd8] sm:$0xff]
          %v2655 = vld [vmem:[#allocation4 + $0xe0] sm:$0xff]
          %v2656 = vld [vmem:[#allocation4 + $0xe8] sm:$0xff]
          %v2657 = vld [vmem:[#allocation4 + $0xf0] sm:$0xff]
          %v2658 = vld [vmem:[#allocation4 + $0xf8] sm:$0xff]
          %v2659 = vld [vmem:[#allocation3] sm:$0xff]
          %v2660 = vld [vmem:[#allocation3 + $0x8] sm:$0xff]
          %v2661 = vld [vmem:[#allocation3 + $0x10] sm:$0xff]
          %v2662 = vld [vmem:[#allocation3 + $0x18] sm:$0xff]
          %v2663 = vld [vmem:[#allocation3 + $0x20] sm:$0xff]
          %v2664 = vld [vmem:[#allocation3 + $0x28] sm:$0xff]
          %v2665 = vld [vmem:[#allocation3 + $0x30] sm:$0xff]
          %v2666 = vld [vmem:[#allocation3 + $0x38] sm:$0xff]
          %v2667 = vld [vmem:[#allocation3 + $0x40] sm:$0xff]
          %v2668 = vld [vmem:[#allocation3 + $0x48] sm:$0xff]
          %v2669 = vld [vmem:[#allocation3 + $0x50] sm:$0xff]
          %v2670 = vld [vmem:[#allocation3 + $0x58] sm:$0xff]
          %v2671 = vld [vmem:[#allocation3 + $0x60] sm:$0xff]
          %v2672 = vld [vmem:[#allocation3 + $0x68] sm:$0xff]
          %v2673 = vld [vmem:[#allocation3 + $0x70] sm:$0xff]
          %v2674 = vld [vmem:[#allocation3 + $0x78] sm:$0xff]
          %v2675 = vld [vmem:[#allocation3 + $0x80] sm:$0xff]
          %v2676 = vld [vmem:[#allocation3 + $0x88] sm:$0xff]
          %v2677 = vld [vmem:[#allocation3 + $0x90] sm:$0xff]
          %v2678 = vld [vmem:[#allocation3 + $0x98] sm:$0xff]
          %v2679 = vld [vmem:[#allocation3 + $0xa0] sm:$0xff]
          %v2680 = vld [vmem:[#allocation3 + $0xa8] sm:$0xff]
          %v2681 = vld [vmem:[#allocation3 + $0xb0] sm:$0xff]
          %v2682 = vld [vmem:[#allocation3 + $0xb8] sm:$0xff]
          %v2683 = vld [vmem:[#allocation3 + $0xc0] sm:$0xff]
          %v2684 = vld [vmem:[#allocation3 + $0xc8] sm:$0xff]
          %v2685 = vld [vmem:[#allocation3 + $0xd0] sm:$0xff]
          %v2686 = vld [vmem:[#allocation3 + $0xd8] sm:$0xff]
          %v2687 = vld [vmem:[#allocation3 + $0xe0] sm:$0xff]
          %v2688 = vld [vmem:[#allocation3 + $0xe8] sm:$0xff]
          %v2689 = vld [vmem:[#allocation3 + $0xf0] sm:$0xff]
          %v2690 = vld [vmem:[#allocation3 + $0xf8] sm:$0xff]
          %v2691 = vrcp.pop %v2659
          %v2692 = vrcp.pop %v2660
          %v2693 = vrcp.pop %v2661
          %v2694 = vrcp.pop %v2662
          %v2695 = vrcp.pop %v2663
          %v2696 = vrcp.pop %v2664
          %v2697 = vrcp.pop %v2665
          %v2698 = vrcp.pop %v2666
          %v2699 = vrcp.pop %v2667
          %v2700 = vrcp.pop %v2668
          %v2701 = vrcp.pop %v2669
          %v2702 = vrcp.pop %v2670
          %v2703 = vrcp.pop %v2671
          %v2704 = vrcp.pop %v2672
          %v2705 = vrcp.pop %v2673
          %v2706 = vrcp.pop %v2674
          %v2707 = vrcp.pop %v2675
          %v2708 = vrcp.pop %v2676
          %v2709 = vrcp.pop %v2677
          %v2710 = vrcp.pop %v2678
          %v2711 = vrcp.pop %v2679
          %v2712 = vrcp.pop %v2680
          %v2713 = vrcp.pop %v2681
          %v2714 = vrcp.pop %v2682
          %v2715 = vrcp.pop %v2683
          %v2716 = vrcp.pop %v2684
          %v2717 = vrcp.pop %v2685
          %v2718 = vrcp.pop %v2686
          %v2719 = vrcp.pop %v2687
          %v2720 = vrcp.pop %v2688
          %v2721 = vrcp.pop %v2689
          %v2722 = vrcp.pop %v2690
          %2724 = vset.pattern.permute.xlu0 0
          %2725 = vperm.xlu0 %2724, %v2691
          %v2726 = vpop.permute.xlu0 %2725
          %2729 = vset.pattern.permute.xlu0 0
          %2730 = vperm.xlu0 %2729, %v2692
          %v2731 = vpop.permute.xlu0 %2730
          %2734 = vset.pattern.permute.xlu0 0
          %2735 = vperm.xlu0 %2734, %v2693
          %v2736 = vpop.permute.xlu0 %2735
          %2739 = vset.pattern.permute.xlu0 0
          %2740 = vperm.xlu0 %2739, %v2694
          %v2741 = vpop.permute.xlu0 %2740
          %2744 = vset.pattern.permute.xlu0 0
          %2745 = vperm.xlu0 %2744, %v2695
          %v2746 = vpop.permute.xlu0 %2745
          %2749 = vset.pattern.permute.xlu0 0
          %2750 = vperm.xlu0 %2749, %v2696
          %v2751 = vpop.permute.xlu0 %2750
          %2754 = vset.pattern.permute.xlu0 0
          %2755 = vperm.xlu0 %2754, %v2697
          %v2756 = vpop.permute.xlu0 %2755
          %2759 = vset.pattern.permute.xlu0 0
          %2760 = vperm.xlu0 %2759, %v2698
          %v2761 = vpop.permute.xlu0 %2760
          %2764 = vset.pattern.permute.xlu0 0
          %2765 = vperm.xlu0 %2764, %v2699
          %v2766 = vpop.permute.xlu0 %2765
          %2769 = vset.pattern.permute.xlu0 0
          %2770 = vperm.xlu0 %2769, %v2700
          %v2771 = vpop.permute.xlu0 %2770
          %2774 = vset.pattern.permute.xlu0 0
          %2775 = vperm.xlu0 %2774, %v2701
          %v2776 = vpop.permute.xlu0 %2775
          %2779 = vset.pattern.permute.xlu0 0
          %2780 = vperm.xlu0 %2779, %v2702
          %v2781 = vpop.permute.xlu0 %2780
          %2784 = vset.pattern.permute.xlu0 0
          %2785 = vperm.xlu0 %2784, %v2703
          %v2786 = vpop.permute.xlu0 %2785
          %2789 = vset.pattern.permute.xlu0 0
          %2790 = vperm.xlu0 %2789, %v2704
          %v2791 = vpop.permute.xlu0 %2790
          %2794 = vset.pattern.permute.xlu0 0
          %2795 = vperm.xlu0 %2794, %v2705
          %v2796 = vpop.permute.xlu0 %2795
          %2799 = vset.pattern.permute.xlu0 0
          %2800 = vperm.xlu0 %2799, %v2706
          %v2801 = vpop.permute.xlu0 %2800
          %2804 = vset.pattern.permute.xlu0 0
          %2805 = vperm.xlu0 %2804, %v2707
          %v2806 = vpop.permute.xlu0 %2805
          %2809 = vset.pattern.permute.xlu0 0
          %2810 = vperm.xlu0 %2809, %v2708
          %v2811 = vpop.permute.xlu0 %2810
          %2814 = vset.pattern.permute.xlu0 0
          %2815 = vperm.xlu0 %2814, %v2709
          %v2816 = vpop.permute.xlu0 %2815
          %2819 = vset.pattern.permute.xlu0 0
          %2820 = vperm.xlu0 %2819, %v2710
          %v2821 = vpop.permute.xlu0 %2820
          %2824 = vset.pattern.permute.xlu0 0
          %2825 = vperm.xlu0 %2824, %v2711
          %v2826 = vpop.permute.xlu0 %2825
          %2829 = vset.pattern.permute.xlu0 0
          %2830 = vperm.xlu0 %2829, %v2712
          %v2831 = vpop.permute.xlu0 %2830
          %2834 = vset.pattern.permute.xlu0 0
          %2835 = vperm.xlu0 %2834, %v2713
          %v2836 = vpop.permute.xlu0 %2835
          %2839 = vset.pattern.permute.xlu0 0
          %2840 = vperm.xlu0 %2839, %v2714
          %v2841 = vpop.permute.xlu0 %2840
          %2844 = vset.pattern.permute.xlu0 0
          %2845 = vperm.xlu0 %2844, %v2715
          %v2846 = vpop.permute.xlu0 %2845
          %2849 = vset.pattern.permute.xlu0 0
          %2850 = vperm.xlu0 %2849, %v2716
          %v2851 = vpop.permute.xlu0 %2850
          %2854 = vset.pattern.permute.xlu0 0
          %2855 = vperm.xlu0 %2854, %v2717
          %v2856 = vpop.permute.xlu0 %2855
          %2859 = vset.pattern.permute.xlu0 0
          %2860 = vperm.xlu0 %2859, %v2718
          %v2861 = vpop.permute.xlu0 %2860
          %2864 = vset.pattern.permute.xlu0 0
          %2865 = vperm.xlu0 %2864, %v2719
          %v2866 = vpop.permute.xlu0 %2865
          %2869 = vset.pattern.permute.xlu0 0
          %2870 = vperm.xlu0 %2869, %v2720
          %v2871 = vpop.permute.xlu0 %2870
          %2874 = vset.pattern.permute.xlu0 0
          %2875 = vperm.xlu0 %2874, %v2721
          %v2876 = vpop.permute.xlu0 %2875
          %2879 = vset.pattern.permute.xlu0 0
          %2880 = vperm.xlu0 %2879, %v2722
          %v2881 = vpop.permute.xlu0 %2880
          %v2883 = vmul.f32 %v2627, %v2726
          %v2884 = vmul.f32 %v2628, %v2731
          %v2885 = vmul.f32 %v2629, %v2736
          %v2886 = vmul.f32 %v2630, %v2741
          %v2887 = vmul.f32 %v2631, %v2746
          %v2888 = vmul.f32 %v2632, %v2751
          %v2889 = vmul.f32 %v2633, %v2756
          %v2890 = vmul.f32 %v2634, %v2761
          %v2891 = vmul.f32 %v2635, %v2766
          %v2892 = vmul.f32 %v2636, %v2771
          %v2893 = vmul.f32 %v2637, %v2776
          %v2894 = vmul.f32 %v2638, %v2781
          %v2895 = vmul.f32 %v2639, %v2786
          %v2896 = vmul.f32 %v2640, %v2791
          %v2897 = vmul.f32 %v2641, %v2796
          %v2898 = vmul.f32 %v2642, %v2801
          %v2899 = vmul.f32 %v2643, %v2806
          %v2900 = vmul.f32 %v2644, %v2811
          %v2901 = vmul.f32 %v2645, %v2816
          %v2902 = vmul.f32 %v2646, %v2821
          %v2903 = vmul.f32 %v2647, %v2826
          %v2904 = vmul.f32 %v2648, %v2831
          %v2905 = vmul.f32 %v2649, %v2836
          %v2906 = vmul.f32 %v2650, %v2841
          %v2907 = vmul.f32 %v2651, %v2846
          %v2908 = vmul.f32 %v2652, %v2851
          %v2909 = vmul.f32 %v2653, %v2856
          %v2910 = vmul.f32 %v2654, %v2861
          %v2911 = vmul.f32 %v2655, %v2866
          %v2912 = vmul.f32 %v2656, %v2871
          %v2913 = vmul.f32 %v2657, %v2876
          %v2914 = vmul.f32 %v2658, %v2881
          %2915 = vst [vmem:[%s750] sm:$0xff] %v2883
          %2916 = vst [vmem:[%s750 + $0x8] sm:$0xff] %v2884
          %2917 = vst [vmem:[%s750 + $0x10] sm:$0xff] %v2885
          %2918 = vst [vmem:[%s750 + $0x18] sm:$0xff] %v2886
          %2919 = vst [vmem:[%s750 + $0x20] sm:$0xff] %v2887
          %2920 = vst [vmem:[%s750 + $0x28] sm:$0xff] %v2888
          %2921 = vst [vmem:[%s750 + $0x30] sm:$0xff] %v2889
          %2922 = vst [vmem:[%s750 + $0x38] sm:$0xff] %v2890
          %2923 = vst [vmem:[%s750 + $0x40] sm:$0xff] %v2891
          %2924 = vst [vmem:[%s750 + $0x48] sm:$0xff] %v2892
          %2925 = vst [vmem:[%s750 + $0x50] sm:$0xff] %v2893
          %2926 = vst [vmem:[%s750 + $0x58] sm:$0xff] %v2894
          %2927 = vst [vmem:[%s750 + $0x60] sm:$0xff] %v2895
          %2928 = vst [vmem:[%s750 + $0x68] sm:$0xff] %v2896
          %2929 = vst [vmem:[%s750 + $0x70] sm:$0xff] %v2897
          %2930 = vst [vmem:[%s750 + $0x78] sm:$0xff] %v2898
          %2931 = vst [vmem:[%s750 + $0x80] sm:$0xff] %v2899
          %2932 = vst [vmem:[%s750 + $0x88] sm:$0xff] %v2900
          %2933 = vst [vmem:[%s750 + $0x90] sm:$0xff] %v2901
          %2934 = vst [vmem:[%s750 + $0x98] sm:$0xff] %v2902
          %2935 = vst [vmem:[%s750 + $0xa0] sm:$0xff] %v2903
          %2936 = vst [vmem:[%s750 + $0xa8] sm:$0xff] %v2904
          %2937 = vst [vmem:[%s750 + $0xb0] sm:$0xff] %v2905
          %2938 = vst [vmem:[%s750 + $0xb8] sm:$0xff] %v2906
          %2939 = vst [vmem:[%s750 + $0xc0] sm:$0xff] %v2907
          %2940 = vst [vmem:[%s750 + $0xc8] sm:$0xff] %v2908
          %2941 = vst [vmem:[%s750 + $0xd0] sm:$0xff] %v2909
          %2942 = vst [vmem:[%s750 + $0xd8] sm:$0xff] %v2910
          %2943 = vst [vmem:[%s750 + $0xe0] sm:$0xff] %v2911
          %2944 = vst [vmem:[%s750 + $0xe8] sm:$0xff] %v2912
          %2945 = vst [vmem:[%s750 + $0xf0] sm:$0xff] %v2913
          %2946 = vst [vmem:[%s750 + $0xf8] sm:$0xff] %v2914
        $region154: #{attention_forward.4} parent=133 // pred_fallthru
          _
        %s2947 = sand.u32 %s152, 1
        %s2948 = sand.u32 %s152, 1
        %s2949 = smul.addr %s2948, 256
        %s2950 = scalar_lea.vmem [#allocation8], %s2949
        // Predicated region
        $region155: #{attention_forward.4} parent=133 // pred_check
          %p2951 = pneg %p162
        $region156: #{attention_forward.4} parent=133 // pred_check_branch
          %2953 = sbr.rel (%p2951) target = $region158
        $region157: #{attention_forward.4} parent=133 // pred_region
          %s2954 = smul.u32 32, %s22
          %s2955 = smul.addr %s2954, 2
          %s2956 = sadd.s32 %s21, %s2955
          %s2957 = smul.addr %s20, 64
          %s2958 = sadd.s32 %s2956, %s2957
          %s2959 = smul.addr %s2958, 8
          %s2960 = scalar_lea.vmem %s3, %s2959
          // Predicated region
          $region159: #{attention_forward.4} parent=157 // pred_check
            _
          $region160: #{attention_forward.4} parent=157 // pred_check_branch
            %2962 = sbr.rel (0) target = $region162
          $region161: #{attention_forward.4} parent=157 // pred_region
            // Predicated region
            $region163: #{attention_forward.4} parent=161 // pred_check
              _
            $region164: #{attention_forward.4} parent=161 // pred_check_branch
              %2964 = sbr.rel (0) target = $region166
            $region165: #{attention_forward.4} parent=161 // pred_region
              // Predicated region
              $region178: #{attention_forward.4} parent=165 // pred_check
                _
              $region179: #{attention_forward.4} parent=165 // pred_check_branch
                %3041 = sbr.rel (0) target = $region181
              $region180: #{attention_forward.4} parent=165 // pred_region
                loop: start=0, step=1, limit=1
                $region182: #{attention_forward.4} parent=180 // loop_pre_header
                  _
                $region183: #{attention_forward.4} parent=180 // loop_header
                  %s3043 = sphi 0, %s3047
                  %p3044 = scmp.ge.s32.totalorder %s3043, 1
                  %s3048 = sphi %s2950, %s2950
                  %s3049 = sphi %s2960, %s2960
                $region184: #{attention_forward.4} parent=180 // loop_header_branch
                  %3046 = sbr.rel (%p3044) target = $region188
                $region185: #{attention_forward.4} parent=180 // loop_body
                  %v3050 = vld [vmem:[%s3048] sm:$0xff]
                  %3051 = vst [vmem:[%s3049] sm:$0xff] %v3050
                  %v3052 = vld [vmem:[%s3048 + $0x8] sm:$0xff]
                  %3053 = vst [vmem:[%s3049 + $0x10] sm:$0xff] %v3052
                  %v3054 = vld [vmem:[%s3048 + $0x10] sm:$0xff]
                  %3055 = vst [vmem:[%s3049 + $0x20] sm:$0xff] %v3054
                  %v3056 = vld [vmem:[%s3048 + $0x18] sm:$0xff]
                  %3057 = vst [vmem:[%s3049 + $0x30] sm:$0xff] %v3056
                  %v3058 = vld [vmem:[%s3048 + $0x20] sm:$0xff]
                  %3059 = vst [vmem:[%s3049 + $0x40] sm:$0xff] %v3058
                  %v3060 = vld [vmem:[%s3048 + $0x28] sm:$0xff]
                  %3061 = vst [vmem:[%s3049 + $0x50] sm:$0xff] %v3060
                  %v3062 = vld [vmem:[%s3048 + $0x30] sm:$0xff]
                  %3063 = vst [vmem:[%s3049 + $0x60] sm:$0xff] %v3062
                  %v3064 = vld [vmem:[%s3048 + $0x38] sm:$0xff]
                  %3065 = vst [vmem:[%s3049 + $0x70] sm:$0xff] %v3064
                  %v3066 = vld [vmem:[%s3048 + $0x40] sm:$0xff]
                  %3067 = vst [vmem:[%s3049 + $0x80] sm:$0xff] %v3066
                  %v3068 = vld [vmem:[%s3048 + $0x48] sm:$0xff]
                  %3069 = vst [vmem:[%s3049 + $0x90] sm:$0xff] %v3068
                  %v3070 = vld [vmem:[%s3048 + $0x50] sm:$0xff]
                  %3071 = vst [vmem:[%s3049 + $0xa0] sm:$0xff] %v3070
                  %v3072 = vld [vmem:[%s3048 + $0x58] sm:$0xff]
                  %3073 = vst [vmem:[%s3049 + $0xb0] sm:$0xff] %v3072
                  %v3074 = vld [vmem:[%s3048 + $0x60] sm:$0xff]
                  %3075 = vst [vmem:[%s3049 + $0xc0] sm:$0xff] %v3074
                  %v3076 = vld [vmem:[%s3048 + $0x68] sm:$0xff]
                  %3077 = vst [vmem:[%s3049 + $0xd0] sm:$0xff] %v3076
                  %v3078 = vld [vmem:[%s3048 + $0x70] sm:$0xff]
                  %3079 = vst [vmem:[%s3049 + $0xe0] sm:$0xff] %v3078
                  %v3080 = vld [vmem:[%s3048 + $0x78] sm:$0xff]
                  %3081 = vst [vmem:[%s3049 + $0xf0] sm:$0xff] %v3080
                  %v3082 = vld [vmem:[%s3048 + $0x80] sm:$0xff]
                  %3083 = vst [vmem:[%s3049 + $0x100] sm:$0xff] %v3082
                  %v3084 = vld [vmem:[%s3048 + $0x88] sm:$0xff]
                  %3085 = vst [vmem:[%s3049 + $0x110] sm:$0xff] %v3084
                  %v3086 = vld [vmem:[%s3048 + $0x90] sm:$0xff]
                  %3087 = vst [vmem:[%s3049 + $0x120] sm:$0xff] %v3086
                  %v3088 = vld [vmem:[%s3048 + $0x98] sm:$0xff]
                  %3089 = vst [vmem:[%s3049 + $0x130] sm:$0xff] %v3088
                  %v3090 = vld [vmem:[%s3048 + $0xa0] sm:$0xff]
                  %3091 = vst [vmem:[%s3049 + $0x140] sm:$0xff] %v3090
                  %v3092 = vld [vmem:[%s3048 + $0xa8] sm:$0xff]
                  %3093 = vst [vmem:[%s3049 + $0x150] sm:$0xff] %v3092
                  %v3094 = vld [vmem:[%s3048 + $0xb0] sm:$0xff]
                  %3095 = vst [vmem:[%s3049 + $0x160] sm:$0xff] %v3094
                  %v3096 = vld [vmem:[%s3048 + $0xb8] sm:$0xff]
                  %3097 = vst [vmem:[%s3049 + $0x170] sm:$0xff] %v3096
                  %v3098 = vld [vmem:[%s3048 + $0xc0] sm:$0xff]
                  %3099 = vst [vmem:[%s3049 + $0x180] sm:$0xff] %v3098
                  %v3100 = vld [vmem:[%s3048 + $0xc8] sm:$0xff]
                  %3101 = vst [vmem:[%s3049 + $0x190] sm:$0xff] %v3100
                  %v3102 = vld [vmem:[%s3048 + $0xd0] sm:$0xff]
                  %3103 = vst [vmem:[%s3049 + $0x1a0] sm:$0xff] %v3102
                  %v3104 = vld [vmem:[%s3048 + $0xd8] sm:$0xff]
                  %3105 = vst [vmem:[%s3049 + $0x1b0] sm:$0xff] %v3104
                  %v3106 = vld [vmem:[%s3048 + $0xe0] sm:$0xff]
                  %3107 = vst [vmem:[%s3049 + $0x1c0] sm:$0xff] %v3106
                  %v3108 = vld [vmem:[%s3048 + $0xe8] sm:$0xff]
                  %3109 = vst [vmem:[%s3049 + $0x1d0] sm:$0xff] %v3108
                  %v3110 = vld [vmem:[%s3048 + $0xf0] sm:$0xff]
                  %3111 = vst [vmem:[%s3049 + $0x1e0] sm:$0xff] %v3110
                  %v3112 = vld [vmem:[%s3048 + $0xf8] sm:$0xff]
                  %3113 = vst [vmem:[%s3049 + $0x1f0] sm:$0xff] %v3112
                $region186: #{attention_forward.4} parent=180 // loop_footer
                  %s3047 = sadd.s32 1, %s3043
                $region187: #{attention_forward.4} parent=180 // loop_footer_branch
                  %3042 = sbr.rel target = $region183
                $region188: #{attention_forward.4} parent=180 // loop_exit
                  _
              $region181: #{attention_forward.4} parent=165 // pred_fallthru
                _
              // Predicated region
              $region189: #{attention_forward.4} parent=165 // pred_check
                _
              $region190: #{attention_forward.4} parent=165 // pred_check_branch
                %3115 = sbr.rel target = $region192
              $region191: #{attention_forward.4} parent=165 // pred_region
                _
              $region192: #{attention_forward.4} parent=165 // pred_fallthru
                _
            $region166: #{attention_forward.4} parent=161 // pred_fallthru
              _
            // Predicated region
            $region167: #{attention_forward.4} parent=161 // pred_check
              _
            $region168: #{attention_forward.4} parent=161 // pred_check_branch
              %2966 = sbr.rel target = $region170
            $region169: #{attention_forward.4} parent=161 // pred_region
              loop: start=0, step=1, limit=1
              $region171: #{attention_forward.4} parent=169 // loop_pre_header
                _
              $region172: #{attention_forward.4} parent=169 // loop_header
                %s2969 = sphi 0, %s2973
                %p2970 = scmp.ge.s32.totalorder %s2969, 1
                %s2974 = sphi %s2950, %s2950
                %s2975 = sphi %s2960, %s2960
              $region173: #{attention_forward.4} parent=169 // loop_header_branch
                %2972 = sbr.rel (%p2970) target = $region177
              $region174: #{attention_forward.4} parent=169 // loop_body
                %v2976 = vld [vmem:[%s2974] sm:$0xff]
                %2977 = vst [vmem:[%s2975] sm:$0xff] %v2976
                %v2978 = vld [vmem:[%s2974 + $0x8] sm:$0xff]
                %2979 = vst [vmem:[%s2975 + $0x10] sm:$0xff] %v2978
                %v2980 = vld [vmem:[%s2974 + $0x10] sm:$0xff]
                %2981 = vst [vmem:[%s2975 + $0x20] sm:$0xff] %v2980
                %v2982 = vld [vmem:[%s2974 + $0x18] sm:$0xff]
                %2983 = vst [vmem:[%s2975 + $0x30] sm:$0xff] %v2982
                %v2984 = vld [vmem:[%s2974 + $0x20] sm:$0xff]
                %2985 = vst [vmem:[%s2975 + $0x40] sm:$0xff] %v2984
                %v2986 = vld [vmem:[%s2974 + $0x28] sm:$0xff]
                %2987 = vst [vmem:[%s2975 + $0x50] sm:$0xff] %v2986
                %v2988 = vld [vmem:[%s2974 + $0x30] sm:$0xff]
                %2989 = vst [vmem:[%s2975 + $0x60] sm:$0xff] %v2988
                %v2990 = vld [vmem:[%s2974 + $0x38] sm:$0xff]
                %2991 = vst [vmem:[%s2975 + $0x70] sm:$0xff] %v2990
                %v2992 = vld [vmem:[%s2974 + $0x40] sm:$0xff]
                %2993 = vst [vmem:[%s2975 + $0x80] sm:$0xff] %v2992
                %v2994 = vld [vmem:[%s2974 + $0x48] sm:$0xff]
                %2995 = vst [vmem:[%s2975 + $0x90] sm:$0xff] %v2994
                %v2996 = vld [vmem:[%s2974 + $0x50] sm:$0xff]
                %2997 = vst [vmem:[%s2975 + $0xa0] sm:$0xff] %v2996
                %v2998 = vld [vmem:[%s2974 + $0x58] sm:$0xff]
                %2999 = vst [vmem:[%s2975 + $0xb0] sm:$0xff] %v2998
                %v3000 = vld [vmem:[%s2974 + $0x60] sm:$0xff]
                %3001 = vst [vmem:[%s2975 + $0xc0] sm:$0xff] %v3000
                %v3002 = vld [vmem:[%s2974 + $0x68] sm:$0xff]
                %3003 = vst [vmem:[%s2975 + $0xd0] sm:$0xff] %v3002
                %v3004 = vld [vmem:[%s2974 + $0x70] sm:$0xff]
                %3005 = vst [vmem:[%s2975 + $0xe0] sm:$0xff] %v3004
                %v3006 = vld [vmem:[%s2974 + $0x78] sm:$0xff]
                %3007 = vst [vmem:[%s2975 + $0xf0] sm:$0xff] %v3006
                %v3008 = vld [vmem:[%s2974 + $0x80] sm:$0xff]
                %3009 = vst [vmem:[%s2975 + $0x100] sm:$0xff] %v3008
                %v3010 = vld [vmem:[%s2974 + $0x88] sm:$0xff]
                %3011 = vst [vmem:[%s2975 + $0x110] sm:$0xff] %v3010
                %v3012 = vld [vmem:[%s2974 + $0x90] sm:$0xff]
                %3013 = vst [vmem:[%s2975 + $0x120] sm:$0xff] %v3012
                %v3014 = vld [vmem:[%s2974 + $0x98] sm:$0xff]
                %3015 = vst [vmem:[%s2975 + $0x130] sm:$0xff] %v3014
                %v3016 = vld [vmem:[%s2974 + $0xa0] sm:$0xff]
                %3017 = vst [vmem:[%s2975 + $0x140] sm:$0xff] %v3016
                %v3018 = vld [vmem:[%s2974 + $0xa8] sm:$0xff]
                %3019 = vst [vmem:[%s2975 + $0x150] sm:$0xff] %v3018
                %v3020 = vld [vmem:[%s2974 + $0xb0] sm:$0xff]
                %3021 = vst [vmem:[%s2975 + $0x160] sm:$0xff] %v3020
                %v3022 = vld [vmem:[%s2974 + $0xb8] sm:$0xff]
                %3023 = vst [vmem:[%s2975 + $0x170] sm:$0xff] %v3022
                %v3024 = vld [vmem:[%s2974 + $0xc0] sm:$0xff]
                %3025 = vst [vmem:[%s2975 + $0x180] sm:$0xff] %v3024
                %v3026 = vld [vmem:[%s2974 + $0xc8] sm:$0xff]
                %3027 = vst [vmem:[%s2975 + $0x190] sm:$0xff] %v3026
                %v3028 = vld [vmem:[%s2974 + $0xd0] sm:$0xff]
                %3029 = vst [vmem:[%s2975 + $0x1a0] sm:$0xff] %v3028
                %v3030 = vld [vmem:[%s2974 + $0xd8] sm:$0xff]
                %3031 = vst [vmem:[%s2975 + $0x1b0] sm:$0xff] %v3030
                %v3032 = vld [vmem:[%s2974 + $0xe0] sm:$0xff]
                %3033 = vst [vmem:[%s2975 + $0x1c0] sm:$0xff] %v3032
                %v3034 = vld [vmem:[%s2974 + $0xe8] sm:$0xff]
                %3035 = vst [vmem:[%s2975 + $0x1d0] sm:$0xff] %v3034
                %v3036 = vld [vmem:[%s2974 + $0xf0] sm:$0xff]
                %3037 = vst [vmem:[%s2975 + $0x1e0] sm:$0xff] %v3036
                %v3038 = vld [vmem:[%s2974 + $0xf8] sm:$0xff]
                %3039 = vst [vmem:[%s2975 + $0x1f0] sm:$0xff] %v3038
              $region175: #{attention_forward.4} parent=169 // loop_footer
                %s2973 = sadd.s32 1, %s2969
              $region176: #{attention_forward.4} parent=169 // loop_footer_branch
                %2968 = sbr.rel target = $region172
              $region177: #{attention_forward.4} parent=169 // loop_exit
                _
            $region170: #{attention_forward.4} parent=161 // pred_fallthru
              _
          $region162: #{attention_forward.4} parent=157 // pred_fallthru
            _
          %3116 = vnop
        $region158: #{attention_forward.4} parent=133 // pred_fallthru
          _
      $region134: #{attention_forward.4} parent=5 // pred_fallthru
        _
      %p3117 = scmp.le.s32.totalorder 2, %s9
      // Predicated region
      $region193: #{attention_forward.4} parent=5 // pred_check
        %p3118 = pneg %p3117
      $region194: #{attention_forward.4} parent=5 // pred_check_branch
        %3120 = sbr.rel (%p3118) target = $region196
      $region195: #{attention_forward.4} parent=5 // pred_region
        %s3121 = ssub.s32 %s9, 2
        // Predicated region
        $region197: #{attention_forward.4} parent=195 // pred_check
          %p3122 = pneg %p168
        $region198: #{attention_forward.4} parent=195 // pred_check_branch
          %3124 = sbr.rel (%p3122) target = $region200
        $region199: #{attention_forward.4} parent=195 // pred_region
          %s3125 = sand.u32 %s153, 1
          %s3126 = sand.u32 %s153, 1
          %s3127 = smul.addr %s3126, 256
          %s3128 = scalar_lea.vmem [#allocation8], %s3127
        $region200: #{attention_forward.4} parent=195 // pred_fallthru
          _
      $region196: #{attention_forward.4} parent=5 // pred_fallthru
        _
    $region6: #{attention_forward.4} parent=1 // loop_footer
      %s13 = sadd.s32 1, %s9
    $region7: #{attention_forward.4} parent=1 // loop_footer_branch
      %8 = sbr.rel target = $region3
    $region8: #{attention_forward.4} parent=1 // loop_exit
      _

</llo_original>
